<compile_context>
chip_gen: v5e
topology: v5e:2x2
jax: 0.10.0
libtpu: 0.0.40
codegen_flags: <defaults>
</compile_context>

<pallas_src>
import functools

import jax
import jax.numpy as jnp
from jax.experimental import pallas as pl
from jax.experimental.pallas import tpu as pltpu


HIDDEN = 64
CHUNK = 256          # lane-columns per inner compute pass (multiple of 128)
MAX_TILE_N = 2048    # lane-columns per grid step (DMA tile), multiple of CHUNK
KPAD = 8             # fc1 contraction depth after zero-padding 3 -> 8


def _round_up(x, m):
    return ((x + m - 1) // m) * m


def _cdiv(a, b):
    return (a + b - 1) // b


def _make_kernel(scales, tile_n, chunk):
    """Build the kernel body with static ABU scales / tiling baked in."""
    s_sin, s_tanh, s_swish, s_quad, s_softplus = (float(s) for s in scales)
    # Shared-exp fast path needs the tanh/swish/softplus scales to coincide
    # (default: all 1.0).
    share_exp = (s_tanh == s_swish) and (s_swish == s_softplus)
    n_chunks = tile_n // chunk

    def kernel(abu_w_ref,                 # SMEM (5,) softmax blend weights
               xT_ref,                    # (KPAD, tile_n)  feature-major input
               w1_ref, b1_ref,            # (64, KPAD), (64, 1)
               w2_ref, b2_ref,            # (64, 64),   (64, 1)
               w3_ref, b3_ref,            # (3, 64),    (3, 1)
               o_ref):                    # (3, tile_n) feature-major output
        # Hoist the 5 SMEM scalar reads once per grid step (live in sregs).
        a_sin = abu_w_ref[0]
        a_tanh = abu_w_ref[1]
        a_swish = abu_w_ref[2]
        a_quad = abu_w_ref[3]
        a_softplus = abu_w_ref[4]
        # Pre-fold the quadratic scale into the blend weight (one scalar mul).
        c_quad = a_quad if s_quad == 1.0 else a_quad * (s_quad * s_quad)

        def _recip(d):
            # approx EUP reciprocal + one Newton step -> ~f32 accurate.
            r = pl.reciprocal(d, approx=True)
            return r * (2.0 - d * r)

        def abu(h):
            if share_exp:
                z = h if s_swish == 1.0 else s_swish * h
                pos = z >= 0.0
                e = jnp.exp(-jnp.abs(z))                  # shared exponential
                # swish: z * sigmoid(z)
                r = _recip(1.0 + e)
                sig = jnp.where(pos, r, 1.0 - r)
                out = a_swish * (z * sig)
                # softplus: max(z,0) + log(1 + e)
                out = out + a_softplus * (jnp.maximum(z, 0.0) + jnp.log(1.0 + e))
                # tanh from the same exp: tanh(z) = sign(z)*(1-e^2)/(1+e^2)
                e2 = e * e
                t = (1.0 - e2) * _recip(1.0 + e2)
                out = out + a_tanh * jnp.where(pos, t, -t)
            else:
                # General path: independent scales, separate transcendentals.
                zw = s_swish * h
                ew = jnp.exp(-jnp.abs(zw))
                rw = _recip(1.0 + ew)
                sigw = jnp.where(zw >= 0.0, rw, 1.0 - rw)
                out = a_swish * (zw * sigw)
                zp = s_softplus * h
                ep = jnp.exp(-jnp.abs(zp))
                out = out + a_softplus * (jnp.maximum(zp, 0.0) + jnp.log(1.0 + ep))
                out = out + a_tanh * jnp.tanh(s_tanh * h)
            # sin term
            hs = h if s_sin == 1.0 else s_sin * h
            out = out + a_sin * jnp.sin(hs)
            # quadratic term (scale pre-folded into c_quad)
            out = out + c_quad * (h * h)
            return out

        # Inner lane-chunk loop: bounds the live activation working set so the
        # ABU intermediates stay in vregs instead of spilling to VMEM.
        @pl.loop(0, n_chunks)
        def _(c):
            col = pl.multiple_of(c * chunk, chunk)
            xc = xT_ref[:, pl.ds(col, chunk)]                      # (KPAD, chunk)
            # fc1 on the MXU (K padded to 8 with zeros on the host).
            h = jnp.dot(w1_ref[...], xc,
                        preferred_element_type=jnp.float32) + b1_ref[...]
            h = abu(h)
            # fc2 (64x64) on the MXU.
            h = jnp.dot(w2_ref[...], h,
                        preferred_element_type=jnp.float32) + b2_ref[...]
            h = abu(h)
            # fc3 (3x64): small MXU matmul, output stays lane-dense (3, chunk).
            h = jnp.dot(w3_ref[...], h,
                        preferred_element_type=jnp.float32) + b3_ref[...]
            o_ref[:, pl.ds(col, chunk)] = abu(h).astype(o_ref.dtype)

    return kernel


@functools.partial(jax.jit, static_argnames=("scales", "tile_n"))
def navier_stokes_forward(x, params, scales=(1.0, 1.0, 1.0, 1.0, 1.0),
                          tile_n=None):
    """x: f32[N, 3] (any N). Returns f32[N, 3]."""
    N, F = x.shape
    assert F == 3
    abu_w, w1, b1, w2, b2, w3, b3 = params

    if tile_n is None:
        # Cap the tile at ceil(N/2) (rounded to CHUNK) so the grid has >= 2
        # steps whenever N allows: v7x gets both TensorCores via
        # dimension_semantics=("parallel",) and I/O DMA overlaps compute.
        tile_n = min(MAX_TILE_N, max(CHUNK, _round_up(_cdiv(N, 2), CHUNK)))
    else:
        tile_n = max(CHUNK, _round_up(int(tile_n), CHUNK))
    n_pad = _round_up(N, tile_n)
    grid = (n_pad // tile_n,)

    # Feature-major, lane-dense layout.  Features are zero-padded 3 -> KPAD so
    # fc1's contraction is a full sublane tile for the MXU; padding columns
    # are zeros and sliced off at the end.
    # NOTE: for large N, keeping the surrounding model feature-major
    # end-to-end would remove these two wrapper HBM passes entirely.
    xT = jnp.pad(x.T, ((0, KPAD - F), (0, n_pad - N)))
    w1p = jnp.pad(w1, ((0, 0), (0, KPAD - F)))

    act_elems = n_pad * (HIDDEN + HIDDEN + 3)
    flops = (2 * n_pad * (KPAD * HIDDEN + HIDDEN * HIDDEN + HIDDEN * 3)
             + 25 * act_elems)                       # matmuls + ABU elementwise
    transc = 5 * act_elems                           # sin, exp, log, 2x rcp
    bytes_acc = 4 * (KPAD * n_pad + 3 * n_pad + 5    # I/O (weights stay resident:
                     + HIDDEN * KPAD + HIDDEN        #  constant index_map)
                     + HIDDEN * HIDDEN + HIDDEN
                     + 3 * HIDDEN + 3)

    out_T = pl.pallas_call(
        _make_kernel(scales, tile_n, CHUNK),
        out_shape=jax.ShapeDtypeStruct((3, n_pad), jnp.float32),
        grid_spec=pltpu.PrefetchScalarGridSpec(
            num_scalar_prefetch=0,
            grid=grid,
            in_specs=[
                pl.BlockSpec(memory_space=pltpu.MemorySpace.SMEM),    # ABU blend weights (5,)
                pl.BlockSpec((KPAD, tile_n), lambda i: (0, i)),       # x^T tile
                pl.BlockSpec((HIDDEN, KPAD), lambda i: (0, 0)),       # w1 (padded)
                pl.BlockSpec((HIDDEN, 1), lambda i: (0, 0)),          # b1
                pl.BlockSpec((HIDDEN, HIDDEN), lambda i: (0, 0)),     # w2
                pl.BlockSpec((HIDDEN, 1), lambda i: (0, 0)),          # b2
                pl.BlockSpec((3, HIDDEN), lambda i: (0, 0)),          # w3
                pl.BlockSpec((3, 1), lambda i: (0, 0)),               # b3
            ],
            out_specs=pl.BlockSpec((3, tile_n), lambda i: (0, i)),
        ),
        compiler_params=pltpu.CompilerParams(
            dimension_semantics=("parallel",)),
        cost_estimate=pl.CostEstimate(
            flops=int(flops),
            transcendentals=int(transc),
            bytes_accessed=int(bytes_acc)),
    )(abu_w, xT, w1p, b1, w2, b2, w3, b3)

    return out_T[:, :N].T


def init_params(key):
    """Deterministic init mirroring the module's shapes (weights stored (out, in))."""
    k1, k2, k3, k4, k5, k6 = jax.random.split(key, 6)

    def linear(kw, kb, fan_in, fan_out):
        bound = 1.0 / jnp.sqrt(jnp.float32(fan_in))
        w = jax.random.uniform(kw, (fan_out, fan_in), jnp.float32, -bound, bound)
        b = jax.random.uniform(kb, (fan_out, 1), jnp.float32, -bound, bound)
        return w, b

    w1, b1 = linear(k1, k2, 3, HIDDEN)
    w2, b2 = linear(k3, k4, HIDDEN, HIDDEN)
    w3, b3 = linear(k5, k6, HIDDEN, 3)

    # ABU: logits initialized to 0 -> equal softmax blend weights of 0.2 each.
    abu_w = jax.nn.softmax(jnp.zeros((5,), jnp.float32))
    return abu_w, w1, b1, w2, b2, w3, b3


def reference_forward(x, params, scales=(1.0, 1.0, 1.0, 1.0, 1.0)):
    """Pure-JAX reference (torch-equivalent math) for correctness checking."""
    abu_w, w1, b1, w2, b2, w3, b3 = params
    s = scales

    def abu(h):
        sw = s[2] * h
        return (abu_w[0] * jnp.sin(s[0] * h)
                + abu_w[1] * jnp.tanh(s[1] * h)
                + abu_w[2] * (sw * jax.nn.sigmoid(sw))
                + abu_w[3] * jnp.square(s[3] * h)
                + abu_w[4] * jax.nn.softplus(s[4] * h))

    h = abu(x @ w1.T + b1[:, 0])
    h = abu(h @ w2.T + b2[:, 0])
    return abu(h @ w3.T + b3[:, 0])


if __name__ == "__main__":
    key = jax.random.PRNGKey(0)
    kx, kp = jax.random.split(key)

    N = 1024  # number of (x, y, t) collocation points
    x = jax.random.normal(kx, (N, 3), jnp.float32)
    params = init_params(kp)

    out = navier_stokes_forward(x, params)
    out = jax.block_until_ready(out)

    ref = reference_forward(x, params)
    assert out.shape == (N, 3)
    # Newton-refined reciprocal keeps the kernel within tight tolerance.
    assert jnp.allclose(out, ref, atol=1e-3, rtol=1e-3), "mismatch vs reference"
    print("KERNEL_OK")
</pallas_src>

<mosaic_0001>
module attributes {stable_mosaic.version = 11 : i64} {
  func.func @kernel(%arg0: i32, %arg1: memref<5xf32, #tpu.memory_space<smem>>, %arg2: memref<8x512xf32, #tpu.memory_space<vmem>>, %arg3: memref<64x8xf32, #tpu.memory_space<vmem>>, %arg4: memref<64x1xf32, #tpu.memory_space<vmem>>, %arg5: memref<64x64xf32, #tpu.memory_space<vmem>>, %arg6: memref<64x1xf32, #tpu.memory_space<vmem>>, %arg7: memref<3x64xf32, #tpu.memory_space<vmem>>, %arg8: memref<3x1xf32, #tpu.memory_space<vmem>>, %arg9: memref<3x512xf32, #tpu.memory_space<vmem>>) attributes {dimension_semantics = [#tpu.dimension_semantics<parallel>], iteration_bounds = array<i64: 2>, scalar_prefetch = 0 : i64, scratch_operands = 0 : i64, tpu.core_type = #tpu.core_type<tc>, window_params = [{transform_indices = @transform_0, window_bounds = array<i64: 5>}, {transform_indices = @transform_1, window_bounds = array<i64: 8, 512>}, {pipeline_mode = #tpu.pipeline_mode<synchronous>, transform_indices = @transform_2, window_bounds = array<i64: 64, 8>}, {pipeline_mode = #tpu.pipeline_mode<synchronous>, transform_indices = @transform_3, window_bounds = array<i64: 64, 1>}, {pipeline_mode = #tpu.pipeline_mode<synchronous>, transform_indices = @transform_4, window_bounds = array<i64: 64, 64>}, {pipeline_mode = #tpu.pipeline_mode<synchronous>, transform_indices = @transform_5, window_bounds = array<i64: 64, 1>}, {pipeline_mode = #tpu.pipeline_mode<synchronous>, transform_indices = @transform_6, window_bounds = array<i64: 3, 64>}, {pipeline_mode = #tpu.pipeline_mode<synchronous>, transform_indices = @transform_7, window_bounds = array<i64: 3, 1>}, {transform_indices = @transform_8, window_bounds = array<i64: 3, 512>}]} {
    %c0 = arith.constant 0 : index
    %0 = memref.load %arg1[%c0] : memref<5xf32, #tpu.memory_space<smem>>
    %c1 = arith.constant 1 : index
    %1 = memref.load %arg1[%c1] : memref<5xf32, #tpu.memory_space<smem>>
    %c2 = arith.constant 2 : index
    %2 = memref.load %arg1[%c2] : memref<5xf32, #tpu.memory_space<smem>>
    %c3 = arith.constant 3 : index
    %3 = memref.load %arg1[%c3] : memref<5xf32, #tpu.memory_space<smem>>
    %c4 = arith.constant 4 : index
    %4 = memref.load %arg1[%c4] : memref<5xf32, #tpu.memory_space<smem>>
    %c0_i32 = arith.constant 0 : i32
    %c2_i32 = arith.constant 2 : i32
    %5 = arith.addi %c0_i32, %c2_i32 : i32
    %c1_i32 = arith.constant 1 : i32
    scf.for %arg10 = %c0_i32 to %5 step %c1_i32  : i32 {
      %c1_i32_1 = arith.constant 1 : i32
      %6 = arith.muli %arg10, %c1_i32_1 : i32
      %c0_i32_2 = arith.constant 0 : i32
      %7 = arith.addi %c0_i32_2, %6 : i32
      %c256_i32 = arith.constant 256 : i32
      %8 = arith.muli %7, %c256_i32 : i32
      %9 = tpu.assume_multiple %8, 256 : i32
      %c0_3 = arith.constant 0 : index
      %10 = arith.index_cast %9 : i32 to index
      %11 = vector.load %arg2[%c0_3, %10] : memref<8x512xf32, #tpu.memory_space<vmem>>, vector<8x256xf32>
      %c0_4 = arith.constant 0 : index
      %c0_5 = arith.constant 0 : index
      %12 = vector.load %arg3[%c0_4, %c0_5] : memref<64x8xf32, #tpu.memory_space<vmem>>, vector<64x8xf32>
      %cst = arith.constant dense<0.000000e+00> : vector<64x256xf32>
      %13 = tpu.matmul %12, %11, %cst {dimension_numbers = #tpu.dot_dimension_numbers<[1], [0], [0], [1], [0, 0, 1, 1], [], []>} : vector<64x8xf32>, vector<8x256xf32>, vector<64x256xf32> -> vector<64x256xf32>
      %c0_6 = arith.constant 0 : index
      %c0_7 = arith.constant 0 : index
      %14 = vector.load %arg4[%c0_6, %c0_7] : memref<64x1xf32, #tpu.memory_space<vmem>>, vector<64x1xf32>
      %15 = vector.broadcast %14 : vector<64x1xf32> to vector<64x256xf32>
      %16 = arith.addf %13, %15 : vector<64x256xf32>
      %cst_8 = arith.constant 0.000000e+00 : f32
      %17 = vector.broadcast %cst_8 : f32 to vector<64x256xf32>
      %18 = arith.cmpf oge, %16, %17 : vector<64x256xf32>
      %19 = math.absf %16 : vector<64x256xf32>
      %cst_9 = arith.constant 0.000000e+00 : f32
      %20 = vector.broadcast %cst_9 : f32 to vector<64x256xf32>
      %21 = arith.subf %20, %19 : vector<64x256xf32>
      %22 = math.exp %21 : vector<64x256xf32>
      %cst_10 = arith.constant 1.000000e+00 : f32
      %23 = vector.broadcast %cst_10 : f32 to vector<64x256xf32>
      %24 = arith.addf %23, %22 : vector<64x256xf32>
      %25 = tpu.reciprocal %24 {approx = true} : vector<64x256xf32> -> vector<64x256xf32>
      %26 = arith.mulf %24, %25 : vector<64x256xf32>
      %cst_11 = arith.constant 2.000000e+00 : f32
      %27 = vector.broadcast %cst_11 : f32 to vector<64x256xf32>
      %28 = arith.subf %27, %26 : vector<64x256xf32>
      %29 = arith.mulf %25, %28 : vector<64x256xf32>
      %cst_12 = arith.constant 1.000000e+00 : f32
      %30 = vector.broadcast %cst_12 : f32 to vector<64x256xf32>
      %31 = arith.subf %30, %29 : vector<64x256xf32>
      %32 = arith.select %18, %29, %31 : vector<64x256xi1>, vector<64x256xf32>
      %33 = arith.mulf %16, %32 : vector<64x256xf32>
      %34 = vector.broadcast %2 : f32 to vector<64x256xf32>
      %35 = arith.mulf %34, %33 : vector<64x256xf32>
      %cst_13 = arith.constant 0.000000e+00 : f32
      %36 = vector.broadcast %cst_13 : f32 to vector<64x256xf32>
      %37 = arith.maximumf %16, %36 : vector<64x256xf32>
      %cst_14 = arith.constant 1.000000e+00 : f32
      %38 = vector.broadcast %cst_14 : f32 to vector<64x256xf32>
      %39 = arith.addf %38, %22 : vector<64x256xf32>
      %40 = math.log %39 : vector<64x256xf32>
      %41 = arith.addf %37, %40 : vector<64x256xf32>
      %42 = vector.broadcast %4 : f32 to vector<64x256xf32>
      %43 = arith.mulf %42, %41 : vector<64x256xf32>
      %44 = arith.addf %35, %43 : vector<64x256xf32>
      %45 = arith.mulf %22, %22 : vector<64x256xf32>
      %cst_15 = arith.constant 1.000000e+00 : f32
      %46 = vector.broadcast %cst_15 : f32 to vector<64x256xf32>
      %47 = arith.subf %46, %45 : vector<64x256xf32>
      %cst_16 = arith.constant 1.000000e+00 : f32
      %48 = vector.broadcast %cst_16 : f32 to vector<64x256xf32>
      %49 = arith.addf %48, %45 : vector<64x256xf32>
      %50 = tpu.reciprocal %49 {approx = true} : vector<64x256xf32> -> vector<64x256xf32>
      %51 = arith.mulf %49, %50 : vector<64x256xf32>
      %cst_17 = arith.constant 2.000000e+00 : f32
      %52 = vector.broadcast %cst_17 : f32 to vector<64x256xf32>
      %53 = arith.subf %52, %51 : vector<64x256xf32>
      %54 = arith.mulf %50, %53 : vector<64x256xf32>
      %55 = arith.mulf %47, %54 : vector<64x256xf32>
      %cst_18 = arith.constant 0.000000e+00 : f32
      %56 = vector.broadcast %cst_18 : f32 to vector<64x256xf32>
      %57 = arith.subf %56, %55 : vector<64x256xf32>
      %58 = arith.select %18, %55, %57 : vector<64x256xi1>, vector<64x256xf32>
      %59 = vector.broadcast %1 : f32 to vector<64x256xf32>
      %60 = arith.mulf %59, %58 : vector<64x256xf32>
      %61 = arith.addf %44, %60 : vector<64x256xf32>
      %62 = math.sin %16 : vector<64x256xf32>
      %63 = vector.broadcast %0 : f32 to vector<64x256xf32>
      %64 = arith.mulf %63, %62 : vector<64x256xf32>
      %65 = arith.addf %61, %64 : vector<64x256xf32>
      %66 = arith.mulf %16, %16 : vector<64x256xf32>
      %67 = vector.broadcast %3 : f32 to vector<64x256xf32>
      %68 = arith.mulf %67, %66 : vector<64x256xf32>
      %69 = arith.addf %65, %68 : vector<64x256xf32>
      %c0_19 = arith.constant 0 : index
      %c0_20 = arith.constant 0 : index
      %70 = vector.load %arg5[%c0_19, %c0_20] : memref<64x64xf32, #tpu.memory_space<vmem>>, vector<64x64xf32>
      %cst_21 = arith.constant dense<0.000000e+00> : vector<64x256xf32>
      %71 = tpu.matmul %70, %69, %cst_21 {dimension_numbers = #tpu.dot_dimension_numbers<[1], [0], [0], [1], [0, 0, 1, 1], [], []>} : vector<64x64xf32>, vector<64x256xf32>, vector<64x256xf32> -> vector<64x256xf32>
      %c0_22 = arith.constant 0 : index
      %c0_23 = arith.constant 0 : index
      %72 = vector.load %arg6[%c0_22, %c0_23] : memref<64x1xf32, #tpu.memory_space<vmem>>, vector<64x1xf32>
      %73 = vector.broadcast %72 : vector<64x1xf32> to vector<64x256xf32>
      %74 = arith.addf %71, %73 : vector<64x256xf32>
      %cst_24 = arith.constant 0.000000e+00 : f32
      %75 = vector.broadcast %cst_24 : f32 to vector<64x256xf32>
      %76 = arith.cmpf oge, %74, %75 : vector<64x256xf32>
      %77 = math.absf %74 : vector<64x256xf32>
      %cst_25 = arith.constant 0.000000e+00 : f32
      %78 = vector.broadcast %cst_25 : f32 to vector<64x256xf32>
      %79 = arith.subf %78, %77 : vector<64x256xf32>
      %80 = math.exp %79 : vector<64x256xf32>
      %cst_26 = arith.constant 1.000000e+00 : f32
      %81 = vector.broadcast %cst_26 : f32 to vector<64x256xf32>
      %82 = arith.addf %81, %80 : vector<64x256xf32>
      %83 = tpu.reciprocal %82 {approx = true} : vector<64x256xf32> -> vector<64x256xf32>
      %84 = arith.mulf %82, %83 : vector<64x256xf32>
      %cst_27 = arith.constant 2.000000e+00 : f32
      %85 = vector.broadcast %cst_27 : f32 to vector<64x256xf32>
      %86 = arith.subf %85, %84 : vector<64x256xf32>
      %87 = arith.mulf %83, %86 : vector<64x256xf32>
      %cst_28 = arith.constant 1.000000e+00 : f32
      %88 = vector.broadcast %cst_28 : f32 to vector<64x256xf32>
      %89 = arith.subf %88, %87 : vector<64x256xf32>
      %90 = arith.select %76, %87, %89 : vector<64x256xi1>, vector<64x256xf32>
      %91 = arith.mulf %74, %90 : vector<64x256xf32>
      %92 = vector.broadcast %2 : f32 to vector<64x256xf32>
      %93 = arith.mulf %92, %91 : vector<64x256xf32>
      %cst_29 = arith.constant 0.000000e+00 : f32
      %94 = vector.broadcast %cst_29 : f32 to vector<64x256xf32>
      %95 = arith.maximumf %74, %94 : vector<64x256xf32>
      %cst_30 = arith.constant 1.000000e+00 : f32
      %96 = vector.broadcast %cst_30 : f32 to vector<64x256xf32>
      %97 = arith.addf %96, %80 : vector<64x256xf32>
      %98 = math.log %97 : vector<64x256xf32>
      %99 = arith.addf %95, %98 : vector<64x256xf32>
      %100 = vector.broadcast %4 : f32 to vector<64x256xf32>
      %101 = arith.mulf %100, %99 : vector<64x256xf32>
      %102 = arith.addf %93, %101 : vector<64x256xf32>
      %103 = arith.mulf %80, %80 : vector<64x256xf32>
      %cst_31 = arith.constant 1.000000e+00 : f32
      %104 = vector.broadcast %cst_31 : f32 to vector<64x256xf32>
      %105 = arith.subf %104, %103 : vector<64x256xf32>
      %cst_32 = arith.constant 1.000000e+00 : f32
      %106 = vector.broadcast %cst_32 : f32 to vector<64x256xf32>
      %107 = arith.addf %106, %103 : vector<64x256xf32>
      %108 = tpu.reciprocal %107 {approx = true} : vector<64x256xf32> -> vector<64x256xf32>
      %109 = arith.mulf %107, %108 : vector<64x256xf32>
      %cst_33 = arith.constant 2.000000e+00 : f32
      %110 = vector.broadcast %cst_33 : f32 to vector<64x256xf32>
      %111 = arith.subf %110, %109 : vector<64x256xf32>
      %112 = arith.mulf %108, %111 : vector<64x256xf32>
      %113 = arith.mulf %105, %112 : vector<64x256xf32>
      %cst_34 = arith.constant 0.000000e+00 : f32
      %114 = vector.broadcast %cst_34 : f32 to vector<64x256xf32>
      %115 = arith.subf %114, %113 : vector<64x256xf32>
      %116 = arith.select %76, %113, %115 : vector<64x256xi1>, vector<64x256xf32>
      %117 = vector.broadcast %1 : f32 to vector<64x256xf32>
      %118 = arith.mulf %117, %116 : vector<64x256xf32>
      %119 = arith.addf %102, %118 : vector<64x256xf32>
      %120 = math.sin %74 : vector<64x256xf32>
      %121 = vector.broadcast %0 : f32 to vector<64x256xf32>
      %122 = arith.mulf %121, %120 : vector<64x256xf32>
      %123 = arith.addf %119, %122 : vector<64x256xf32>
      %124 = arith.mulf %74, %74 : vector<64x256xf32>
      %125 = vector.broadcast %3 : f32 to vector<64x256xf32>
      %126 = arith.mulf %125, %124 : vector<64x256xf32>
      %127 = arith.addf %123, %126 : vector<64x256xf32>
      %c0_35 = arith.constant 0 : index
      %c0_36 = arith.constant 0 : index
      %128 = vector.load %arg7[%c0_35, %c0_36] : memref<3x64xf32, #tpu.memory_space<vmem>>, vector<3x64xf32>
      %cst_37 = arith.constant dense<0.000000e+00> : vector<3x256xf32>
      %129 = tpu.matmul %128, %127, %cst_37 {dimension_numbers = #tpu.dot_dimension_numbers<[1], [0], [0], [1], [0, 0, 1, 1], [], []>} : vector<3x64xf32>, vector<64x256xf32>, vector<3x256xf32> -> vector<3x256xf32>
      %c0_38 = arith.constant 0 : index
      %c0_39 = arith.constant 0 : index
      %130 = vector.load %arg8[%c0_38, %c0_39] : memref<3x1xf32, #tpu.memory_space<vmem>>, vector<3x1xf32>
      %131 = vector.broadcast %130 : vector<3x1xf32> to vector<3x256xf32>
      %132 = arith.addf %129, %131 : vector<3x256xf32>
      %cst_40 = arith.constant 0.000000e+00 : f32
      %133 = vector.broadcast %cst_40 : f32 to vector<3x256xf32>
      %134 = arith.cmpf oge, %132, %133 : vector<3x256xf32>
      %135 = math.absf %132 : vector<3x256xf32>
      %cst_41 = arith.constant 0.000000e+00 : f32
      %136 = vector.broadcast %cst_41 : f32 to vector<3x256xf32>
      %137 = arith.subf %136, %135 : vector<3x256xf32>
      %138 = math.exp %137 : vector<3x256xf32>
      %cst_42 = arith.constant 1.000000e+00 : f32
      %139 = vector.broadcast %cst_42 : f32 to vector<3x256xf32>
      %140 = arith.addf %139, %138 : vector<3x256xf32>
      %141 = tpu.reciprocal %140 {approx = true} : vector<3x256xf32> -> vector<3x256xf32>
      %142 = arith.mulf %140, %141 : vector<3x256xf32>
      %cst_43 = arith.constant 2.000000e+00 : f32
      %143 = vector.broadcast %cst_43 : f32 to vector<3x256xf32>
      %144 = arith.subf %143, %142 : vector<3x256xf32>
      %145 = arith.mulf %141, %144 : vector<3x256xf32>
      %cst_44 = arith.constant 1.000000e+00 : f32
      %146 = vector.broadcast %cst_44 : f32 to vector<3x256xf32>
      %147 = arith.subf %146, %145 : vector<3x256xf32>
      %148 = arith.select %134, %145, %147 : vector<3x256xi1>, vector<3x256xf32>
      %149 = arith.mulf %132, %148 : vector<3x256xf32>
      %150 = vector.broadcast %2 : f32 to vector<3x256xf32>
      %151 = arith.mulf %150, %149 : vector<3x256xf32>
      %cst_45 = arith.constant 0.000000e+00 : f32
      %152 = vector.broadcast %cst_45 : f32 to vector<3x256xf32>
      %153 = arith.maximumf %132, %152 : vector<3x256xf32>
      %cst_46 = arith.constant 1.000000e+00 : f32
      %154 = vector.broadcast %cst_46 : f32 to vector<3x256xf32>
      %155 = arith.addf %154, %138 : vector<3x256xf32>
      %156 = math.log %155 : vector<3x256xf32>
      %157 = arith.addf %153, %156 : vector<3x256xf32>
      %158 = vector.broadcast %4 : f32 to vector<3x256xf32>
      %159 = arith.mulf %158, %157 : vector<3x256xf32>
      %160 = arith.addf %151, %159 : vector<3x256xf32>
      %161 = arith.mulf %138, %138 : vector<3x256xf32>
      %cst_47 = arith.constant 1.000000e+00 : f32
      %162 = vector.broadcast %cst_47 : f32 to vector<3x256xf32>
      %163 = arith.subf %162, %161 : vector<3x256xf32>
      %cst_48 = arith.constant 1.000000e+00 : f32
      %164 = vector.broadcast %cst_48 : f32 to vector<3x256xf32>
      %165 = arith.addf %164, %161 : vector<3x256xf32>
      %166 = tpu.reciprocal %165 {approx = true} : vector<3x256xf32> -> vector<3x256xf32>
      %167 = arith.mulf %165, %166 : vector<3x256xf32>
      %cst_49 = arith.constant 2.000000e+00 : f32
      %168 = vector.broadcast %cst_49 : f32 to vector<3x256xf32>
      %169 = arith.subf %168, %167 : vector<3x256xf32>
      %170 = arith.mulf %166, %169 : vector<3x256xf32>
      %171 = arith.mulf %163, %170 : vector<3x256xf32>
      %cst_50 = arith.constant 0.000000e+00 : f32
      %172 = vector.broadcast %cst_50 : f32 to vector<3x256xf32>
      %173 = arith.subf %172, %171 : vector<3x256xf32>
      %174 = arith.select %134, %171, %173 : vector<3x256xi1>, vector<3x256xf32>
      %175 = vector.broadcast %1 : f32 to vector<3x256xf32>
      %176 = arith.mulf %175, %174 : vector<3x256xf32>
      %177 = arith.addf %160, %176 : vector<3x256xf32>
      %178 = math.sin %132 : vector<3x256xf32>
      %179 = vector.broadcast %0 : f32 to vector<3x256xf32>
      %180 = arith.mulf %179, %178 : vector<3x256xf32>
      %181 = arith.addf %177, %180 : vector<3x256xf32>
      %182 = arith.mulf %132, %132 : vector<3x256xf32>
      %183 = vector.broadcast %3 : f32 to vector<3x256xf32>
      %184 = arith.mulf %183, %182 : vector<3x256xf32>
      %185 = arith.addf %181, %184 : vector<3x256xf32>
      %c0_51 = arith.constant 0 : index
      %186 = arith.index_cast %9 : i32 to index
      %187 = vector.load %arg9[%c0_51, %186] : memref<3x512xf32, #tpu.memory_space<vmem>>, vector<3x256xf32>
      tpu.vector_store %arg9[%c0_51, %186], %185 {strides = array<i32>} : memref<3x512xf32, #tpu.memory_space<vmem>>, vector<3x256xf32>,
    }
    %c2_i32_0 = arith.constant 2 : i32
    return
  }
  func.func @transform_0(%arg0: i32) -> i32 {
    %c0_i32 = arith.constant 0 : i32
    %c0_i32_0 = arith.constant 0 : i32
    return %c0_i32 : i32
  }
  func.func @transform_1(%arg0: i32) -> (i32, i32) {
    %c0_i32 = arith.constant 0 : i32
    %c0_i32_0 = arith.constant 0 : i32
    return %c0_i32, %arg0 : i32, i32
  }
  func.func @transform_2(%arg0: i32) -> (i32, i32) {
    %c0_i32 = arith.constant 0 : i32
    %c0_i32_0 = arith.constant 0 : i32
    %c0_i32_1 = arith.constant 0 : i32
    return %c0_i32, %c0_i32_0 : i32, i32
  }
  func.func @transform_3(%arg0: i32) -> (i32, i32) {
    %c0_i32 = arith.constant 0 : i32
    %c0_i32_0 = arith.constant 0 : i32
    %c0_i32_1 = arith.constant 0 : i32
    return %c0_i32, %c0_i32_0 : i32, i32
  }
  func.func @transform_4(%arg0: i32) -> (i32, i32) {
    %c0_i32 = arith.constant 0 : i32
    %c0_i32_0 = arith.constant 0 : i32
    %c0_i32_1 = arith.constant 0 : i32
    return %c0_i32, %c0_i32_0 : i32, i32
  }
  func.func @transform_5(%arg0: i32) -> (i32, i32) {
    %c0_i32 = arith.constant 0 : i32
    %c0_i32_0 = arith.constant 0 : i32
    %c0_i32_1 = arith.constant 0 : i32
    return %c0_i32, %c0_i32_0 : i32, i32
  }
  func.func @transform_6(%arg0: i32) -> (i32, i32) {
    %c0_i32 = arith.constant 0 : i32
    %c0_i32_0 = arith.constant 0 : i32
    %c0_i32_1 = arith.constant 0 : i32
    return %c0_i32, %c0_i32_0 : i32, i32
  }
  func.func @transform_7(%arg0: i32) -> (i32, i32) {
    %c0_i32 = arith.constant 0 : i32
    %c0_i32_0 = arith.constant 0 : i32
    %c0_i32_1 = arith.constant 0 : i32
    return %c0_i32, %c0_i32_0 : i32, i32
  }
  func.func @transform_8(%arg0: i32) -> (i32, i32) {
    %c0_i32 = arith.constant 0 : i32
    %c0_i32_0 = arith.constant 0 : i32
    return %c0_i32, %arg0 : i32, i32
  }
}

</mosaic_0001>

<llo_original>
// kernel: navier_stokes_forward.1
$region0: #{navier_stokes_forward.1}
  #allocation0 [shape = 'u32[]', space=smem, size = 0x4, offset = 0x4, fixed_abs, tag = 'smem constant byte address 0x4 - core index']
  #allocation1 [shape = 'u32[72,128]{1,0:T(1,128)}', space=vmem, size = 0x9000, scoped, tag = 'internal scratch']
  %s0 = inlined_call_operand.vmem [shape: f32[5], index: 0, kind: input, shape index: {}]
  %s1 = inlined_call_operand.vmem [shape: f32[8,1024], index: 1, kind: input, shape index: {}]
  %s2 = inlined_call_operand.vmem [shape: f32[64,8], index: 2, kind: input, shape index: {}]
  %s3 = inlined_call_operand.vmem [shape: f32[64,1], index: 3, kind: input, shape index: {}]
  %s4 = inlined_call_operand.vmem [shape: f32[64,64], index: 4, kind: input, shape index: {}]
  %s5 = inlined_call_operand.vmem [shape: f32[64,1], index: 5, kind: input, shape index: {}]
  %s6 = inlined_call_operand.vmem [shape: f32[3,64], index: 6, kind: input, shape index: {}]
  %s7 = inlined_call_operand.vmem [shape: f32[3,1], index: 7, kind: input, shape index: {}]
  %s8 = inlined_call_operand.hbm [shape: f32[3,1024], index: 8, kind: output, shape index: {}]
  %s9 = sld [smem:[#allocation0]]
  $region76: #{navier_stokes_forward.1} parent=0
    _
  %s11 = ssub.s32 1, %s9
  %s12 = scalar_select 0, %s11, %s9
  $region1: #{navier_stokes_forward.1} parent=0
    #allocation2 [shape = 'u8[512]{0}', space=smem, size = 0x200, scoped, tag = 'input window, operand 0, single buffered']
    #allocation3 [shape = 's32[2]{0}', space=sflag, size = 0x8, scoped, tag = 'scoped memory for navier_stokes_forward.1']
    #allocation4 [shape = 's32[2]{0}', space=sflag, size = 0x8, scoped, tag = 'scoped memory for navier_stokes_forward.1']
    #allocation5 [shape = 'u8[16384]{0}', space=vmem, size = 0x4000, scoped, tag = 'output window, operand 0']
    %13 = vsyncpa [#allocation4], 0
    %14 = vsyncpa [#allocation3], 0
    %s15 = scalar_lea.sflag [#allocation3], 1
    %16 = vsyncpa %s15, 0
    loop: start=0, step=1, limit=4
    $region2: #{navier_stokes_forward.1} parent=1 // loop_pre_header
      _
    $region3: #{navier_stokes_forward.1} parent=1 // loop_header
      %s18 = sphi 0, %s22
      %p19 = scmp.ge.s32.totalorder %s18, 4
      %s26 = sphi 0, %s26
      %s28 = sphi 0, %s26
      %s29 = sphi 0, %s28
      %s43 = sphi 0, %s29
      %s49 = sphi 0, %s51
      %s52 = sphi 0, %s49
      %s53 = sphi 0, %s52
      %s69 = sphi 0, %s53
      %s73 = sphi 0, %s73
      %s75 = sphi 0, %s73
      %s76 = sphi 0, %s75
      %s90 = sphi 0, %s76
      %s94 = sphi 0, %s94
      %s96 = sphi 0, %s94
      %s97 = sphi 0, %s96
      %s111 = sphi 0, %s97
      %s115 = sphi 0, %s115
      %s117 = sphi 0, %s115
      %s118 = sphi 0, %s117
      %s132 = sphi 0, %s118
      %s136 = sphi 0, %s136
      %s138 = sphi 0, %s136
      %s139 = sphi 0, %s138
      %s153 = sphi 0, %s139
      %s157 = sphi 0, %s157
      %s159 = sphi 0, %s157
      %s160 = sphi 0, %s159
      %s174 = sphi 0, %s160
      %s178 = sphi 0, %s178
      %s180 = sphi 0, %s178
      %s181 = sphi 0, %s180
      %s195 = sphi 0, %s181
      %s201 = sphi 0, %s203
      %s204 = sphi 0, %s201
      %s205 = sphi 0, %s204
      %s221 = sphi 0, %s205
    $region4: #{navier_stokes_forward.1} parent=1 // loop_header_branch
      %21 = sbr.rel (%p19) target = $region8
    $region5: #{navier_stokes_forward.1} parent=1 // loop_body
      %s23 = ssub.s32 %s18, 1
      %s24 = ssub.s32 %s18, 2
      %s25 = sadd.s32 %s18, 1
      %s27 = sadd.s32 %s26, 1
      %p30 = scmp.eq.s32.totalorder %s18, 1
      %p31 = scmp.ne.s32.totalorder %s26, %s28
      %p32 = scmp.eq.s32.totalorder %s18, 0
      %p33 = por %p31, %p32
      %p34 = scmp.ne.s32.totalorder %s26, %s28
      %p35 = scmp.eq.s32.totalorder %s23, 1
      %p36 = por %p34, %p35
      %p37 = scmp.ne.s32.totalorder %s28, %s29
      %p38 = scmp.eq.s32.totalorder %s23, 0
      %p39 = por %p37, %p38
      %p40 = scmp.ne.s32.totalorder %s28, %s29
      %p41 = scmp.eq.s32.totalorder %s24, 1
      %p42 = por %p40, %p41
      %p44 = scmp.ne.s32.totalorder %s29, %s43
      %p45 = scmp.eq.s32.totalorder %s24, 0
      %p46 = por %p44, %p45
      %s47 = ssub.s32 %s18, %s25
      %p48 = scmp.eq.s32.totalorder %s47, 0
      %s50 = sadd.s32 %s49, 1
      %s51 = scalar_select %p48, %s49, %s50
      %p54 = pneg %p48
      %p55 = scmp.eq.s32.totalorder %s18, 1
      %p56 = por %p54, %p55
      %p57 = scmp.ne.s32.totalorder %s49, %s52
      %p58 = scmp.eq.s32.totalorder %s18, 0
      %p59 = por %p57, %p58
      %p60 = scmp.ne.s32.totalorder %s49, %s52
      %p61 = scmp.eq.s32.totalorder %s23, 1
      %p62 = por %p60, %p61
      %p63 = scmp.ne.s32.totalorder %s52, %s53
      %p64 = scmp.eq.s32.totalorder %s23, 0
      %p65 = por %p63, %p64
      %p66 = scmp.ne.s32.totalorder %s52, %s53
      %p67 = scmp.eq.s32.totalorder %s24, 1
      %p68 = por %p66, %p67
      %p70 = scmp.ne.s32.totalorder %s53, %s69
      %p71 = scmp.eq.s32.totalorder %s24, 0
      %p72 = por %p70, %p71
      %s74 = sadd.s32 %s73, 1
      %p77 = scmp.eq.s32.totalorder %s18, 1
      %p78 = scmp.ne.s32.totalorder %s73, %s75
      %p79 = scmp.eq.s32.totalorder %s18, 0
      %p80 = por %p78, %p79
      %p81 = scmp.ne.s32.totalorder %s73, %s75
      %p82 = scmp.eq.s32.totalorder %s23, 1
      %p83 = por %p81, %p82
      %p84 = scmp.ne.s32.totalorder %s75, %s76
      %p85 = scmp.eq.s32.totalorder %s23, 0
      %p86 = por %p84, %p85
      %p87 = scmp.ne.s32.totalorder %s75, %s76
      %p88 = scmp.eq.s32.totalorder %s24, 1
      %p89 = por %p87, %p88
      %p91 = scmp.ne.s32.totalorder %s76, %s90
      %p92 = scmp.eq.s32.totalorder %s24, 0
      %p93 = por %p91, %p92
      %s95 = sadd.s32 %s94, 1
      %p98 = scmp.eq.s32.totalorder %s18, 1
      %p99 = scmp.ne.s32.totalorder %s94, %s96
      %p100 = scmp.eq.s32.totalorder %s18, 0
      %p101 = por %p99, %p100
      %p102 = scmp.ne.s32.totalorder %s94, %s96
      %p103 = scmp.eq.s32.totalorder %s23, 1
      %p104 = por %p102, %p103
      %p105 = scmp.ne.s32.totalorder %s96, %s97
      %p106 = scmp.eq.s32.totalorder %s23, 0
      %p107 = por %p105, %p106
      %p108 = scmp.ne.s32.totalorder %s96, %s97
      %p109 = scmp.eq.s32.totalorder %s24, 1
      %p110 = por %p108, %p109
      %p112 = scmp.ne.s32.totalorder %s97, %s111
      %p113 = scmp.eq.s32.totalorder %s24, 0
      %p114 = por %p112, %p113
      %s116 = sadd.s32 %s115, 1
      %p119 = scmp.eq.s32.totalorder %s18, 1
      %p120 = scmp.ne.s32.totalorder %s115, %s117
      %p121 = scmp.eq.s32.totalorder %s18, 0
      %p122 = por %p120, %p121
      %p123 = scmp.ne.s32.totalorder %s115, %s117
      %p124 = scmp.eq.s32.totalorder %s23, 1
      %p125 = por %p123, %p124
      %p126 = scmp.ne.s32.totalorder %s117, %s118
      %p127 = scmp.eq.s32.totalorder %s23, 0
      %p128 = por %p126, %p127
      %p129 = scmp.ne.s32.totalorder %s117, %s118
      %p130 = scmp.eq.s32.totalorder %s24, 1
      %p131 = por %p129, %p130
      %p133 = scmp.ne.s32.totalorder %s118, %s132
      %p134 = scmp.eq.s32.totalorder %s24, 0
      %p135 = por %p133, %p134
      %s137 = sadd.s32 %s136, 1
      %p140 = scmp.eq.s32.totalorder %s18, 1
      %p141 = scmp.ne.s32.totalorder %s136, %s138
      %p142 = scmp.eq.s32.totalorder %s18, 0
      %p143 = por %p141, %p142
      %p144 = scmp.ne.s32.totalorder %s136, %s138
      %p145 = scmp.eq.s32.totalorder %s23, 1
      %p146 = por %p144, %p145
      %p147 = scmp.ne.s32.totalorder %s138, %s139
      %p148 = scmp.eq.s32.totalorder %s23, 0
      %p149 = por %p147, %p148
      %p150 = scmp.ne.s32.totalorder %s138, %s139
      %p151 = scmp.eq.s32.totalorder %s24, 1
      %p152 = por %p150, %p151
      %p154 = scmp.ne.s32.totalorder %s139, %s153
      %p155 = scmp.eq.s32.totalorder %s24, 0
      %p156 = por %p154, %p155
      %s158 = sadd.s32 %s157, 1
      %p161 = scmp.eq.s32.totalorder %s18, 1
      %p162 = scmp.ne.s32.totalorder %s157, %s159
      %p163 = scmp.eq.s32.totalorder %s18, 0
      %p164 = por %p162, %p163
      %p165 = scmp.ne.s32.totalorder %s157, %s159
      %p166 = scmp.eq.s32.totalorder %s23, 1
      %p167 = por %p165, %p166
      %p168 = scmp.ne.s32.totalorder %s159, %s160
      %p169 = scmp.eq.s32.totalorder %s23, 0
      %p170 = por %p168, %p169
      %p171 = scmp.ne.s32.totalorder %s159, %s160
      %p172 = scmp.eq.s32.totalorder %s24, 1
      %p173 = por %p171, %p172
      %p175 = scmp.ne.s32.totalorder %s160, %s174
      %p176 = scmp.eq.s32.totalorder %s24, 0
      %p177 = por %p175, %p176
      %s179 = sadd.s32 %s178, 1
      %p182 = scmp.eq.s32.totalorder %s18, 1
      %p183 = scmp.ne.s32.totalorder %s178, %s180
      %p184 = scmp.eq.s32.totalorder %s18, 0
      %p185 = por %p183, %p184
      %p186 = scmp.ne.s32.totalorder %s178, %s180
      %p187 = scmp.eq.s32.totalorder %s23, 1
      %p188 = por %p186, %p187
      %p189 = scmp.ne.s32.totalorder %s180, %s181
      %p190 = scmp.eq.s32.totalorder %s23, 0
      %p191 = por %p189, %p190
      %p192 = scmp.ne.s32.totalorder %s180, %s181
      %p193 = scmp.eq.s32.totalorder %s24, 1
      %p194 = por %p192, %p193
      %p196 = scmp.ne.s32.totalorder %s181, %s195
      %p197 = scmp.eq.s32.totalorder %s24, 0
      %p198 = por %p196, %p197
      %s199 = ssub.s32 %s18, %s25
      %p200 = scmp.eq.s32.totalorder %s199, 0
      %s202 = sadd.s32 %s201, 1
      %s203 = scalar_select %p200, %s201, %s202
      %p206 = pneg %p200
      %p207 = scmp.eq.s32.totalorder %s18, 1
      %p208 = por %p206, %p207
      %p209 = scmp.ne.s32.totalorder %s201, %s204
      %p210 = scmp.eq.s32.totalorder %s18, 0
      %p211 = por %p209, %p210
      %p212 = scmp.ne.s32.totalorder %s201, %s204
      %p213 = scmp.eq.s32.totalorder %s23, 1
      %p214 = por %p212, %p213
      %p215 = scmp.ne.s32.totalorder %s204, %s205
      %p216 = scmp.eq.s32.totalorder %s23, 0
      %p217 = por %p215, %p216
      %p218 = scmp.ne.s32.totalorder %s204, %s205
      %p219 = scmp.eq.s32.totalorder %s24, 1
      %p220 = por %p218, %p219
      %p222 = scmp.ne.s32.totalorder %s205, %s221
      %p223 = scmp.eq.s32.totalorder %s24, 0
      %p224 = por %p222, %p223
      %p225 = scmp.le.s32.totalorder 1, %s18
      %p226 = scmp.lt.s32.totalorder %s18, 3
      %p227 = pnand %p225, %p226
      %p228 = pneg %p227
      // Predicated region
      $region9: #{navier_stokes_forward.1} parent=5 // pred_check
        _
      $region10: #{navier_stokes_forward.1} parent=5 // pred_check_branch
        %230 = sbr.rel (%p227) target = $region12
      $region11: #{navier_stokes_forward.1} parent=5 // pred_region
        %s231 = ssub.s32 %s18, 1
        // Predicated region
        $region13: #{navier_stokes_forward.1} parent=11 // pred_check
          %p232 = pneg %p39
        $region14: #{navier_stokes_forward.1} parent=11 // pred_check_branch
          %234 = sbr.rel (%p232) target = $region16
        $region15: #{navier_stokes_forward.1} parent=11 // pred_region
          %236 = vsyncadd [#allocation4], 0
          %s238 = sshll.u32 %s0, 4
          %s239 = int_to_ptr.vmem [resolvable:$true] %s238
          %241 = dma.vmem_to_smem %s239, 16, [#allocation2], [#allocation4]
        $region16: #{navier_stokes_forward.1} parent=11 // pred_fallthru
          _
        // Predicated region
        $region17: #{navier_stokes_forward.1} parent=11 // pred_check
          %p242 = pneg %p86
        $region18: #{navier_stokes_forward.1} parent=11 // pred_check_branch
          %244 = sbr.rel (%p242) target = $region20
        $region19: #{navier_stokes_forward.1} parent=11 // pred_region
          _
        $region20: #{navier_stokes_forward.1} parent=11 // pred_fallthru
          _
        // Predicated region
        $region21: #{navier_stokes_forward.1} parent=11 // pred_check
          %p245 = pneg %p107
        $region22: #{navier_stokes_forward.1} parent=11 // pred_check_branch
          %247 = sbr.rel (%p245) target = $region24
        $region23: #{navier_stokes_forward.1} parent=11 // pred_region
          _
        $region24: #{navier_stokes_forward.1} parent=11 // pred_fallthru
          _
        // Predicated region
        $region25: #{navier_stokes_forward.1} parent=11 // pred_check
          %p248 = pneg %p128
        $region26: #{navier_stokes_forward.1} parent=11 // pred_check_branch
          %250 = sbr.rel (%p248) target = $region28
        $region27: #{navier_stokes_forward.1} parent=11 // pred_region
          _
        $region28: #{navier_stokes_forward.1} parent=11 // pred_fallthru
          _
        // Predicated region
        $region29: #{navier_stokes_forward.1} parent=11 // pred_check
          %p251 = pneg %p149
        $region30: #{navier_stokes_forward.1} parent=11 // pred_check_branch
          %253 = sbr.rel (%p251) target = $region32
        $region31: #{navier_stokes_forward.1} parent=11 // pred_region
          _
        $region32: #{navier_stokes_forward.1} parent=11 // pred_fallthru
          _
        // Predicated region
        $region33: #{navier_stokes_forward.1} parent=11 // pred_check
          %p254 = pneg %p170
        $region34: #{navier_stokes_forward.1} parent=11 // pred_check_branch
          %256 = sbr.rel (%p254) target = $region36
        $region35: #{navier_stokes_forward.1} parent=11 // pred_region
          _
        $region36: #{navier_stokes_forward.1} parent=11 // pred_fallthru
          _
        // Predicated region
        $region37: #{navier_stokes_forward.1} parent=11 // pred_check
          %p257 = pneg %p191
        $region38: #{navier_stokes_forward.1} parent=11 // pred_check_branch
          %259 = sbr.rel (%p257) target = $region40
        $region39: #{navier_stokes_forward.1} parent=11 // pred_region
          _
        $region40: #{navier_stokes_forward.1} parent=11 // pred_fallthru
          _
      $region12: #{navier_stokes_forward.1} parent=5 // pred_fallthru
        _
      %p260 = scmp.lt.s32.totalorder %s18, 2
      // Predicated region
      $region41: #{navier_stokes_forward.1} parent=5 // pred_check
        %p261 = pneg %p260
      $region42: #{navier_stokes_forward.1} parent=5 // pred_check_branch
        %263 = sbr.rel (%p261) target = $region44
      $region43: #{navier_stokes_forward.1} parent=5 // pred_region
        // Predicated region
        $region45: #{navier_stokes_forward.1} parent=43 // pred_check
          %p264 = pneg %p59
        $region46: #{navier_stokes_forward.1} parent=43 // pred_check_branch
          %266 = sbr.rel (%p264) target = $region48
        $region47: #{navier_stokes_forward.1} parent=43 // pred_region
          %s267 = smul.u32 4, %s18
          %p268 = scmp.lt.s32.totalorder %s267, 7
          %s269 = scalar_select %p268, %s267, 7
          %s270 = smul.addr %s269, 8
          %s271 = scalar_lea.vmem %s1, %s270
          %s272 = smul.u32 4, %s18
        $region48: #{navier_stokes_forward.1} parent=43 // pred_fallthru
          _
      $region44: #{navier_stokes_forward.1} parent=5 // pred_fallthru
        _
      %p273 = scmp.le.s32.totalorder 1, %s18
      %p274 = scmp.lt.s32.totalorder %s18, 3
      %p275 = pnand %p273, %p274
      %p276 = pneg %p275
      // Predicated region
      $region49: #{navier_stokes_forward.1} parent=5 // pred_check
        _
      $region50: #{navier_stokes_forward.1} parent=5 // pred_check_branch
        %278 = sbr.rel (%p275) target = $region52
      $region51: #{navier_stokes_forward.1} parent=5 // pred_region
        %s279 = ssub.s32 %s18, 1
        // Predicated region
        $region53: #{navier_stokes_forward.1} parent=51 // pred_check
          %p280 = pneg %p39
        $region54: #{navier_stokes_forward.1} parent=51 // pred_check_branch
          %282 = sbr.rel (%p280) target = $region56
        $region55: #{navier_stokes_forward.1} parent=51 // pred_region
          %284 = dma.done [#allocation4], 16
        $region56: #{navier_stokes_forward.1} parent=51 // pred_fallthru
          _
        %285 = sfence
        %p286 = pneg %p39
        %p287 = pneg %p36
        %s288 = smul.u32 4, %s23
        %p289 = scmp.lt.s32.totalorder %s288, 7
        %s290 = scalar_select %p289, %s288, 7
        %s291 = smul.addr %s290, 8
        %s292 = scalar_lea.vmem %s1, %s291
        %p293 = pneg %p65
        %p294 = pneg %p62
        %p295 = pneg %p86
        %p296 = pneg %p83
        %p297 = pneg %p107
        %p298 = pneg %p104
        %p299 = pneg %p128
        %p300 = pneg %p125
        %p301 = pneg %p149
        %p302 = pneg %p146
        %p303 = pneg %p170
        %p304 = pneg %p167
        %p305 = pneg %p191
        %p306 = pneg %p188
        %p307 = pneg %p217
        %p308 = pneg %p214
        %s309 = sand.u32 %s204, 1
        %s310 = scalar_lea.sflag [#allocation3], %s309
        %s311 = sand.u32 %s204, 1
        %s312 = smul.addr %s311, 16
        %s313 = scalar_lea.vmem [#allocation5], %s312
        %s314 = smul.u32 4, %s23
        %p315 = scmp.lt.s32.totalorder %s314, 7
        %s316 = scalar_select %p315, %s314, 7
        %s317 = smul.addr %s316, 8
        %s318 = scalar_lea.vmem %s1, %s317
        %s319 = smul.u32 4, %s23
        %s320 = smul.u32 4, %s23
        %s321 = sld [smem:[#allocation2]]
        %s322 = sld [smem:[#allocation2 + $0x1]]
        %s323 = sld [smem:[#allocation2 + $0x2]]
        %s324 = sld [smem:[#allocation2 + $0x3]]
        %s325 = sld [smem:[#allocation2 + $0x4]]
        loop: start=0, step=1, limit=2
        $region57: #{navier_stokes_forward.1} parent=51 // loop_pre_header
          _
        $region58: #{navier_stokes_forward.1} parent=51 // loop_header
          %s327 = sphi 0, %s331
          %p328 = scmp.ge.s32.totalorder %s327, 2
        $region59: #{navier_stokes_forward.1} parent=51 // loop_header_branch
          %330 = sbr.rel (%p328) target = $region63
        $region60: #{navier_stokes_forward.1} parent=51 // loop_body
          %s332 = smul.u32 %s327, 256
          %s333 = sshra.s32 %s332, 7
          %s334 = sand.u32 %s332, 127
          %s335 = smul.addr %s333, 8
          %s336 = scalar_lea.vmem %s318, %s335
          %v337 = vld [vmem:[%s336] sm:$0xff]
          %v338 = vld [vmem:[%s336 + $0x8] sm:$0xff]
          %v339 = vld [vmem:[%s2] sm:$0xff]
          %v340 = vld [vmem:[%s2 + $0x8] sm:$0xff]
          %v341 = vld [vmem:[%s2 + $0x10] sm:$0xff]
          %v342 = vld [vmem:[%s2 + $0x18] sm:$0xff]
          %v343 = vld [vmem:[%s2 + $0x20] sm:$0xff]
          %v344 = vld [vmem:[%s2 + $0x28] sm:$0xff]
          %v345 = vld [vmem:[%s2 + $0x30] sm:$0xff]
          %v346 = vld [vmem:[%s2 + $0x38] sm:$0xff]
          %v347 = vld [vmem:[%s3] sm:$0xff]
          %v348 = vld [vmem:[%s3 + $0x8] sm:$0xff]
          %v349 = vld [vmem:[%s3 + $0x10] sm:$0xff]
          %v350 = vld [vmem:[%s3 + $0x18] sm:$0xff]
          %v351 = vld [vmem:[%s3 + $0x20] sm:$0xff]
          %v352 = vld [vmem:[%s3 + $0x28] sm:$0xff]
          %v353 = vld [vmem:[%s3 + $0x30] sm:$0xff]
          %v354 = vld [vmem:[%s3 + $0x38] sm:$0xff]
          %356 = vset.pattern.permute.xlu0 0
          %357 = vperm.xlu0 %356, %v347
          %v358 = vpop.permute.xlu0 %357
          %361 = vset.pattern.permute.xlu0 0
          %362 = vperm.xlu0 %361, %v348
          %v363 = vpop.permute.xlu0 %362
          %366 = vset.pattern.permute.xlu0 0
          %367 = vperm.xlu0 %366, %v349
          %v368 = vpop.permute.xlu0 %367
          %371 = vset.pattern.permute.xlu0 0
          %372 = vperm.xlu0 %371, %v350
          %v373 = vpop.permute.xlu0 %372
          %376 = vset.pattern.permute.xlu0 0
          %377 = vperm.xlu0 %376, %v351
          %v378 = vpop.permute.xlu0 %377
          %381 = vset.pattern.permute.xlu0 0
          %382 = vperm.xlu0 %381, %v352
          %v383 = vpop.permute.xlu0 %382
          %386 = vset.pattern.permute.xlu0 0
          %387 = vperm.xlu0 %386, %v353
          %v388 = vpop.permute.xlu0 %387
          %391 = vset.pattern.permute.xlu0 0
          %392 = vperm.xlu0 %391, %v354
          %v393 = vpop.permute.xlu0 %392
          %vm395 = vcmask 64512
          %v397 = vsel %vm395, %v339, 0
          %v400 = vsel %vm395, %v340, 0
          %v403 = vsel %vm395, %v341, 0
          %v406 = vsel %vm395, %v342, 0
          %v409 = vsel %vm395, %v343, 0
          %v412 = vsel %vm395, %v344, 0
          %v415 = vsel %vm395, %v345, 0
          %v418 = vsel %vm395, %v346, 0
          %420 = vmatpush.msra.mxu0 0.0
          %421 = vmatpush.msra.mxu0 0.0
          %422 = vmatpush.msra.mxu0 0.0
          %423 = vmatpush.msra.mxu0 0.0
          %424 = vmatpush.msra.mxu0 0.0
          %425 = vmatpush.msra.mxu0 0.0
          %426 = vmatpush.msra.mxu0 0.0
          %427 = vmatpush.msra.mxu0 0.0
          %428 = vmatpush.msra.mxu0 0.0
          %429 = vmatpush.msra.mxu0 0.0
          %430 = vmatpush.msra.mxu0 0.0
          %431 = vmatpush.msra.mxu0 0.0
          %432 = vmatpush.msra.mxu0 0.0
          %433 = vmatpush.msra.mxu0 0.0
          %434 = vmatpush.msra.mxu0 0.0
          %435 = vmatpush.msra.mxu0 %v337
          %436 = vmatmul.f32.gmra.mxu0 %v397
          %v437 = vpop.f32.mrf.mxu0
          %v438 = vadd.f32 %v358, %v437
          %439 = vmatmul.f32.gmra.mxu0 %v400
          %v440 = vpop.f32.mrf.mxu0
          %v441 = vadd.f32 %v363, %v440
          %442 = vmatmul.f32.gmra.mxu0 %v403
          %v443 = vpop.f32.mrf.mxu0
          %v444 = vadd.f32 %v368, %v443
          %445 = vmatmul.f32.gmra.mxu0 %v406
          %v446 = vpop.f32.mrf.mxu0
          %v447 = vadd.f32 %v373, %v446
          %448 = vmatmul.f32.gmra.mxu0 %v409
          %v449 = vpop.f32.mrf.mxu0
          %v450 = vadd.f32 %v378, %v449
          %451 = vmatmul.f32.gmra.mxu0 %v412
          %v452 = vpop.f32.mrf.mxu0
          %v453 = vadd.f32 %v383, %v452
          %454 = vmatmul.f32.gmra.mxu0 %v415
          %v455 = vpop.f32.mrf.mxu0
          %v456 = vadd.f32 %v388, %v455
          %457 = vmatmul.f32.gmra.mxu0 %v418
          %v458 = vpop.f32.mrf.mxu0
          %v459 = vadd.f32 %v393, %v458
          %460 = vdwg.mxu0
          %461 = vmatpush.msra.mxu0 0.0
          %462 = vmatpush.msra.mxu0 0.0
          %463 = vmatpush.msra.mxu0 0.0
          %464 = vmatpush.msra.mxu0 0.0
          %465 = vmatpush.msra.mxu0 0.0
          %466 = vmatpush.msra.mxu0 0.0
          %467 = vmatpush.msra.mxu0 0.0
          %468 = vmatpush.msra.mxu0 0.0
          %469 = vmatpush.msra.mxu0 0.0
          %470 = vmatpush.msra.mxu0 0.0
          %471 = vmatpush.msra.mxu0 0.0
          %472 = vmatpush.msra.mxu0 0.0
          %473 = vmatpush.msra.mxu0 0.0
          %474 = vmatpush.msra.mxu0 0.0
          %475 = vmatpush.msra.mxu0 0.0
          %476 = vmatpush.msra.mxu0 %v338
          %477 = vmatmul.f32.gmra.mxu0 %v397
          %v478 = vpop.f32.mrf.mxu0
          %v479 = vadd.f32 %v358, %v478
          %480 = vmatmul.f32.gmra.mxu0 %v400
          %v481 = vpop.f32.mrf.mxu0
          %v482 = vadd.f32 %v363, %v481
          %483 = vmatmul.f32.gmra.mxu0 %v403
          %v484 = vpop.f32.mrf.mxu0
          %v485 = vadd.f32 %v368, %v484
          %486 = vmatmul.f32.gmra.mxu0 %v406
          %v487 = vpop.f32.mrf.mxu0
          %v488 = vadd.f32 %v373, %v487
          %489 = vmatmul.f32.gmra.mxu0 %v409
          %v490 = vpop.f32.mrf.mxu0
          %v491 = vadd.f32 %v378, %v490
          %492 = vmatmul.f32.gmra.mxu0 %v412
          %v493 = vpop.f32.mrf.mxu0
          %v494 = vadd.f32 %v383, %v493
          %495 = vmatmul.f32.gmra.mxu0 %v415
          %v496 = vpop.f32.mrf.mxu0
          %v497 = vadd.f32 %v388, %v496
          %498 = vmatmul.f32.gmra.mxu0 %v418
          %v499 = vpop.f32.mrf.mxu0
          %v500 = vadd.f32 %v393, %v499
          %501 = vdwg.mxu0
          %vm502 = vcmp.ge.f32.partialorder %v438, 0.0
          %vm503 = vcmp.ge.f32.partialorder %v479, 0.0
          %vm504 = vcmp.ge.f32.partialorder %v441, 0.0
          %vm505 = vcmp.ge.f32.partialorder %v482, 0.0
          %vm506 = vcmp.ge.f32.partialorder %v444, 0.0
          %vm507 = vcmp.ge.f32.partialorder %v485, 0.0
          %vm508 = vcmp.ge.f32.partialorder %v447, 0.0
          %vm509 = vcmp.ge.f32.partialorder %v488, 0.0
          %vm510 = vcmp.ge.f32.partialorder %v450, 0.0
          %vm511 = vcmp.ge.f32.partialorder %v491, 0.0
          %vm512 = vcmp.ge.f32.partialorder %v453, 0.0
          %vm513 = vcmp.ge.f32.partialorder %v494, 0.0
          %vm514 = vcmp.ge.f32.partialorder %v456, 0.0
          %vm515 = vcmp.ge.f32.partialorder %v497, 0.0
          %vm516 = vcmp.ge.f32.partialorder %v459, 0.0
          %vm517 = vcmp.ge.f32.partialorder %v500, 0.0
          %v518 = vand.u32 2147483647, %v438
          %v519 = vand.u32 2147483647, %v479
          %v520 = vand.u32 2147483647, %v441
          %v521 = vand.u32 2147483647, %v482
          %v522 = vand.u32 2147483647, %v444
          %v523 = vand.u32 2147483647, %v485
          %v524 = vand.u32 2147483647, %v447
          %v525 = vand.u32 2147483647, %v488
          %v526 = vand.u32 2147483647, %v450
          %v527 = vand.u32 2147483647, %v491
          %v528 = vand.u32 2147483647, %v453
          %v529 = vand.u32 2147483647, %v494
          %v530 = vand.u32 2147483647, %v456
          %v531 = vand.u32 2147483647, %v497
          %v532 = vand.u32 2147483647, %v459
          %v533 = vand.u32 2147483647, %v500
          %v534 = vsub.f32 0.0, %v518
          %v535 = vsub.f32 0.0, %v519
          %v536 = vsub.f32 0.0, %v520
          %v537 = vsub.f32 0.0, %v521
          %v538 = vsub.f32 0.0, %v522
          %v539 = vsub.f32 0.0, %v523
          %v540 = vsub.f32 0.0, %v524
          %v541 = vsub.f32 0.0, %v525
          %v542 = vsub.f32 0.0, %v526
          %v543 = vsub.f32 0.0, %v527
          %v544 = vsub.f32 0.0, %v528
          %v545 = vsub.f32 0.0, %v529
          %v546 = vsub.f32 0.0, %v530
          %v547 = vsub.f32 0.0, %v531
          %v548 = vsub.f32 0.0, %v532
          %v549 = vsub.f32 0.0, %v533
          %v550 = vmul.f32 %v534, 1.442695
          %v551 = vpow.pop %v550
          %v552 = vmul.f32 %v535, 1.442695
          %v553 = vpow.pop %v552
          %v554 = vmul.f32 %v536, 1.442695
          %v555 = vpow.pop %v554
          %v556 = vmul.f32 %v537, 1.442695
          %v557 = vpow.pop %v556
          %v558 = vmul.f32 %v538, 1.442695
          %v559 = vpow.pop %v558
          %v560 = vmul.f32 %v539, 1.442695
          %v561 = vpow.pop %v560
          %v562 = vmul.f32 %v540, 1.442695
          %v563 = vpow.pop %v562
          %v564 = vmul.f32 %v541, 1.442695
          %v565 = vpow.pop %v564
          %v566 = vmul.f32 %v542, 1.442695
          %v567 = vpow.pop %v566
          %v568 = vmul.f32 %v543, 1.442695
          %v569 = vpow.pop %v568
          %v570 = vmul.f32 %v544, 1.442695
          %v571 = vpow.pop %v570
          %v572 = vmul.f32 %v545, 1.442695
          %v573 = vpow.pop %v572
          %v574 = vmul.f32 %v546, 1.442695
          %v575 = vpow.pop %v574
          %v576 = vmul.f32 %v547, 1.442695
          %v577 = vpow.pop %v576
          %v578 = vmul.f32 %v548, 1.442695
          %v579 = vpow.pop %v578
          %v580 = vmul.f32 %v549, 1.442695
          %v581 = vpow.pop %v580
          %v582 = vadd.f32 %v551, 1.0
          %v583 = vadd.f32 %v553, 1.0
          %v584 = vadd.f32 %v555, 1.0
          %v585 = vadd.f32 %v557, 1.0
          %v586 = vadd.f32 %v559, 1.0
          %v587 = vadd.f32 %v561, 1.0
          %v588 = vadd.f32 %v563, 1.0
          %v589 = vadd.f32 %v565, 1.0
          %v590 = vadd.f32 %v567, 1.0
          %v591 = vadd.f32 %v569, 1.0
          %v592 = vadd.f32 %v571, 1.0
          %v593 = vadd.f32 %v573, 1.0
          %v594 = vadd.f32 %v575, 1.0
          %v595 = vadd.f32 %v577, 1.0
          %v596 = vadd.f32 %v579, 1.0
          %v597 = vadd.f32 %v581, 1.0
          %v598 = vrcp.pop %v582
          %v599 = vrcp.pop %v583
          %v600 = vrcp.pop %v584
          %v601 = vrcp.pop %v585
          %v602 = vrcp.pop %v586
          %v603 = vrcp.pop %v587
          %v604 = vrcp.pop %v588
          %v605 = vrcp.pop %v589
          %v606 = vrcp.pop %v590
          %v607 = vrcp.pop %v591
          %v608 = vrcp.pop %v592
          %v609 = vrcp.pop %v593
          %v610 = vrcp.pop %v594
          %v611 = vrcp.pop %v595
          %v612 = vrcp.pop %v596
          %v613 = vrcp.pop %v597
          %v614 = vmul.f32 %v582, %v598
          %v615 = vmul.f32 %v583, %v599
          %v616 = vmul.f32 %v584, %v600
          %v617 = vmul.f32 %v585, %v601
          %v618 = vmul.f32 %v586, %v602
          %v619 = vmul.f32 %v587, %v603
          %v620 = vmul.f32 %v588, %v604
          %v621 = vmul.f32 %v589, %v605
          %v622 = vmul.f32 %v590, %v606
          %v623 = vmul.f32 %v591, %v607
          %v624 = vmul.f32 %v592, %v608
          %v625 = vmul.f32 %v593, %v609
          %v626 = vmul.f32 %v594, %v610
          %v627 = vmul.f32 %v595, %v611
          %v628 = vmul.f32 %v596, %v612
          %v629 = vmul.f32 %v597, %v613
          %v630 = vsub.f32 2.0, %v614
          %v631 = vsub.f32 2.0, %v615
          %v632 = vsub.f32 2.0, %v616
          %v633 = vsub.f32 2.0, %v617
          %v634 = vsub.f32 2.0, %v618
          %v635 = vsub.f32 2.0, %v619
          %v636 = vsub.f32 2.0, %v620
          %v637 = vsub.f32 2.0, %v621
          %v638 = vsub.f32 2.0, %v622
          %v639 = vsub.f32 2.0, %v623
          %v640 = vsub.f32 2.0, %v624
          %v641 = vsub.f32 2.0, %v625
          %v642 = vsub.f32 2.0, %v626
          %v643 = vsub.f32 2.0, %v627
          %v644 = vsub.f32 2.0, %v628
          %v645 = vsub.f32 2.0, %v629
          %v646 = vmul.f32 %v598, %v630
          %v647 = vmul.f32 %v599, %v631
          %v648 = vmul.f32 %v600, %v632
          %v649 = vmul.f32 %v601, %v633
          %v650 = vmul.f32 %v602, %v634
          %v651 = vmul.f32 %v603, %v635
          %v652 = vmul.f32 %v604, %v636
          %v653 = vmul.f32 %v605, %v637
          %v654 = vmul.f32 %v606, %v638
          %v655 = vmul.f32 %v607, %v639
          %v656 = vmul.f32 %v608, %v640
          %v657 = vmul.f32 %v609, %v641
          %v658 = vmul.f32 %v610, %v642
          %v659 = vmul.f32 %v611, %v643
          %v660 = vmul.f32 %v612, %v644
          %v661 = vmul.f32 %v613, %v645
          %v662 = vsub.f32 1.0, %v646
          %v663 = vsub.f32 1.0, %v647
          %v664 = vsub.f32 1.0, %v648
          %v665 = vsub.f32 1.0, %v649
          %v666 = vsub.f32 1.0, %v650
          %v667 = vsub.f32 1.0, %v651
          %v668 = vsub.f32 1.0, %v652
          %v669 = vsub.f32 1.0, %v653
          %v670 = vsub.f32 1.0, %v654
          %v671 = vsub.f32 1.0, %v655
          %v672 = vsub.f32 1.0, %v656
          %v673 = vsub.f32 1.0, %v657
          %v674 = vsub.f32 1.0, %v658
          %v675 = vsub.f32 1.0, %v659
          %v676 = vsub.f32 1.0, %v660
          %v677 = vsub.f32 1.0, %v661
          %v678 = vsel %vm502, %v646, %v662
          %v679 = vsel %vm503, %v647, %v663
          %v680 = vsel %vm504, %v648, %v664
          %v681 = vsel %vm505, %v649, %v665
          %v682 = vsel %vm506, %v650, %v666
          %v683 = vsel %vm507, %v651, %v667
          %v684 = vsel %vm508, %v652, %v668
          %v685 = vsel %vm509, %v653, %v669
          %v686 = vsel %vm510, %v654, %v670
          %v687 = vsel %vm511, %v655, %v671
          %v688 = vsel %vm512, %v656, %v672
          %v689 = vsel %vm513, %v657, %v673
          %v690 = vsel %vm514, %v658, %v674
          %v691 = vsel %vm515, %v659, %v675
          %v692 = vsel %vm516, %v660, %v676
          %v693 = vsel %vm517, %v661, %v677
          %v694 = vmul.f32 %v438, %v678
          %v695 = vmul.f32 %v479, %v679
          %v696 = vmul.f32 %v441, %v680
          %v697 = vmul.f32 %v482, %v681
          %v698 = vmul.f32 %v444, %v682
          %v699 = vmul.f32 %v485, %v683
          %v700 = vmul.f32 %v447, %v684
          %v701 = vmul.f32 %v488, %v685
          %v702 = vmul.f32 %v450, %v686
          %v703 = vmul.f32 %v491, %v687
          %v704 = vmul.f32 %v453, %v688
          %v705 = vmul.f32 %v494, %v689
          %v706 = vmul.f32 %v456, %v690
          %v707 = vmul.f32 %v497, %v691
          %v708 = vmul.f32 %v459, %v692
          %v709 = vmul.f32 %v500, %v693
          %v710 = vstv %s323
          %v711 = vmul.f32 %v710, %v694
          %v712 = vmul.f32 %v710, %v695
          %v713 = vmul.f32 %v710, %v696
          %v714 = vmul.f32 %v710, %v697
          %v715 = vmul.f32 %v710, %v698
          %v716 = vmul.f32 %v710, %v699
          %v717 = vmul.f32 %v710, %v700
          %v718 = vmul.f32 %v710, %v701
          %v719 = vmul.f32 %v710, %v702
          %v720 = vmul.f32 %v710, %v703
          %v721 = vmul.f32 %v710, %v704
          %v722 = vmul.f32 %v710, %v705
          %v723 = vmul.f32 %v710, %v706
          %v724 = vmul.f32 %v710, %v707
          %v725 = vmul.f32 %v710, %v708
          %v726 = vmul.f32 %v710, %v709
          %v727 = vmax.f32 %v438, 0.0
          %v728 = vmax.f32 %v479, 0.0
          %v729 = vmax.f32 %v441, 0.0
          %v730 = vmax.f32 %v482, 0.0
          %v731 = vmax.f32 %v444, 0.0
          %v732 = vmax.f32 %v485, 0.0
          %v733 = vmax.f32 %v447, 0.0
          %v734 = vmax.f32 %v488, 0.0
          %v735 = vmax.f32 %v450, 0.0
          %v736 = vmax.f32 %v491, 0.0
          %v737 = vmax.f32 %v453, 0.0
          %v738 = vmax.f32 %v494, 0.0
          %v739 = vmax.f32 %v456, 0.0
          %v740 = vmax.f32 %v497, 0.0
          %v741 = vmax.f32 %v459, 0.0
          %v742 = vmax.f32 %v500, 0.0
          %v743 = vlog2.pop %v582
          %v744 = vmul.f32 %v743, 0.6931472
          %v745 = vlog2.pop %v583
          %v746 = vmul.f32 %v745, 0.6931472
          %v747 = vlog2.pop %v584
          %v748 = vmul.f32 %v747, 0.6931472
          %v749 = vlog2.pop %v585
          %v750 = vmul.f32 %v749, 0.6931472
          %v751 = vlog2.pop %v586
          %v752 = vmul.f32 %v751, 0.6931472
          %v753 = vlog2.pop %v587
          %v754 = vmul.f32 %v753, 0.6931472
          %v755 = vlog2.pop %v588
          %v756 = vmul.f32 %v755, 0.6931472
          %v757 = vlog2.pop %v589
          %v758 = vmul.f32 %v757, 0.6931472
          %v759 = vlog2.pop %v590
          %v760 = vmul.f32 %v759, 0.6931472
          %v761 = vlog2.pop %v591
          %v762 = vmul.f32 %v761, 0.6931472
          %v763 = vlog2.pop %v592
          %v764 = vmul.f32 %v763, 0.6931472
          %v765 = vlog2.pop %v593
          %v766 = vmul.f32 %v765, 0.6931472
          %v767 = vlog2.pop %v594
          %v768 = vmul.f32 %v767, 0.6931472
          %v769 = vlog2.pop %v595
          %v770 = vmul.f32 %v769, 0.6931472
          %v771 = vlog2.pop %v596
          %v772 = vmul.f32 %v771, 0.6931472
          %v773 = vlog2.pop %v597
          %v774 = vmul.f32 %v773, 0.6931472
          %v775 = vadd.f32 %v727, %v744
          %v776 = vadd.f32 %v728, %v746
          %v777 = vadd.f32 %v729, %v748
          %v778 = vadd.f32 %v730, %v750
          %v779 = vadd.f32 %v731, %v752
          %v780 = vadd.f32 %v732, %v754
          %v781 = vadd.f32 %v733, %v756
          %v782 = vadd.f32 %v734, %v758
          %v783 = vadd.f32 %v735, %v760
          %v784 = vadd.f32 %v736, %v762
          %v785 = vadd.f32 %v737, %v764
          %v786 = vadd.f32 %v738, %v766
          %v787 = vadd.f32 %v739, %v768
          %v788 = vadd.f32 %v740, %v770
          %v789 = vadd.f32 %v741, %v772
          %v790 = vadd.f32 %v742, %v774
          %v791 = vstv %s325
          %v792 = vmul.f32 %v791, %v775
          %v793 = vmul.f32 %v791, %v776
          %v794 = vmul.f32 %v791, %v777
          %v795 = vmul.f32 %v791, %v778
          %v796 = vmul.f32 %v791, %v779
          %v797 = vmul.f32 %v791, %v780
          %v798 = vmul.f32 %v791, %v781
          %v799 = vmul.f32 %v791, %v782
          %v800 = vmul.f32 %v791, %v783
          %v801 = vmul.f32 %v791, %v784
          %v802 = vmul.f32 %v791, %v785
          %v803 = vmul.f32 %v791, %v786
          %v804 = vmul.f32 %v791, %v787
          %v805 = vmul.f32 %v791, %v788
          %v806 = vmul.f32 %v791, %v789
          %v807 = vmul.f32 %v791, %v790
          %v808 = vadd.f32 %v711, %v792
          %v809 = vadd.f32 %v712, %v793
          %v810 = vadd.f32 %v713, %v794
          %v811 = vadd.f32 %v714, %v795
          %v812 = vadd.f32 %v715, %v796
          %v813 = vadd.f32 %v716, %v797
          %v814 = vadd.f32 %v717, %v798
          %v815 = vadd.f32 %v718, %v799
          %v816 = vadd.f32 %v719, %v800
          %v817 = vadd.f32 %v720, %v801
          %v818 = vadd.f32 %v721, %v802
          %v819 = vadd.f32 %v722, %v803
          %v820 = vadd.f32 %v723, %v804
          %v821 = vadd.f32 %v724, %v805
          %v822 = vadd.f32 %v725, %v806
          %v823 = vadd.f32 %v726, %v807
          %v824 = vmul.f32 %v551, %v551
          %v825 = vmul.f32 %v553, %v553
          %v826 = vmul.f32 %v555, %v555
          %v827 = vmul.f32 %v557, %v557
          %v828 = vmul.f32 %v559, %v559
          %v829 = vmul.f32 %v561, %v561
          %v830 = vmul.f32 %v563, %v563
          %v831 = vmul.f32 %v565, %v565
          %v832 = vmul.f32 %v567, %v567
          %v833 = vmul.f32 %v569, %v569
          %v834 = vmul.f32 %v571, %v571
          %v835 = vmul.f32 %v573, %v573
          %v836 = vmul.f32 %v575, %v575
          %v837 = vmul.f32 %v577, %v577
          %v838 = vmul.f32 %v579, %v579
          %v839 = vmul.f32 %v581, %v581
          %v840 = vsub.f32 1.0, %v824
          %v841 = vsub.f32 1.0, %v825
          %v842 = vsub.f32 1.0, %v826
          %v843 = vsub.f32 1.0, %v827
          %v844 = vsub.f32 1.0, %v828
          %v845 = vsub.f32 1.0, %v829
          %v846 = vsub.f32 1.0, %v830
          %v847 = vsub.f32 1.0, %v831
          %v848 = vsub.f32 1.0, %v832
          %v849 = vsub.f32 1.0, %v833
          %v850 = vsub.f32 1.0, %v834
          %v851 = vsub.f32 1.0, %v835
          %v852 = vsub.f32 1.0, %v836
          %v853 = vsub.f32 1.0, %v837
          %v854 = vsub.f32 1.0, %v838
          %v855 = vsub.f32 1.0, %v839
          %v856 = vadd.f32 %v824, 1.0
          %v857 = vadd.f32 %v825, 1.0
          %v858 = vadd.f32 %v826, 1.0
          %v859 = vadd.f32 %v827, 1.0
          %v860 = vadd.f32 %v828, 1.0
          %v861 = vadd.f32 %v829, 1.0
          %v862 = vadd.f32 %v830, 1.0
          %v863 = vadd.f32 %v831, 1.0
          %v864 = vadd.f32 %v832, 1.0
          %v865 = vadd.f32 %v833, 1.0
          %v866 = vadd.f32 %v834, 1.0
          %v867 = vadd.f32 %v835, 1.0
          %v868 = vadd.f32 %v836, 1.0
          %v869 = vadd.f32 %v837, 1.0
          %v870 = vadd.f32 %v838, 1.0
          %v871 = vadd.f32 %v839, 1.0
          %v872 = vrcp.pop %v856
          %v873 = vrcp.pop %v857
          %v874 = vrcp.pop %v858
          %v875 = vrcp.pop %v859
          %v876 = vrcp.pop %v860
          %v877 = vrcp.pop %v861
          %v878 = vrcp.pop %v862
          %v879 = vrcp.pop %v863
          %v880 = vrcp.pop %v864
          %v881 = vrcp.pop %v865
          %v882 = vrcp.pop %v866
          %v883 = vrcp.pop %v867
          %v884 = vrcp.pop %v868
          %v885 = vrcp.pop %v869
          %v886 = vrcp.pop %v870
          %v887 = vrcp.pop %v871
          %v888 = vmul.f32 %v856, %v872
          %v889 = vmul.f32 %v857, %v873
          %v890 = vmul.f32 %v858, %v874
          %v891 = vmul.f32 %v859, %v875
          %v892 = vmul.f32 %v860, %v876
          %v893 = vmul.f32 %v861, %v877
          %v894 = vmul.f32 %v862, %v878
          %v895 = vmul.f32 %v863, %v879
          %v896 = vmul.f32 %v864, %v880
          %v897 = vmul.f32 %v865, %v881
          %v898 = vmul.f32 %v866, %v882
          %v899 = vmul.f32 %v867, %v883
          %v900 = vmul.f32 %v868, %v884
          %v901 = vmul.f32 %v869, %v885
          %v902 = vmul.f32 %v870, %v886
          %v903 = vmul.f32 %v871, %v887
          %v904 = vsub.f32 2.0, %v888
          %v905 = vsub.f32 2.0, %v889
          %v906 = vsub.f32 2.0, %v890
          %v907 = vsub.f32 2.0, %v891
          %v908 = vsub.f32 2.0, %v892
          %v909 = vsub.f32 2.0, %v893
          %v910 = vsub.f32 2.0, %v894
          %v911 = vsub.f32 2.0, %v895
          %v912 = vsub.f32 2.0, %v896
          %v913 = vsub.f32 2.0, %v897
          %v914 = vsub.f32 2.0, %v898
          %v915 = vsub.f32 2.0, %v899
          %v916 = vsub.f32 2.0, %v900
          %v917 = vsub.f32 2.0, %v901
          %v918 = vsub.f32 2.0, %v902
          %v919 = vsub.f32 2.0, %v903
          %v920 = vmul.f32 %v872, %v904
          %v921 = vmul.f32 %v873, %v905
          %v922 = vmul.f32 %v874, %v906
          %v923 = vmul.f32 %v875, %v907
          %v924 = vmul.f32 %v876, %v908
          %v925 = vmul.f32 %v877, %v909
          %v926 = vmul.f32 %v878, %v910
          %v927 = vmul.f32 %v879, %v911
          %v928 = vmul.f32 %v880, %v912
          %v929 = vmul.f32 %v881, %v913
          %v930 = vmul.f32 %v882, %v914
          %v931 = vmul.f32 %v883, %v915
          %v932 = vmul.f32 %v884, %v916
          %v933 = vmul.f32 %v885, %v917
          %v934 = vmul.f32 %v886, %v918
          %v935 = vmul.f32 %v887, %v919
          %v936 = vmul.f32 %v840, %v920
          %v937 = vmul.f32 %v841, %v921
          %v938 = vmul.f32 %v842, %v922
          %v939 = vmul.f32 %v843, %v923
          %v940 = vmul.f32 %v844, %v924
          %v941 = vmul.f32 %v845, %v925
          %v942 = vmul.f32 %v846, %v926
          %v943 = vmul.f32 %v847, %v927
          %v944 = vmul.f32 %v848, %v928
          %v945 = vmul.f32 %v849, %v929
          %v946 = vmul.f32 %v850, %v930
          %v947 = vmul.f32 %v851, %v931
          %v948 = vmul.f32 %v852, %v932
          %v949 = vmul.f32 %v853, %v933
          %v950 = vmul.f32 %v854, %v934
          %v951 = vmul.f32 %v855, %v935
          %v952 = vsub.f32 0.0, %v936
          %v953 = vsub.f32 0.0, %v937
          %v954 = vsub.f32 0.0, %v938
          %v955 = vsub.f32 0.0, %v939
          %v956 = vsub.f32 0.0, %v940
          %v957 = vsub.f32 0.0, %v941
          %v958 = vsub.f32 0.0, %v942
          %v959 = vsub.f32 0.0, %v943
          %v960 = vsub.f32 0.0, %v944
          %v961 = vsub.f32 0.0, %v945
          %v962 = vsub.f32 0.0, %v946
          %v963 = vsub.f32 0.0, %v947
          %v964 = vsub.f32 0.0, %v948
          %v965 = vsub.f32 0.0, %v949
          %v966 = vsub.f32 0.0, %v950
          %v967 = vsub.f32 0.0, %v951
          %v968 = vsel %vm502, %v936, %v952
          %v969 = vsel %vm503, %v937, %v953
          %v970 = vsel %vm504, %v938, %v954
          %v971 = vsel %vm505, %v939, %v955
          %v972 = vsel %vm506, %v940, %v956
          %v973 = vsel %vm507, %v941, %v957
          %v974 = vsel %vm508, %v942, %v958
          %v975 = vsel %vm509, %v943, %v959
          %v976 = vsel %vm510, %v944, %v960
          %v977 = vsel %vm511, %v945, %v961
          %v978 = vsel %vm512, %v946, %v962
          %v979 = vsel %vm513, %v947, %v963
          %v980 = vsel %vm514, %v948, %v964
          %v981 = vsel %vm515, %v949, %v965
          %v982 = vsel %vm516, %v950, %v966
          %v983 = vsel %vm517, %v951, %v967
          %v984 = vstv %s322
          %v985 = vmul.f32 %v984, %v968
          %v986 = vmul.f32 %v984, %v969
          %v987 = vmul.f32 %v984, %v970
          %v988 = vmul.f32 %v984, %v971
          %v989 = vmul.f32 %v984, %v972
          %v990 = vmul.f32 %v984, %v973
          %v991 = vmul.f32 %v984, %v974
          %v992 = vmul.f32 %v984, %v975
          %v993 = vmul.f32 %v984, %v976
          %v994 = vmul.f32 %v984, %v977
          %v995 = vmul.f32 %v984, %v978
          %v996 = vmul.f32 %v984, %v979
          %v997 = vmul.f32 %v984, %v980
          %v998 = vmul.f32 %v984, %v981
          %v999 = vmul.f32 %v984, %v982
          %v1000 = vmul.f32 %v984, %v983
          %v1001 = vadd.f32 %v808, %v985
          %v1002 = vadd.f32 %v809, %v986
          %v1003 = vadd.f32 %v810, %v987
          %v1004 = vadd.f32 %v811, %v988
          %v1005 = vadd.f32 %v812, %v989
          %v1006 = vadd.f32 %v813, %v990
          %v1007 = vadd.f32 %v814, %v991
          %v1008 = vadd.f32 %v815, %v992
          %v1009 = vadd.f32 %v816, %v993
          %v1010 = vadd.f32 %v817, %v994
          %v1011 = vadd.f32 %v818, %v995
          %v1012 = vadd.f32 %v819, %v996
          %v1013 = vadd.f32 %v820, %v997
          %v1014 = vadd.f32 %v821, %v998
          %v1015 = vadd.f32 %v822, %v999
          %v1016 = vadd.f32 %v823, %v1000
          %v1017 = vand.u32 2147483647, %v438
          %vm1018 = vcmp.le.f32.partialorder %v1017, 0.7853982
          %vm1019 = vcmp.lt.s32.totalorder %v438, 0
          %v1020 = vand.u32 %v438, 2139095040
          %v1021 = vshrl.u32 %v1020, 23
          %v1022 = vsub.s32 %v1021, 127
          %v1023 = vand.u32 2147483647, %v438
          %v1024 = vand.u32 %v1023, 8388607
          %v1025 = vor.u32 %v1024, 8388608
          %v1026 = vsub.s32 0, %v1025
          %v1027 = vadd.s32 %v1022, 1
          %vm1028 = vcmp.gt.s32.totalorder %v1027, 0
          %v1029 = vsel %vm1028, %v1027, 0
          %v1030 = vshrl.u32 %v1029, 5
          %v1031 = vand.u32 %v1029, 31
          %v1032 = vsub.s32 32, %v1031
          %v1033 = vshrl.u32 683565275, %v1032
          %v1034 = vshll.u32 683565275, %v1031
          %v1035 = vshrl.u32 2475754826, %v1032
          %v1036 = vor.u32 %v1034, %v1035
          %v1037 = vshll.u32 2475754826, %v1031
          %v1038 = vshrl.u32 2131351028, %v1032
          %v1039 = vor.u32 %v1037, %v1038
          %v1040 = vshll.u32 2131351028, %v1031
          %v1041 = vshrl.u32 2102212464, %v1032
          %v1042 = vor.u32 %v1040, %v1041
          %v1043 = vshll.u32 2102212464, %v1031
          %v1044 = vshrl.u32 920167782, %v1032
          %v1045 = vor.u32 %v1043, %v1044
          %v1046 = vshll.u32 920167782, %v1031
          %v1047 = vshrl.u32 1326507024, %v1032
          %v1048 = vor.u32 %v1046, %v1047
          %vm1049 = vcmp.lt.s32.totalorder %v1030, 1
          %vm1050 = vcmp.lt.s32.totalorder %v1030, 2
          %vm1051 = vcmp.lt.s32.totalorder %v1030, 3
          %vm1052 = vcmp.lt.s32.totalorder %v1030, 4
          %v1053 = vsel %vm1049, %v1033, %v1036
          %v1054 = vsel %vm1052, %v1042, 2102212464
          %v1055 = vsel %vm1051, %v1039, %v1054
          %v1056 = vsel %vm1050, %v1053, %v1055
          %v1057 = vsel %vm1049, %v1036, %v1039
          %v1058 = vsel %vm1052, %v1045, 920167782
          %v1059 = vsel %vm1051, %v1042, %v1058
          %v1060 = vsel %vm1050, %v1057, %v1059
          %v1061 = vsel %vm1049, %v1039, %v1042
          %v1062 = vsel %vm1052, %v1048, 1326507024
          %v1063 = vsel %vm1051, %v1045, %v1062
          %v1064 = vsel %vm1050, %v1061, %v1063
          %v1065 = vshll.u32 %v1025, 8
          %v1066 = vand.u32 %v1065, 65535
          %v1067 = vshrl.u32 %v1065, 16
          %v1068 = vand.u32 %v1064, 65535
          %v1069 = vshrl.u32 %v1064, 16
          %v1070 = vmul.u32 %v1066, %v1068
          %v1071 = vmul.u32 %v1066, %v1069
          %v1072 = vmul.u32 %v1067, %v1068
          %v1073 = vmul.u32 %v1067, %v1069
          %v1074 = vshll.u32 %v1071, 16
          %v1075 = vshrl.u32 %v1071, 16
          %v1076 = vshll.u32 %v1072, 16
          %v1077 = vshrl.u32 %v1072, 16
          %vm1078 = vc.u32 %v1070, %v1074
          %v1079 = vsel %vm1078, 1, 0
          %v1080 = vadd.s32 %v1070, %v1074
          %v1081 = vadd.s32 %v1073, %v1079
          %vm1082 = vc.u32 %v1080, %v1076
          %v1083 = vsel %vm1082, 1, 0
          %v1084 = vadd.s32 %v1080, %v1076
          %v1085 = vadd.s32 %v1081, %v1083
          %v1086 = vadd.s32 %v1085, %v1075
          %v1087 = vadd.s32 %v1086, %v1077
          %v1088 = vand.u32 %v1065, 65535
          %v1089 = vshrl.u32 %v1065, 16
          %v1090 = vand.u32 %v1060, 65535
          %v1091 = vshrl.u32 %v1060, 16
          %v1092 = vmul.u32 %v1088, %v1090
          %v1093 = vmul.u32 %v1088, %v1091
          %v1094 = vmul.u32 %v1089, %v1090
          %v1095 = vmul.u32 %v1089, %v1091
          %v1096 = vshll.u32 %v1093, 16
          %v1097 = vshrl.u32 %v1093, 16
          %v1098 = vshll.u32 %v1094, 16
          %v1099 = vshrl.u32 %v1094, 16
          %vm1100 = vc.u32 %v1092, %v1096
          %v1101 = vsel %vm1100, 1, 0
          %v1102 = vadd.s32 %v1092, %v1096
          %v1103 = vadd.s32 %v1095, %v1101
          %vm1104 = vc.u32 %v1102, %v1098
          %v1105 = vsel %vm1104, 1, 0
          %v1106 = vadd.s32 %v1102, %v1098
          %v1107 = vadd.s32 %v1103, %v1105
          %v1108 = vadd.s32 %v1107, %v1097
          %v1109 = vadd.s32 %v1108, %v1099
          %v1110 = vmul.u32 %v1065, %v1056
          %v1111 = vadd.s32 %v1087, %v1106
          %vm1112 = vc.u32 %v1087, %v1106
          %v1113 = vadd.s32 %v1109, 1
          %v1114 = vsel %vm1112, %v1113, %v1109
          %v1115 = vadd.s32 %v1110, %v1114
          %v1116 = vadd.s32 %v1115, 536870912
          %v1117 = vshrl.u32 %v1116, 30
          %v1118 = vshll.u32 %v1117, 30
          %v1119 = vsub.s32 %v1115, %v1118
          %vm1120 = vcmp.lt.s32.totalorder %v1119, 0
          %v1121 = vsub.s32 0, %v1119
          %v1122 = vsel %vm1120, %v1121, %v1119
          %v1123 = vclz %v1122
          %v1124 = vsub.s32 %v1123, 2
          %vm1125 = vcmp.gt.s32.totalorder 0, %v1124
          %v1126 = vsel %vm1125, 0, %v1124
          %v1127 = vsub.s32 32, %v1126
          %v1128 = vshll.u32 %v1119, %v1126
          %v1129 = vshrl.u32 %v1111, %v1127
          %v1130 = vor.u32 %v1128, %v1129
          %v1131 = vsub.s32 4294967266, %v1126
          %v1132 = vadd.s32 %v1131, 127
          %v1133 = vshll.u32 %v1132, 23
          %v1134 = vor.u32 4788187, %v1133
          %v1135 = vand.u32 2147483647, %v1134
          %v1137 = vcvt.s32.f32 %v1130
          %v1138 = vmul.f32 %v1137, %v1135
          %v1139 = vxor.u32 %v1138, 2147483648
          %v1140 = vsel %vm1019, %v1139, %v1138
          %v1141 = vsub.s32 4, %v1117
          %v1142 = vsel %vm1019, %v1141, %v1117
          %v1143 = vsel %vm1018, %v438, %v1140
          %v1144 = vsel %vm1018, 0, %v1142
          %v1145 = vmul.f32 %v1143, %v1143
          %v1146 = vmul.f32 %v1145, -0.001358992
          %v1147 = vadd.f32 %v1146, 0.041655596
          %v1148 = vmul.f32 %v1145, %v1147
          %v1149 = vadd.f32 %v1148, -0.4999988
          %v1150 = vmul.f32 %v1145, %v1149
          %v1151 = vadd.f32 1.0, %v1150
          %v1152 = vmul.f32 %v1143, %v1143
          %v1153 = vmul.f32 %v1152, -0.00019511016
          %v1154 = vadd.f32 %v1153, 0.008332121
          %v1155 = vmul.f32 %v1152, %v1154
          %v1156 = vadd.f32 %v1155, -0.16666654
          %v1157 = vmul.f32 %v1152, %v1156
          %v1158 = vadd.f32 %v1157, 1.0
          %v1159 = vmul.f32 %v1158, %v1143
          %vm1160 = vweird.f32 %v438
          %v1161 = vadd.s32 %v1144, 3
          %v1162 = vand.u32 %v1161, 3
          %vm1163 = vcmp.lt.s32.totalorder %v1162, 2
          %vm1164 = vcmp.eq.s32.totalorder %v1162, 0
          %v1165 = vxor.u32 %v1159, 2147483648
          %v1166 = vsel %vm1164, %v1151, %v1165
          %vm1167 = vcmp.eq.s32.totalorder %v1162, 2
          %v1168 = vxor.u32 %v1151, 2147483648
          %v1169 = vsel %vm1167, %v1168, %v1159
          %v1170 = vsel %vm1163, %v1166, %v1169
          %v1171 = vsel %vm1160, nan, %v1170
          %v1172 = vand.u32 2147483647, %v479
          %vm1173 = vcmp.le.f32.partialorder %v1172, 0.7853982
          %vm1174 = vcmp.lt.s32.totalorder %v479, 0
          %v1175 = vand.u32 %v479, 2139095040
          %v1176 = vshrl.u32 %v1175, 23
          %v1177 = vsub.s32 %v1176, 127
          %v1178 = vand.u32 2147483647, %v479
          %v1179 = vand.u32 %v1178, 8388607
          %v1180 = vor.u32 %v1179, 8388608
          %v1181 = vsub.s32 0, %v1180
          %v1182 = vadd.s32 %v1177, 1
          %vm1183 = vcmp.gt.s32.totalorder %v1182, 0
          %v1184 = vsel %vm1183, %v1182, 0
          %v1185 = vshrl.u32 %v1184, 5
          %v1186 = vand.u32 %v1184, 31
          %v1187 = vsub.s32 32, %v1186
          %v1188 = vshrl.u32 683565275, %v1187
          %v1189 = vshll.u32 683565275, %v1186
          %v1190 = vshrl.u32 2475754826, %v1187
          %v1191 = vor.u32 %v1189, %v1190
          %v1192 = vshll.u32 2475754826, %v1186
          %v1193 = vshrl.u32 2131351028, %v1187
          %v1194 = vor.u32 %v1192, %v1193
          %v1195 = vshll.u32 2131351028, %v1186
          %v1196 = vshrl.u32 2102212464, %v1187
          %v1197 = vor.u32 %v1195, %v1196
          %v1198 = vshll.u32 2102212464, %v1186
          %v1199 = vshrl.u32 920167782, %v1187
          %v1200 = vor.u32 %v1198, %v1199
          %v1201 = vshll.u32 920167782, %v1186
          %v1202 = vshrl.u32 1326507024, %v1187
          %v1203 = vor.u32 %v1201, %v1202
          %vm1204 = vcmp.lt.s32.totalorder %v1185, 1
          %vm1205 = vcmp.lt.s32.totalorder %v1185, 2
          %vm1206 = vcmp.lt.s32.totalorder %v1185, 3
          %vm1207 = vcmp.lt.s32.totalorder %v1185, 4
          %v1208 = vsel %vm1204, %v1188, %v1191
          %v1209 = vsel %vm1207, %v1197, 2102212464
          %v1210 = vsel %vm1206, %v1194, %v1209
          %v1211 = vsel %vm1205, %v1208, %v1210
          %v1212 = vsel %vm1204, %v1191, %v1194
          %v1213 = vsel %vm1207, %v1200, 920167782
          %v1214 = vsel %vm1206, %v1197, %v1213
          %v1215 = vsel %vm1205, %v1212, %v1214
          %v1216 = vsel %vm1204, %v1194, %v1197
          %v1217 = vsel %vm1207, %v1203, 1326507024
          %v1218 = vsel %vm1206, %v1200, %v1217
          %v1219 = vsel %vm1205, %v1216, %v1218
          %v1220 = vshll.u32 %v1180, 8
          %v1221 = vand.u32 %v1220, 65535
          %v1222 = vshrl.u32 %v1220, 16
          %v1223 = vand.u32 %v1219, 65535
          %v1224 = vshrl.u32 %v1219, 16
          %v1225 = vmul.u32 %v1221, %v1223
          %v1226 = vmul.u32 %v1221, %v1224
          %v1227 = vmul.u32 %v1222, %v1223
          %v1228 = vmul.u32 %v1222, %v1224
          %v1229 = vshll.u32 %v1226, 16
          %v1230 = vshrl.u32 %v1226, 16
          %v1231 = vshll.u32 %v1227, 16
          %v1232 = vshrl.u32 %v1227, 16
          %vm1233 = vc.u32 %v1225, %v1229
          %v1234 = vsel %vm1233, 1, 0
          %v1235 = vadd.s32 %v1225, %v1229
          %v1236 = vadd.s32 %v1228, %v1234
          %vm1237 = vc.u32 %v1235, %v1231
          %v1238 = vsel %vm1237, 1, 0
          %v1239 = vadd.s32 %v1235, %v1231
          %v1240 = vadd.s32 %v1236, %v1238
          %v1241 = vadd.s32 %v1240, %v1230
          %v1242 = vadd.s32 %v1241, %v1232
          %v1243 = vand.u32 %v1220, 65535
          %v1244 = vshrl.u32 %v1220, 16
          %v1245 = vand.u32 %v1215, 65535
          %v1246 = vshrl.u32 %v1215, 16
          %v1247 = vmul.u32 %v1243, %v1245
          %v1248 = vmul.u32 %v1243, %v1246
          %v1249 = vmul.u32 %v1244, %v1245
          %v1250 = vmul.u32 %v1244, %v1246
          %v1251 = vshll.u32 %v1248, 16
          %v1252 = vshrl.u32 %v1248, 16
          %v1253 = vshll.u32 %v1249, 16
          %v1254 = vshrl.u32 %v1249, 16
          %vm1255 = vc.u32 %v1247, %v1251
          %v1256 = vsel %vm1255, 1, 0
          %v1257 = vadd.s32 %v1247, %v1251
          %v1258 = vadd.s32 %v1250, %v1256
          %vm1259 = vc.u32 %v1257, %v1253
          %v1260 = vsel %vm1259, 1, 0
          %v1261 = vadd.s32 %v1257, %v1253
          %v1262 = vadd.s32 %v1258, %v1260
          %v1263 = vadd.s32 %v1262, %v1252
          %v1264 = vadd.s32 %v1263, %v1254
          %v1265 = vmul.u32 %v1220, %v1211
          %v1266 = vadd.s32 %v1242, %v1261
          %vm1267 = vc.u32 %v1242, %v1261
          %v1268 = vadd.s32 %v1264, 1
          %v1269 = vsel %vm1267, %v1268, %v1264
          %v1270 = vadd.s32 %v1265, %v1269
          %v1271 = vadd.s32 %v1270, 536870912
          %v1272 = vshrl.u32 %v1271, 30
          %v1273 = vshll.u32 %v1272, 30
          %v1274 = vsub.s32 %v1270, %v1273
          %vm1275 = vcmp.lt.s32.totalorder %v1274, 0
          %v1276 = vsub.s32 0, %v1274
          %v1277 = vsel %vm1275, %v1276, %v1274
          %v1278 = vclz %v1277
          %v1279 = vsub.s32 %v1278, 2
          %vm1280 = vcmp.gt.s32.totalorder 0, %v1279
          %v1281 = vsel %vm1280, 0, %v1279
          %v1282 = vsub.s32 32, %v1281
          %v1283 = vshll.u32 %v1274, %v1281
          %v1284 = vshrl.u32 %v1266, %v1282
          %v1285 = vor.u32 %v1283, %v1284
          %v1286 = vsub.s32 4294967266, %v1281
          %v1287 = vadd.s32 %v1286, 127
          %v1288 = vshll.u32 %v1287, 23
          %v1289 = vor.u32 4788187, %v1288
          %v1290 = vand.u32 2147483647, %v1289
          %v1292 = vcvt.s32.f32 %v1285
          %v1293 = vmul.f32 %v1292, %v1290
          %v1294 = vxor.u32 %v1293, 2147483648
          %v1295 = vsel %vm1174, %v1294, %v1293
          %v1296 = vsub.s32 4, %v1272
          %v1297 = vsel %vm1174, %v1296, %v1272
          %v1298 = vsel %vm1173, %v479, %v1295
          %v1299 = vsel %vm1173, 0, %v1297
          %v1300 = vmul.f32 %v1298, %v1298
          %v1301 = vmul.f32 %v1300, -0.001358992
          %v1302 = vadd.f32 %v1301, 0.041655596
          %v1303 = vmul.f32 %v1300, %v1302
          %v1304 = vadd.f32 %v1303, -0.4999988
          %v1305 = vmul.f32 %v1300, %v1304
          %v1306 = vadd.f32 1.0, %v1305
          %v1307 = vmul.f32 %v1298, %v1298
          %v1308 = vmul.f32 %v1307, -0.00019511016
          %v1309 = vadd.f32 %v1308, 0.008332121
          %v1310 = vmul.f32 %v1307, %v1309
          %v1311 = vadd.f32 %v1310, -0.16666654
          %v1312 = vmul.f32 %v1307, %v1311
          %v1313 = vadd.f32 %v1312, 1.0
          %v1314 = vmul.f32 %v1313, %v1298
          %vm1315 = vweird.f32 %v479
          %v1316 = vadd.s32 %v1299, 3
          %v1317 = vand.u32 %v1316, 3
          %vm1318 = vcmp.lt.s32.totalorder %v1317, 2
          %vm1319 = vcmp.eq.s32.totalorder %v1317, 0
          %v1320 = vxor.u32 %v1314, 2147483648
          %v1321 = vsel %vm1319, %v1306, %v1320
          %vm1322 = vcmp.eq.s32.totalorder %v1317, 2
          %v1323 = vxor.u32 %v1306, 2147483648
          %v1324 = vsel %vm1322, %v1323, %v1314
          %v1325 = vsel %vm1318, %v1321, %v1324
          %v1326 = vsel %vm1315, nan, %v1325
          %v1327 = vand.u32 2147483647, %v441
          %vm1328 = vcmp.le.f32.partialorder %v1327, 0.7853982
          %vm1329 = vcmp.lt.s32.totalorder %v441, 0
          %v1330 = vand.u32 %v441, 2139095040
          %v1331 = vshrl.u32 %v1330, 23
          %v1332 = vsub.s32 %v1331, 127
          %v1333 = vand.u32 2147483647, %v441
          %v1334 = vand.u32 %v1333, 8388607
          %v1335 = vor.u32 %v1334, 8388608
          %v1336 = vsub.s32 0, %v1335
          %v1337 = vadd.s32 %v1332, 1
          %vm1338 = vcmp.gt.s32.totalorder %v1337, 0
          %v1339 = vsel %vm1338, %v1337, 0
          %v1340 = vshrl.u32 %v1339, 5
          %v1341 = vand.u32 %v1339, 31
          %v1342 = vsub.s32 32, %v1341
          %v1343 = vshrl.u32 683565275, %v1342
          %v1344 = vshll.u32 683565275, %v1341
          %v1345 = vshrl.u32 2475754826, %v1342
          %v1346 = vor.u32 %v1344, %v1345
          %v1347 = vshll.u32 2475754826, %v1341
          %v1348 = vshrl.u32 2131351028, %v1342
          %v1349 = vor.u32 %v1347, %v1348
          %v1350 = vshll.u32 2131351028, %v1341
          %v1351 = vshrl.u32 2102212464, %v1342
          %v1352 = vor.u32 %v1350, %v1351
          %v1353 = vshll.u32 2102212464, %v1341
          %v1354 = vshrl.u32 920167782, %v1342
          %v1355 = vor.u32 %v1353, %v1354
          %v1356 = vshll.u32 920167782, %v1341
          %v1357 = vshrl.u32 1326507024, %v1342
          %v1358 = vor.u32 %v1356, %v1357
          %vm1359 = vcmp.lt.s32.totalorder %v1340, 1
          %vm1360 = vcmp.lt.s32.totalorder %v1340, 2
          %vm1361 = vcmp.lt.s32.totalorder %v1340, 3
          %vm1362 = vcmp.lt.s32.totalorder %v1340, 4
          %v1363 = vsel %vm1359, %v1343, %v1346
          %v1364 = vsel %vm1362, %v1352, 2102212464
          %v1365 = vsel %vm1361, %v1349, %v1364
          %v1366 = vsel %vm1360, %v1363, %v1365
          %v1367 = vsel %vm1359, %v1346, %v1349
          %v1368 = vsel %vm1362, %v1355, 920167782
          %v1369 = vsel %vm1361, %v1352, %v1368
          %v1370 = vsel %vm1360, %v1367, %v1369
          %v1371 = vsel %vm1359, %v1349, %v1352
          %v1372 = vsel %vm1362, %v1358, 1326507024
          %v1373 = vsel %vm1361, %v1355, %v1372
          %v1374 = vsel %vm1360, %v1371, %v1373
          %v1375 = vshll.u32 %v1335, 8
          %v1376 = vand.u32 %v1375, 65535
          %v1377 = vshrl.u32 %v1375, 16
          %v1378 = vand.u32 %v1374, 65535
          %v1379 = vshrl.u32 %v1374, 16
          %v1380 = vmul.u32 %v1376, %v1378
          %v1381 = vmul.u32 %v1376, %v1379
          %v1382 = vmul.u32 %v1377, %v1378
          %v1383 = vmul.u32 %v1377, %v1379
          %v1384 = vshll.u32 %v1381, 16
          %v1385 = vshrl.u32 %v1381, 16
          %v1386 = vshll.u32 %v1382, 16
          %v1387 = vshrl.u32 %v1382, 16
          %vm1388 = vc.u32 %v1380, %v1384
          %v1389 = vsel %vm1388, 1, 0
          %v1390 = vadd.s32 %v1380, %v1384
          %v1391 = vadd.s32 %v1383, %v1389
          %vm1392 = vc.u32 %v1390, %v1386
          %v1393 = vsel %vm1392, 1, 0
          %v1394 = vadd.s32 %v1390, %v1386
          %v1395 = vadd.s32 %v1391, %v1393
          %v1396 = vadd.s32 %v1395, %v1385
          %v1397 = vadd.s32 %v1396, %v1387
          %v1398 = vand.u32 %v1375, 65535
          %v1399 = vshrl.u32 %v1375, 16
          %v1400 = vand.u32 %v1370, 65535
          %v1401 = vshrl.u32 %v1370, 16
          %v1402 = vmul.u32 %v1398, %v1400
          %v1403 = vmul.u32 %v1398, %v1401
          %v1404 = vmul.u32 %v1399, %v1400
          %v1405 = vmul.u32 %v1399, %v1401
          %v1406 = vshll.u32 %v1403, 16
          %v1407 = vshrl.u32 %v1403, 16
          %v1408 = vshll.u32 %v1404, 16
          %v1409 = vshrl.u32 %v1404, 16
          %vm1410 = vc.u32 %v1402, %v1406
          %v1411 = vsel %vm1410, 1, 0
          %v1412 = vadd.s32 %v1402, %v1406
          %v1413 = vadd.s32 %v1405, %v1411
          %vm1414 = vc.u32 %v1412, %v1408
          %v1415 = vsel %vm1414, 1, 0
          %v1416 = vadd.s32 %v1412, %v1408
          %v1417 = vadd.s32 %v1413, %v1415
          %v1418 = vadd.s32 %v1417, %v1407
          %v1419 = vadd.s32 %v1418, %v1409
          %v1420 = vmul.u32 %v1375, %v1366
          %v1421 = vadd.s32 %v1397, %v1416
          %vm1422 = vc.u32 %v1397, %v1416
          %v1423 = vadd.s32 %v1419, 1
          %v1424 = vsel %vm1422, %v1423, %v1419
          %v1425 = vadd.s32 %v1420, %v1424
          %v1426 = vadd.s32 %v1425, 536870912
          %v1427 = vshrl.u32 %v1426, 30
          %v1428 = vshll.u32 %v1427, 30
          %v1429 = vsub.s32 %v1425, %v1428
          %vm1430 = vcmp.lt.s32.totalorder %v1429, 0
          %v1431 = vsub.s32 0, %v1429
          %v1432 = vsel %vm1430, %v1431, %v1429
          %v1433 = vclz %v1432
          %v1434 = vsub.s32 %v1433, 2
          %vm1435 = vcmp.gt.s32.totalorder 0, %v1434
          %v1436 = vsel %vm1435, 0, %v1434
          %v1437 = vsub.s32 32, %v1436
          %v1438 = vshll.u32 %v1429, %v1436
          %v1439 = vshrl.u32 %v1421, %v1437
          %v1440 = vor.u32 %v1438, %v1439
          %v1441 = vsub.s32 4294967266, %v1436
          %v1442 = vadd.s32 %v1441, 127
          %v1443 = vshll.u32 %v1442, 23
          %v1444 = vor.u32 4788187, %v1443
          %v1445 = vand.u32 2147483647, %v1444
          %v1447 = vcvt.s32.f32 %v1440
          %v1448 = vmul.f32 %v1447, %v1445
          %v1449 = vxor.u32 %v1448, 2147483648
          %v1450 = vsel %vm1329, %v1449, %v1448
          %v1451 = vsub.s32 4, %v1427
          %v1452 = vsel %vm1329, %v1451, %v1427
          %v1453 = vsel %vm1328, %v441, %v1450
          %v1454 = vsel %vm1328, 0, %v1452
          %v1455 = vmul.f32 %v1453, %v1453
          %v1456 = vmul.f32 %v1455, -0.001358992
          %v1457 = vadd.f32 %v1456, 0.041655596
          %v1458 = vmul.f32 %v1455, %v1457
          %v1459 = vadd.f32 %v1458, -0.4999988
          %v1460 = vmul.f32 %v1455, %v1459
          %v1461 = vadd.f32 1.0, %v1460
          %v1462 = vmul.f32 %v1453, %v1453
          %v1463 = vmul.f32 %v1462, -0.00019511016
          %v1464 = vadd.f32 %v1463, 0.008332121
          %v1465 = vmul.f32 %v1462, %v1464
          %v1466 = vadd.f32 %v1465, -0.16666654
          %v1467 = vmul.f32 %v1462, %v1466
          %v1468 = vadd.f32 %v1467, 1.0
          %v1469 = vmul.f32 %v1468, %v1453
          %vm1470 = vweird.f32 %v441
          %v1471 = vadd.s32 %v1454, 3
          %v1472 = vand.u32 %v1471, 3
          %vm1473 = vcmp.lt.s32.totalorder %v1472, 2
          %vm1474 = vcmp.eq.s32.totalorder %v1472, 0
          %v1475 = vxor.u32 %v1469, 2147483648
          %v1476 = vsel %vm1474, %v1461, %v1475
          %vm1477 = vcmp.eq.s32.totalorder %v1472, 2
          %v1478 = vxor.u32 %v1461, 2147483648
          %v1479 = vsel %vm1477, %v1478, %v1469
          %v1480 = vsel %vm1473, %v1476, %v1479
          %v1481 = vsel %vm1470, nan, %v1480
          %v1482 = vand.u32 2147483647, %v482
          %vm1483 = vcmp.le.f32.partialorder %v1482, 0.7853982
          %vm1484 = vcmp.lt.s32.totalorder %v482, 0
          %v1485 = vand.u32 %v482, 2139095040
          %v1486 = vshrl.u32 %v1485, 23
          %v1487 = vsub.s32 %v1486, 127
          %v1488 = vand.u32 2147483647, %v482
          %v1489 = vand.u32 %v1488, 8388607
          %v1490 = vor.u32 %v1489, 8388608
          %v1491 = vsub.s32 0, %v1490
          %v1492 = vadd.s32 %v1487, 1
          %vm1493 = vcmp.gt.s32.totalorder %v1492, 0
          %v1494 = vsel %vm1493, %v1492, 0
          %v1495 = vshrl.u32 %v1494, 5
          %v1496 = vand.u32 %v1494, 31
          %v1497 = vsub.s32 32, %v1496
          %v1498 = vshrl.u32 683565275, %v1497
          %v1499 = vshll.u32 683565275, %v1496
          %v1500 = vshrl.u32 2475754826, %v1497
          %v1501 = vor.u32 %v1499, %v1500
          %v1502 = vshll.u32 2475754826, %v1496
          %v1503 = vshrl.u32 2131351028, %v1497
          %v1504 = vor.u32 %v1502, %v1503
          %v1505 = vshll.u32 2131351028, %v1496
          %v1506 = vshrl.u32 2102212464, %v1497
          %v1507 = vor.u32 %v1505, %v1506
          %v1508 = vshll.u32 2102212464, %v1496
          %v1509 = vshrl.u32 920167782, %v1497
          %v1510 = vor.u32 %v1508, %v1509
          %v1511 = vshll.u32 920167782, %v1496
          %v1512 = vshrl.u32 1326507024, %v1497
          %v1513 = vor.u32 %v1511, %v1512
          %vm1514 = vcmp.lt.s32.totalorder %v1495, 1
          %vm1515 = vcmp.lt.s32.totalorder %v1495, 2
          %vm1516 = vcmp.lt.s32.totalorder %v1495, 3
          %vm1517 = vcmp.lt.s32.totalorder %v1495, 4
          %v1518 = vsel %vm1514, %v1498, %v1501
          %v1519 = vsel %vm1517, %v1507, 2102212464
          %v1520 = vsel %vm1516, %v1504, %v1519
          %v1521 = vsel %vm1515, %v1518, %v1520
          %v1522 = vsel %vm1514, %v1501, %v1504
          %v1523 = vsel %vm1517, %v1510, 920167782
          %v1524 = vsel %vm1516, %v1507, %v1523
          %v1525 = vsel %vm1515, %v1522, %v1524
          %v1526 = vsel %vm1514, %v1504, %v1507
          %v1527 = vsel %vm1517, %v1513, 1326507024
          %v1528 = vsel %vm1516, %v1510, %v1527
          %v1529 = vsel %vm1515, %v1526, %v1528
          %v1530 = vshll.u32 %v1490, 8
          %v1531 = vand.u32 %v1530, 65535
          %v1532 = vshrl.u32 %v1530, 16
          %v1533 = vand.u32 %v1529, 65535
          %v1534 = vshrl.u32 %v1529, 16
          %v1535 = vmul.u32 %v1531, %v1533
          %v1536 = vmul.u32 %v1531, %v1534
          %v1537 = vmul.u32 %v1532, %v1533
          %v1538 = vmul.u32 %v1532, %v1534
          %v1539 = vshll.u32 %v1536, 16
          %v1540 = vshrl.u32 %v1536, 16
          %v1541 = vshll.u32 %v1537, 16
          %v1542 = vshrl.u32 %v1537, 16
          %vm1543 = vc.u32 %v1535, %v1539
          %v1544 = vsel %vm1543, 1, 0
          %v1545 = vadd.s32 %v1535, %v1539
          %v1546 = vadd.s32 %v1538, %v1544
          %vm1547 = vc.u32 %v1545, %v1541
          %v1548 = vsel %vm1547, 1, 0
          %v1549 = vadd.s32 %v1545, %v1541
          %v1550 = vadd.s32 %v1546, %v1548
          %v1551 = vadd.s32 %v1550, %v1540
          %v1552 = vadd.s32 %v1551, %v1542
          %v1553 = vand.u32 %v1530, 65535
          %v1554 = vshrl.u32 %v1530, 16
          %v1555 = vand.u32 %v1525, 65535
          %v1556 = vshrl.u32 %v1525, 16
          %v1557 = vmul.u32 %v1553, %v1555
          %v1558 = vmul.u32 %v1553, %v1556
          %v1559 = vmul.u32 %v1554, %v1555
          %v1560 = vmul.u32 %v1554, %v1556
          %v1561 = vshll.u32 %v1558, 16
          %v1562 = vshrl.u32 %v1558, 16
          %v1563 = vshll.u32 %v1559, 16
          %v1564 = vshrl.u32 %v1559, 16
          %vm1565 = vc.u32 %v1557, %v1561
          %v1566 = vsel %vm1565, 1, 0
          %v1567 = vadd.s32 %v1557, %v1561
          %v1568 = vadd.s32 %v1560, %v1566
          %vm1569 = vc.u32 %v1567, %v1563
          %v1570 = vsel %vm1569, 1, 0
          %v1571 = vadd.s32 %v1567, %v1563
          %v1572 = vadd.s32 %v1568, %v1570
          %v1573 = vadd.s32 %v1572, %v1562
          %v1574 = vadd.s32 %v1573, %v1564
          %v1575 = vmul.u32 %v1530, %v1521
          %v1576 = vadd.s32 %v1552, %v1571
          %vm1577 = vc.u32 %v1552, %v1571
          %v1578 = vadd.s32 %v1574, 1
          %v1579 = vsel %vm1577, %v1578, %v1574
          %v1580 = vadd.s32 %v1575, %v1579
          %v1581 = vadd.s32 %v1580, 536870912
          %v1582 = vshrl.u32 %v1581, 30
          %v1583 = vshll.u32 %v1582, 30
          %v1584 = vsub.s32 %v1580, %v1583
          %vm1585 = vcmp.lt.s32.totalorder %v1584, 0
          %v1586 = vsub.s32 0, %v1584
          %v1587 = vsel %vm1585, %v1586, %v1584
          %v1588 = vclz %v1587
          %v1589 = vsub.s32 %v1588, 2
          %vm1590 = vcmp.gt.s32.totalorder 0, %v1589
          %v1591 = vsel %vm1590, 0, %v1589
          %v1592 = vsub.s32 32, %v1591
          %v1593 = vshll.u32 %v1584, %v1591
          %v1594 = vshrl.u32 %v1576, %v1592
          %v1595 = vor.u32 %v1593, %v1594
          %v1596 = vsub.s32 4294967266, %v1591
          %v1597 = vadd.s32 %v1596, 127
          %v1598 = vshll.u32 %v1597, 23
          %v1599 = vor.u32 4788187, %v1598
          %v1600 = vand.u32 2147483647, %v1599
          %v1602 = vcvt.s32.f32 %v1595
          %v1603 = vmul.f32 %v1602, %v1600
          %v1604 = vxor.u32 %v1603, 2147483648
          %v1605 = vsel %vm1484, %v1604, %v1603
          %v1606 = vsub.s32 4, %v1582
          %v1607 = vsel %vm1484, %v1606, %v1582
          %v1608 = vsel %vm1483, %v482, %v1605
          %v1609 = vsel %vm1483, 0, %v1607
          %v1610 = vmul.f32 %v1608, %v1608
          %v1611 = vmul.f32 %v1610, -0.001358992
          %v1612 = vadd.f32 %v1611, 0.041655596
          %v1613 = vmul.f32 %v1610, %v1612
          %v1614 = vadd.f32 %v1613, -0.4999988
          %v1615 = vmul.f32 %v1610, %v1614
          %v1616 = vadd.f32 1.0, %v1615
          %v1617 = vmul.f32 %v1608, %v1608
          %v1618 = vmul.f32 %v1617, -0.00019511016
          %v1619 = vadd.f32 %v1618, 0.008332121
          %v1620 = vmul.f32 %v1617, %v1619
          %v1621 = vadd.f32 %v1620, -0.16666654
          %v1622 = vmul.f32 %v1617, %v1621
          %v1623 = vadd.f32 %v1622, 1.0
          %v1624 = vmul.f32 %v1623, %v1608
          %vm1625 = vweird.f32 %v482
          %v1626 = vadd.s32 %v1609, 3
          %v1627 = vand.u32 %v1626, 3
          %vm1628 = vcmp.lt.s32.totalorder %v1627, 2
          %vm1629 = vcmp.eq.s32.totalorder %v1627, 0
          %v1630 = vxor.u32 %v1624, 2147483648
          %v1631 = vsel %vm1629, %v1616, %v1630
          %vm1632 = vcmp.eq.s32.totalorder %v1627, 2
          %v1633 = vxor.u32 %v1616, 2147483648
          %v1634 = vsel %vm1632, %v1633, %v1624
          %v1635 = vsel %vm1628, %v1631, %v1634
          %v1636 = vsel %vm1625, nan, %v1635
          %v1637 = vand.u32 2147483647, %v444
          %vm1638 = vcmp.le.f32.partialorder %v1637, 0.7853982
          %vm1639 = vcmp.lt.s32.totalorder %v444, 0
          %v1640 = vand.u32 %v444, 2139095040
          %v1641 = vshrl.u32 %v1640, 23
          %v1642 = vsub.s32 %v1641, 127
          %v1643 = vand.u32 2147483647, %v444
          %v1644 = vand.u32 %v1643, 8388607
          %v1645 = vor.u32 %v1644, 8388608
          %v1646 = vsub.s32 0, %v1645
          %v1647 = vadd.s32 %v1642, 1
          %vm1648 = vcmp.gt.s32.totalorder %v1647, 0
          %v1649 = vsel %vm1648, %v1647, 0
          %v1650 = vshrl.u32 %v1649, 5
          %v1651 = vand.u32 %v1649, 31
          %v1652 = vsub.s32 32, %v1651
          %v1653 = vshrl.u32 683565275, %v1652
          %v1654 = vshll.u32 683565275, %v1651
          %v1655 = vshrl.u32 2475754826, %v1652
          %v1656 = vor.u32 %v1654, %v1655
          %v1657 = vshll.u32 2475754826, %v1651
          %v1658 = vshrl.u32 2131351028, %v1652
          %v1659 = vor.u32 %v1657, %v1658
          %v1660 = vshll.u32 2131351028, %v1651
          %v1661 = vshrl.u32 2102212464, %v1652
          %v1662 = vor.u32 %v1660, %v1661
          %v1663 = vshll.u32 2102212464, %v1651
          %v1664 = vshrl.u32 920167782, %v1652
          %v1665 = vor.u32 %v1663, %v1664
          %v1666 = vshll.u32 920167782, %v1651
          %v1667 = vshrl.u32 1326507024, %v1652
          %v1668 = vor.u32 %v1666, %v1667
          %vm1669 = vcmp.lt.s32.totalorder %v1650, 1
          %vm1670 = vcmp.lt.s32.totalorder %v1650, 2
          %vm1671 = vcmp.lt.s32.totalorder %v1650, 3
          %vm1672 = vcmp.lt.s32.totalorder %v1650, 4
          %v1673 = vsel %vm1669, %v1653, %v1656
          %v1674 = vsel %vm1672, %v1662, 2102212464
          %v1675 = vsel %vm1671, %v1659, %v1674
          %v1676 = vsel %vm1670, %v1673, %v1675
          %v1677 = vsel %vm1669, %v1656, %v1659
          %v1678 = vsel %vm1672, %v1665, 920167782
          %v1679 = vsel %vm1671, %v1662, %v1678
          %v1680 = vsel %vm1670, %v1677, %v1679
          %v1681 = vsel %vm1669, %v1659, %v1662
          %v1682 = vsel %vm1672, %v1668, 1326507024
          %v1683 = vsel %vm1671, %v1665, %v1682
          %v1684 = vsel %vm1670, %v1681, %v1683
          %v1685 = vshll.u32 %v1645, 8
          %v1686 = vand.u32 %v1685, 65535
          %v1687 = vshrl.u32 %v1685, 16
          %v1688 = vand.u32 %v1684, 65535
          %v1689 = vshrl.u32 %v1684, 16
          %v1690 = vmul.u32 %v1686, %v1688
          %v1691 = vmul.u32 %v1686, %v1689
          %v1692 = vmul.u32 %v1687, %v1688
          %v1693 = vmul.u32 %v1687, %v1689
          %v1694 = vshll.u32 %v1691, 16
          %v1695 = vshrl.u32 %v1691, 16
          %v1696 = vshll.u32 %v1692, 16
          %v1697 = vshrl.u32 %v1692, 16
          %vm1698 = vc.u32 %v1690, %v1694
          %v1699 = vsel %vm1698, 1, 0
          %v1700 = vadd.s32 %v1690, %v1694
          %v1701 = vadd.s32 %v1693, %v1699
          %vm1702 = vc.u32 %v1700, %v1696
          %v1703 = vsel %vm1702, 1, 0
          %v1704 = vadd.s32 %v1700, %v1696
          %v1705 = vadd.s32 %v1701, %v1703
          %v1706 = vadd.s32 %v1705, %v1695
          %v1707 = vadd.s32 %v1706, %v1697
          %v1708 = vand.u32 %v1685, 65535
          %v1709 = vshrl.u32 %v1685, 16
          %v1710 = vand.u32 %v1680, 65535
          %v1711 = vshrl.u32 %v1680, 16
          %v1712 = vmul.u32 %v1708, %v1710
          %v1713 = vmul.u32 %v1708, %v1711
          %v1714 = vmul.u32 %v1709, %v1710
          %v1715 = vmul.u32 %v1709, %v1711
          %v1716 = vshll.u32 %v1713, 16
          %v1717 = vshrl.u32 %v1713, 16
          %v1718 = vshll.u32 %v1714, 16
          %v1719 = vshrl.u32 %v1714, 16
          %vm1720 = vc.u32 %v1712, %v1716
          %v1721 = vsel %vm1720, 1, 0
          %v1722 = vadd.s32 %v1712, %v1716
          %v1723 = vadd.s32 %v1715, %v1721
          %vm1724 = vc.u32 %v1722, %v1718
          %v1725 = vsel %vm1724, 1, 0
          %v1726 = vadd.s32 %v1722, %v1718
          %v1727 = vadd.s32 %v1723, %v1725
          %v1728 = vadd.s32 %v1727, %v1717
          %v1729 = vadd.s32 %v1728, %v1719
          %v1730 = vmul.u32 %v1685, %v1676
          %v1731 = vadd.s32 %v1707, %v1726
          %vm1732 = vc.u32 %v1707, %v1726
          %v1733 = vadd.s32 %v1729, 1
          %v1734 = vsel %vm1732, %v1733, %v1729
          %v1735 = vadd.s32 %v1730, %v1734
          %v1736 = vadd.s32 %v1735, 536870912
          %v1737 = vshrl.u32 %v1736, 30
          %v1738 = vshll.u32 %v1737, 30
          %v1739 = vsub.s32 %v1735, %v1738
          %vm1740 = vcmp.lt.s32.totalorder %v1739, 0
          %v1741 = vsub.s32 0, %v1739
          %v1742 = vsel %vm1740, %v1741, %v1739
          %v1743 = vclz %v1742
          %v1744 = vsub.s32 %v1743, 2
          %vm1745 = vcmp.gt.s32.totalorder 0, %v1744
          %v1746 = vsel %vm1745, 0, %v1744
          %v1747 = vsub.s32 32, %v1746
          %v1748 = vshll.u32 %v1739, %v1746
          %v1749 = vshrl.u32 %v1731, %v1747
          %v1750 = vor.u32 %v1748, %v1749
          %v1751 = vsub.s32 4294967266, %v1746
          %v1752 = vadd.s32 %v1751, 127
          %v1753 = vshll.u32 %v1752, 23
          %v1754 = vor.u32 4788187, %v1753
          %v1755 = vand.u32 2147483647, %v1754
          %v1757 = vcvt.s32.f32 %v1750
          %v1758 = vmul.f32 %v1757, %v1755
          %v1759 = vxor.u32 %v1758, 2147483648
          %v1760 = vsel %vm1639, %v1759, %v1758
          %v1761 = vsub.s32 4, %v1737
          %v1762 = vsel %vm1639, %v1761, %v1737
          %v1763 = vsel %vm1638, %v444, %v1760
          %v1764 = vsel %vm1638, 0, %v1762
          %v1765 = vmul.f32 %v1763, %v1763
          %v1766 = vmul.f32 %v1765, -0.001358992
          %v1767 = vadd.f32 %v1766, 0.041655596
          %v1768 = vmul.f32 %v1765, %v1767
          %v1769 = vadd.f32 %v1768, -0.4999988
          %v1770 = vmul.f32 %v1765, %v1769
          %v1771 = vadd.f32 1.0, %v1770
          %v1772 = vmul.f32 %v1763, %v1763
          %v1773 = vmul.f32 %v1772, -0.00019511016
          %v1774 = vadd.f32 %v1773, 0.008332121
          %v1775 = vmul.f32 %v1772, %v1774
          %v1776 = vadd.f32 %v1775, -0.16666654
          %v1777 = vmul.f32 %v1772, %v1776
          %v1778 = vadd.f32 %v1777, 1.0
          %v1779 = vmul.f32 %v1778, %v1763
          %vm1780 = vweird.f32 %v444
          %v1781 = vadd.s32 %v1764, 3
          %v1782 = vand.u32 %v1781, 3
          %vm1783 = vcmp.lt.s32.totalorder %v1782, 2
          %vm1784 = vcmp.eq.s32.totalorder %v1782, 0
          %v1785 = vxor.u32 %v1779, 2147483648
          %v1786 = vsel %vm1784, %v1771, %v1785
          %vm1787 = vcmp.eq.s32.totalorder %v1782, 2
          %v1788 = vxor.u32 %v1771, 2147483648
          %v1789 = vsel %vm1787, %v1788, %v1779
          %v1790 = vsel %vm1783, %v1786, %v1789
          %v1791 = vsel %vm1780, nan, %v1790
          %v1792 = vand.u32 2147483647, %v485
          %vm1793 = vcmp.le.f32.partialorder %v1792, 0.7853982
          %vm1794 = vcmp.lt.s32.totalorder %v485, 0
          %v1795 = vand.u32 %v485, 2139095040
          %v1796 = vshrl.u32 %v1795, 23
          %v1797 = vsub.s32 %v1796, 127
          %v1798 = vand.u32 2147483647, %v485
          %v1799 = vand.u32 %v1798, 8388607
          %v1800 = vor.u32 %v1799, 8388608
          %v1801 = vsub.s32 0, %v1800
          %v1802 = vadd.s32 %v1797, 1
          %vm1803 = vcmp.gt.s32.totalorder %v1802, 0
          %v1804 = vsel %vm1803, %v1802, 0
          %v1805 = vshrl.u32 %v1804, 5
          %v1806 = vand.u32 %v1804, 31
          %v1807 = vsub.s32 32, %v1806
          %v1808 = vshrl.u32 683565275, %v1807
          %v1809 = vshll.u32 683565275, %v1806
          %v1810 = vshrl.u32 2475754826, %v1807
          %v1811 = vor.u32 %v1809, %v1810
          %v1812 = vshll.u32 2475754826, %v1806
          %v1813 = vshrl.u32 2131351028, %v1807
          %v1814 = vor.u32 %v1812, %v1813
          %v1815 = vshll.u32 2131351028, %v1806
          %v1816 = vshrl.u32 2102212464, %v1807
          %v1817 = vor.u32 %v1815, %v1816
          %v1818 = vshll.u32 2102212464, %v1806
          %v1819 = vshrl.u32 920167782, %v1807
          %v1820 = vor.u32 %v1818, %v1819
          %v1821 = vshll.u32 920167782, %v1806
          %v1822 = vshrl.u32 1326507024, %v1807
          %v1823 = vor.u32 %v1821, %v1822
          %vm1824 = vcmp.lt.s32.totalorder %v1805, 1
          %vm1825 = vcmp.lt.s32.totalorder %v1805, 2
          %vm1826 = vcmp.lt.s32.totalorder %v1805, 3
          %vm1827 = vcmp.lt.s32.totalorder %v1805, 4
          %v1828 = vsel %vm1824, %v1808, %v1811
          %v1829 = vsel %vm1827, %v1817, 2102212464
          %v1830 = vsel %vm1826, %v1814, %v1829
          %v1831 = vsel %vm1825, %v1828, %v1830
          %v1832 = vsel %vm1824, %v1811, %v1814
          %v1833 = vsel %vm1827, %v1820, 920167782
          %v1834 = vsel %vm1826, %v1817, %v1833
          %v1835 = vsel %vm1825, %v1832, %v1834
          %v1836 = vsel %vm1824, %v1814, %v1817
          %v1837 = vsel %vm1827, %v1823, 1326507024
          %v1838 = vsel %vm1826, %v1820, %v1837
          %v1839 = vsel %vm1825, %v1836, %v1838
          %v1840 = vshll.u32 %v1800, 8
          %v1841 = vand.u32 %v1840, 65535
          %v1842 = vshrl.u32 %v1840, 16
          %v1843 = vand.u32 %v1839, 65535
          %v1844 = vshrl.u32 %v1839, 16
          %v1845 = vmul.u32 %v1841, %v1843
          %v1846 = vmul.u32 %v1841, %v1844
          %v1847 = vmul.u32 %v1842, %v1843
          %v1848 = vmul.u32 %v1842, %v1844
          %v1849 = vshll.u32 %v1846, 16
          %v1850 = vshrl.u32 %v1846, 16
          %v1851 = vshll.u32 %v1847, 16
          %v1852 = vshrl.u32 %v1847, 16
          %vm1853 = vc.u32 %v1845, %v1849
          %v1854 = vsel %vm1853, 1, 0
          %v1855 = vadd.s32 %v1845, %v1849
          %v1856 = vadd.s32 %v1848, %v1854
          %vm1857 = vc.u32 %v1855, %v1851
          %v1858 = vsel %vm1857, 1, 0
          %v1859 = vadd.s32 %v1855, %v1851
          %v1860 = vadd.s32 %v1856, %v1858
          %v1861 = vadd.s32 %v1860, %v1850
          %v1862 = vadd.s32 %v1861, %v1852
          %v1863 = vand.u32 %v1840, 65535
          %v1864 = vshrl.u32 %v1840, 16
          %v1865 = vand.u32 %v1835, 65535
          %v1866 = vshrl.u32 %v1835, 16
          %v1867 = vmul.u32 %v1863, %v1865
          %v1868 = vmul.u32 %v1863, %v1866
          %v1869 = vmul.u32 %v1864, %v1865
          %v1870 = vmul.u32 %v1864, %v1866
          %v1871 = vshll.u32 %v1868, 16
          %v1872 = vshrl.u32 %v1868, 16
          %v1873 = vshll.u32 %v1869, 16
          %v1874 = vshrl.u32 %v1869, 16
          %vm1875 = vc.u32 %v1867, %v1871
          %v1876 = vsel %vm1875, 1, 0
          %v1877 = vadd.s32 %v1867, %v1871
          %v1878 = vadd.s32 %v1870, %v1876
          %vm1879 = vc.u32 %v1877, %v1873
          %v1880 = vsel %vm1879, 1, 0
          %v1881 = vadd.s32 %v1877, %v1873
          %v1882 = vadd.s32 %v1878, %v1880
          %v1883 = vadd.s32 %v1882, %v1872
          %v1884 = vadd.s32 %v1883, %v1874
          %v1885 = vmul.u32 %v1840, %v1831
          %v1886 = vadd.s32 %v1862, %v1881
          %vm1887 = vc.u32 %v1862, %v1881
          %v1888 = vadd.s32 %v1884, 1
          %v1889 = vsel %vm1887, %v1888, %v1884
          %v1890 = vadd.s32 %v1885, %v1889
          %v1891 = vadd.s32 %v1890, 536870912
          %v1892 = vshrl.u32 %v1891, 30
          %v1893 = vshll.u32 %v1892, 30
          %v1894 = vsub.s32 %v1890, %v1893
          %vm1895 = vcmp.lt.s32.totalorder %v1894, 0
          %v1896 = vsub.s32 0, %v1894
          %v1897 = vsel %vm1895, %v1896, %v1894
          %v1898 = vclz %v1897
          %v1899 = vsub.s32 %v1898, 2
          %vm1900 = vcmp.gt.s32.totalorder 0, %v1899
          %v1901 = vsel %vm1900, 0, %v1899
          %v1902 = vsub.s32 32, %v1901
          %v1903 = vshll.u32 %v1894, %v1901
          %v1904 = vshrl.u32 %v1886, %v1902
          %v1905 = vor.u32 %v1903, %v1904
          %v1906 = vsub.s32 4294967266, %v1901
          %v1907 = vadd.s32 %v1906, 127
          %v1908 = vshll.u32 %v1907, 23
          %v1909 = vor.u32 4788187, %v1908
          %v1910 = vand.u32 2147483647, %v1909
          %v1912 = vcvt.s32.f32 %v1905
          %v1913 = vmul.f32 %v1912, %v1910
          %v1914 = vxor.u32 %v1913, 2147483648
          %v1915 = vsel %vm1794, %v1914, %v1913
          %v1916 = vsub.s32 4, %v1892
          %v1917 = vsel %vm1794, %v1916, %v1892
          %v1918 = vsel %vm1793, %v485, %v1915
          %v1919 = vsel %vm1793, 0, %v1917
          %v1920 = vmul.f32 %v1918, %v1918
          %v1921 = vmul.f32 %v1920, -0.001358992
          %v1922 = vadd.f32 %v1921, 0.041655596
          %v1923 = vmul.f32 %v1920, %v1922
          %v1924 = vadd.f32 %v1923, -0.4999988
          %v1925 = vmul.f32 %v1920, %v1924
          %v1926 = vadd.f32 1.0, %v1925
          %v1927 = vmul.f32 %v1918, %v1918
          %v1928 = vmul.f32 %v1927, -0.00019511016
          %v1929 = vadd.f32 %v1928, 0.008332121
          %v1930 = vmul.f32 %v1927, %v1929
          %v1931 = vadd.f32 %v1930, -0.16666654
          %v1932 = vmul.f32 %v1927, %v1931
          %v1933 = vadd.f32 %v1932, 1.0
          %v1934 = vmul.f32 %v1933, %v1918
          %vm1935 = vweird.f32 %v485
          %v1936 = vadd.s32 %v1919, 3
          %v1937 = vand.u32 %v1936, 3
          %vm1938 = vcmp.lt.s32.totalorder %v1937, 2
          %vm1939 = vcmp.eq.s32.totalorder %v1937, 0
          %v1940 = vxor.u32 %v1934, 2147483648
          %v1941 = vsel %vm1939, %v1926, %v1940
          %vm1942 = vcmp.eq.s32.totalorder %v1937, 2
          %v1943 = vxor.u32 %v1926, 2147483648
          %v1944 = vsel %vm1942, %v1943, %v1934
          %v1945 = vsel %vm1938, %v1941, %v1944
          %v1946 = vsel %vm1935, nan, %v1945
          %v1947 = vand.u32 2147483647, %v447
          %vm1948 = vcmp.le.f32.partialorder %v1947, 0.7853982
          %vm1949 = vcmp.lt.s32.totalorder %v447, 0
          %v1950 = vand.u32 %v447, 2139095040
          %v1951 = vshrl.u32 %v1950, 23
          %v1952 = vsub.s32 %v1951, 127
          %v1953 = vand.u32 2147483647, %v447
          %v1954 = vand.u32 %v1953, 8388607
          %v1955 = vor.u32 %v1954, 8388608
          %v1956 = vsub.s32 0, %v1955
          %v1957 = vadd.s32 %v1952, 1
          %vm1958 = vcmp.gt.s32.totalorder %v1957, 0
          %v1959 = vsel %vm1958, %v1957, 0
          %v1960 = vshrl.u32 %v1959, 5
          %v1961 = vand.u32 %v1959, 31
          %v1962 = vsub.s32 32, %v1961
          %v1963 = vshrl.u32 683565275, %v1962
          %v1964 = vshll.u32 683565275, %v1961
          %v1965 = vshrl.u32 2475754826, %v1962
          %v1966 = vor.u32 %v1964, %v1965
          %v1967 = vshll.u32 2475754826, %v1961
          %v1968 = vshrl.u32 2131351028, %v1962
          %v1969 = vor.u32 %v1967, %v1968
          %v1970 = vshll.u32 2131351028, %v1961
          %v1971 = vshrl.u32 2102212464, %v1962
          %v1972 = vor.u32 %v1970, %v1971
          %v1973 = vshll.u32 2102212464, %v1961
          %v1974 = vshrl.u32 920167782, %v1962
          %v1975 = vor.u32 %v1973, %v1974
          %v1976 = vshll.u32 920167782, %v1961
          %v1977 = vshrl.u32 1326507024, %v1962
          %v1978 = vor.u32 %v1976, %v1977
          %vm1979 = vcmp.lt.s32.totalorder %v1960, 1
          %vm1980 = vcmp.lt.s32.totalorder %v1960, 2
          %vm1981 = vcmp.lt.s32.totalorder %v1960, 3
          %vm1982 = vcmp.lt.s32.totalorder %v1960, 4
          %v1983 = vsel %vm1979, %v1963, %v1966
          %v1984 = vsel %vm1982, %v1972, 2102212464
          %v1985 = vsel %vm1981, %v1969, %v1984
          %v1986 = vsel %vm1980, %v1983, %v1985
          %v1987 = vsel %vm1979, %v1966, %v1969
          %v1988 = vsel %vm1982, %v1975, 920167782
          %v1989 = vsel %vm1981, %v1972, %v1988
          %v1990 = vsel %vm1980, %v1987, %v1989
          %v1991 = vsel %vm1979, %v1969, %v1972
          %v1992 = vsel %vm1982, %v1978, 1326507024
          %v1993 = vsel %vm1981, %v1975, %v1992
          %v1994 = vsel %vm1980, %v1991, %v1993
          %v1995 = vshll.u32 %v1955, 8
          %v1996 = vand.u32 %v1995, 65535
          %v1997 = vshrl.u32 %v1995, 16
          %v1998 = vand.u32 %v1994, 65535
          %v1999 = vshrl.u32 %v1994, 16
          %v2000 = vmul.u32 %v1996, %v1998
          %v2001 = vmul.u32 %v1996, %v1999
          %v2002 = vmul.u32 %v1997, %v1998
          %v2003 = vmul.u32 %v1997, %v1999
          %v2004 = vshll.u32 %v2001, 16
          %v2005 = vshrl.u32 %v2001, 16
          %v2006 = vshll.u32 %v2002, 16
          %v2007 = vshrl.u32 %v2002, 16
          %vm2008 = vc.u32 %v2000, %v2004
          %v2009 = vsel %vm2008, 1, 0
          %v2010 = vadd.s32 %v2000, %v2004
          %v2011 = vadd.s32 %v2003, %v2009
          %vm2012 = vc.u32 %v2010, %v2006
          %v2013 = vsel %vm2012, 1, 0
          %v2014 = vadd.s32 %v2010, %v2006
          %v2015 = vadd.s32 %v2011, %v2013
          %v2016 = vadd.s32 %v2015, %v2005
          %v2017 = vadd.s32 %v2016, %v2007
          %v2018 = vand.u32 %v1995, 65535
          %v2019 = vshrl.u32 %v1995, 16
          %v2020 = vand.u32 %v1990, 65535
          %v2021 = vshrl.u32 %v1990, 16
          %v2022 = vmul.u32 %v2018, %v2020
          %v2023 = vmul.u32 %v2018, %v2021
          %v2024 = vmul.u32 %v2019, %v2020
          %v2025 = vmul.u32 %v2019, %v2021
          %v2026 = vshll.u32 %v2023, 16
          %v2027 = vshrl.u32 %v2023, 16
          %v2028 = vshll.u32 %v2024, 16
          %v2029 = vshrl.u32 %v2024, 16
          %vm2030 = vc.u32 %v2022, %v2026
          %v2031 = vsel %vm2030, 1, 0
          %v2032 = vadd.s32 %v2022, %v2026
          %v2033 = vadd.s32 %v2025, %v2031
          %vm2034 = vc.u32 %v2032, %v2028
          %v2035 = vsel %vm2034, 1, 0
          %v2036 = vadd.s32 %v2032, %v2028
          %v2037 = vadd.s32 %v2033, %v2035
          %v2038 = vadd.s32 %v2037, %v2027
          %v2039 = vadd.s32 %v2038, %v2029
          %v2040 = vmul.u32 %v1995, %v1986
          %v2041 = vadd.s32 %v2017, %v2036
          %vm2042 = vc.u32 %v2017, %v2036
          %v2043 = vadd.s32 %v2039, 1
          %v2044 = vsel %vm2042, %v2043, %v2039
          %v2045 = vadd.s32 %v2040, %v2044
          %v2046 = vadd.s32 %v2045, 536870912
          %v2047 = vshrl.u32 %v2046, 30
          %v2048 = vshll.u32 %v2047, 30
          %v2049 = vsub.s32 %v2045, %v2048
          %vm2050 = vcmp.lt.s32.totalorder %v2049, 0
          %v2051 = vsub.s32 0, %v2049
          %v2052 = vsel %vm2050, %v2051, %v2049
          %v2053 = vclz %v2052
          %v2054 = vsub.s32 %v2053, 2
          %vm2055 = vcmp.gt.s32.totalorder 0, %v2054
          %v2056 = vsel %vm2055, 0, %v2054
          %v2057 = vsub.s32 32, %v2056
          %v2058 = vshll.u32 %v2049, %v2056
          %v2059 = vshrl.u32 %v2041, %v2057
          %v2060 = vor.u32 %v2058, %v2059
          %v2061 = vsub.s32 4294967266, %v2056
          %v2062 = vadd.s32 %v2061, 127
          %v2063 = vshll.u32 %v2062, 23
          %v2064 = vor.u32 4788187, %v2063
          %v2065 = vand.u32 2147483647, %v2064
          %v2067 = vcvt.s32.f32 %v2060
          %v2068 = vmul.f32 %v2067, %v2065
          %v2069 = vxor.u32 %v2068, 2147483648
          %v2070 = vsel %vm1949, %v2069, %v2068
          %v2071 = vsub.s32 4, %v2047
          %v2072 = vsel %vm1949, %v2071, %v2047
          %v2073 = vsel %vm1948, %v447, %v2070
          %v2074 = vsel %vm1948, 0, %v2072
          %v2075 = vmul.f32 %v2073, %v2073
          %v2076 = vmul.f32 %v2075, -0.001358992
          %v2077 = vadd.f32 %v2076, 0.041655596
          %v2078 = vmul.f32 %v2075, %v2077
          %v2079 = vadd.f32 %v2078, -0.4999988
          %v2080 = vmul.f32 %v2075, %v2079
          %v2081 = vadd.f32 1.0, %v2080
          %v2082 = vmul.f32 %v2073, %v2073
          %v2083 = vmul.f32 %v2082, -0.00019511016
          %v2084 = vadd.f32 %v2083, 0.008332121
          %v2085 = vmul.f32 %v2082, %v2084
          %v2086 = vadd.f32 %v2085, -0.16666654
          %v2087 = vmul.f32 %v2082, %v2086
          %v2088 = vadd.f32 %v2087, 1.0
          %v2089 = vmul.f32 %v2088, %v2073
          %vm2090 = vweird.f32 %v447
          %v2091 = vadd.s32 %v2074, 3
          %v2092 = vand.u32 %v2091, 3
          %vm2093 = vcmp.lt.s32.totalorder %v2092, 2
          %vm2094 = vcmp.eq.s32.totalorder %v2092, 0
          %v2095 = vxor.u32 %v2089, 2147483648
          %v2096 = vsel %vm2094, %v2081, %v2095
          %vm2097 = vcmp.eq.s32.totalorder %v2092, 2
          %v2098 = vxor.u32 %v2081, 2147483648
          %v2099 = vsel %vm2097, %v2098, %v2089
          %v2100 = vsel %vm2093, %v2096, %v2099
          %v2101 = vsel %vm2090, nan, %v2100
          %v2102 = vand.u32 2147483647, %v488
          %vm2103 = vcmp.le.f32.partialorder %v2102, 0.7853982
          %vm2104 = vcmp.lt.s32.totalorder %v488, 0
          %v2105 = vand.u32 %v488, 2139095040
          %v2106 = vshrl.u32 %v2105, 23
          %v2107 = vsub.s32 %v2106, 127
          %v2108 = vand.u32 2147483647, %v488
          %v2109 = vand.u32 %v2108, 8388607
          %v2110 = vor.u32 %v2109, 8388608
          %v2111 = vsub.s32 0, %v2110
          %v2112 = vadd.s32 %v2107, 1
          %vm2113 = vcmp.gt.s32.totalorder %v2112, 0
          %v2114 = vsel %vm2113, %v2112, 0
          %v2115 = vshrl.u32 %v2114, 5
          %v2116 = vand.u32 %v2114, 31
          %v2117 = vsub.s32 32, %v2116
          %v2118 = vshrl.u32 683565275, %v2117
          %v2119 = vshll.u32 683565275, %v2116
          %v2120 = vshrl.u32 2475754826, %v2117
          %v2121 = vor.u32 %v2119, %v2120
          %v2122 = vshll.u32 2475754826, %v2116
          %v2123 = vshrl.u32 2131351028, %v2117
          %v2124 = vor.u32 %v2122, %v2123
          %v2125 = vshll.u32 2131351028, %v2116
          %v2126 = vshrl.u32 2102212464, %v2117
          %v2127 = vor.u32 %v2125, %v2126
          %v2128 = vshll.u32 2102212464, %v2116
          %v2129 = vshrl.u32 920167782, %v2117
          %v2130 = vor.u32 %v2128, %v2129
          %v2131 = vshll.u32 920167782, %v2116
          %v2132 = vshrl.u32 1326507024, %v2117
          %v2133 = vor.u32 %v2131, %v2132
          %vm2134 = vcmp.lt.s32.totalorder %v2115, 1
          %vm2135 = vcmp.lt.s32.totalorder %v2115, 2
          %vm2136 = vcmp.lt.s32.totalorder %v2115, 3
          %vm2137 = vcmp.lt.s32.totalorder %v2115, 4
          %v2138 = vsel %vm2134, %v2118, %v2121
          %v2139 = vsel %vm2137, %v2127, 2102212464
          %v2140 = vsel %vm2136, %v2124, %v2139
          %v2141 = vsel %vm2135, %v2138, %v2140
          %v2142 = vsel %vm2134, %v2121, %v2124
          %v2143 = vsel %vm2137, %v2130, 920167782
          %v2144 = vsel %vm2136, %v2127, %v2143
          %v2145 = vsel %vm2135, %v2142, %v2144
          %v2146 = vsel %vm2134, %v2124, %v2127
          %v2147 = vsel %vm2137, %v2133, 1326507024
          %v2148 = vsel %vm2136, %v2130, %v2147
          %v2149 = vsel %vm2135, %v2146, %v2148
          %v2150 = vshll.u32 %v2110, 8
          %v2151 = vand.u32 %v2150, 65535
          %v2152 = vshrl.u32 %v2150, 16
          %v2153 = vand.u32 %v2149, 65535
          %v2154 = vshrl.u32 %v2149, 16
          %v2155 = vmul.u32 %v2151, %v2153
          %v2156 = vmul.u32 %v2151, %v2154
          %v2157 = vmul.u32 %v2152, %v2153
          %v2158 = vmul.u32 %v2152, %v2154
          %v2159 = vshll.u32 %v2156, 16
          %v2160 = vshrl.u32 %v2156, 16
          %v2161 = vshll.u32 %v2157, 16
          %v2162 = vshrl.u32 %v2157, 16
          %vm2163 = vc.u32 %v2155, %v2159
          %v2164 = vsel %vm2163, 1, 0
          %v2165 = vadd.s32 %v2155, %v2159
          %v2166 = vadd.s32 %v2158, %v2164
          %vm2167 = vc.u32 %v2165, %v2161
          %v2168 = vsel %vm2167, 1, 0
          %v2169 = vadd.s32 %v2165, %v2161
          %v2170 = vadd.s32 %v2166, %v2168
          %v2171 = vadd.s32 %v2170, %v2160
          %v2172 = vadd.s32 %v2171, %v2162
          %v2173 = vand.u32 %v2150, 65535
          %v2174 = vshrl.u32 %v2150, 16
          %v2175 = vand.u32 %v2145, 65535
          %v2176 = vshrl.u32 %v2145, 16
          %v2177 = vmul.u32 %v2173, %v2175
          %v2178 = vmul.u32 %v2173, %v2176
          %v2179 = vmul.u32 %v2174, %v2175
          %v2180 = vmul.u32 %v2174, %v2176
          %v2181 = vshll.u32 %v2178, 16
          %v2182 = vshrl.u32 %v2178, 16
          %v2183 = vshll.u32 %v2179, 16
          %v2184 = vshrl.u32 %v2179, 16
          %vm2185 = vc.u32 %v2177, %v2181
          %v2186 = vsel %vm2185, 1, 0
          %v2187 = vadd.s32 %v2177, %v2181
          %v2188 = vadd.s32 %v2180, %v2186
          %vm2189 = vc.u32 %v2187, %v2183
          %v2190 = vsel %vm2189, 1, 0
          %v2191 = vadd.s32 %v2187, %v2183
          %v2192 = vadd.s32 %v2188, %v2190
          %v2193 = vadd.s32 %v2192, %v2182
          %v2194 = vadd.s32 %v2193, %v2184
          %v2195 = vmul.u32 %v2150, %v2141
          %v2196 = vadd.s32 %v2172, %v2191
          %vm2197 = vc.u32 %v2172, %v2191
          %v2198 = vadd.s32 %v2194, 1
          %v2199 = vsel %vm2197, %v2198, %v2194
          %v2200 = vadd.s32 %v2195, %v2199
          %v2201 = vadd.s32 %v2200, 536870912
          %v2202 = vshrl.u32 %v2201, 30
          %v2203 = vshll.u32 %v2202, 30
          %v2204 = vsub.s32 %v2200, %v2203
          %vm2205 = vcmp.lt.s32.totalorder %v2204, 0
          %v2206 = vsub.s32 0, %v2204
          %v2207 = vsel %vm2205, %v2206, %v2204
          %v2208 = vclz %v2207
          %v2209 = vsub.s32 %v2208, 2
          %vm2210 = vcmp.gt.s32.totalorder 0, %v2209
          %v2211 = vsel %vm2210, 0, %v2209
          %v2212 = vsub.s32 32, %v2211
          %v2213 = vshll.u32 %v2204, %v2211
          %v2214 = vshrl.u32 %v2196, %v2212
          %v2215 = vor.u32 %v2213, %v2214
          %v2216 = vsub.s32 4294967266, %v2211
          %v2217 = vadd.s32 %v2216, 127
          %v2218 = vshll.u32 %v2217, 23
          %v2219 = vor.u32 4788187, %v2218
          %v2220 = vand.u32 2147483647, %v2219
          %v2222 = vcvt.s32.f32 %v2215
          %v2223 = vmul.f32 %v2222, %v2220
          %v2224 = vxor.u32 %v2223, 2147483648
          %v2225 = vsel %vm2104, %v2224, %v2223
          %v2226 = vsub.s32 4, %v2202
          %v2227 = vsel %vm2104, %v2226, %v2202
          %v2228 = vsel %vm2103, %v488, %v2225
          %v2229 = vsel %vm2103, 0, %v2227
          %v2230 = vmul.f32 %v2228, %v2228
          %v2231 = vmul.f32 %v2230, -0.001358992
          %v2232 = vadd.f32 %v2231, 0.041655596
          %v2233 = vmul.f32 %v2230, %v2232
          %v2234 = vadd.f32 %v2233, -0.4999988
          %v2235 = vmul.f32 %v2230, %v2234
          %v2236 = vadd.f32 1.0, %v2235
          %v2237 = vmul.f32 %v2228, %v2228
          %v2238 = vmul.f32 %v2237, -0.00019511016
          %v2239 = vadd.f32 %v2238, 0.008332121
          %v2240 = vmul.f32 %v2237, %v2239
          %v2241 = vadd.f32 %v2240, -0.16666654
          %v2242 = vmul.f32 %v2237, %v2241
          %v2243 = vadd.f32 %v2242, 1.0
          %v2244 = vmul.f32 %v2243, %v2228
          %vm2245 = vweird.f32 %v488
          %v2246 = vadd.s32 %v2229, 3
          %v2247 = vand.u32 %v2246, 3
          %vm2248 = vcmp.lt.s32.totalorder %v2247, 2
          %vm2249 = vcmp.eq.s32.totalorder %v2247, 0
          %v2250 = vxor.u32 %v2244, 2147483648
          %v2251 = vsel %vm2249, %v2236, %v2250
          %vm2252 = vcmp.eq.s32.totalorder %v2247, 2
          %v2253 = vxor.u32 %v2236, 2147483648
          %v2254 = vsel %vm2252, %v2253, %v2244
          %v2255 = vsel %vm2248, %v2251, %v2254
          %v2256 = vsel %vm2245, nan, %v2255
          %v2257 = vand.u32 2147483647, %v450
          %vm2258 = vcmp.le.f32.partialorder %v2257, 0.7853982
          %vm2259 = vcmp.lt.s32.totalorder %v450, 0
          %v2260 = vand.u32 %v450, 2139095040
          %v2261 = vshrl.u32 %v2260, 23
          %v2262 = vsub.s32 %v2261, 127
          %v2263 = vand.u32 2147483647, %v450
          %v2264 = vand.u32 %v2263, 8388607
          %v2265 = vor.u32 %v2264, 8388608
          %v2266 = vsub.s32 0, %v2265
          %v2267 = vadd.s32 %v2262, 1
          %vm2268 = vcmp.gt.s32.totalorder %v2267, 0
          %v2269 = vsel %vm2268, %v2267, 0
          %v2270 = vshrl.u32 %v2269, 5
          %v2271 = vand.u32 %v2269, 31
          %v2272 = vsub.s32 32, %v2271
          %v2273 = vshrl.u32 683565275, %v2272
          %v2274 = vshll.u32 683565275, %v2271
          %v2275 = vshrl.u32 2475754826, %v2272
          %v2276 = vor.u32 %v2274, %v2275
          %v2277 = vshll.u32 2475754826, %v2271
          %v2278 = vshrl.u32 2131351028, %v2272
          %v2279 = vor.u32 %v2277, %v2278
          %v2280 = vshll.u32 2131351028, %v2271
          %v2281 = vshrl.u32 2102212464, %v2272
          %v2282 = vor.u32 %v2280, %v2281
          %v2283 = vshll.u32 2102212464, %v2271
          %v2284 = vshrl.u32 920167782, %v2272
          %v2285 = vor.u32 %v2283, %v2284
          %v2286 = vshll.u32 920167782, %v2271
          %v2287 = vshrl.u32 1326507024, %v2272
          %v2288 = vor.u32 %v2286, %v2287
          %vm2289 = vcmp.lt.s32.totalorder %v2270, 1
          %vm2290 = vcmp.lt.s32.totalorder %v2270, 2
          %vm2291 = vcmp.lt.s32.totalorder %v2270, 3
          %vm2292 = vcmp.lt.s32.totalorder %v2270, 4
          %v2293 = vsel %vm2289, %v2273, %v2276
          %v2294 = vsel %vm2292, %v2282, 2102212464
          %v2295 = vsel %vm2291, %v2279, %v2294
          %v2296 = vsel %vm2290, %v2293, %v2295
          %v2297 = vsel %vm2289, %v2276, %v2279
          %v2298 = vsel %vm2292, %v2285, 920167782
          %v2299 = vsel %vm2291, %v2282, %v2298
          %v2300 = vsel %vm2290, %v2297, %v2299
          %v2301 = vsel %vm2289, %v2279, %v2282
          %v2302 = vsel %vm2292, %v2288, 1326507024
          %v2303 = vsel %vm2291, %v2285, %v2302
          %v2304 = vsel %vm2290, %v2301, %v2303
          %v2305 = vshll.u32 %v2265, 8
          %v2306 = vand.u32 %v2305, 65535
          %v2307 = vshrl.u32 %v2305, 16
          %v2308 = vand.u32 %v2304, 65535
          %v2309 = vshrl.u32 %v2304, 16
          %v2310 = vmul.u32 %v2306, %v2308
          %v2311 = vmul.u32 %v2306, %v2309
          %v2312 = vmul.u32 %v2307, %v2308
          %v2313 = vmul.u32 %v2307, %v2309
          %v2314 = vshll.u32 %v2311, 16
          %v2315 = vshrl.u32 %v2311, 16
          %v2316 = vshll.u32 %v2312, 16
          %v2317 = vshrl.u32 %v2312, 16
          %vm2318 = vc.u32 %v2310, %v2314
          %v2319 = vsel %vm2318, 1, 0
          %v2320 = vadd.s32 %v2310, %v2314
          %v2321 = vadd.s32 %v2313, %v2319
          %vm2322 = vc.u32 %v2320, %v2316
          %v2323 = vsel %vm2322, 1, 0
          %v2324 = vadd.s32 %v2320, %v2316
          %v2325 = vadd.s32 %v2321, %v2323
          %v2326 = vadd.s32 %v2325, %v2315
          %v2327 = vadd.s32 %v2326, %v2317
          %v2328 = vand.u32 %v2305, 65535
          %v2329 = vshrl.u32 %v2305, 16
          %v2330 = vand.u32 %v2300, 65535
          %v2331 = vshrl.u32 %v2300, 16
          %v2332 = vmul.u32 %v2328, %v2330
          %v2333 = vmul.u32 %v2328, %v2331
          %v2334 = vmul.u32 %v2329, %v2330
          %v2335 = vmul.u32 %v2329, %v2331
          %v2336 = vshll.u32 %v2333, 16
          %v2337 = vshrl.u32 %v2333, 16
          %v2338 = vshll.u32 %v2334, 16
          %v2339 = vshrl.u32 %v2334, 16
          %vm2340 = vc.u32 %v2332, %v2336
          %v2341 = vsel %vm2340, 1, 0
          %v2342 = vadd.s32 %v2332, %v2336
          %v2343 = vadd.s32 %v2335, %v2341
          %vm2344 = vc.u32 %v2342, %v2338
          %v2345 = vsel %vm2344, 1, 0
          %v2346 = vadd.s32 %v2342, %v2338
          %v2347 = vadd.s32 %v2343, %v2345
          %v2348 = vadd.s32 %v2347, %v2337
          %v2349 = vadd.s32 %v2348, %v2339
          %v2350 = vmul.u32 %v2305, %v2296
          %v2351 = vadd.s32 %v2327, %v2346
          %vm2352 = vc.u32 %v2327, %v2346
          %v2353 = vadd.s32 %v2349, 1
          %v2354 = vsel %vm2352, %v2353, %v2349
          %v2355 = vadd.s32 %v2350, %v2354
          %v2356 = vadd.s32 %v2355, 536870912
          %v2357 = vshrl.u32 %v2356, 30
          %v2358 = vshll.u32 %v2357, 30
          %v2359 = vsub.s32 %v2355, %v2358
          %vm2360 = vcmp.lt.s32.totalorder %v2359, 0
          %v2361 = vsub.s32 0, %v2359
          %v2362 = vsel %vm2360, %v2361, %v2359
          %v2363 = vclz %v2362
          %v2364 = vsub.s32 %v2363, 2
          %vm2365 = vcmp.gt.s32.totalorder 0, %v2364
          %v2366 = vsel %vm2365, 0, %v2364
          %v2367 = vsub.s32 32, %v2366
          %v2368 = vshll.u32 %v2359, %v2366
          %v2369 = vshrl.u32 %v2351, %v2367
          %v2370 = vor.u32 %v2368, %v2369
          %v2371 = vsub.s32 4294967266, %v2366
          %v2372 = vadd.s32 %v2371, 127
          %v2373 = vshll.u32 %v2372, 23
          %v2374 = vor.u32 4788187, %v2373
          %v2375 = vand.u32 2147483647, %v2374
          %v2377 = vcvt.s32.f32 %v2370
          %v2378 = vmul.f32 %v2377, %v2375
          %v2379 = vxor.u32 %v2378, 2147483648
          %v2380 = vsel %vm2259, %v2379, %v2378
          %v2381 = vsub.s32 4, %v2357
          %v2382 = vsel %vm2259, %v2381, %v2357
          %v2383 = vsel %vm2258, %v450, %v2380
          %v2384 = vsel %vm2258, 0, %v2382
          %v2385 = vmul.f32 %v2383, %v2383
          %v2386 = vmul.f32 %v2385, -0.001358992
          %v2387 = vadd.f32 %v2386, 0.041655596
          %v2388 = vmul.f32 %v2385, %v2387
          %v2389 = vadd.f32 %v2388, -0.4999988
          %v2390 = vmul.f32 %v2385, %v2389
          %v2391 = vadd.f32 1.0, %v2390
          %v2392 = vmul.f32 %v2383, %v2383
          %v2393 = vmul.f32 %v2392, -0.00019511016
          %v2394 = vadd.f32 %v2393, 0.008332121
          %v2395 = vmul.f32 %v2392, %v2394
          %v2396 = vadd.f32 %v2395, -0.16666654
          %v2397 = vmul.f32 %v2392, %v2396
          %v2398 = vadd.f32 %v2397, 1.0
          %v2399 = vmul.f32 %v2398, %v2383
          %vm2400 = vweird.f32 %v450
          %v2401 = vadd.s32 %v2384, 3
          %v2402 = vand.u32 %v2401, 3
          %vm2403 = vcmp.lt.s32.totalorder %v2402, 2
          %vm2404 = vcmp.eq.s32.totalorder %v2402, 0
          %v2405 = vxor.u32 %v2399, 2147483648
          %v2406 = vsel %vm2404, %v2391, %v2405
          %vm2407 = vcmp.eq.s32.totalorder %v2402, 2
          %v2408 = vxor.u32 %v2391, 2147483648
          %v2409 = vsel %vm2407, %v2408, %v2399
          %v2410 = vsel %vm2403, %v2406, %v2409
          %v2411 = vsel %vm2400, nan, %v2410
          %v2412 = vand.u32 2147483647, %v491
          %vm2413 = vcmp.le.f32.partialorder %v2412, 0.7853982
          %vm2414 = vcmp.lt.s32.totalorder %v491, 0
          %v2415 = vand.u32 %v491, 2139095040
          %v2416 = vshrl.u32 %v2415, 23
          %v2417 = vsub.s32 %v2416, 127
          %v2418 = vand.u32 2147483647, %v491
          %v2419 = vand.u32 %v2418, 8388607
          %v2420 = vor.u32 %v2419, 8388608
          %v2421 = vsub.s32 0, %v2420
          %v2422 = vadd.s32 %v2417, 1
          %vm2423 = vcmp.gt.s32.totalorder %v2422, 0
          %v2424 = vsel %vm2423, %v2422, 0
          %v2425 = vshrl.u32 %v2424, 5
          %v2426 = vand.u32 %v2424, 31
          %v2427 = vsub.s32 32, %v2426
          %v2428 = vshrl.u32 683565275, %v2427
          %v2429 = vshll.u32 683565275, %v2426
          %v2430 = vshrl.u32 2475754826, %v2427
          %v2431 = vor.u32 %v2429, %v2430
          %v2432 = vshll.u32 2475754826, %v2426
          %v2433 = vshrl.u32 2131351028, %v2427
          %v2434 = vor.u32 %v2432, %v2433
          %v2435 = vshll.u32 2131351028, %v2426
          %v2436 = vshrl.u32 2102212464, %v2427
          %v2437 = vor.u32 %v2435, %v2436
          %v2438 = vshll.u32 2102212464, %v2426
          %v2439 = vshrl.u32 920167782, %v2427
          %v2440 = vor.u32 %v2438, %v2439
          %v2441 = vshll.u32 920167782, %v2426
          %v2442 = vshrl.u32 1326507024, %v2427
          %v2443 = vor.u32 %v2441, %v2442
          %vm2444 = vcmp.lt.s32.totalorder %v2425, 1
          %vm2445 = vcmp.lt.s32.totalorder %v2425, 2
          %vm2446 = vcmp.lt.s32.totalorder %v2425, 3
          %vm2447 = vcmp.lt.s32.totalorder %v2425, 4
          %v2448 = vsel %vm2444, %v2428, %v2431
          %v2449 = vsel %vm2447, %v2437, 2102212464
          %v2450 = vsel %vm2446, %v2434, %v2449
          %v2451 = vsel %vm2445, %v2448, %v2450
          %v2452 = vsel %vm2444, %v2431, %v2434
          %v2453 = vsel %vm2447, %v2440, 920167782
          %v2454 = vsel %vm2446, %v2437, %v2453
          %v2455 = vsel %vm2445, %v2452, %v2454
          %v2456 = vsel %vm2444, %v2434, %v2437
          %v2457 = vsel %vm2447, %v2443, 1326507024
          %v2458 = vsel %vm2446, %v2440, %v2457
          %v2459 = vsel %vm2445, %v2456, %v2458
          %v2460 = vshll.u32 %v2420, 8
          %v2461 = vand.u32 %v2460, 65535
          %v2462 = vshrl.u32 %v2460, 16
          %v2463 = vand.u32 %v2459, 65535
          %v2464 = vshrl.u32 %v2459, 16
          %v2465 = vmul.u32 %v2461, %v2463
          %v2466 = vmul.u32 %v2461, %v2464
          %v2467 = vmul.u32 %v2462, %v2463
          %v2468 = vmul.u32 %v2462, %v2464
          %v2469 = vshll.u32 %v2466, 16
          %v2470 = vshrl.u32 %v2466, 16
          %v2471 = vshll.u32 %v2467, 16
          %v2472 = vshrl.u32 %v2467, 16
          %vm2473 = vc.u32 %v2465, %v2469
          %v2474 = vsel %vm2473, 1, 0
          %v2475 = vadd.s32 %v2465, %v2469
          %v2476 = vadd.s32 %v2468, %v2474
          %vm2477 = vc.u32 %v2475, %v2471
          %v2478 = vsel %vm2477, 1, 0
          %v2479 = vadd.s32 %v2475, %v2471
          %v2480 = vadd.s32 %v2476, %v2478
          %v2481 = vadd.s32 %v2480, %v2470
          %v2482 = vadd.s32 %v2481, %v2472
          %v2483 = vand.u32 %v2460, 65535
          %v2484 = vshrl.u32 %v2460, 16
          %v2485 = vand.u32 %v2455, 65535
          %v2486 = vshrl.u32 %v2455, 16
          %v2487 = vmul.u32 %v2483, %v2485
          %v2488 = vmul.u32 %v2483, %v2486
          %v2489 = vmul.u32 %v2484, %v2485
          %v2490 = vmul.u32 %v2484, %v2486
          %v2491 = vshll.u32 %v2488, 16
          %v2492 = vshrl.u32 %v2488, 16
          %v2493 = vshll.u32 %v2489, 16
          %v2494 = vshrl.u32 %v2489, 16
          %vm2495 = vc.u32 %v2487, %v2491
          %v2496 = vsel %vm2495, 1, 0
          %v2497 = vadd.s32 %v2487, %v2491
          %v2498 = vadd.s32 %v2490, %v2496
          %vm2499 = vc.u32 %v2497, %v2493
          %v2500 = vsel %vm2499, 1, 0
          %v2501 = vadd.s32 %v2497, %v2493
          %v2502 = vadd.s32 %v2498, %v2500
          %v2503 = vadd.s32 %v2502, %v2492
          %v2504 = vadd.s32 %v2503, %v2494
          %v2505 = vmul.u32 %v2460, %v2451
          %v2506 = vadd.s32 %v2482, %v2501
          %vm2507 = vc.u32 %v2482, %v2501
          %v2508 = vadd.s32 %v2504, 1
          %v2509 = vsel %vm2507, %v2508, %v2504
          %v2510 = vadd.s32 %v2505, %v2509
          %v2511 = vadd.s32 %v2510, 536870912
          %v2512 = vshrl.u32 %v2511, 30
          %v2513 = vshll.u32 %v2512, 30
          %v2514 = vsub.s32 %v2510, %v2513
          %vm2515 = vcmp.lt.s32.totalorder %v2514, 0
          %v2516 = vsub.s32 0, %v2514
          %v2517 = vsel %vm2515, %v2516, %v2514
          %v2518 = vclz %v2517
          %v2519 = vsub.s32 %v2518, 2
          %vm2520 = vcmp.gt.s32.totalorder 0, %v2519
          %v2521 = vsel %vm2520, 0, %v2519
          %v2522 = vsub.s32 32, %v2521
          %v2523 = vshll.u32 %v2514, %v2521
          %v2524 = vshrl.u32 %v2506, %v2522
          %v2525 = vor.u32 %v2523, %v2524
          %v2526 = vsub.s32 4294967266, %v2521
          %v2527 = vadd.s32 %v2526, 127
          %v2528 = vshll.u32 %v2527, 23
          %v2529 = vor.u32 4788187, %v2528
          %v2530 = vand.u32 2147483647, %v2529
          %v2532 = vcvt.s32.f32 %v2525
          %v2533 = vmul.f32 %v2532, %v2530
          %v2534 = vxor.u32 %v2533, 2147483648
          %v2535 = vsel %vm2414, %v2534, %v2533
          %v2536 = vsub.s32 4, %v2512
          %v2537 = vsel %vm2414, %v2536, %v2512
          %v2538 = vsel %vm2413, %v491, %v2535
          %v2539 = vsel %vm2413, 0, %v2537
          %v2540 = vmul.f32 %v2538, %v2538
          %v2541 = vmul.f32 %v2540, -0.001358992
          %v2542 = vadd.f32 %v2541, 0.041655596
          %v2543 = vmul.f32 %v2540, %v2542
          %v2544 = vadd.f32 %v2543, -0.4999988
          %v2545 = vmul.f32 %v2540, %v2544
          %v2546 = vadd.f32 1.0, %v2545
          %v2547 = vmul.f32 %v2538, %v2538
          %v2548 = vmul.f32 %v2547, -0.00019511016
          %v2549 = vadd.f32 %v2548, 0.008332121
          %v2550 = vmul.f32 %v2547, %v2549
          %v2551 = vadd.f32 %v2550, -0.16666654
          %v2552 = vmul.f32 %v2547, %v2551
          %v2553 = vadd.f32 %v2552, 1.0
          %v2554 = vmul.f32 %v2553, %v2538
          %vm2555 = vweird.f32 %v491
          %v2556 = vadd.s32 %v2539, 3
          %v2557 = vand.u32 %v2556, 3
          %vm2558 = vcmp.lt.s32.totalorder %v2557, 2
          %vm2559 = vcmp.eq.s32.totalorder %v2557, 0
          %v2560 = vxor.u32 %v2554, 2147483648
          %v2561 = vsel %vm2559, %v2546, %v2560
          %vm2562 = vcmp.eq.s32.totalorder %v2557, 2
          %v2563 = vxor.u32 %v2546, 2147483648
          %v2564 = vsel %vm2562, %v2563, %v2554
          %v2565 = vsel %vm2558, %v2561, %v2564
          %v2566 = vsel %vm2555, nan, %v2565
          %v2567 = vand.u32 2147483647, %v453
          %vm2568 = vcmp.le.f32.partialorder %v2567, 0.7853982
          %vm2569 = vcmp.lt.s32.totalorder %v453, 0
          %v2570 = vand.u32 %v453, 2139095040
          %v2571 = vshrl.u32 %v2570, 23
          %v2572 = vsub.s32 %v2571, 127
          %v2573 = vand.u32 2147483647, %v453
          %v2574 = vand.u32 %v2573, 8388607
          %v2575 = vor.u32 %v2574, 8388608
          %v2576 = vsub.s32 0, %v2575
          %v2577 = vadd.s32 %v2572, 1
          %vm2578 = vcmp.gt.s32.totalorder %v2577, 0
          %v2579 = vsel %vm2578, %v2577, 0
          %v2580 = vshrl.u32 %v2579, 5
          %v2581 = vand.u32 %v2579, 31
          %v2582 = vsub.s32 32, %v2581
          %v2583 = vshrl.u32 683565275, %v2582
          %v2584 = vshll.u32 683565275, %v2581
          %v2585 = vshrl.u32 2475754826, %v2582
          %v2586 = vor.u32 %v2584, %v2585
          %v2587 = vshll.u32 2475754826, %v2581
          %v2588 = vshrl.u32 2131351028, %v2582
          %v2589 = vor.u32 %v2587, %v2588
          %v2590 = vshll.u32 2131351028, %v2581
          %v2591 = vshrl.u32 2102212464, %v2582
          %v2592 = vor.u32 %v2590, %v2591
          %v2593 = vshll.u32 2102212464, %v2581
          %v2594 = vshrl.u32 920167782, %v2582
          %v2595 = vor.u32 %v2593, %v2594
          %v2596 = vshll.u32 920167782, %v2581
          %v2597 = vshrl.u32 1326507024, %v2582
          %v2598 = vor.u32 %v2596, %v2597
          %vm2599 = vcmp.lt.s32.totalorder %v2580, 1
          %vm2600 = vcmp.lt.s32.totalorder %v2580, 2
          %vm2601 = vcmp.lt.s32.totalorder %v2580, 3
          %vm2602 = vcmp.lt.s32.totalorder %v2580, 4
          %v2603 = vsel %vm2599, %v2583, %v2586
          %v2604 = vsel %vm2602, %v2592, 2102212464
          %v2605 = vsel %vm2601, %v2589, %v2604
          %v2606 = vsel %vm2600, %v2603, %v2605
          %v2607 = vsel %vm2599, %v2586, %v2589
          %v2608 = vsel %vm2602, %v2595, 920167782
          %v2609 = vsel %vm2601, %v2592, %v2608
          %v2610 = vsel %vm2600, %v2607, %v2609
          %v2611 = vsel %vm2599, %v2589, %v2592
          %v2612 = vsel %vm2602, %v2598, 1326507024
          %v2613 = vsel %vm2601, %v2595, %v2612
          %v2614 = vsel %vm2600, %v2611, %v2613
          %v2615 = vshll.u32 %v2575, 8
          %v2616 = vand.u32 %v2615, 65535
          %v2617 = vshrl.u32 %v2615, 16
          %v2618 = vand.u32 %v2614, 65535
          %v2619 = vshrl.u32 %v2614, 16
          %v2620 = vmul.u32 %v2616, %v2618
          %v2621 = vmul.u32 %v2616, %v2619
          %v2622 = vmul.u32 %v2617, %v2618
          %v2623 = vmul.u32 %v2617, %v2619
          %v2624 = vshll.u32 %v2621, 16
          %v2625 = vshrl.u32 %v2621, 16
          %v2626 = vshll.u32 %v2622, 16
          %v2627 = vshrl.u32 %v2622, 16
          %vm2628 = vc.u32 %v2620, %v2624
          %v2629 = vsel %vm2628, 1, 0
          %v2630 = vadd.s32 %v2620, %v2624
          %v2631 = vadd.s32 %v2623, %v2629
          %vm2632 = vc.u32 %v2630, %v2626
          %v2633 = vsel %vm2632, 1, 0
          %v2634 = vadd.s32 %v2630, %v2626
          %v2635 = vadd.s32 %v2631, %v2633
          %v2636 = vadd.s32 %v2635, %v2625
          %v2637 = vadd.s32 %v2636, %v2627
          %v2638 = vand.u32 %v2615, 65535
          %v2639 = vshrl.u32 %v2615, 16
          %v2640 = vand.u32 %v2610, 65535
          %v2641 = vshrl.u32 %v2610, 16
          %v2642 = vmul.u32 %v2638, %v2640
          %v2643 = vmul.u32 %v2638, %v2641
          %v2644 = vmul.u32 %v2639, %v2640
          %v2645 = vmul.u32 %v2639, %v2641
          %v2646 = vshll.u32 %v2643, 16
          %v2647 = vshrl.u32 %v2643, 16
          %v2648 = vshll.u32 %v2644, 16
          %v2649 = vshrl.u32 %v2644, 16
          %vm2650 = vc.u32 %v2642, %v2646
          %v2651 = vsel %vm2650, 1, 0
          %v2652 = vadd.s32 %v2642, %v2646
          %v2653 = vadd.s32 %v2645, %v2651
          %vm2654 = vc.u32 %v2652, %v2648
          %v2655 = vsel %vm2654, 1, 0
          %v2656 = vadd.s32 %v2652, %v2648
          %v2657 = vadd.s32 %v2653, %v2655
          %v2658 = vadd.s32 %v2657, %v2647
          %v2659 = vadd.s32 %v2658, %v2649
          %v2660 = vmul.u32 %v2615, %v2606
          %v2661 = vadd.s32 %v2637, %v2656
          %vm2662 = vc.u32 %v2637, %v2656
          %v2663 = vadd.s32 %v2659, 1
          %v2664 = vsel %vm2662, %v2663, %v2659
          %v2665 = vadd.s32 %v2660, %v2664
          %v2666 = vadd.s32 %v2665, 536870912
          %v2667 = vshrl.u32 %v2666, 30
          %v2668 = vshll.u32 %v2667, 30
          %v2669 = vsub.s32 %v2665, %v2668
          %vm2670 = vcmp.lt.s32.totalorder %v2669, 0
          %v2671 = vsub.s32 0, %v2669
          %v2672 = vsel %vm2670, %v2671, %v2669
          %v2673 = vclz %v2672
          %v2674 = vsub.s32 %v2673, 2
          %vm2675 = vcmp.gt.s32.totalorder 0, %v2674
          %v2676 = vsel %vm2675, 0, %v2674
          %v2677 = vsub.s32 32, %v2676
          %v2678 = vshll.u32 %v2669, %v2676
          %v2679 = vshrl.u32 %v2661, %v2677
          %v2680 = vor.u32 %v2678, %v2679
          %v2681 = vsub.s32 4294967266, %v2676
          %v2682 = vadd.s32 %v2681, 127
          %v2683 = vshll.u32 %v2682, 23
          %v2684 = vor.u32 4788187, %v2683
          %v2685 = vand.u32 2147483647, %v2684
          %v2687 = vcvt.s32.f32 %v2680
          %v2688 = vmul.f32 %v2687, %v2685
          %v2689 = vxor.u32 %v2688, 2147483648
          %v2690 = vsel %vm2569, %v2689, %v2688
          %v2691 = vsub.s32 4, %v2667
          %v2692 = vsel %vm2569, %v2691, %v2667
          %v2693 = vsel %vm2568, %v453, %v2690
          %v2694 = vsel %vm2568, 0, %v2692
          %v2695 = vmul.f32 %v2693, %v2693
          %v2696 = vmul.f32 %v2695, -0.001358992
          %v2697 = vadd.f32 %v2696, 0.041655596
          %v2698 = vmul.f32 %v2695, %v2697
          %v2699 = vadd.f32 %v2698, -0.4999988
          %v2700 = vmul.f32 %v2695, %v2699
          %v2701 = vadd.f32 1.0, %v2700
          %v2702 = vmul.f32 %v2693, %v2693
          %v2703 = vmul.f32 %v2702, -0.00019511016
          %v2704 = vadd.f32 %v2703, 0.008332121
          %v2705 = vmul.f32 %v2702, %v2704
          %v2706 = vadd.f32 %v2705, -0.16666654
          %v2707 = vmul.f32 %v2702, %v2706
          %v2708 = vadd.f32 %v2707, 1.0
          %v2709 = vmul.f32 %v2708, %v2693
          %vm2710 = vweird.f32 %v453
          %v2711 = vadd.s32 %v2694, 3
          %v2712 = vand.u32 %v2711, 3
          %vm2713 = vcmp.lt.s32.totalorder %v2712, 2
          %vm2714 = vcmp.eq.s32.totalorder %v2712, 0
          %v2715 = vxor.u32 %v2709, 2147483648
          %v2716 = vsel %vm2714, %v2701, %v2715
          %vm2717 = vcmp.eq.s32.totalorder %v2712, 2
          %v2718 = vxor.u32 %v2701, 2147483648
          %v2719 = vsel %vm2717, %v2718, %v2709
          %v2720 = vsel %vm2713, %v2716, %v2719
          %v2721 = vsel %vm2710, nan, %v2720
          %v2722 = vand.u32 2147483647, %v494
          %vm2723 = vcmp.le.f32.partialorder %v2722, 0.7853982
          %vm2724 = vcmp.lt.s32.totalorder %v494, 0
          %v2725 = vand.u32 %v494, 2139095040
          %v2726 = vshrl.u32 %v2725, 23
          %v2727 = vsub.s32 %v2726, 127
          %v2728 = vand.u32 2147483647, %v494
          %v2729 = vand.u32 %v2728, 8388607
          %v2730 = vor.u32 %v2729, 8388608
          %v2731 = vsub.s32 0, %v2730
          %v2732 = vadd.s32 %v2727, 1
          %vm2733 = vcmp.gt.s32.totalorder %v2732, 0
          %v2734 = vsel %vm2733, %v2732, 0
          %v2735 = vshrl.u32 %v2734, 5
          %v2736 = vand.u32 %v2734, 31
          %v2737 = vsub.s32 32, %v2736
          %v2738 = vshrl.u32 683565275, %v2737
          %v2739 = vshll.u32 683565275, %v2736
          %v2740 = vshrl.u32 2475754826, %v2737
          %v2741 = vor.u32 %v2739, %v2740
          %v2742 = vshll.u32 2475754826, %v2736
          %v2743 = vshrl.u32 2131351028, %v2737
          %v2744 = vor.u32 %v2742, %v2743
          %v2745 = vshll.u32 2131351028, %v2736
          %v2746 = vshrl.u32 2102212464, %v2737
          %v2747 = vor.u32 %v2745, %v2746
          %v2748 = vshll.u32 2102212464, %v2736
          %v2749 = vshrl.u32 920167782, %v2737
          %v2750 = vor.u32 %v2748, %v2749
          %v2751 = vshll.u32 920167782, %v2736
          %v2752 = vshrl.u32 1326507024, %v2737
          %v2753 = vor.u32 %v2751, %v2752
          %vm2754 = vcmp.lt.s32.totalorder %v2735, 1
          %vm2755 = vcmp.lt.s32.totalorder %v2735, 2
          %vm2756 = vcmp.lt.s32.totalorder %v2735, 3
          %vm2757 = vcmp.lt.s32.totalorder %v2735, 4
          %v2758 = vsel %vm2754, %v2738, %v2741
          %v2759 = vsel %vm2757, %v2747, 2102212464
          %v2760 = vsel %vm2756, %v2744, %v2759
          %v2761 = vsel %vm2755, %v2758, %v2760
          %v2762 = vsel %vm2754, %v2741, %v2744
          %v2763 = vsel %vm2757, %v2750, 920167782
          %v2764 = vsel %vm2756, %v2747, %v2763
          %v2765 = vsel %vm2755, %v2762, %v2764
          %v2766 = vsel %vm2754, %v2744, %v2747
          %v2767 = vsel %vm2757, %v2753, 1326507024
          %v2768 = vsel %vm2756, %v2750, %v2767
          %v2769 = vsel %vm2755, %v2766, %v2768
          %v2770 = vshll.u32 %v2730, 8
          %v2771 = vand.u32 %v2770, 65535
          %v2772 = vshrl.u32 %v2770, 16
          %v2773 = vand.u32 %v2769, 65535
          %v2774 = vshrl.u32 %v2769, 16
          %v2775 = vmul.u32 %v2771, %v2773
          %v2776 = vmul.u32 %v2771, %v2774
          %v2777 = vmul.u32 %v2772, %v2773
          %v2778 = vmul.u32 %v2772, %v2774
          %v2779 = vshll.u32 %v2776, 16
          %v2780 = vshrl.u32 %v2776, 16
          %v2781 = vshll.u32 %v2777, 16
          %v2782 = vshrl.u32 %v2777, 16
          %vm2783 = vc.u32 %v2775, %v2779
          %v2784 = vsel %vm2783, 1, 0
          %v2785 = vadd.s32 %v2775, %v2779
          %v2786 = vadd.s32 %v2778, %v2784
          %vm2787 = vc.u32 %v2785, %v2781
          %v2788 = vsel %vm2787, 1, 0
          %v2789 = vadd.s32 %v2785, %v2781
          %v2790 = vadd.s32 %v2786, %v2788
          %v2791 = vadd.s32 %v2790, %v2780
          %v2792 = vadd.s32 %v2791, %v2782
          %v2793 = vand.u32 %v2770, 65535
          %v2794 = vshrl.u32 %v2770, 16
          %v2795 = vand.u32 %v2765, 65535
          %v2796 = vshrl.u32 %v2765, 16
          %v2797 = vmul.u32 %v2793, %v2795
          %v2798 = vmul.u32 %v2793, %v2796
          %v2799 = vmul.u32 %v2794, %v2795
          %v2800 = vmul.u32 %v2794, %v2796
          %v2801 = vshll.u32 %v2798, 16
          %v2802 = vshrl.u32 %v2798, 16
          %v2803 = vshll.u32 %v2799, 16
          %v2804 = vshrl.u32 %v2799, 16
          %vm2805 = vc.u32 %v2797, %v2801
          %v2806 = vsel %vm2805, 1, 0
          %v2807 = vadd.s32 %v2797, %v2801
          %v2808 = vadd.s32 %v2800, %v2806
          %vm2809 = vc.u32 %v2807, %v2803
          %v2810 = vsel %vm2809, 1, 0
          %v2811 = vadd.s32 %v2807, %v2803
          %v2812 = vadd.s32 %v2808, %v2810
          %v2813 = vadd.s32 %v2812, %v2802
          %v2814 = vadd.s32 %v2813, %v2804
          %v2815 = vmul.u32 %v2770, %v2761
          %v2816 = vadd.s32 %v2792, %v2811
          %vm2817 = vc.u32 %v2792, %v2811
          %v2818 = vadd.s32 %v2814, 1
          %v2819 = vsel %vm2817, %v2818, %v2814
          %v2820 = vadd.s32 %v2815, %v2819
          %v2821 = vadd.s32 %v2820, 536870912
          %v2822 = vshrl.u32 %v2821, 30
          %v2823 = vshll.u32 %v2822, 30
          %v2824 = vsub.s32 %v2820, %v2823
          %vm2825 = vcmp.lt.s32.totalorder %v2824, 0
          %v2826 = vsub.s32 0, %v2824
          %v2827 = vsel %vm2825, %v2826, %v2824
          %v2828 = vclz %v2827
          %v2829 = vsub.s32 %v2828, 2
          %vm2830 = vcmp.gt.s32.totalorder 0, %v2829
          %v2831 = vsel %vm2830, 0, %v2829
          %v2832 = vsub.s32 32, %v2831
          %v2833 = vshll.u32 %v2824, %v2831
          %v2834 = vshrl.u32 %v2816, %v2832
          %v2835 = vor.u32 %v2833, %v2834
          %v2836 = vsub.s32 4294967266, %v2831
          %v2837 = vadd.s32 %v2836, 127
          %v2838 = vshll.u32 %v2837, 23
          %v2839 = vor.u32 4788187, %v2838
          %v2840 = vand.u32 2147483647, %v2839
          %v2842 = vcvt.s32.f32 %v2835
          %v2843 = vmul.f32 %v2842, %v2840
          %v2844 = vxor.u32 %v2843, 2147483648
          %v2845 = vsel %vm2724, %v2844, %v2843
          %v2846 = vsub.s32 4, %v2822
          %v2847 = vsel %vm2724, %v2846, %v2822
          %v2848 = vsel %vm2723, %v494, %v2845
          %v2849 = vsel %vm2723, 0, %v2847
          %v2850 = vmul.f32 %v2848, %v2848
          %v2851 = vmul.f32 %v2850, -0.001358992
          %v2852 = vadd.f32 %v2851, 0.041655596
          %v2853 = vmul.f32 %v2850, %v2852
          %v2854 = vadd.f32 %v2853, -0.4999988
          %v2855 = vmul.f32 %v2850, %v2854
          %v2856 = vadd.f32 1.0, %v2855
          %v2857 = vmul.f32 %v2848, %v2848
          %v2858 = vmul.f32 %v2857, -0.00019511016
          %v2859 = vadd.f32 %v2858, 0.008332121
          %v2860 = vmul.f32 %v2857, %v2859
          %v2861 = vadd.f32 %v2860, -0.16666654
          %v2862 = vmul.f32 %v2857, %v2861
          %v2863 = vadd.f32 %v2862, 1.0
          %v2864 = vmul.f32 %v2863, %v2848
          %vm2865 = vweird.f32 %v494
          %v2866 = vadd.s32 %v2849, 3
          %v2867 = vand.u32 %v2866, 3
          %vm2868 = vcmp.lt.s32.totalorder %v2867, 2
          %vm2869 = vcmp.eq.s32.totalorder %v2867, 0
          %v2870 = vxor.u32 %v2864, 2147483648
          %v2871 = vsel %vm2869, %v2856, %v2870
          %vm2872 = vcmp.eq.s32.totalorder %v2867, 2
          %v2873 = vxor.u32 %v2856, 2147483648
          %v2874 = vsel %vm2872, %v2873, %v2864
          %v2875 = vsel %vm2868, %v2871, %v2874
          %v2876 = vsel %vm2865, nan, %v2875
          %v2877 = vand.u32 2147483647, %v456
          %vm2878 = vcmp.le.f32.partialorder %v2877, 0.7853982
          %vm2879 = vcmp.lt.s32.totalorder %v456, 0
          %v2880 = vand.u32 %v456, 2139095040
          %v2881 = vshrl.u32 %v2880, 23
          %v2882 = vsub.s32 %v2881, 127
          %v2883 = vand.u32 2147483647, %v456
          %v2884 = vand.u32 %v2883, 8388607
          %v2885 = vor.u32 %v2884, 8388608
          %v2886 = vsub.s32 0, %v2885
          %v2887 = vadd.s32 %v2882, 1
          %vm2888 = vcmp.gt.s32.totalorder %v2887, 0
          %v2889 = vsel %vm2888, %v2887, 0
          %v2890 = vshrl.u32 %v2889, 5
          %v2891 = vand.u32 %v2889, 31
          %v2892 = vsub.s32 32, %v2891
          %v2893 = vshrl.u32 683565275, %v2892
          %v2894 = vshll.u32 683565275, %v2891
          %v2895 = vshrl.u32 2475754826, %v2892
          %v2896 = vor.u32 %v2894, %v2895
          %v2897 = vshll.u32 2475754826, %v2891
          %v2898 = vshrl.u32 2131351028, %v2892
          %v2899 = vor.u32 %v2897, %v2898
          %v2900 = vshll.u32 2131351028, %v2891
          %v2901 = vshrl.u32 2102212464, %v2892
          %v2902 = vor.u32 %v2900, %v2901
          %v2903 = vshll.u32 2102212464, %v2891
          %v2904 = vshrl.u32 920167782, %v2892
          %v2905 = vor.u32 %v2903, %v2904
          %v2906 = vshll.u32 920167782, %v2891
          %v2907 = vshrl.u32 1326507024, %v2892
          %v2908 = vor.u32 %v2906, %v2907
          %vm2909 = vcmp.lt.s32.totalorder %v2890, 1
          %vm2910 = vcmp.lt.s32.totalorder %v2890, 2
          %vm2911 = vcmp.lt.s32.totalorder %v2890, 3
          %vm2912 = vcmp.lt.s32.totalorder %v2890, 4
          %v2913 = vsel %vm2909, %v2893, %v2896
          %v2914 = vsel %vm2912, %v2902, 2102212464
          %v2915 = vsel %vm2911, %v2899, %v2914
          %v2916 = vsel %vm2910, %v2913, %v2915
          %v2917 = vsel %vm2909, %v2896, %v2899
          %v2918 = vsel %vm2912, %v2905, 920167782
          %v2919 = vsel %vm2911, %v2902, %v2918
          %v2920 = vsel %vm2910, %v2917, %v2919
          %v2921 = vsel %vm2909, %v2899, %v2902
          %v2922 = vsel %vm2912, %v2908, 1326507024
          %v2923 = vsel %vm2911, %v2905, %v2922
          %v2924 = vsel %vm2910, %v2921, %v2923
          %v2925 = vshll.u32 %v2885, 8
          %v2926 = vand.u32 %v2925, 65535
          %v2927 = vshrl.u32 %v2925, 16
          %v2928 = vand.u32 %v2924, 65535
          %v2929 = vshrl.u32 %v2924, 16
          %v2930 = vmul.u32 %v2926, %v2928
          %v2931 = vmul.u32 %v2926, %v2929
          %v2932 = vmul.u32 %v2927, %v2928
          %v2933 = vmul.u32 %v2927, %v2929
          %v2934 = vshll.u32 %v2931, 16
          %v2935 = vshrl.u32 %v2931, 16
          %v2936 = vshll.u32 %v2932, 16
          %v2937 = vshrl.u32 %v2932, 16
          %vm2938 = vc.u32 %v2930, %v2934
          %v2939 = vsel %vm2938, 1, 0
          %v2940 = vadd.s32 %v2930, %v2934
          %v2941 = vadd.s32 %v2933, %v2939
          %vm2942 = vc.u32 %v2940, %v2936
          %v2943 = vsel %vm2942, 1, 0
          %v2944 = vadd.s32 %v2940, %v2936
          %v2945 = vadd.s32 %v2941, %v2943
          %v2946 = vadd.s32 %v2945, %v2935
          %v2947 = vadd.s32 %v2946, %v2937
          %v2948 = vand.u32 %v2925, 65535
          %v2949 = vshrl.u32 %v2925, 16
          %v2950 = vand.u32 %v2920, 65535
          %v2951 = vshrl.u32 %v2920, 16
          %v2952 = vmul.u32 %v2948, %v2950
          %v2953 = vmul.u32 %v2948, %v2951
          %v2954 = vmul.u32 %v2949, %v2950
          %v2955 = vmul.u32 %v2949, %v2951
          %v2956 = vshll.u32 %v2953, 16
          %v2957 = vshrl.u32 %v2953, 16
          %v2958 = vshll.u32 %v2954, 16
          %v2959 = vshrl.u32 %v2954, 16
          %vm2960 = vc.u32 %v2952, %v2956
          %v2961 = vsel %vm2960, 1, 0
          %v2962 = vadd.s32 %v2952, %v2956
          %v2963 = vadd.s32 %v2955, %v2961
          %vm2964 = vc.u32 %v2962, %v2958
          %v2965 = vsel %vm2964, 1, 0
          %v2966 = vadd.s32 %v2962, %v2958
          %v2967 = vadd.s32 %v2963, %v2965
          %v2968 = vadd.s32 %v2967, %v2957
          %v2969 = vadd.s32 %v2968, %v2959
          %v2970 = vmul.u32 %v2925, %v2916
          %v2971 = vadd.s32 %v2947, %v2966
          %vm2972 = vc.u32 %v2947, %v2966
          %v2973 = vadd.s32 %v2969, 1
          %v2974 = vsel %vm2972, %v2973, %v2969
          %v2975 = vadd.s32 %v2970, %v2974
          %v2976 = vadd.s32 %v2975, 536870912
          %v2977 = vshrl.u32 %v2976, 30
          %v2978 = vshll.u32 %v2977, 30
          %v2979 = vsub.s32 %v2975, %v2978
          %vm2980 = vcmp.lt.s32.totalorder %v2979, 0
          %v2981 = vsub.s32 0, %v2979
          %v2982 = vsel %vm2980, %v2981, %v2979
          %v2983 = vclz %v2982
          %v2984 = vsub.s32 %v2983, 2
          %vm2985 = vcmp.gt.s32.totalorder 0, %v2984
          %v2986 = vsel %vm2985, 0, %v2984
          %v2987 = vsub.s32 32, %v2986
          %v2988 = vshll.u32 %v2979, %v2986
          %v2989 = vshrl.u32 %v2971, %v2987
          %v2990 = vor.u32 %v2988, %v2989
          %v2991 = vsub.s32 4294967266, %v2986
          %v2992 = vadd.s32 %v2991, 127
          %v2993 = vshll.u32 %v2992, 23
          %v2994 = vor.u32 4788187, %v2993
          %v2995 = vand.u32 2147483647, %v2994
          %v2997 = vcvt.s32.f32 %v2990
          %v2998 = vmul.f32 %v2997, %v2995
          %v2999 = vxor.u32 %v2998, 2147483648
          %v3000 = vsel %vm2879, %v2999, %v2998
          %v3001 = vsub.s32 4, %v2977
          %v3002 = vsel %vm2879, %v3001, %v2977
          %v3003 = vsel %vm2878, %v456, %v3000
          %v3004 = vsel %vm2878, 0, %v3002
          %v3005 = vmul.f32 %v3003, %v3003
          %v3006 = vmul.f32 %v3005, -0.001358992
          %v3007 = vadd.f32 %v3006, 0.041655596
          %v3008 = vmul.f32 %v3005, %v3007
          %v3009 = vadd.f32 %v3008, -0.4999988
          %v3010 = vmul.f32 %v3005, %v3009
          %v3011 = vadd.f32 1.0, %v3010
          %v3012 = vmul.f32 %v3003, %v3003
          %v3013 = vmul.f32 %v3012, -0.00019511016
          %v3014 = vadd.f32 %v3013, 0.008332121
          %v3015 = vmul.f32 %v3012, %v3014
          %v3016 = vadd.f32 %v3015, -0.16666654
          %v3017 = vmul.f32 %v3012, %v3016
          %v3018 = vadd.f32 %v3017, 1.0
          %v3019 = vmul.f32 %v3018, %v3003
          %vm3020 = vweird.f32 %v456
          %v3021 = vadd.s32 %v3004, 3
          %v3022 = vand.u32 %v3021, 3
          %vm3023 = vcmp.lt.s32.totalorder %v3022, 2
          %vm3024 = vcmp.eq.s32.totalorder %v3022, 0
          %v3025 = vxor.u32 %v3019, 2147483648
          %v3026 = vsel %vm3024, %v3011, %v3025
          %vm3027 = vcmp.eq.s32.totalorder %v3022, 2
          %v3028 = vxor.u32 %v3011, 2147483648
          %v3029 = vsel %vm3027, %v3028, %v3019
          %v3030 = vsel %vm3023, %v3026, %v3029
          %v3031 = vsel %vm3020, nan, %v3030
          %v3032 = vand.u32 2147483647, %v497
          %vm3033 = vcmp.le.f32.partialorder %v3032, 0.7853982
          %vm3034 = vcmp.lt.s32.totalorder %v497, 0
          %v3035 = vand.u32 %v497, 2139095040
          %v3036 = vshrl.u32 %v3035, 23
          %v3037 = vsub.s32 %v3036, 127
          %v3038 = vand.u32 2147483647, %v497
          %v3039 = vand.u32 %v3038, 8388607
          %v3040 = vor.u32 %v3039, 8388608
          %v3041 = vsub.s32 0, %v3040
          %v3042 = vadd.s32 %v3037, 1
          %vm3043 = vcmp.gt.s32.totalorder %v3042, 0
          %v3044 = vsel %vm3043, %v3042, 0
          %v3045 = vshrl.u32 %v3044, 5
          %v3046 = vand.u32 %v3044, 31
          %v3047 = vsub.s32 32, %v3046
          %v3048 = vshrl.u32 683565275, %v3047
          %v3049 = vshll.u32 683565275, %v3046
          %v3050 = vshrl.u32 2475754826, %v3047
          %v3051 = vor.u32 %v3049, %v3050
          %v3052 = vshll.u32 2475754826, %v3046
          %v3053 = vshrl.u32 2131351028, %v3047
          %v3054 = vor.u32 %v3052, %v3053
          %v3055 = vshll.u32 2131351028, %v3046
          %v3056 = vshrl.u32 2102212464, %v3047
          %v3057 = vor.u32 %v3055, %v3056
          %v3058 = vshll.u32 2102212464, %v3046
          %v3059 = vshrl.u32 920167782, %v3047
          %v3060 = vor.u32 %v3058, %v3059
          %v3061 = vshll.u32 920167782, %v3046
          %v3062 = vshrl.u32 1326507024, %v3047
          %v3063 = vor.u32 %v3061, %v3062
          %vm3064 = vcmp.lt.s32.totalorder %v3045, 1
          %vm3065 = vcmp.lt.s32.totalorder %v3045, 2
          %vm3066 = vcmp.lt.s32.totalorder %v3045, 3
          %vm3067 = vcmp.lt.s32.totalorder %v3045, 4
          %v3068 = vsel %vm3064, %v3048, %v3051
          %v3069 = vsel %vm3067, %v3057, 2102212464
          %v3070 = vsel %vm3066, %v3054, %v3069
          %v3071 = vsel %vm3065, %v3068, %v3070
          %v3072 = vsel %vm3064, %v3051, %v3054
          %v3073 = vsel %vm3067, %v3060, 920167782
          %v3074 = vsel %vm3066, %v3057, %v3073
          %v3075 = vsel %vm3065, %v3072, %v3074
          %v3076 = vsel %vm3064, %v3054, %v3057
          %v3077 = vsel %vm3067, %v3063, 1326507024
          %v3078 = vsel %vm3066, %v3060, %v3077
          %v3079 = vsel %vm3065, %v3076, %v3078
          %v3080 = vshll.u32 %v3040, 8
          %v3081 = vand.u32 %v3080, 65535
          %v3082 = vshrl.u32 %v3080, 16
          %v3083 = vand.u32 %v3079, 65535
          %v3084 = vshrl.u32 %v3079, 16
          %v3085 = vmul.u32 %v3081, %v3083
          %v3086 = vmul.u32 %v3081, %v3084
          %v3087 = vmul.u32 %v3082, %v3083
          %v3088 = vmul.u32 %v3082, %v3084
          %v3089 = vshll.u32 %v3086, 16
          %v3090 = vshrl.u32 %v3086, 16
          %v3091 = vshll.u32 %v3087, 16
          %v3092 = vshrl.u32 %v3087, 16
          %vm3093 = vc.u32 %v3085, %v3089
          %v3094 = vsel %vm3093, 1, 0
          %v3095 = vadd.s32 %v3085, %v3089
          %v3096 = vadd.s32 %v3088, %v3094
          %vm3097 = vc.u32 %v3095, %v3091
          %v3098 = vsel %vm3097, 1, 0
          %v3099 = vadd.s32 %v3095, %v3091
          %v3100 = vadd.s32 %v3096, %v3098
          %v3101 = vadd.s32 %v3100, %v3090
          %v3102 = vadd.s32 %v3101, %v3092
          %v3103 = vand.u32 %v3080, 65535
          %v3104 = vshrl.u32 %v3080, 16
          %v3105 = vand.u32 %v3075, 65535
          %v3106 = vshrl.u32 %v3075, 16
          %v3107 = vmul.u32 %v3103, %v3105
          %v3108 = vmul.u32 %v3103, %v3106
          %v3109 = vmul.u32 %v3104, %v3105
          %v3110 = vmul.u32 %v3104, %v3106
          %v3111 = vshll.u32 %v3108, 16
          %v3112 = vshrl.u32 %v3108, 16
          %v3113 = vshll.u32 %v3109, 16
          %v3114 = vshrl.u32 %v3109, 16
          %vm3115 = vc.u32 %v3107, %v3111
          %v3116 = vsel %vm3115, 1, 0
          %v3117 = vadd.s32 %v3107, %v3111
          %v3118 = vadd.s32 %v3110, %v3116
          %vm3119 = vc.u32 %v3117, %v3113
          %v3120 = vsel %vm3119, 1, 0
          %v3121 = vadd.s32 %v3117, %v3113
          %v3122 = vadd.s32 %v3118, %v3120
          %v3123 = vadd.s32 %v3122, %v3112
          %v3124 = vadd.s32 %v3123, %v3114
          %v3125 = vmul.u32 %v3080, %v3071
          %v3126 = vadd.s32 %v3102, %v3121
          %vm3127 = vc.u32 %v3102, %v3121
          %v3128 = vadd.s32 %v3124, 1
          %v3129 = vsel %vm3127, %v3128, %v3124
          %v3130 = vadd.s32 %v3125, %v3129
          %v3131 = vadd.s32 %v3130, 536870912
          %v3132 = vshrl.u32 %v3131, 30
          %v3133 = vshll.u32 %v3132, 30
          %v3134 = vsub.s32 %v3130, %v3133
          %vm3135 = vcmp.lt.s32.totalorder %v3134, 0
          %v3136 = vsub.s32 0, %v3134
          %v3137 = vsel %vm3135, %v3136, %v3134
          %v3138 = vclz %v3137
          %v3139 = vsub.s32 %v3138, 2
          %vm3140 = vcmp.gt.s32.totalorder 0, %v3139
          %v3141 = vsel %vm3140, 0, %v3139
          %v3142 = vsub.s32 32, %v3141
          %v3143 = vshll.u32 %v3134, %v3141
          %v3144 = vshrl.u32 %v3126, %v3142
          %v3145 = vor.u32 %v3143, %v3144
          %v3146 = vsub.s32 4294967266, %v3141
          %v3147 = vadd.s32 %v3146, 127
          %v3148 = vshll.u32 %v3147, 23
          %v3149 = vor.u32 4788187, %v3148
          %v3150 = vand.u32 2147483647, %v3149
          %v3152 = vcvt.s32.f32 %v3145
          %v3153 = vmul.f32 %v3152, %v3150
          %v3154 = vxor.u32 %v3153, 2147483648
          %v3155 = vsel %vm3034, %v3154, %v3153
          %v3156 = vsub.s32 4, %v3132
          %v3157 = vsel %vm3034, %v3156, %v3132
          %v3158 = vsel %vm3033, %v497, %v3155
          %v3159 = vsel %vm3033, 0, %v3157
          %v3160 = vmul.f32 %v3158, %v3158
          %v3161 = vmul.f32 %v3160, -0.001358992
          %v3162 = vadd.f32 %v3161, 0.041655596
          %v3163 = vmul.f32 %v3160, %v3162
          %v3164 = vadd.f32 %v3163, -0.4999988
          %v3165 = vmul.f32 %v3160, %v3164
          %v3166 = vadd.f32 1.0, %v3165
          %v3167 = vmul.f32 %v3158, %v3158
          %v3168 = vmul.f32 %v3167, -0.00019511016
          %v3169 = vadd.f32 %v3168, 0.008332121
          %v3170 = vmul.f32 %v3167, %v3169
          %v3171 = vadd.f32 %v3170, -0.16666654
          %v3172 = vmul.f32 %v3167, %v3171
          %v3173 = vadd.f32 %v3172, 1.0
          %v3174 = vmul.f32 %v3173, %v3158
          %vm3175 = vweird.f32 %v497
          %v3176 = vadd.s32 %v3159, 3
          %v3177 = vand.u32 %v3176, 3
          %vm3178 = vcmp.lt.s32.totalorder %v3177, 2
          %vm3179 = vcmp.eq.s32.totalorder %v3177, 0
          %v3180 = vxor.u32 %v3174, 2147483648
          %v3181 = vsel %vm3179, %v3166, %v3180
          %vm3182 = vcmp.eq.s32.totalorder %v3177, 2
          %v3183 = vxor.u32 %v3166, 2147483648
          %v3184 = vsel %vm3182, %v3183, %v3174
          %v3185 = vsel %vm3178, %v3181, %v3184
          %v3186 = vsel %vm3175, nan, %v3185
          %v3187 = vand.u32 2147483647, %v459
          %vm3188 = vcmp.le.f32.partialorder %v3187, 0.7853982
          %vm3189 = vcmp.lt.s32.totalorder %v459, 0
          %v3190 = vand.u32 %v459, 2139095040
          %v3191 = vshrl.u32 %v3190, 23
          %v3192 = vsub.s32 %v3191, 127
          %v3193 = vand.u32 2147483647, %v459
          %v3194 = vand.u32 %v3193, 8388607
          %v3195 = vor.u32 %v3194, 8388608
          %v3196 = vsub.s32 0, %v3195
          %v3197 = vadd.s32 %v3192, 1
          %vm3198 = vcmp.gt.s32.totalorder %v3197, 0
          %v3199 = vsel %vm3198, %v3197, 0
          %v3200 = vshrl.u32 %v3199, 5
          %v3201 = vand.u32 %v3199, 31
          %v3202 = vsub.s32 32, %v3201
          %v3203 = vshrl.u32 683565275, %v3202
          %v3204 = vshll.u32 683565275, %v3201
          %v3205 = vshrl.u32 2475754826, %v3202
          %v3206 = vor.u32 %v3204, %v3205
          %v3207 = vshll.u32 2475754826, %v3201
          %v3208 = vshrl.u32 2131351028, %v3202
          %v3209 = vor.u32 %v3207, %v3208
          %v3210 = vshll.u32 2131351028, %v3201
          %v3211 = vshrl.u32 2102212464, %v3202
          %v3212 = vor.u32 %v3210, %v3211
          %v3213 = vshll.u32 2102212464, %v3201
          %v3214 = vshrl.u32 920167782, %v3202
          %v3215 = vor.u32 %v3213, %v3214
          %v3216 = vshll.u32 920167782, %v3201
          %v3217 = vshrl.u32 1326507024, %v3202
          %v3218 = vor.u32 %v3216, %v3217
          %vm3219 = vcmp.lt.s32.totalorder %v3200, 1
          %vm3220 = vcmp.lt.s32.totalorder %v3200, 2
          %vm3221 = vcmp.lt.s32.totalorder %v3200, 3
          %vm3222 = vcmp.lt.s32.totalorder %v3200, 4
          %v3223 = vsel %vm3219, %v3203, %v3206
          %v3224 = vsel %vm3222, %v3212, 2102212464
          %v3225 = vsel %vm3221, %v3209, %v3224
          %v3226 = vsel %vm3220, %v3223, %v3225
          %v3227 = vsel %vm3219, %v3206, %v3209
          %v3228 = vsel %vm3222, %v3215, 920167782
          %v3229 = vsel %vm3221, %v3212, %v3228
          %v3230 = vsel %vm3220, %v3227, %v3229
          %v3231 = vsel %vm3219, %v3209, %v3212
          %v3232 = vsel %vm3222, %v3218, 1326507024
          %v3233 = vsel %vm3221, %v3215, %v3232
          %v3234 = vsel %vm3220, %v3231, %v3233
          %v3235 = vshll.u32 %v3195, 8
          %v3236 = vand.u32 %v3235, 65535
          %v3237 = vshrl.u32 %v3235, 16
          %v3238 = vand.u32 %v3234, 65535
          %v3239 = vshrl.u32 %v3234, 16
          %v3240 = vmul.u32 %v3236, %v3238
          %v3241 = vmul.u32 %v3236, %v3239
          %v3242 = vmul.u32 %v3237, %v3238
          %v3243 = vmul.u32 %v3237, %v3239
          %v3244 = vshll.u32 %v3241, 16
          %v3245 = vshrl.u32 %v3241, 16
          %v3246 = vshll.u32 %v3242, 16
          %v3247 = vshrl.u32 %v3242, 16
          %vm3248 = vc.u32 %v3240, %v3244
          %v3249 = vsel %vm3248, 1, 0
          %v3250 = vadd.s32 %v3240, %v3244
          %v3251 = vadd.s32 %v3243, %v3249
          %vm3252 = vc.u32 %v3250, %v3246
          %v3253 = vsel %vm3252, 1, 0
          %v3254 = vadd.s32 %v3250, %v3246
          %v3255 = vadd.s32 %v3251, %v3253
          %v3256 = vadd.s32 %v3255, %v3245
          %v3257 = vadd.s32 %v3256, %v3247
          %v3258 = vand.u32 %v3235, 65535
          %v3259 = vshrl.u32 %v3235, 16
          %v3260 = vand.u32 %v3230, 65535
          %v3261 = vshrl.u32 %v3230, 16
          %v3262 = vmul.u32 %v3258, %v3260
          %v3263 = vmul.u32 %v3258, %v3261
          %v3264 = vmul.u32 %v3259, %v3260
          %v3265 = vmul.u32 %v3259, %v3261
          %v3266 = vshll.u32 %v3263, 16
          %v3267 = vshrl.u32 %v3263, 16
          %v3268 = vshll.u32 %v3264, 16
          %v3269 = vshrl.u32 %v3264, 16
          %vm3270 = vc.u32 %v3262, %v3266
          %v3271 = vsel %vm3270, 1, 0
          %v3272 = vadd.s32 %v3262, %v3266
          %v3273 = vadd.s32 %v3265, %v3271
          %vm3274 = vc.u32 %v3272, %v3268
          %v3275 = vsel %vm3274, 1, 0
          %v3276 = vadd.s32 %v3272, %v3268
          %v3277 = vadd.s32 %v3273, %v3275
          %v3278 = vadd.s32 %v3277, %v3267
          %v3279 = vadd.s32 %v3278, %v3269
          %v3280 = vmul.u32 %v3235, %v3226
          %v3281 = vadd.s32 %v3257, %v3276
          %vm3282 = vc.u32 %v3257, %v3276
          %v3283 = vadd.s32 %v3279, 1
          %v3284 = vsel %vm3282, %v3283, %v3279
          %v3285 = vadd.s32 %v3280, %v3284
          %v3286 = vadd.s32 %v3285, 536870912
          %v3287 = vshrl.u32 %v3286, 30
          %v3288 = vshll.u32 %v3287, 30
          %v3289 = vsub.s32 %v3285, %v3288
          %vm3290 = vcmp.lt.s32.totalorder %v3289, 0
          %v3291 = vsub.s32 0, %v3289
          %v3292 = vsel %vm3290, %v3291, %v3289
          %v3293 = vclz %v3292
          %v3294 = vsub.s32 %v3293, 2
          %vm3295 = vcmp.gt.s32.totalorder 0, %v3294
          %v3296 = vsel %vm3295, 0, %v3294
          %v3297 = vsub.s32 32, %v3296
          %v3298 = vshll.u32 %v3289, %v3296
          %v3299 = vshrl.u32 %v3281, %v3297
          %v3300 = vor.u32 %v3298, %v3299
          %v3301 = vsub.s32 4294967266, %v3296
          %v3302 = vadd.s32 %v3301, 127
          %v3303 = vshll.u32 %v3302, 23
          %v3304 = vor.u32 4788187, %v3303
          %v3305 = vand.u32 2147483647, %v3304
          %v3307 = vcvt.s32.f32 %v3300
          %v3308 = vmul.f32 %v3307, %v3305
          %v3309 = vxor.u32 %v3308, 2147483648
          %v3310 = vsel %vm3189, %v3309, %v3308
          %v3311 = vsub.s32 4, %v3287
          %v3312 = vsel %vm3189, %v3311, %v3287
          %v3313 = vsel %vm3188, %v459, %v3310
          %v3314 = vsel %vm3188, 0, %v3312
          %v3315 = vmul.f32 %v3313, %v3313
          %v3316 = vmul.f32 %v3315, -0.001358992
          %v3317 = vadd.f32 %v3316, 0.041655596
          %v3318 = vmul.f32 %v3315, %v3317
          %v3319 = vadd.f32 %v3318, -0.4999988
          %v3320 = vmul.f32 %v3315, %v3319
          %v3321 = vadd.f32 1.0, %v3320
          %v3322 = vmul.f32 %v3313, %v3313
          %v3323 = vmul.f32 %v3322, -0.00019511016
          %v3324 = vadd.f32 %v3323, 0.008332121
          %v3325 = vmul.f32 %v3322, %v3324
          %v3326 = vadd.f32 %v3325, -0.16666654
          %v3327 = vmul.f32 %v3322, %v3326
          %v3328 = vadd.f32 %v3327, 1.0
          %v3329 = vmul.f32 %v3328, %v3313
          %vm3330 = vweird.f32 %v459
          %v3331 = vadd.s32 %v3314, 3
          %v3332 = vand.u32 %v3331, 3
          %vm3333 = vcmp.lt.s32.totalorder %v3332, 2
          %vm3334 = vcmp.eq.s32.totalorder %v3332, 0
          %v3335 = vxor.u32 %v3329, 2147483648
          %v3336 = vsel %vm3334, %v3321, %v3335
          %vm3337 = vcmp.eq.s32.totalorder %v3332, 2
          %v3338 = vxor.u32 %v3321, 2147483648
          %v3339 = vsel %vm3337, %v3338, %v3329
          %v3340 = vsel %vm3333, %v3336, %v3339
          %v3341 = vsel %vm3330, nan, %v3340
          %v3342 = vand.u32 2147483647, %v500
          %vm3343 = vcmp.le.f32.partialorder %v3342, 0.7853982
          %vm3344 = vcmp.lt.s32.totalorder %v500, 0
          %v3345 = vand.u32 %v500, 2139095040
          %v3346 = vshrl.u32 %v3345, 23
          %v3347 = vsub.s32 %v3346, 127
          %v3348 = vand.u32 2147483647, %v500
          %v3349 = vand.u32 %v3348, 8388607
          %v3350 = vor.u32 %v3349, 8388608
          %v3351 = vsub.s32 0, %v3350
          %v3352 = vadd.s32 %v3347, 1
          %vm3353 = vcmp.gt.s32.totalorder %v3352, 0
          %v3354 = vsel %vm3353, %v3352, 0
          %v3355 = vshrl.u32 %v3354, 5
          %v3356 = vand.u32 %v3354, 31
          %v3357 = vsub.s32 32, %v3356
          %v3358 = vshrl.u32 683565275, %v3357
          %v3359 = vshll.u32 683565275, %v3356
          %v3360 = vshrl.u32 2475754826, %v3357
          %v3361 = vor.u32 %v3359, %v3360
          %v3362 = vshll.u32 2475754826, %v3356
          %v3363 = vshrl.u32 2131351028, %v3357
          %v3364 = vor.u32 %v3362, %v3363
          %v3365 = vshll.u32 2131351028, %v3356
          %v3366 = vshrl.u32 2102212464, %v3357
          %v3367 = vor.u32 %v3365, %v3366
          %v3368 = vshll.u32 2102212464, %v3356
          %v3369 = vshrl.u32 920167782, %v3357
          %v3370 = vor.u32 %v3368, %v3369
          %v3371 = vshll.u32 920167782, %v3356
          %v3372 = vshrl.u32 1326507024, %v3357
          %v3373 = vor.u32 %v3371, %v3372
          %vm3374 = vcmp.lt.s32.totalorder %v3355, 1
          %vm3375 = vcmp.lt.s32.totalorder %v3355, 2
          %vm3376 = vcmp.lt.s32.totalorder %v3355, 3
          %vm3377 = vcmp.lt.s32.totalorder %v3355, 4
          %v3378 = vsel %vm3374, %v3358, %v3361
          %v3379 = vsel %vm3377, %v3367, 2102212464
          %v3380 = vsel %vm3376, %v3364, %v3379
          %v3381 = vsel %vm3375, %v3378, %v3380
          %v3382 = vsel %vm3374, %v3361, %v3364
          %v3383 = vsel %vm3377, %v3370, 920167782
          %v3384 = vsel %vm3376, %v3367, %v3383
          %v3385 = vsel %vm3375, %v3382, %v3384
          %v3386 = vsel %vm3374, %v3364, %v3367
          %v3387 = vsel %vm3377, %v3373, 1326507024
          %v3388 = vsel %vm3376, %v3370, %v3387
          %v3389 = vsel %vm3375, %v3386, %v3388
          %v3390 = vshll.u32 %v3350, 8
          %v3391 = vand.u32 %v3390, 65535
          %v3392 = vshrl.u32 %v3390, 16
          %v3393 = vand.u32 %v3389, 65535
          %v3394 = vshrl.u32 %v3389, 16
          %v3395 = vmul.u32 %v3391, %v3393
          %v3396 = vmul.u32 %v3391, %v3394
          %v3397 = vmul.u32 %v3392, %v3393
          %v3398 = vmul.u32 %v3392, %v3394
          %v3399 = vshll.u32 %v3396, 16
          %v3400 = vshrl.u32 %v3396, 16
          %v3401 = vshll.u32 %v3397, 16
          %v3402 = vshrl.u32 %v3397, 16
          %vm3403 = vc.u32 %v3395, %v3399
          %v3404 = vsel %vm3403, 1, 0
          %v3405 = vadd.s32 %v3395, %v3399
          %v3406 = vadd.s32 %v3398, %v3404
          %vm3407 = vc.u32 %v3405, %v3401
          %v3408 = vsel %vm3407, 1, 0
          %v3409 = vadd.s32 %v3405, %v3401
          %v3410 = vadd.s32 %v3406, %v3408
          %v3411 = vadd.s32 %v3410, %v3400
          %v3412 = vadd.s32 %v3411, %v3402
          %v3413 = vand.u32 %v3390, 65535
          %v3414 = vshrl.u32 %v3390, 16
          %v3415 = vand.u32 %v3385, 65535
          %v3416 = vshrl.u32 %v3385, 16
          %v3417 = vmul.u32 %v3413, %v3415
          %v3418 = vmul.u32 %v3413, %v3416
          %v3419 = vmul.u32 %v3414, %v3415
          %v3420 = vmul.u32 %v3414, %v3416
          %v3421 = vshll.u32 %v3418, 16
          %v3422 = vshrl.u32 %v3418, 16
          %v3423 = vshll.u32 %v3419, 16
          %v3424 = vshrl.u32 %v3419, 16
          %vm3425 = vc.u32 %v3417, %v3421
          %v3426 = vsel %vm3425, 1, 0
          %v3427 = vadd.s32 %v3417, %v3421
          %v3428 = vadd.s32 %v3420, %v3426
          %vm3429 = vc.u32 %v3427, %v3423
          %v3430 = vsel %vm3429, 1, 0
          %v3431 = vadd.s32 %v3427, %v3423
          %v3432 = vadd.s32 %v3428, %v3430
          %v3433 = vadd.s32 %v3432, %v3422
          %v3434 = vadd.s32 %v3433, %v3424
          %v3435 = vmul.u32 %v3390, %v3381
          %v3436 = vadd.s32 %v3412, %v3431
          %vm3437 = vc.u32 %v3412, %v3431
          %v3438 = vadd.s32 %v3434, 1
          %v3439 = vsel %vm3437, %v3438, %v3434
          %v3440 = vadd.s32 %v3435, %v3439
          %v3441 = vadd.s32 %v3440, 536870912
          %v3442 = vshrl.u32 %v3441, 30
          %v3443 = vshll.u32 %v3442, 30
          %v3444 = vsub.s32 %v3440, %v3443
          %vm3445 = vcmp.lt.s32.totalorder %v3444, 0
          %v3446 = vsub.s32 0, %v3444
          %v3447 = vsel %vm3445, %v3446, %v3444
          %v3448 = vclz %v3447
          %v3449 = vsub.s32 %v3448, 2
          %vm3450 = vcmp.gt.s32.totalorder 0, %v3449
          %v3451 = vsel %vm3450, 0, %v3449
          %v3452 = vsub.s32 32, %v3451
          %v3453 = vshll.u32 %v3444, %v3451
          %v3454 = vshrl.u32 %v3436, %v3452
          %v3455 = vor.u32 %v3453, %v3454
          %v3456 = vsub.s32 4294967266, %v3451
          %v3457 = vadd.s32 %v3456, 127
          %v3458 = vshll.u32 %v3457, 23
          %v3459 = vor.u32 4788187, %v3458
          %v3460 = vand.u32 2147483647, %v3459
          %v3462 = vcvt.s32.f32 %v3455
          %v3463 = vmul.f32 %v3462, %v3460
          %v3464 = vxor.u32 %v3463, 2147483648
          %v3465 = vsel %vm3344, %v3464, %v3463
          %v3466 = vsub.s32 4, %v3442
          %v3467 = vsel %vm3344, %v3466, %v3442
          %v3468 = vsel %vm3343, %v500, %v3465
          %v3469 = vsel %vm3343, 0, %v3467
          %v3470 = vmul.f32 %v3468, %v3468
          %v3471 = vmul.f32 %v3470, -0.001358992
          %v3472 = vadd.f32 %v3471, 0.041655596
          %v3473 = vmul.f32 %v3470, %v3472
          %v3474 = vadd.f32 %v3473, -0.4999988
          %v3475 = vmul.f32 %v3470, %v3474
          %v3476 = vadd.f32 1.0, %v3475
          %v3477 = vmul.f32 %v3468, %v3468
          %v3478 = vmul.f32 %v3477, -0.00019511016
          %v3479 = vadd.f32 %v3478, 0.008332121
          %v3480 = vmul.f32 %v3477, %v3479
          %v3481 = vadd.f32 %v3480, -0.16666654
          %v3482 = vmul.f32 %v3477, %v3481
          %v3483 = vadd.f32 %v3482, 1.0
          %v3484 = vmul.f32 %v3483, %v3468
          %vm3485 = vweird.f32 %v500
          %v3486 = vadd.s32 %v3469, 3
          %v3487 = vand.u32 %v3486, 3
          %vm3488 = vcmp.lt.s32.totalorder %v3487, 2
          %vm3489 = vcmp.eq.s32.totalorder %v3487, 0
          %v3490 = vxor.u32 %v3484, 2147483648
          %v3491 = vsel %vm3489, %v3476, %v3490
          %vm3492 = vcmp.eq.s32.totalorder %v3487, 2
          %v3493 = vxor.u32 %v3476, 2147483648
          %v3494 = vsel %vm3492, %v3493, %v3484
          %v3495 = vsel %vm3488, %v3491, %v3494
          %v3496 = vsel %vm3485, nan, %v3495
          %v3497 = vstv %s321
          %v3498 = vmul.f32 %v3497, %v1171
          %v3499 = vmul.f32 %v3497, %v1326
          %v3500 = vmul.f32 %v3497, %v1481
          %v3501 = vmul.f32 %v3497, %v1636
          %v3502 = vmul.f32 %v3497, %v1791
          %v3503 = vmul.f32 %v3497, %v1946
          %v3504 = vmul.f32 %v3497, %v2101
          %v3505 = vmul.f32 %v3497, %v2256
          %v3506 = vmul.f32 %v3497, %v2411
          %v3507 = vmul.f32 %v3497, %v2566
          %v3508 = vmul.f32 %v3497, %v2721
          %v3509 = vmul.f32 %v3497, %v2876
          %v3510 = vmul.f32 %v3497, %v3031
          %v3511 = vmul.f32 %v3497, %v3186
          %v3512 = vmul.f32 %v3497, %v3341
          %v3513 = vmul.f32 %v3497, %v3496
          %v3514 = vadd.f32 %v1001, %v3498
          %v3515 = vadd.f32 %v1002, %v3499
          %v3516 = vadd.f32 %v1003, %v3500
          %v3517 = vadd.f32 %v1004, %v3501
          %v3518 = vadd.f32 %v1005, %v3502
          %v3519 = vadd.f32 %v1006, %v3503
          %v3520 = vadd.f32 %v1007, %v3504
          %v3521 = vadd.f32 %v1008, %v3505
          %v3522 = vadd.f32 %v1009, %v3506
          %v3523 = vadd.f32 %v1010, %v3507
          %v3524 = vadd.f32 %v1011, %v3508
          %v3525 = vadd.f32 %v1012, %v3509
          %v3526 = vadd.f32 %v1013, %v3510
          %v3527 = vadd.f32 %v1014, %v3511
          %v3528 = vadd.f32 %v1015, %v3512
          %v3529 = vadd.f32 %v1016, %v3513
          %v3530 = vmul.f32 %v438, %v438
          %v3531 = vmul.f32 %v479, %v479
          %v3532 = vmul.f32 %v441, %v441
          %v3533 = vmul.f32 %v482, %v482
          %v3534 = vmul.f32 %v444, %v444
          %v3535 = vmul.f32 %v485, %v485
          %v3536 = vmul.f32 %v447, %v447
          %v3537 = vmul.f32 %v488, %v488
          %v3538 = vmul.f32 %v450, %v450
          %v3539 = vmul.f32 %v491, %v491
          %v3540 = vmul.f32 %v453, %v453
          %v3541 = vmul.f32 %v494, %v494
          %v3542 = vmul.f32 %v456, %v456
          %v3543 = vmul.f32 %v497, %v497
          %v3544 = vmul.f32 %v459, %v459
          %v3545 = vmul.f32 %v500, %v500
          %v3546 = vstv %s324
          %v3547 = vmul.f32 %v3546, %v3530
          %v3548 = vmul.f32 %v3546, %v3531
          %v3549 = vmul.f32 %v3546, %v3532
          %v3550 = vmul.f32 %v3546, %v3533
          %v3551 = vmul.f32 %v3546, %v3534
          %v3552 = vmul.f32 %v3546, %v3535
          %v3553 = vmul.f32 %v3546, %v3536
          %v3554 = vmul.f32 %v3546, %v3537
          %v3555 = vmul.f32 %v3546, %v3538
          %v3556 = vmul.f32 %v3546, %v3539
          %v3557 = vmul.f32 %v3546, %v3540
          %v3558 = vmul.f32 %v3546, %v3541
          %v3559 = vmul.f32 %v3546, %v3542
          %v3560 = vmul.f32 %v3546, %v3543
          %v3561 = vmul.f32 %v3546, %v3544
          %v3562 = vmul.f32 %v3546, %v3545
          %v3563 = vadd.f32 %v3514, %v3547
          %v3564 = vadd.f32 %v3515, %v3548
          %v3565 = vadd.f32 %v3516, %v3549
          %v3566 = vadd.f32 %v3517, %v3550
          %v3567 = vadd.f32 %v3518, %v3551
          %v3568 = vadd.f32 %v3519, %v3552
          %v3569 = vadd.f32 %v3520, %v3553
          %v3570 = vadd.f32 %v3521, %v3554
          %v3571 = vadd.f32 %v3522, %v3555
          %v3572 = vadd.f32 %v3523, %v3556
          %v3573 = vadd.f32 %v3524, %v3557
          %v3574 = vadd.f32 %v3525, %v3558
          %v3575 = vadd.f32 %v3526, %v3559
          %v3576 = vadd.f32 %v3527, %v3560
          %v3577 = vadd.f32 %v3528, %v3561
          %v3578 = vadd.f32 %v3529, %v3562
          %v3579 = vld [vmem:[%s4] sm:$0xff]
          %v3580 = vld [vmem:[%s4 + $0x8] sm:$0xff]
          %v3581 = vld [vmem:[%s4 + $0x10] sm:$0xff]
          %v3582 = vld [vmem:[%s4 + $0x18] sm:$0xff]
          %v3583 = vld [vmem:[%s4 + $0x20] sm:$0xff]
          %v3584 = vld [vmem:[%s4 + $0x28] sm:$0xff]
          %v3585 = vld [vmem:[%s4 + $0x30] sm:$0xff]
          %v3586 = vld [vmem:[%s4 + $0x38] sm:$0xff]
          %v3587 = vld [vmem:[%s5] sm:$0xff]
          %v3588 = vld [vmem:[%s5 + $0x8] sm:$0xff]
          %v3589 = vld [vmem:[%s5 + $0x10] sm:$0xff]
          %v3590 = vld [vmem:[%s5 + $0x18] sm:$0xff]
          %v3591 = vld [vmem:[%s5 + $0x20] sm:$0xff]
          %v3592 = vld [vmem:[%s5 + $0x28] sm:$0xff]
          %v3593 = vld [vmem:[%s5 + $0x30] sm:$0xff]
          %v3594 = vld [vmem:[%s5 + $0x38] sm:$0xff]
          %3596 = vset.pattern.permute.xlu0 0
          %3597 = vperm.xlu0 %3596, %v3587
          %v3598 = vpop.permute.xlu0 %3597
          %3601 = vset.pattern.permute.xlu0 0
          %3602 = vperm.xlu0 %3601, %v3588
          %v3603 = vpop.permute.xlu0 %3602
          %3606 = vset.pattern.permute.xlu0 0
          %3607 = vperm.xlu0 %3606, %v3589
          %v3608 = vpop.permute.xlu0 %3607
          %3611 = vset.pattern.permute.xlu0 0
          %3612 = vperm.xlu0 %3611, %v3590
          %v3613 = vpop.permute.xlu0 %3612
          %3616 = vset.pattern.permute.xlu0 0
          %3617 = vperm.xlu0 %3616, %v3591
          %v3618 = vpop.permute.xlu0 %3617
          %3621 = vset.pattern.permute.xlu0 0
          %3622 = vperm.xlu0 %3621, %v3592
          %v3623 = vpop.permute.xlu0 %3622
          %3626 = vset.pattern.permute.xlu0 0
          %3627 = vperm.xlu0 %3626, %v3593
          %v3628 = vpop.permute.xlu0 %3627
          %3631 = vset.pattern.permute.xlu0 0
          %3632 = vperm.xlu0 %3631, %v3594
          %v3633 = vpop.permute.xlu0 %3632
          %vm3635 = vcmask 523264
          %v3637 = vsel %vm3635, %v3579, 0
          %v3640 = vsel %vm3635, %v3580, 0
          %v3643 = vsel %vm3635, %v3581, 0
          %v3646 = vsel %vm3635, %v3582, 0
          %v3649 = vsel %vm3635, %v3583, 0
          %v3652 = vsel %vm3635, %v3584, 0
          %v3655 = vsel %vm3635, %v3585, 0
          %v3658 = vsel %vm3635, %v3586, 0
          %3660 = vmatpush.msra.mxu0 0.0
          %3661 = vmatpush.msra.mxu0 0.0
          %3662 = vmatpush.msra.mxu0 0.0
          %3663 = vmatpush.msra.mxu0 0.0
          %3664 = vmatpush.msra.mxu0 0.0
          %3665 = vmatpush.msra.mxu0 0.0
          %3666 = vmatpush.msra.mxu0 0.0
          %3667 = vmatpush.msra.mxu0 0.0
          %3668 = vmatpush.msra.mxu0 %v3577
          %3669 = vmatpush.msra.mxu0 %v3575
          %3670 = vmatpush.msra.mxu0 %v3573
          %3671 = vmatpush.msra.mxu0 %v3571
          %3672 = vmatpush.msra.mxu0 %v3569
          %3673 = vmatpush.msra.mxu0 %v3567
          %3674 = vmatpush.msra.mxu0 %v3565
          %3675 = vmatpush.msra.mxu0 %v3563
          %3676 = vmatmul.f32.gmra.mxu0 %v3637
          %v3677 = vpop.f32.mrf.mxu0
          %v3678 = vadd.f32 %v3598, %v3677
          %3679 = vmatmul.f32.gmra.mxu0 %v3640
          %v3680 = vpop.f32.mrf.mxu0
          %v3681 = vadd.f32 %v3603, %v3680
          %3682 = vmatmul.f32.gmra.mxu0 %v3643
          %v3683 = vpop.f32.mrf.mxu0
          %v3684 = vadd.f32 %v3608, %v3683
          %3685 = vmatmul.f32.gmra.mxu0 %v3646
          %v3686 = vpop.f32.mrf.mxu0
          %v3687 = vadd.f32 %v3613, %v3686
          %3688 = vmatmul.f32.gmra.mxu0 %v3649
          %v3689 = vpop.f32.mrf.mxu0
          %v3690 = vadd.f32 %v3618, %v3689
          %3691 = vmatmul.f32.gmra.mxu0 %v3652
          %v3692 = vpop.f32.mrf.mxu0
          %v3693 = vadd.f32 %v3623, %v3692
          %3694 = vmatmul.f32.gmra.mxu0 %v3655
          %v3695 = vpop.f32.mrf.mxu0
          %v3696 = vadd.f32 %v3628, %v3695
          %3697 = vmatmul.f32.gmra.mxu0 %v3658
          %v3698 = vpop.f32.mrf.mxu0
          %v3699 = vadd.f32 %v3633, %v3698
          %3700 = vdwg.mxu0
          %3701 = vmatpush.msra.mxu0 0.0
          %3702 = vmatpush.msra.mxu0 0.0
          %3703 = vmatpush.msra.mxu0 0.0
          %3704 = vmatpush.msra.mxu0 0.0
          %3705 = vmatpush.msra.mxu0 0.0
          %3706 = vmatpush.msra.mxu0 0.0
          %3707 = vmatpush.msra.mxu0 0.0
          %3708 = vmatpush.msra.mxu0 0.0
          %3709 = vmatpush.msra.mxu0 %v3578
          %3710 = vmatpush.msra.mxu0 %v3576
          %3711 = vmatpush.msra.mxu0 %v3574
          %3712 = vmatpush.msra.mxu0 %v3572
          %3713 = vmatpush.msra.mxu0 %v3570
          %3714 = vmatpush.msra.mxu0 %v3568
          %3715 = vmatpush.msra.mxu0 %v3566
          %3716 = vmatpush.msra.mxu0 %v3564
          %3717 = vmatmul.f32.gmra.mxu0 %v3637
          %v3718 = vpop.f32.mrf.mxu0
          %v3719 = vadd.f32 %v3598, %v3718
          %3720 = vmatmul.f32.gmra.mxu0 %v3640
          %v3721 = vpop.f32.mrf.mxu0
          %v3722 = vadd.f32 %v3603, %v3721
          %3723 = vmatmul.f32.gmra.mxu0 %v3643
          %v3724 = vpop.f32.mrf.mxu0
          %v3725 = vadd.f32 %v3608, %v3724
          %3726 = vmatmul.f32.gmra.mxu0 %v3646
          %v3727 = vpop.f32.mrf.mxu0
          %v3728 = vadd.f32 %v3613, %v3727
          %3729 = vmatmul.f32.gmra.mxu0 %v3649
          %v3730 = vpop.f32.mrf.mxu0
          %v3731 = vadd.f32 %v3618, %v3730
          %3732 = vmatmul.f32.gmra.mxu0 %v3652
          %v3733 = vpop.f32.mrf.mxu0
          %v3734 = vadd.f32 %v3623, %v3733
          %3735 = vmatmul.f32.gmra.mxu0 %v3655
          %v3736 = vpop.f32.mrf.mxu0
          %v3737 = vadd.f32 %v3628, %v3736
          %3738 = vmatmul.f32.gmra.mxu0 %v3658
          %v3739 = vpop.f32.mrf.mxu0
          %v3740 = vadd.f32 %v3633, %v3739
          %3741 = vdwg.mxu0
          %vm3742 = vcmp.ge.f32.partialorder %v3678, 0.0
          %vm3743 = vcmp.ge.f32.partialorder %v3719, 0.0
          %vm3744 = vcmp.ge.f32.partialorder %v3681, 0.0
          %vm3745 = vcmp.ge.f32.partialorder %v3722, 0.0
          %vm3746 = vcmp.ge.f32.partialorder %v3684, 0.0
          %vm3747 = vcmp.ge.f32.partialorder %v3725, 0.0
          %vm3748 = vcmp.ge.f32.partialorder %v3687, 0.0
          %vm3749 = vcmp.ge.f32.partialorder %v3728, 0.0
          %vm3750 = vcmp.ge.f32.partialorder %v3690, 0.0
          %vm3751 = vcmp.ge.f32.partialorder %v3731, 0.0
          %vm3752 = vcmp.ge.f32.partialorder %v3693, 0.0
          %vm3753 = vcmp.ge.f32.partialorder %v3734, 0.0
          %vm3754 = vcmp.ge.f32.partialorder %v3696, 0.0
          %vm3755 = vcmp.ge.f32.partialorder %v3737, 0.0
          %vm3756 = vcmp.ge.f32.partialorder %v3699, 0.0
          %vm3757 = vcmp.ge.f32.partialorder %v3740, 0.0
          %v3758 = vand.u32 2147483647, %v3678
          %v3759 = vand.u32 2147483647, %v3719
          %v3760 = vand.u32 2147483647, %v3681
          %v3761 = vand.u32 2147483647, %v3722
          %v3762 = vand.u32 2147483647, %v3684
          %v3763 = vand.u32 2147483647, %v3725
          %v3764 = vand.u32 2147483647, %v3687
          %v3765 = vand.u32 2147483647, %v3728
          %v3766 = vand.u32 2147483647, %v3690
          %v3767 = vand.u32 2147483647, %v3731
          %v3768 = vand.u32 2147483647, %v3693
          %v3769 = vand.u32 2147483647, %v3734
          %v3770 = vand.u32 2147483647, %v3696
          %v3771 = vand.u32 2147483647, %v3737
          %v3772 = vand.u32 2147483647, %v3699
          %v3773 = vand.u32 2147483647, %v3740
          %v3774 = vsub.f32 0.0, %v3758
          %v3775 = vsub.f32 0.0, %v3759
          %v3776 = vsub.f32 0.0, %v3760
          %v3777 = vsub.f32 0.0, %v3761
          %v3778 = vsub.f32 0.0, %v3762
          %v3779 = vsub.f32 0.0, %v3763
          %v3780 = vsub.f32 0.0, %v3764
          %v3781 = vsub.f32 0.0, %v3765
          %v3782 = vsub.f32 0.0, %v3766
          %v3783 = vsub.f32 0.0, %v3767
          %v3784 = vsub.f32 0.0, %v3768
          %v3785 = vsub.f32 0.0, %v3769
          %v3786 = vsub.f32 0.0, %v3770
          %v3787 = vsub.f32 0.0, %v3771
          %v3788 = vsub.f32 0.0, %v3772
          %v3789 = vsub.f32 0.0, %v3773
          %v3790 = vmul.f32 %v3774, 1.442695
          %v3791 = vpow.pop %v3790
          %v3792 = vmul.f32 %v3775, 1.442695
          %v3793 = vpow.pop %v3792
          %v3794 = vmul.f32 %v3776, 1.442695
          %v3795 = vpow.pop %v3794
          %v3796 = vmul.f32 %v3777, 1.442695
          %v3797 = vpow.pop %v3796
          %v3798 = vmul.f32 %v3778, 1.442695
          %v3799 = vpow.pop %v3798
          %v3800 = vmul.f32 %v3779, 1.442695
          %v3801 = vpow.pop %v3800
          %v3802 = vmul.f32 %v3780, 1.442695
          %v3803 = vpow.pop %v3802
          %v3804 = vmul.f32 %v3781, 1.442695
          %v3805 = vpow.pop %v3804
          %v3806 = vmul.f32 %v3782, 1.442695
          %v3807 = vpow.pop %v3806
          %v3808 = vmul.f32 %v3783, 1.442695
          %v3809 = vpow.pop %v3808
          %v3810 = vmul.f32 %v3784, 1.442695
          %v3811 = vpow.pop %v3810
          %v3812 = vmul.f32 %v3785, 1.442695
          %v3813 = vpow.pop %v3812
          %v3814 = vmul.f32 %v3786, 1.442695
          %v3815 = vpow.pop %v3814
          %v3816 = vmul.f32 %v3787, 1.442695
          %v3817 = vpow.pop %v3816
          %v3818 = vmul.f32 %v3788, 1.442695
          %v3819 = vpow.pop %v3818
          %v3820 = vmul.f32 %v3789, 1.442695
          %v3821 = vpow.pop %v3820
          %v3822 = vadd.f32 %v3791, 1.0
          %v3823 = vadd.f32 %v3793, 1.0
          %v3824 = vadd.f32 %v3795, 1.0
          %v3825 = vadd.f32 %v3797, 1.0
          %v3826 = vadd.f32 %v3799, 1.0
          %v3827 = vadd.f32 %v3801, 1.0
          %v3828 = vadd.f32 %v3803, 1.0
          %v3829 = vadd.f32 %v3805, 1.0
          %v3830 = vadd.f32 %v3807, 1.0
          %v3831 = vadd.f32 %v3809, 1.0
          %v3832 = vadd.f32 %v3811, 1.0
          %v3833 = vadd.f32 %v3813, 1.0
          %v3834 = vadd.f32 %v3815, 1.0
          %v3835 = vadd.f32 %v3817, 1.0
          %v3836 = vadd.f32 %v3819, 1.0
          %v3837 = vadd.f32 %v3821, 1.0
          %v3838 = vrcp.pop %v3822
          %v3839 = vrcp.pop %v3823
          %v3840 = vrcp.pop %v3824
          %v3841 = vrcp.pop %v3825
          %v3842 = vrcp.pop %v3826
          %v3843 = vrcp.pop %v3827
          %v3844 = vrcp.pop %v3828
          %v3845 = vrcp.pop %v3829
          %v3846 = vrcp.pop %v3830
          %v3847 = vrcp.pop %v3831
          %v3848 = vrcp.pop %v3832
          %v3849 = vrcp.pop %v3833
          %v3850 = vrcp.pop %v3834
          %v3851 = vrcp.pop %v3835
          %v3852 = vrcp.pop %v3836
          %v3853 = vrcp.pop %v3837
          %v3854 = vmul.f32 %v3822, %v3838
          %v3855 = vmul.f32 %v3823, %v3839
          %v3856 = vmul.f32 %v3824, %v3840
          %v3857 = vmul.f32 %v3825, %v3841
          %v3858 = vmul.f32 %v3826, %v3842
          %v3859 = vmul.f32 %v3827, %v3843
          %v3860 = vmul.f32 %v3828, %v3844
          %v3861 = vmul.f32 %v3829, %v3845
          %v3862 = vmul.f32 %v3830, %v3846
          %v3863 = vmul.f32 %v3831, %v3847
          %v3864 = vmul.f32 %v3832, %v3848
          %v3865 = vmul.f32 %v3833, %v3849
          %v3866 = vmul.f32 %v3834, %v3850
          %v3867 = vmul.f32 %v3835, %v3851
          %v3868 = vmul.f32 %v3836, %v3852
          %v3869 = vmul.f32 %v3837, %v3853
          %v3870 = vsub.f32 2.0, %v3854
          %v3871 = vsub.f32 2.0, %v3855
          %v3872 = vsub.f32 2.0, %v3856
          %v3873 = vsub.f32 2.0, %v3857
          %v3874 = vsub.f32 2.0, %v3858
          %v3875 = vsub.f32 2.0, %v3859
          %v3876 = vsub.f32 2.0, %v3860
          %v3877 = vsub.f32 2.0, %v3861
          %v3878 = vsub.f32 2.0, %v3862
          %v3879 = vsub.f32 2.0, %v3863
          %v3880 = vsub.f32 2.0, %v3864
          %v3881 = vsub.f32 2.0, %v3865
          %v3882 = vsub.f32 2.0, %v3866
          %v3883 = vsub.f32 2.0, %v3867
          %v3884 = vsub.f32 2.0, %v3868
          %v3885 = vsub.f32 2.0, %v3869
          %v3886 = vmul.f32 %v3838, %v3870
          %v3887 = vmul.f32 %v3839, %v3871
          %v3888 = vmul.f32 %v3840, %v3872
          %v3889 = vmul.f32 %v3841, %v3873
          %v3890 = vmul.f32 %v3842, %v3874
          %v3891 = vmul.f32 %v3843, %v3875
          %v3892 = vmul.f32 %v3844, %v3876
          %v3893 = vmul.f32 %v3845, %v3877
          %v3894 = vmul.f32 %v3846, %v3878
          %v3895 = vmul.f32 %v3847, %v3879
          %v3896 = vmul.f32 %v3848, %v3880
          %v3897 = vmul.f32 %v3849, %v3881
          %v3898 = vmul.f32 %v3850, %v3882
          %v3899 = vmul.f32 %v3851, %v3883
          %v3900 = vmul.f32 %v3852, %v3884
          %v3901 = vmul.f32 %v3853, %v3885
          %v3902 = vsub.f32 1.0, %v3886
          %v3903 = vsub.f32 1.0, %v3887
          %v3904 = vsub.f32 1.0, %v3888
          %v3905 = vsub.f32 1.0, %v3889
          %v3906 = vsub.f32 1.0, %v3890
          %v3907 = vsub.f32 1.0, %v3891
          %v3908 = vsub.f32 1.0, %v3892
          %v3909 = vsub.f32 1.0, %v3893
          %v3910 = vsub.f32 1.0, %v3894
          %v3911 = vsub.f32 1.0, %v3895
          %v3912 = vsub.f32 1.0, %v3896
          %v3913 = vsub.f32 1.0, %v3897
          %v3914 = vsub.f32 1.0, %v3898
          %v3915 = vsub.f32 1.0, %v3899
          %v3916 = vsub.f32 1.0, %v3900
          %v3917 = vsub.f32 1.0, %v3901
          %v3918 = vsel %vm3742, %v3886, %v3902
          %v3919 = vsel %vm3743, %v3887, %v3903
          %v3920 = vsel %vm3744, %v3888, %v3904
          %v3921 = vsel %vm3745, %v3889, %v3905
          %v3922 = vsel %vm3746, %v3890, %v3906
          %v3923 = vsel %vm3747, %v3891, %v3907
          %v3924 = vsel %vm3748, %v3892, %v3908
          %v3925 = vsel %vm3749, %v3893, %v3909
          %v3926 = vsel %vm3750, %v3894, %v3910
          %v3927 = vsel %vm3751, %v3895, %v3911
          %v3928 = vsel %vm3752, %v3896, %v3912
          %v3929 = vsel %vm3753, %v3897, %v3913
          %v3930 = vsel %vm3754, %v3898, %v3914
          %v3931 = vsel %vm3755, %v3899, %v3915
          %v3932 = vsel %vm3756, %v3900, %v3916
          %v3933 = vsel %vm3757, %v3901, %v3917
          %v3934 = vmul.f32 %v3678, %v3918
          %v3935 = vmul.f32 %v3719, %v3919
          %v3936 = vmul.f32 %v3681, %v3920
          %v3937 = vmul.f32 %v3722, %v3921
          %v3938 = vmul.f32 %v3684, %v3922
          %v3939 = vmul.f32 %v3725, %v3923
          %v3940 = vmul.f32 %v3687, %v3924
          %v3941 = vmul.f32 %v3728, %v3925
          %v3942 = vmul.f32 %v3690, %v3926
          %v3943 = vmul.f32 %v3731, %v3927
          %v3944 = vmul.f32 %v3693, %v3928
          %v3945 = vmul.f32 %v3734, %v3929
          %v3946 = vmul.f32 %v3696, %v3930
          %v3947 = vmul.f32 %v3737, %v3931
          %v3948 = vmul.f32 %v3699, %v3932
          %v3949 = vmul.f32 %v3740, %v3933
          %v3950 = vmul.f32 %v710, %v3934
          %v3951 = vmul.f32 %v710, %v3935
          %v3952 = vmul.f32 %v710, %v3936
          %v3953 = vmul.f32 %v710, %v3937
          %v3954 = vmul.f32 %v710, %v3938
          %v3955 = vmul.f32 %v710, %v3939
          %v3956 = vmul.f32 %v710, %v3940
          %v3957 = vmul.f32 %v710, %v3941
          %v3958 = vmul.f32 %v710, %v3942
          %v3959 = vmul.f32 %v710, %v3943
          %v3960 = vmul.f32 %v710, %v3944
          %v3961 = vmul.f32 %v710, %v3945
          %v3962 = vmul.f32 %v710, %v3946
          %v3963 = vmul.f32 %v710, %v3947
          %v3964 = vmul.f32 %v710, %v3948
          %v3965 = vmul.f32 %v710, %v3949
          %v3966 = vmax.f32 %v3678, 0.0
          %v3967 = vmax.f32 %v3719, 0.0
          %v3968 = vmax.f32 %v3681, 0.0
          %v3969 = vmax.f32 %v3722, 0.0
          %v3970 = vmax.f32 %v3684, 0.0
          %v3971 = vmax.f32 %v3725, 0.0
          %v3972 = vmax.f32 %v3687, 0.0
          %v3973 = vmax.f32 %v3728, 0.0
          %v3974 = vmax.f32 %v3690, 0.0
          %v3975 = vmax.f32 %v3731, 0.0
          %v3976 = vmax.f32 %v3693, 0.0
          %v3977 = vmax.f32 %v3734, 0.0
          %v3978 = vmax.f32 %v3696, 0.0
          %v3979 = vmax.f32 %v3737, 0.0
          %v3980 = vmax.f32 %v3699, 0.0
          %v3981 = vmax.f32 %v3740, 0.0
          %v3982 = vlog2.pop %v3822
          %v3983 = vmul.f32 %v3982, 0.6931472
          %v3984 = vlog2.pop %v3823
          %v3985 = vmul.f32 %v3984, 0.6931472
          %v3986 = vlog2.pop %v3824
          %v3987 = vmul.f32 %v3986, 0.6931472
          %v3988 = vlog2.pop %v3825
          %v3989 = vmul.f32 %v3988, 0.6931472
          %v3990 = vlog2.pop %v3826
          %v3991 = vmul.f32 %v3990, 0.6931472
          %v3992 = vlog2.pop %v3827
          %v3993 = vmul.f32 %v3992, 0.6931472
          %v3994 = vlog2.pop %v3828
          %v3995 = vmul.f32 %v3994, 0.6931472
          %v3996 = vlog2.pop %v3829
          %v3997 = vmul.f32 %v3996, 0.6931472
          %v3998 = vlog2.pop %v3830
          %v3999 = vmul.f32 %v3998, 0.6931472
          %v4000 = vlog2.pop %v3831
          %v4001 = vmul.f32 %v4000, 0.6931472
          %v4002 = vlog2.pop %v3832
          %v4003 = vmul.f32 %v4002, 0.6931472
          %v4004 = vlog2.pop %v3833
          %v4005 = vmul.f32 %v4004, 0.6931472
          %v4006 = vlog2.pop %v3834
          %v4007 = vmul.f32 %v4006, 0.6931472
          %v4008 = vlog2.pop %v3835
          %v4009 = vmul.f32 %v4008, 0.6931472
          %v4010 = vlog2.pop %v3836
          %v4011 = vmul.f32 %v4010, 0.6931472
          %v4012 = vlog2.pop %v3837
          %v4013 = vmul.f32 %v4012, 0.6931472
          %v4014 = vadd.f32 %v3966, %v3983
          %v4015 = vadd.f32 %v3967, %v3985
          %v4016 = vadd.f32 %v3968, %v3987
          %v4017 = vadd.f32 %v3969, %v3989
          %v4018 = vadd.f32 %v3970, %v3991
          %v4019 = vadd.f32 %v3971, %v3993
          %v4020 = vadd.f32 %v3972, %v3995
          %v4021 = vadd.f32 %v3973, %v3997
          %v4022 = vadd.f32 %v3974, %v3999
          %v4023 = vadd.f32 %v3975, %v4001
          %v4024 = vadd.f32 %v3976, %v4003
          %v4025 = vadd.f32 %v3977, %v4005
          %v4026 = vadd.f32 %v3978, %v4007
          %v4027 = vadd.f32 %v3979, %v4009
          %v4028 = vadd.f32 %v3980, %v4011
          %v4029 = vadd.f32 %v3981, %v4013
          %v4030 = vmul.f32 %v791, %v4014
          %v4031 = vmul.f32 %v791, %v4015
          %v4032 = vmul.f32 %v791, %v4016
          %v4033 = vmul.f32 %v791, %v4017
          %v4034 = vmul.f32 %v791, %v4018
          %v4035 = vmul.f32 %v791, %v4019
          %v4036 = vmul.f32 %v791, %v4020
          %v4037 = vmul.f32 %v791, %v4021
          %v4038 = vmul.f32 %v791, %v4022
          %v4039 = vmul.f32 %v791, %v4023
          %v4040 = vmul.f32 %v791, %v4024
          %v4041 = vmul.f32 %v791, %v4025
          %v4042 = vmul.f32 %v791, %v4026
          %v4043 = vmul.f32 %v791, %v4027
          %v4044 = vmul.f32 %v791, %v4028
          %v4045 = vmul.f32 %v791, %v4029
          %v4046 = vadd.f32 %v3950, %v4030
          %v4047 = vadd.f32 %v3951, %v4031
          %v4048 = vadd.f32 %v3952, %v4032
          %v4049 = vadd.f32 %v3953, %v4033
          %v4050 = vadd.f32 %v3954, %v4034
          %v4051 = vadd.f32 %v3955, %v4035
          %v4052 = vadd.f32 %v3956, %v4036
          %v4053 = vadd.f32 %v3957, %v4037
          %v4054 = vadd.f32 %v3958, %v4038
          %v4055 = vadd.f32 %v3959, %v4039
          %v4056 = vadd.f32 %v3960, %v4040
          %v4057 = vadd.f32 %v3961, %v4041
          %v4058 = vadd.f32 %v3962, %v4042
          %v4059 = vadd.f32 %v3963, %v4043
          %v4060 = vadd.f32 %v3964, %v4044
          %v4061 = vadd.f32 %v3965, %v4045
          %v4062 = vmul.f32 %v3791, %v3791
          %v4063 = vmul.f32 %v3793, %v3793
          %v4064 = vmul.f32 %v3795, %v3795
          %v4065 = vmul.f32 %v3797, %v3797
          %v4066 = vmul.f32 %v3799, %v3799
          %v4067 = vmul.f32 %v3801, %v3801
          %v4068 = vmul.f32 %v3803, %v3803
          %v4069 = vmul.f32 %v3805, %v3805
          %v4070 = vmul.f32 %v3807, %v3807
          %v4071 = vmul.f32 %v3809, %v3809
          %v4072 = vmul.f32 %v3811, %v3811
          %v4073 = vmul.f32 %v3813, %v3813
          %v4074 = vmul.f32 %v3815, %v3815
          %v4075 = vmul.f32 %v3817, %v3817
          %v4076 = vmul.f32 %v3819, %v3819
          %v4077 = vmul.f32 %v3821, %v3821
          %v4078 = vsub.f32 1.0, %v4062
          %v4079 = vsub.f32 1.0, %v4063
          %v4080 = vsub.f32 1.0, %v4064
          %v4081 = vsub.f32 1.0, %v4065
          %v4082 = vsub.f32 1.0, %v4066
          %v4083 = vsub.f32 1.0, %v4067
          %v4084 = vsub.f32 1.0, %v4068
          %v4085 = vsub.f32 1.0, %v4069
          %v4086 = vsub.f32 1.0, %v4070
          %v4087 = vsub.f32 1.0, %v4071
          %v4088 = vsub.f32 1.0, %v4072
          %v4089 = vsub.f32 1.0, %v4073
          %v4090 = vsub.f32 1.0, %v4074
          %v4091 = vsub.f32 1.0, %v4075
          %v4092 = vsub.f32 1.0, %v4076
          %v4093 = vsub.f32 1.0, %v4077
          %v4094 = vadd.f32 %v4062, 1.0
          %v4095 = vadd.f32 %v4063, 1.0
          %v4096 = vadd.f32 %v4064, 1.0
          %v4097 = vadd.f32 %v4065, 1.0
          %v4098 = vadd.f32 %v4066, 1.0
          %v4099 = vadd.f32 %v4067, 1.0
          %v4100 = vadd.f32 %v4068, 1.0
          %v4101 = vadd.f32 %v4069, 1.0
          %v4102 = vadd.f32 %v4070, 1.0
          %v4103 = vadd.f32 %v4071, 1.0
          %v4104 = vadd.f32 %v4072, 1.0
          %v4105 = vadd.f32 %v4073, 1.0
          %v4106 = vadd.f32 %v4074, 1.0
          %v4107 = vadd.f32 %v4075, 1.0
          %v4108 = vadd.f32 %v4076, 1.0
          %v4109 = vadd.f32 %v4077, 1.0
          %v4110 = vrcp.pop %v4094
          %v4111 = vrcp.pop %v4095
          %v4112 = vrcp.pop %v4096
          %v4113 = vrcp.pop %v4097
          %v4114 = vrcp.pop %v4098
          %v4115 = vrcp.pop %v4099
          %v4116 = vrcp.pop %v4100
          %v4117 = vrcp.pop %v4101
          %v4118 = vrcp.pop %v4102
          %v4119 = vrcp.pop %v4103
          %v4120 = vrcp.pop %v4104
          %v4121 = vrcp.pop %v4105
          %v4122 = vrcp.pop %v4106
          %v4123 = vrcp.pop %v4107
          %v4124 = vrcp.pop %v4108
          %v4125 = vrcp.pop %v4109
          %v4126 = vmul.f32 %v4094, %v4110
          %v4127 = vmul.f32 %v4095, %v4111
          %v4128 = vmul.f32 %v4096, %v4112
          %v4129 = vmul.f32 %v4097, %v4113
          %v4130 = vmul.f32 %v4098, %v4114
          %v4131 = vmul.f32 %v4099, %v4115
          %v4132 = vmul.f32 %v4100, %v4116
          %v4133 = vmul.f32 %v4101, %v4117
          %v4134 = vmul.f32 %v4102, %v4118
          %v4135 = vmul.f32 %v4103, %v4119
          %v4136 = vmul.f32 %v4104, %v4120
          %v4137 = vmul.f32 %v4105, %v4121
          %v4138 = vmul.f32 %v4106, %v4122
          %v4139 = vmul.f32 %v4107, %v4123
          %v4140 = vmul.f32 %v4108, %v4124
          %v4141 = vmul.f32 %v4109, %v4125
          %v4142 = vsub.f32 2.0, %v4126
          %v4143 = vsub.f32 2.0, %v4127
          %v4144 = vsub.f32 2.0, %v4128
          %v4145 = vsub.f32 2.0, %v4129
          %v4146 = vsub.f32 2.0, %v4130
          %v4147 = vsub.f32 2.0, %v4131
          %v4148 = vsub.f32 2.0, %v4132
          %v4149 = vsub.f32 2.0, %v4133
          %v4150 = vsub.f32 2.0, %v4134
          %v4151 = vsub.f32 2.0, %v4135
          %v4152 = vsub.f32 2.0, %v4136
          %v4153 = vsub.f32 2.0, %v4137
          %v4154 = vsub.f32 2.0, %v4138
          %v4155 = vsub.f32 2.0, %v4139
          %v4156 = vsub.f32 2.0, %v4140
          %v4157 = vsub.f32 2.0, %v4141
          %v4158 = vmul.f32 %v4110, %v4142
          %v4159 = vmul.f32 %v4111, %v4143
          %v4160 = vmul.f32 %v4112, %v4144
          %v4161 = vmul.f32 %v4113, %v4145
          %v4162 = vmul.f32 %v4114, %v4146
          %v4163 = vmul.f32 %v4115, %v4147
          %v4164 = vmul.f32 %v4116, %v4148
          %v4165 = vmul.f32 %v4117, %v4149
          %v4166 = vmul.f32 %v4118, %v4150
          %v4167 = vmul.f32 %v4119, %v4151
          %v4168 = vmul.f32 %v4120, %v4152
          %v4169 = vmul.f32 %v4121, %v4153
          %v4170 = vmul.f32 %v4122, %v4154
          %v4171 = vmul.f32 %v4123, %v4155
          %v4172 = vmul.f32 %v4124, %v4156
          %v4173 = vmul.f32 %v4125, %v4157
          %v4174 = vmul.f32 %v4078, %v4158
          %v4175 = vmul.f32 %v4079, %v4159
          %v4176 = vmul.f32 %v4080, %v4160
          %v4177 = vmul.f32 %v4081, %v4161
          %v4178 = vmul.f32 %v4082, %v4162
          %v4179 = vmul.f32 %v4083, %v4163
          %v4180 = vmul.f32 %v4084, %v4164
          %v4181 = vmul.f32 %v4085, %v4165
          %v4182 = vmul.f32 %v4086, %v4166
          %v4183 = vmul.f32 %v4087, %v4167
          %v4184 = vmul.f32 %v4088, %v4168
          %v4185 = vmul.f32 %v4089, %v4169
          %v4186 = vmul.f32 %v4090, %v4170
          %v4187 = vmul.f32 %v4091, %v4171
          %v4188 = vmul.f32 %v4092, %v4172
          %v4189 = vmul.f32 %v4093, %v4173
          %v4190 = vsub.f32 0.0, %v4174
          %v4191 = vsub.f32 0.0, %v4175
          %v4192 = vsub.f32 0.0, %v4176
          %v4193 = vsub.f32 0.0, %v4177
          %v4194 = vsub.f32 0.0, %v4178
          %v4195 = vsub.f32 0.0, %v4179
          %v4196 = vsub.f32 0.0, %v4180
          %v4197 = vsub.f32 0.0, %v4181
          %v4198 = vsub.f32 0.0, %v4182
          %v4199 = vsub.f32 0.0, %v4183
          %v4200 = vsub.f32 0.0, %v4184
          %v4201 = vsub.f32 0.0, %v4185
          %v4202 = vsub.f32 0.0, %v4186
          %v4203 = vsub.f32 0.0, %v4187
          %v4204 = vsub.f32 0.0, %v4188
          %v4205 = vsub.f32 0.0, %v4189
          %v4206 = vsel %vm3742, %v4174, %v4190
          %v4207 = vsel %vm3743, %v4175, %v4191
          %v4208 = vsel %vm3744, %v4176, %v4192
          %v4209 = vsel %vm3745, %v4177, %v4193
          %v4210 = vsel %vm3746, %v4178, %v4194
          %v4211 = vsel %vm3747, %v4179, %v4195
          %v4212 = vsel %vm3748, %v4180, %v4196
          %v4213 = vsel %vm3749, %v4181, %v4197
          %v4214 = vsel %vm3750, %v4182, %v4198
          %v4215 = vsel %vm3751, %v4183, %v4199
          %v4216 = vsel %vm3752, %v4184, %v4200
          %v4217 = vsel %vm3753, %v4185, %v4201
          %v4218 = vsel %vm3754, %v4186, %v4202
          %v4219 = vsel %vm3755, %v4187, %v4203
          %v4220 = vsel %vm3756, %v4188, %v4204
          %v4221 = vsel %vm3757, %v4189, %v4205
          %v4222 = vmul.f32 %v984, %v4206
          %v4223 = vmul.f32 %v984, %v4207
          %v4224 = vmul.f32 %v984, %v4208
          %v4225 = vmul.f32 %v984, %v4209
          %v4226 = vmul.f32 %v984, %v4210
          %v4227 = vmul.f32 %v984, %v4211
          %v4228 = vmul.f32 %v984, %v4212
          %v4229 = vmul.f32 %v984, %v4213
          %v4230 = vmul.f32 %v984, %v4214
          %v4231 = vmul.f32 %v984, %v4215
          %v4232 = vmul.f32 %v984, %v4216
          %v4233 = vmul.f32 %v984, %v4217
          %v4234 = vmul.f32 %v984, %v4218
          %v4235 = vmul.f32 %v984, %v4219
          %v4236 = vmul.f32 %v984, %v4220
          %v4237 = vmul.f32 %v984, %v4221
          %v4238 = vadd.f32 %v4046, %v4222
          %v4239 = vadd.f32 %v4047, %v4223
          %v4240 = vadd.f32 %v4048, %v4224
          %v4241 = vadd.f32 %v4049, %v4225
          %v4242 = vadd.f32 %v4050, %v4226
          %v4243 = vadd.f32 %v4051, %v4227
          %v4244 = vadd.f32 %v4052, %v4228
          %v4245 = vadd.f32 %v4053, %v4229
          %v4246 = vadd.f32 %v4054, %v4230
          %v4247 = vadd.f32 %v4055, %v4231
          %v4248 = vadd.f32 %v4056, %v4232
          %v4249 = vadd.f32 %v4057, %v4233
          %v4250 = vadd.f32 %v4058, %v4234
          %v4251 = vadd.f32 %v4059, %v4235
          %v4252 = vadd.f32 %v4060, %v4236
          %v4253 = vadd.f32 %v4061, %v4237
          %v4254 = vand.u32 2147483647, %v3678
          %vm4255 = vcmp.le.f32.partialorder %v4254, 0.7853982
          %vm4256 = vcmp.lt.s32.totalorder %v3678, 0
          %v4257 = vand.u32 %v3678, 2139095040
          %v4258 = vshrl.u32 %v4257, 23
          %v4259 = vsub.s32 %v4258, 127
          %v4260 = vand.u32 2147483647, %v3678
          %v4261 = vand.u32 %v4260, 8388607
          %v4262 = vor.u32 %v4261, 8388608
          %v4263 = vsub.s32 0, %v4262
          %v4264 = vadd.s32 %v4259, 1
          %vm4265 = vcmp.gt.s32.totalorder %v4264, 0
          %v4266 = vsel %vm4265, %v4264, 0
          %v4267 = vshrl.u32 %v4266, 5
          %v4268 = vand.u32 %v4266, 31
          %v4269 = vsub.s32 32, %v4268
          %v4270 = vshrl.u32 683565275, %v4269
          %v4271 = vshll.u32 683565275, %v4268
          %v4272 = vshrl.u32 2475754826, %v4269
          %v4273 = vor.u32 %v4271, %v4272
          %v4274 = vshll.u32 2475754826, %v4268
          %v4275 = vshrl.u32 2131351028, %v4269
          %v4276 = vor.u32 %v4274, %v4275
          %v4277 = vshll.u32 2131351028, %v4268
          %v4278 = vshrl.u32 2102212464, %v4269
          %v4279 = vor.u32 %v4277, %v4278
          %v4280 = vshll.u32 2102212464, %v4268
          %v4281 = vshrl.u32 920167782, %v4269
          %v4282 = vor.u32 %v4280, %v4281
          %v4283 = vshll.u32 920167782, %v4268
          %v4284 = vshrl.u32 1326507024, %v4269
          %v4285 = vor.u32 %v4283, %v4284
          %vm4286 = vcmp.lt.s32.totalorder %v4267, 1
          %vm4287 = vcmp.lt.s32.totalorder %v4267, 2
          %vm4288 = vcmp.lt.s32.totalorder %v4267, 3
          %vm4289 = vcmp.lt.s32.totalorder %v4267, 4
          %v4290 = vsel %vm4286, %v4270, %v4273
          %v4291 = vsel %vm4289, %v4279, 2102212464
          %v4292 = vsel %vm4288, %v4276, %v4291
          %v4293 = vsel %vm4287, %v4290, %v4292
          %v4294 = vsel %vm4286, %v4273, %v4276
          %v4295 = vsel %vm4289, %v4282, 920167782
          %v4296 = vsel %vm4288, %v4279, %v4295
          %v4297 = vsel %vm4287, %v4294, %v4296
          %v4298 = vsel %vm4286, %v4276, %v4279
          %v4299 = vsel %vm4289, %v4285, 1326507024
          %v4300 = vsel %vm4288, %v4282, %v4299
          %v4301 = vsel %vm4287, %v4298, %v4300
          %v4302 = vshll.u32 %v4262, 8
          %v4303 = vand.u32 %v4302, 65535
          %v4304 = vshrl.u32 %v4302, 16
          %v4305 = vand.u32 %v4301, 65535
          %v4306 = vshrl.u32 %v4301, 16
          %v4307 = vmul.u32 %v4303, %v4305
          %v4308 = vmul.u32 %v4303, %v4306
          %v4309 = vmul.u32 %v4304, %v4305
          %v4310 = vmul.u32 %v4304, %v4306
          %v4311 = vshll.u32 %v4308, 16
          %v4312 = vshrl.u32 %v4308, 16
          %v4313 = vshll.u32 %v4309, 16
          %v4314 = vshrl.u32 %v4309, 16
          %vm4315 = vc.u32 %v4307, %v4311
          %v4316 = vsel %vm4315, 1, 0
          %v4317 = vadd.s32 %v4307, %v4311
          %v4318 = vadd.s32 %v4310, %v4316
          %vm4319 = vc.u32 %v4317, %v4313
          %v4320 = vsel %vm4319, 1, 0
          %v4321 = vadd.s32 %v4317, %v4313
          %v4322 = vadd.s32 %v4318, %v4320
          %v4323 = vadd.s32 %v4322, %v4312
          %v4324 = vadd.s32 %v4323, %v4314
          %v4325 = vand.u32 %v4302, 65535
          %v4326 = vshrl.u32 %v4302, 16
          %v4327 = vand.u32 %v4297, 65535
          %v4328 = vshrl.u32 %v4297, 16
          %v4329 = vmul.u32 %v4325, %v4327
          %v4330 = vmul.u32 %v4325, %v4328
          %v4331 = vmul.u32 %v4326, %v4327
          %v4332 = vmul.u32 %v4326, %v4328
          %v4333 = vshll.u32 %v4330, 16
          %v4334 = vshrl.u32 %v4330, 16
          %v4335 = vshll.u32 %v4331, 16
          %v4336 = vshrl.u32 %v4331, 16
          %vm4337 = vc.u32 %v4329, %v4333
          %v4338 = vsel %vm4337, 1, 0
          %v4339 = vadd.s32 %v4329, %v4333
          %v4340 = vadd.s32 %v4332, %v4338
          %vm4341 = vc.u32 %v4339, %v4335
          %v4342 = vsel %vm4341, 1, 0
          %v4343 = vadd.s32 %v4339, %v4335
          %v4344 = vadd.s32 %v4340, %v4342
          %v4345 = vadd.s32 %v4344, %v4334
          %v4346 = vadd.s32 %v4345, %v4336
          %v4347 = vmul.u32 %v4302, %v4293
          %v4348 = vadd.s32 %v4324, %v4343
          %vm4349 = vc.u32 %v4324, %v4343
          %v4350 = vadd.s32 %v4346, 1
          %v4351 = vsel %vm4349, %v4350, %v4346
          %v4352 = vadd.s32 %v4347, %v4351
          %v4353 = vadd.s32 %v4352, 536870912
          %v4354 = vshrl.u32 %v4353, 30
          %v4355 = vshll.u32 %v4354, 30
          %v4356 = vsub.s32 %v4352, %v4355
          %vm4357 = vcmp.lt.s32.totalorder %v4356, 0
          %v4358 = vsub.s32 0, %v4356
          %v4359 = vsel %vm4357, %v4358, %v4356
          %v4360 = vclz %v4359
          %v4361 = vsub.s32 %v4360, 2
          %vm4362 = vcmp.gt.s32.totalorder 0, %v4361
          %v4363 = vsel %vm4362, 0, %v4361
          %v4364 = vsub.s32 32, %v4363
          %v4365 = vshll.u32 %v4356, %v4363
          %v4366 = vshrl.u32 %v4348, %v4364
          %v4367 = vor.u32 %v4365, %v4366
          %v4368 = vsub.s32 4294967266, %v4363
          %v4369 = vadd.s32 %v4368, 127
          %v4370 = vshll.u32 %v4369, 23
          %v4371 = vor.u32 4788187, %v4370
          %v4372 = vand.u32 2147483647, %v4371
          %v4374 = vcvt.s32.f32 %v4367
          %v4375 = vmul.f32 %v4374, %v4372
          %v4376 = vxor.u32 %v4375, 2147483648
          %v4377 = vsel %vm4256, %v4376, %v4375
          %v4378 = vsub.s32 4, %v4354
          %v4379 = vsel %vm4256, %v4378, %v4354
          %v4380 = vsel %vm4255, %v3678, %v4377
          %v4381 = vsel %vm4255, 0, %v4379
          %v4382 = vmul.f32 %v4380, %v4380
          %v4383 = vmul.f32 %v4382, -0.001358992
          %v4384 = vadd.f32 %v4383, 0.041655596
          %v4385 = vmul.f32 %v4382, %v4384
          %v4386 = vadd.f32 %v4385, -0.4999988
          %v4387 = vmul.f32 %v4382, %v4386
          %v4388 = vadd.f32 1.0, %v4387
          %v4389 = vmul.f32 %v4380, %v4380
          %v4390 = vmul.f32 %v4389, -0.00019511016
          %v4391 = vadd.f32 %v4390, 0.008332121
          %v4392 = vmul.f32 %v4389, %v4391
          %v4393 = vadd.f32 %v4392, -0.16666654
          %v4394 = vmul.f32 %v4389, %v4393
          %v4395 = vadd.f32 %v4394, 1.0
          %v4396 = vmul.f32 %v4395, %v4380
          %vm4397 = vweird.f32 %v3678
          %v4398 = vadd.s32 %v4381, 3
          %v4399 = vand.u32 %v4398, 3
          %vm4400 = vcmp.lt.s32.totalorder %v4399, 2
          %vm4401 = vcmp.eq.s32.totalorder %v4399, 0
          %v4402 = vxor.u32 %v4396, 2147483648
          %v4403 = vsel %vm4401, %v4388, %v4402
          %vm4404 = vcmp.eq.s32.totalorder %v4399, 2
          %v4405 = vxor.u32 %v4388, 2147483648
          %v4406 = vsel %vm4404, %v4405, %v4396
          %v4407 = vsel %vm4400, %v4403, %v4406
          %v4408 = vsel %vm4397, nan, %v4407
          %v4409 = vand.u32 2147483647, %v3719
          %vm4410 = vcmp.le.f32.partialorder %v4409, 0.7853982
          %vm4411 = vcmp.lt.s32.totalorder %v3719, 0
          %v4412 = vand.u32 %v3719, 2139095040
          %v4413 = vshrl.u32 %v4412, 23
          %v4414 = vsub.s32 %v4413, 127
          %v4415 = vand.u32 2147483647, %v3719
          %v4416 = vand.u32 %v4415, 8388607
          %v4417 = vor.u32 %v4416, 8388608
          %v4418 = vsub.s32 0, %v4417
          %v4419 = vadd.s32 %v4414, 1
          %vm4420 = vcmp.gt.s32.totalorder %v4419, 0
          %v4421 = vsel %vm4420, %v4419, 0
          %v4422 = vshrl.u32 %v4421, 5
          %v4423 = vand.u32 %v4421, 31
          %v4424 = vsub.s32 32, %v4423
          %v4425 = vshrl.u32 683565275, %v4424
          %v4426 = vshll.u32 683565275, %v4423
          %v4427 = vshrl.u32 2475754826, %v4424
          %v4428 = vor.u32 %v4426, %v4427
          %v4429 = vshll.u32 2475754826, %v4423
          %v4430 = vshrl.u32 2131351028, %v4424
          %v4431 = vor.u32 %v4429, %v4430
          %v4432 = vshll.u32 2131351028, %v4423
          %v4433 = vshrl.u32 2102212464, %v4424
          %v4434 = vor.u32 %v4432, %v4433
          %v4435 = vshll.u32 2102212464, %v4423
          %v4436 = vshrl.u32 920167782, %v4424
          %v4437 = vor.u32 %v4435, %v4436
          %v4438 = vshll.u32 920167782, %v4423
          %v4439 = vshrl.u32 1326507024, %v4424
          %v4440 = vor.u32 %v4438, %v4439
          %vm4441 = vcmp.lt.s32.totalorder %v4422, 1
          %vm4442 = vcmp.lt.s32.totalorder %v4422, 2
          %vm4443 = vcmp.lt.s32.totalorder %v4422, 3
          %vm4444 = vcmp.lt.s32.totalorder %v4422, 4
          %v4445 = vsel %vm4441, %v4425, %v4428
          %v4446 = vsel %vm4444, %v4434, 2102212464
          %v4447 = vsel %vm4443, %v4431, %v4446
          %v4448 = vsel %vm4442, %v4445, %v4447
          %v4449 = vsel %vm4441, %v4428, %v4431
          %v4450 = vsel %vm4444, %v4437, 920167782
          %v4451 = vsel %vm4443, %v4434, %v4450
          %v4452 = vsel %vm4442, %v4449, %v4451
          %v4453 = vsel %vm4441, %v4431, %v4434
          %v4454 = vsel %vm4444, %v4440, 1326507024
          %v4455 = vsel %vm4443, %v4437, %v4454
          %v4456 = vsel %vm4442, %v4453, %v4455
          %v4457 = vshll.u32 %v4417, 8
          %v4458 = vand.u32 %v4457, 65535
          %v4459 = vshrl.u32 %v4457, 16
          %v4460 = vand.u32 %v4456, 65535
          %v4461 = vshrl.u32 %v4456, 16
          %v4462 = vmul.u32 %v4458, %v4460
          %v4463 = vmul.u32 %v4458, %v4461
          %v4464 = vmul.u32 %v4459, %v4460
          %v4465 = vmul.u32 %v4459, %v4461
          %v4466 = vshll.u32 %v4463, 16
          %v4467 = vshrl.u32 %v4463, 16
          %v4468 = vshll.u32 %v4464, 16
          %v4469 = vshrl.u32 %v4464, 16
          %vm4470 = vc.u32 %v4462, %v4466
          %v4471 = vsel %vm4470, 1, 0
          %v4472 = vadd.s32 %v4462, %v4466
          %v4473 = vadd.s32 %v4465, %v4471
          %vm4474 = vc.u32 %v4472, %v4468
          %v4475 = vsel %vm4474, 1, 0
          %v4476 = vadd.s32 %v4472, %v4468
          %v4477 = vadd.s32 %v4473, %v4475
          %v4478 = vadd.s32 %v4477, %v4467
          %v4479 = vadd.s32 %v4478, %v4469
          %v4480 = vand.u32 %v4457, 65535
          %v4481 = vshrl.u32 %v4457, 16
          %v4482 = vand.u32 %v4452, 65535
          %v4483 = vshrl.u32 %v4452, 16
          %v4484 = vmul.u32 %v4480, %v4482
          %v4485 = vmul.u32 %v4480, %v4483
          %v4486 = vmul.u32 %v4481, %v4482
          %v4487 = vmul.u32 %v4481, %v4483
          %v4488 = vshll.u32 %v4485, 16
          %v4489 = vshrl.u32 %v4485, 16
          %v4490 = vshll.u32 %v4486, 16
          %v4491 = vshrl.u32 %v4486, 16
          %vm4492 = vc.u32 %v4484, %v4488
          %v4493 = vsel %vm4492, 1, 0
          %v4494 = vadd.s32 %v4484, %v4488
          %v4495 = vadd.s32 %v4487, %v4493
          %vm4496 = vc.u32 %v4494, %v4490
          %v4497 = vsel %vm4496, 1, 0
          %v4498 = vadd.s32 %v4494, %v4490
          %v4499 = vadd.s32 %v4495, %v4497
          %v4500 = vadd.s32 %v4499, %v4489
          %v4501 = vadd.s32 %v4500, %v4491
          %v4502 = vmul.u32 %v4457, %v4448
          %v4503 = vadd.s32 %v4479, %v4498
          %vm4504 = vc.u32 %v4479, %v4498
          %v4505 = vadd.s32 %v4501, 1
          %v4506 = vsel %vm4504, %v4505, %v4501
          %v4507 = vadd.s32 %v4502, %v4506
          %v4508 = vadd.s32 %v4507, 536870912
          %v4509 = vshrl.u32 %v4508, 30
          %v4510 = vshll.u32 %v4509, 30
          %v4511 = vsub.s32 %v4507, %v4510
          %vm4512 = vcmp.lt.s32.totalorder %v4511, 0
          %v4513 = vsub.s32 0, %v4511
          %v4514 = vsel %vm4512, %v4513, %v4511
          %v4515 = vclz %v4514
          %v4516 = vsub.s32 %v4515, 2
          %vm4517 = vcmp.gt.s32.totalorder 0, %v4516
          %v4518 = vsel %vm4517, 0, %v4516
          %v4519 = vsub.s32 32, %v4518
          %v4520 = vshll.u32 %v4511, %v4518
          %v4521 = vshrl.u32 %v4503, %v4519
          %v4522 = vor.u32 %v4520, %v4521
          %v4523 = vsub.s32 4294967266, %v4518
          %v4524 = vadd.s32 %v4523, 127
          %v4525 = vshll.u32 %v4524, 23
          %v4526 = vor.u32 4788187, %v4525
          %v4527 = vand.u32 2147483647, %v4526
          %v4529 = vcvt.s32.f32 %v4522
          %v4530 = vmul.f32 %v4529, %v4527
          %v4531 = vxor.u32 %v4530, 2147483648
          %v4532 = vsel %vm4411, %v4531, %v4530
          %v4533 = vsub.s32 4, %v4509
          %v4534 = vsel %vm4411, %v4533, %v4509
          %v4535 = vsel %vm4410, %v3719, %v4532
          %v4536 = vsel %vm4410, 0, %v4534
          %v4537 = vmul.f32 %v4535, %v4535
          %v4538 = vmul.f32 %v4537, -0.001358992
          %v4539 = vadd.f32 %v4538, 0.041655596
          %v4540 = vmul.f32 %v4537, %v4539
          %v4541 = vadd.f32 %v4540, -0.4999988
          %v4542 = vmul.f32 %v4537, %v4541
          %v4543 = vadd.f32 1.0, %v4542
          %v4544 = vmul.f32 %v4535, %v4535
          %v4545 = vmul.f32 %v4544, -0.00019511016
          %v4546 = vadd.f32 %v4545, 0.008332121
          %v4547 = vmul.f32 %v4544, %v4546
          %v4548 = vadd.f32 %v4547, -0.16666654
          %v4549 = vmul.f32 %v4544, %v4548
          %v4550 = vadd.f32 %v4549, 1.0
          %v4551 = vmul.f32 %v4550, %v4535
          %vm4552 = vweird.f32 %v3719
          %v4553 = vadd.s32 %v4536, 3
          %v4554 = vand.u32 %v4553, 3
          %vm4555 = vcmp.lt.s32.totalorder %v4554, 2
          %vm4556 = vcmp.eq.s32.totalorder %v4554, 0
          %v4557 = vxor.u32 %v4551, 2147483648
          %v4558 = vsel %vm4556, %v4543, %v4557
          %vm4559 = vcmp.eq.s32.totalorder %v4554, 2
          %v4560 = vxor.u32 %v4543, 2147483648
          %v4561 = vsel %vm4559, %v4560, %v4551
          %v4562 = vsel %vm4555, %v4558, %v4561
          %v4563 = vsel %vm4552, nan, %v4562
          %v4564 = vand.u32 2147483647, %v3681
          %vm4565 = vcmp.le.f32.partialorder %v4564, 0.7853982
          %vm4566 = vcmp.lt.s32.totalorder %v3681, 0
          %v4567 = vand.u32 %v3681, 2139095040
          %v4568 = vshrl.u32 %v4567, 23
          %v4569 = vsub.s32 %v4568, 127
          %v4570 = vand.u32 2147483647, %v3681
          %v4571 = vand.u32 %v4570, 8388607
          %v4572 = vor.u32 %v4571, 8388608
          %v4573 = vsub.s32 0, %v4572
          %v4574 = vadd.s32 %v4569, 1
          %vm4575 = vcmp.gt.s32.totalorder %v4574, 0
          %v4576 = vsel %vm4575, %v4574, 0
          %v4577 = vshrl.u32 %v4576, 5
          %v4578 = vand.u32 %v4576, 31
          %v4579 = vsub.s32 32, %v4578
          %v4580 = vshrl.u32 683565275, %v4579
          %v4581 = vshll.u32 683565275, %v4578
          %v4582 = vshrl.u32 2475754826, %v4579
          %v4583 = vor.u32 %v4581, %v4582
          %v4584 = vshll.u32 2475754826, %v4578
          %v4585 = vshrl.u32 2131351028, %v4579
          %v4586 = vor.u32 %v4584, %v4585
          %v4587 = vshll.u32 2131351028, %v4578
          %v4588 = vshrl.u32 2102212464, %v4579
          %v4589 = vor.u32 %v4587, %v4588
          %v4590 = vshll.u32 2102212464, %v4578
          %v4591 = vshrl.u32 920167782, %v4579
          %v4592 = vor.u32 %v4590, %v4591
          %v4593 = vshll.u32 920167782, %v4578
          %v4594 = vshrl.u32 1326507024, %v4579
          %v4595 = vor.u32 %v4593, %v4594
          %vm4596 = vcmp.lt.s32.totalorder %v4577, 1
          %vm4597 = vcmp.lt.s32.totalorder %v4577, 2
          %vm4598 = vcmp.lt.s32.totalorder %v4577, 3
          %vm4599 = vcmp.lt.s32.totalorder %v4577, 4
          %v4600 = vsel %vm4596, %v4580, %v4583
          %v4601 = vsel %vm4599, %v4589, 2102212464
          %v4602 = vsel %vm4598, %v4586, %v4601
          %v4603 = vsel %vm4597, %v4600, %v4602
          %v4604 = vsel %vm4596, %v4583, %v4586
          %v4605 = vsel %vm4599, %v4592, 920167782
          %v4606 = vsel %vm4598, %v4589, %v4605
          %v4607 = vsel %vm4597, %v4604, %v4606
          %v4608 = vsel %vm4596, %v4586, %v4589
          %v4609 = vsel %vm4599, %v4595, 1326507024
          %v4610 = vsel %vm4598, %v4592, %v4609
          %v4611 = vsel %vm4597, %v4608, %v4610
          %v4612 = vshll.u32 %v4572, 8
          %v4613 = vand.u32 %v4612, 65535
          %v4614 = vshrl.u32 %v4612, 16
          %v4615 = vand.u32 %v4611, 65535
          %v4616 = vshrl.u32 %v4611, 16
          %v4617 = vmul.u32 %v4613, %v4615
          %v4618 = vmul.u32 %v4613, %v4616
          %v4619 = vmul.u32 %v4614, %v4615
          %v4620 = vmul.u32 %v4614, %v4616
          %v4621 = vshll.u32 %v4618, 16
          %v4622 = vshrl.u32 %v4618, 16
          %v4623 = vshll.u32 %v4619, 16
          %v4624 = vshrl.u32 %v4619, 16
          %vm4625 = vc.u32 %v4617, %v4621
          %v4626 = vsel %vm4625, 1, 0
          %v4627 = vadd.s32 %v4617, %v4621
          %v4628 = vadd.s32 %v4620, %v4626
          %vm4629 = vc.u32 %v4627, %v4623
          %v4630 = vsel %vm4629, 1, 0
          %v4631 = vadd.s32 %v4627, %v4623
          %v4632 = vadd.s32 %v4628, %v4630
          %v4633 = vadd.s32 %v4632, %v4622
          %v4634 = vadd.s32 %v4633, %v4624
          %v4635 = vand.u32 %v4612, 65535
          %v4636 = vshrl.u32 %v4612, 16
          %v4637 = vand.u32 %v4607, 65535
          %v4638 = vshrl.u32 %v4607, 16
          %v4639 = vmul.u32 %v4635, %v4637
          %v4640 = vmul.u32 %v4635, %v4638
          %v4641 = vmul.u32 %v4636, %v4637
          %v4642 = vmul.u32 %v4636, %v4638
          %v4643 = vshll.u32 %v4640, 16
          %v4644 = vshrl.u32 %v4640, 16
          %v4645 = vshll.u32 %v4641, 16
          %v4646 = vshrl.u32 %v4641, 16
          %vm4647 = vc.u32 %v4639, %v4643
          %v4648 = vsel %vm4647, 1, 0
          %v4649 = vadd.s32 %v4639, %v4643
          %v4650 = vadd.s32 %v4642, %v4648
          %vm4651 = vc.u32 %v4649, %v4645
          %v4652 = vsel %vm4651, 1, 0
          %v4653 = vadd.s32 %v4649, %v4645
          %v4654 = vadd.s32 %v4650, %v4652
          %v4655 = vadd.s32 %v4654, %v4644
          %v4656 = vadd.s32 %v4655, %v4646
          %v4657 = vmul.u32 %v4612, %v4603
          %v4658 = vadd.s32 %v4634, %v4653
          %vm4659 = vc.u32 %v4634, %v4653
          %v4660 = vadd.s32 %v4656, 1
          %v4661 = vsel %vm4659, %v4660, %v4656
          %v4662 = vadd.s32 %v4657, %v4661
          %v4663 = vadd.s32 %v4662, 536870912
          %v4664 = vshrl.u32 %v4663, 30
          %v4665 = vshll.u32 %v4664, 30
          %v4666 = vsub.s32 %v4662, %v4665
          %vm4667 = vcmp.lt.s32.totalorder %v4666, 0
          %v4668 = vsub.s32 0, %v4666
          %v4669 = vsel %vm4667, %v4668, %v4666
          %v4670 = vclz %v4669
          %v4671 = vsub.s32 %v4670, 2
          %vm4672 = vcmp.gt.s32.totalorder 0, %v4671
          %v4673 = vsel %vm4672, 0, %v4671
          %v4674 = vsub.s32 32, %v4673
          %v4675 = vshll.u32 %v4666, %v4673
          %v4676 = vshrl.u32 %v4658, %v4674
          %v4677 = vor.u32 %v4675, %v4676
          %v4678 = vsub.s32 4294967266, %v4673
          %v4679 = vadd.s32 %v4678, 127
          %v4680 = vshll.u32 %v4679, 23
          %v4681 = vor.u32 4788187, %v4680
          %v4682 = vand.u32 2147483647, %v4681
          %v4684 = vcvt.s32.f32 %v4677
          %v4685 = vmul.f32 %v4684, %v4682
          %v4686 = vxor.u32 %v4685, 2147483648
          %v4687 = vsel %vm4566, %v4686, %v4685
          %v4688 = vsub.s32 4, %v4664
          %v4689 = vsel %vm4566, %v4688, %v4664
          %v4690 = vsel %vm4565, %v3681, %v4687
          %v4691 = vsel %vm4565, 0, %v4689
          %v4692 = vmul.f32 %v4690, %v4690
          %v4693 = vmul.f32 %v4692, -0.001358992
          %v4694 = vadd.f32 %v4693, 0.041655596
          %v4695 = vmul.f32 %v4692, %v4694
          %v4696 = vadd.f32 %v4695, -0.4999988
          %v4697 = vmul.f32 %v4692, %v4696
          %v4698 = vadd.f32 1.0, %v4697
          %v4699 = vmul.f32 %v4690, %v4690
          %v4700 = vmul.f32 %v4699, -0.00019511016
          %v4701 = vadd.f32 %v4700, 0.008332121
          %v4702 = vmul.f32 %v4699, %v4701
          %v4703 = vadd.f32 %v4702, -0.16666654
          %v4704 = vmul.f32 %v4699, %v4703
          %v4705 = vadd.f32 %v4704, 1.0
          %v4706 = vmul.f32 %v4705, %v4690
          %vm4707 = vweird.f32 %v3681
          %v4708 = vadd.s32 %v4691, 3
          %v4709 = vand.u32 %v4708, 3
          %vm4710 = vcmp.lt.s32.totalorder %v4709, 2
          %vm4711 = vcmp.eq.s32.totalorder %v4709, 0
          %v4712 = vxor.u32 %v4706, 2147483648
          %v4713 = vsel %vm4711, %v4698, %v4712
          %vm4714 = vcmp.eq.s32.totalorder %v4709, 2
          %v4715 = vxor.u32 %v4698, 2147483648
          %v4716 = vsel %vm4714, %v4715, %v4706
          %v4717 = vsel %vm4710, %v4713, %v4716
          %v4718 = vsel %vm4707, nan, %v4717
          %v4719 = vand.u32 2147483647, %v3722
          %vm4720 = vcmp.le.f32.partialorder %v4719, 0.7853982
          %vm4721 = vcmp.lt.s32.totalorder %v3722, 0
          %v4722 = vand.u32 %v3722, 2139095040
          %v4723 = vshrl.u32 %v4722, 23
          %v4724 = vsub.s32 %v4723, 127
          %v4725 = vand.u32 2147483647, %v3722
          %v4726 = vand.u32 %v4725, 8388607
          %v4727 = vor.u32 %v4726, 8388608
          %v4728 = vsub.s32 0, %v4727
          %v4729 = vadd.s32 %v4724, 1
          %vm4730 = vcmp.gt.s32.totalorder %v4729, 0
          %v4731 = vsel %vm4730, %v4729, 0
          %v4732 = vshrl.u32 %v4731, 5
          %v4733 = vand.u32 %v4731, 31
          %v4734 = vsub.s32 32, %v4733
          %v4735 = vshrl.u32 683565275, %v4734
          %v4736 = vshll.u32 683565275, %v4733
          %v4737 = vshrl.u32 2475754826, %v4734
          %v4738 = vor.u32 %v4736, %v4737
          %v4739 = vshll.u32 2475754826, %v4733
          %v4740 = vshrl.u32 2131351028, %v4734
          %v4741 = vor.u32 %v4739, %v4740
          %v4742 = vshll.u32 2131351028, %v4733
          %v4743 = vshrl.u32 2102212464, %v4734
          %v4744 = vor.u32 %v4742, %v4743
          %v4745 = vshll.u32 2102212464, %v4733
          %v4746 = vshrl.u32 920167782, %v4734
          %v4747 = vor.u32 %v4745, %v4746
          %v4748 = vshll.u32 920167782, %v4733
          %v4749 = vshrl.u32 1326507024, %v4734
          %v4750 = vor.u32 %v4748, %v4749
          %vm4751 = vcmp.lt.s32.totalorder %v4732, 1
          %vm4752 = vcmp.lt.s32.totalorder %v4732, 2
          %vm4753 = vcmp.lt.s32.totalorder %v4732, 3
          %vm4754 = vcmp.lt.s32.totalorder %v4732, 4
          %v4755 = vsel %vm4751, %v4735, %v4738
          %v4756 = vsel %vm4754, %v4744, 2102212464
          %v4757 = vsel %vm4753, %v4741, %v4756
          %v4758 = vsel %vm4752, %v4755, %v4757
          %v4759 = vsel %vm4751, %v4738, %v4741
          %v4760 = vsel %vm4754, %v4747, 920167782
          %v4761 = vsel %vm4753, %v4744, %v4760
          %v4762 = vsel %vm4752, %v4759, %v4761
          %v4763 = vsel %vm4751, %v4741, %v4744
          %v4764 = vsel %vm4754, %v4750, 1326507024
          %v4765 = vsel %vm4753, %v4747, %v4764
          %v4766 = vsel %vm4752, %v4763, %v4765
          %v4767 = vshll.u32 %v4727, 8
          %v4768 = vand.u32 %v4767, 65535
          %v4769 = vshrl.u32 %v4767, 16
          %v4770 = vand.u32 %v4766, 65535
          %v4771 = vshrl.u32 %v4766, 16
          %v4772 = vmul.u32 %v4768, %v4770
          %v4773 = vmul.u32 %v4768, %v4771
          %v4774 = vmul.u32 %v4769, %v4770
          %v4775 = vmul.u32 %v4769, %v4771
          %v4776 = vshll.u32 %v4773, 16
          %v4777 = vshrl.u32 %v4773, 16
          %v4778 = vshll.u32 %v4774, 16
          %v4779 = vshrl.u32 %v4774, 16
          %vm4780 = vc.u32 %v4772, %v4776
          %v4781 = vsel %vm4780, 1, 0
          %v4782 = vadd.s32 %v4772, %v4776
          %v4783 = vadd.s32 %v4775, %v4781
          %vm4784 = vc.u32 %v4782, %v4778
          %v4785 = vsel %vm4784, 1, 0
          %v4786 = vadd.s32 %v4782, %v4778
          %v4787 = vadd.s32 %v4783, %v4785
          %v4788 = vadd.s32 %v4787, %v4777
          %v4789 = vadd.s32 %v4788, %v4779
          %v4790 = vand.u32 %v4767, 65535
          %v4791 = vshrl.u32 %v4767, 16
          %v4792 = vand.u32 %v4762, 65535
          %v4793 = vshrl.u32 %v4762, 16
          %v4794 = vmul.u32 %v4790, %v4792
          %v4795 = vmul.u32 %v4790, %v4793
          %v4796 = vmul.u32 %v4791, %v4792
          %v4797 = vmul.u32 %v4791, %v4793
          %v4798 = vshll.u32 %v4795, 16
          %v4799 = vshrl.u32 %v4795, 16
          %v4800 = vshll.u32 %v4796, 16
          %v4801 = vshrl.u32 %v4796, 16
          %vm4802 = vc.u32 %v4794, %v4798
          %v4803 = vsel %vm4802, 1, 0
          %v4804 = vadd.s32 %v4794, %v4798
          %v4805 = vadd.s32 %v4797, %v4803
          %vm4806 = vc.u32 %v4804, %v4800
          %v4807 = vsel %vm4806, 1, 0
          %v4808 = vadd.s32 %v4804, %v4800
          %v4809 = vadd.s32 %v4805, %v4807
          %v4810 = vadd.s32 %v4809, %v4799
          %v4811 = vadd.s32 %v4810, %v4801
          %v4812 = vmul.u32 %v4767, %v4758
          %v4813 = vadd.s32 %v4789, %v4808
          %vm4814 = vc.u32 %v4789, %v4808
          %v4815 = vadd.s32 %v4811, 1
          %v4816 = vsel %vm4814, %v4815, %v4811
          %v4817 = vadd.s32 %v4812, %v4816
          %v4818 = vadd.s32 %v4817, 536870912
          %v4819 = vshrl.u32 %v4818, 30
          %v4820 = vshll.u32 %v4819, 30
          %v4821 = vsub.s32 %v4817, %v4820
          %vm4822 = vcmp.lt.s32.totalorder %v4821, 0
          %v4823 = vsub.s32 0, %v4821
          %v4824 = vsel %vm4822, %v4823, %v4821
          %v4825 = vclz %v4824
          %v4826 = vsub.s32 %v4825, 2
          %vm4827 = vcmp.gt.s32.totalorder 0, %v4826
          %v4828 = vsel %vm4827, 0, %v4826
          %v4829 = vsub.s32 32, %v4828
          %v4830 = vshll.u32 %v4821, %v4828
          %v4831 = vshrl.u32 %v4813, %v4829
          %v4832 = vor.u32 %v4830, %v4831
          %v4833 = vsub.s32 4294967266, %v4828
          %v4834 = vadd.s32 %v4833, 127
          %v4835 = vshll.u32 %v4834, 23
          %v4836 = vor.u32 4788187, %v4835
          %v4837 = vand.u32 2147483647, %v4836
          %v4839 = vcvt.s32.f32 %v4832
          %v4840 = vmul.f32 %v4839, %v4837
          %v4841 = vxor.u32 %v4840, 2147483648
          %v4842 = vsel %vm4721, %v4841, %v4840
          %v4843 = vsub.s32 4, %v4819
          %v4844 = vsel %vm4721, %v4843, %v4819
          %v4845 = vsel %vm4720, %v3722, %v4842
          %v4846 = vsel %vm4720, 0, %v4844
          %v4847 = vmul.f32 %v4845, %v4845
          %v4848 = vmul.f32 %v4847, -0.001358992
          %v4849 = vadd.f32 %v4848, 0.041655596
          %v4850 = vmul.f32 %v4847, %v4849
          %v4851 = vadd.f32 %v4850, -0.4999988
          %v4852 = vmul.f32 %v4847, %v4851
          %v4853 = vadd.f32 1.0, %v4852
          %v4854 = vmul.f32 %v4845, %v4845
          %v4855 = vmul.f32 %v4854, -0.00019511016
          %v4856 = vadd.f32 %v4855, 0.008332121
          %v4857 = vmul.f32 %v4854, %v4856
          %v4858 = vadd.f32 %v4857, -0.16666654
          %v4859 = vmul.f32 %v4854, %v4858
          %v4860 = vadd.f32 %v4859, 1.0
          %v4861 = vmul.f32 %v4860, %v4845
          %vm4862 = vweird.f32 %v3722
          %v4863 = vadd.s32 %v4846, 3
          %v4864 = vand.u32 %v4863, 3
          %vm4865 = vcmp.lt.s32.totalorder %v4864, 2
          %vm4866 = vcmp.eq.s32.totalorder %v4864, 0
          %v4867 = vxor.u32 %v4861, 2147483648
          %v4868 = vsel %vm4866, %v4853, %v4867
          %vm4869 = vcmp.eq.s32.totalorder %v4864, 2
          %v4870 = vxor.u32 %v4853, 2147483648
          %v4871 = vsel %vm4869, %v4870, %v4861
          %v4872 = vsel %vm4865, %v4868, %v4871
          %v4873 = vsel %vm4862, nan, %v4872
          %v4874 = vand.u32 2147483647, %v3684
          %vm4875 = vcmp.le.f32.partialorder %v4874, 0.7853982
          %vm4876 = vcmp.lt.s32.totalorder %v3684, 0
          %v4877 = vand.u32 %v3684, 2139095040
          %v4878 = vshrl.u32 %v4877, 23
          %v4879 = vsub.s32 %v4878, 127
          %v4880 = vand.u32 2147483647, %v3684
          %v4881 = vand.u32 %v4880, 8388607
          %v4882 = vor.u32 %v4881, 8388608
          %v4883 = vsub.s32 0, %v4882
          %v4884 = vadd.s32 %v4879, 1
          %vm4885 = vcmp.gt.s32.totalorder %v4884, 0
          %v4886 = vsel %vm4885, %v4884, 0
          %v4887 = vshrl.u32 %v4886, 5
          %v4888 = vand.u32 %v4886, 31
          %v4889 = vsub.s32 32, %v4888
          %v4890 = vshrl.u32 683565275, %v4889
          %v4891 = vshll.u32 683565275, %v4888
          %v4892 = vshrl.u32 2475754826, %v4889
          %v4893 = vor.u32 %v4891, %v4892
          %v4894 = vshll.u32 2475754826, %v4888
          %v4895 = vshrl.u32 2131351028, %v4889
          %v4896 = vor.u32 %v4894, %v4895
          %v4897 = vshll.u32 2131351028, %v4888
          %v4898 = vshrl.u32 2102212464, %v4889
          %v4899 = vor.u32 %v4897, %v4898
          %v4900 = vshll.u32 2102212464, %v4888
          %v4901 = vshrl.u32 920167782, %v4889
          %v4902 = vor.u32 %v4900, %v4901
          %v4903 = vshll.u32 920167782, %v4888
          %v4904 = vshrl.u32 1326507024, %v4889
          %v4905 = vor.u32 %v4903, %v4904
          %vm4906 = vcmp.lt.s32.totalorder %v4887, 1
          %vm4907 = vcmp.lt.s32.totalorder %v4887, 2
          %vm4908 = vcmp.lt.s32.totalorder %v4887, 3
          %vm4909 = vcmp.lt.s32.totalorder %v4887, 4
          %v4910 = vsel %vm4906, %v4890, %v4893
          %v4911 = vsel %vm4909, %v4899, 2102212464
          %v4912 = vsel %vm4908, %v4896, %v4911
          %v4913 = vsel %vm4907, %v4910, %v4912
          %v4914 = vsel %vm4906, %v4893, %v4896
          %v4915 = vsel %vm4909, %v4902, 920167782
          %v4916 = vsel %vm4908, %v4899, %v4915
          %v4917 = vsel %vm4907, %v4914, %v4916
          %v4918 = vsel %vm4906, %v4896, %v4899
          %v4919 = vsel %vm4909, %v4905, 1326507024
          %v4920 = vsel %vm4908, %v4902, %v4919
          %v4921 = vsel %vm4907, %v4918, %v4920
          %v4922 = vshll.u32 %v4882, 8
          %v4923 = vand.u32 %v4922, 65535
          %v4924 = vshrl.u32 %v4922, 16
          %v4925 = vand.u32 %v4921, 65535
          %v4926 = vshrl.u32 %v4921, 16
          %v4927 = vmul.u32 %v4923, %v4925
          %v4928 = vmul.u32 %v4923, %v4926
          %v4929 = vmul.u32 %v4924, %v4925
          %v4930 = vmul.u32 %v4924, %v4926
          %v4931 = vshll.u32 %v4928, 16
          %v4932 = vshrl.u32 %v4928, 16
          %v4933 = vshll.u32 %v4929, 16
          %v4934 = vshrl.u32 %v4929, 16
          %vm4935 = vc.u32 %v4927, %v4931
          %v4936 = vsel %vm4935, 1, 0
          %v4937 = vadd.s32 %v4927, %v4931
          %v4938 = vadd.s32 %v4930, %v4936
          %vm4939 = vc.u32 %v4937, %v4933
          %v4940 = vsel %vm4939, 1, 0
          %v4941 = vadd.s32 %v4937, %v4933
          %v4942 = vadd.s32 %v4938, %v4940
          %v4943 = vadd.s32 %v4942, %v4932
          %v4944 = vadd.s32 %v4943, %v4934
          %v4945 = vand.u32 %v4922, 65535
          %v4946 = vshrl.u32 %v4922, 16
          %v4947 = vand.u32 %v4917, 65535
          %v4948 = vshrl.u32 %v4917, 16
          %v4949 = vmul.u32 %v4945, %v4947
          %v4950 = vmul.u32 %v4945, %v4948
          %v4951 = vmul.u32 %v4946, %v4947
          %v4952 = vmul.u32 %v4946, %v4948
          %v4953 = vshll.u32 %v4950, 16
          %v4954 = vshrl.u32 %v4950, 16
          %v4955 = vshll.u32 %v4951, 16
          %v4956 = vshrl.u32 %v4951, 16
          %vm4957 = vc.u32 %v4949, %v4953
          %v4958 = vsel %vm4957, 1, 0
          %v4959 = vadd.s32 %v4949, %v4953
          %v4960 = vadd.s32 %v4952, %v4958
          %vm4961 = vc.u32 %v4959, %v4955
          %v4962 = vsel %vm4961, 1, 0
          %v4963 = vadd.s32 %v4959, %v4955
          %v4964 = vadd.s32 %v4960, %v4962
          %v4965 = vadd.s32 %v4964, %v4954
          %v4966 = vadd.s32 %v4965, %v4956
          %v4967 = vmul.u32 %v4922, %v4913
          %v4968 = vadd.s32 %v4944, %v4963
          %vm4969 = vc.u32 %v4944, %v4963
          %v4970 = vadd.s32 %v4966, 1
          %v4971 = vsel %vm4969, %v4970, %v4966
          %v4972 = vadd.s32 %v4967, %v4971
          %v4973 = vadd.s32 %v4972, 536870912
          %v4974 = vshrl.u32 %v4973, 30
          %v4975 = vshll.u32 %v4974, 30
          %v4976 = vsub.s32 %v4972, %v4975
          %vm4977 = vcmp.lt.s32.totalorder %v4976, 0
          %v4978 = vsub.s32 0, %v4976
          %v4979 = vsel %vm4977, %v4978, %v4976
          %v4980 = vclz %v4979
          %v4981 = vsub.s32 %v4980, 2
          %vm4982 = vcmp.gt.s32.totalorder 0, %v4981
          %v4983 = vsel %vm4982, 0, %v4981
          %v4984 = vsub.s32 32, %v4983
          %v4985 = vshll.u32 %v4976, %v4983
          %v4986 = vshrl.u32 %v4968, %v4984
          %v4987 = vor.u32 %v4985, %v4986
          %v4988 = vsub.s32 4294967266, %v4983
          %v4989 = vadd.s32 %v4988, 127
          %v4990 = vshll.u32 %v4989, 23
          %v4991 = vor.u32 4788187, %v4990
          %v4992 = vand.u32 2147483647, %v4991
          %v4994 = vcvt.s32.f32 %v4987
          %v4995 = vmul.f32 %v4994, %v4992
          %v4996 = vxor.u32 %v4995, 2147483648
          %v4997 = vsel %vm4876, %v4996, %v4995
          %v4998 = vsub.s32 4, %v4974
          %v4999 = vsel %vm4876, %v4998, %v4974
          %v5000 = vsel %vm4875, %v3684, %v4997
          %v5001 = vsel %vm4875, 0, %v4999
          %v5002 = vmul.f32 %v5000, %v5000
          %v5003 = vmul.f32 %v5002, -0.001358992
          %v5004 = vadd.f32 %v5003, 0.041655596
          %v5005 = vmul.f32 %v5002, %v5004
          %v5006 = vadd.f32 %v5005, -0.4999988
          %v5007 = vmul.f32 %v5002, %v5006
          %v5008 = vadd.f32 1.0, %v5007
          %v5009 = vmul.f32 %v5000, %v5000
          %v5010 = vmul.f32 %v5009, -0.00019511016
          %v5011 = vadd.f32 %v5010, 0.008332121
          %v5012 = vmul.f32 %v5009, %v5011
          %v5013 = vadd.f32 %v5012, -0.16666654
          %v5014 = vmul.f32 %v5009, %v5013
          %v5015 = vadd.f32 %v5014, 1.0
          %v5016 = vmul.f32 %v5015, %v5000
          %vm5017 = vweird.f32 %v3684
          %v5018 = vadd.s32 %v5001, 3
          %v5019 = vand.u32 %v5018, 3
          %vm5020 = vcmp.lt.s32.totalorder %v5019, 2
          %vm5021 = vcmp.eq.s32.totalorder %v5019, 0
          %v5022 = vxor.u32 %v5016, 2147483648
          %v5023 = vsel %vm5021, %v5008, %v5022
          %vm5024 = vcmp.eq.s32.totalorder %v5019, 2
          %v5025 = vxor.u32 %v5008, 2147483648
          %v5026 = vsel %vm5024, %v5025, %v5016
          %v5027 = vsel %vm5020, %v5023, %v5026
          %v5028 = vsel %vm5017, nan, %v5027
          %v5029 = vand.u32 2147483647, %v3725
          %vm5030 = vcmp.le.f32.partialorder %v5029, 0.7853982
          %vm5031 = vcmp.lt.s32.totalorder %v3725, 0
          %v5032 = vand.u32 %v3725, 2139095040
          %v5033 = vshrl.u32 %v5032, 23
          %v5034 = vsub.s32 %v5033, 127
          %v5035 = vand.u32 2147483647, %v3725
          %v5036 = vand.u32 %v5035, 8388607
          %v5037 = vor.u32 %v5036, 8388608
          %v5038 = vsub.s32 0, %v5037
          %v5039 = vadd.s32 %v5034, 1
          %vm5040 = vcmp.gt.s32.totalorder %v5039, 0
          %v5041 = vsel %vm5040, %v5039, 0
          %v5042 = vshrl.u32 %v5041, 5
          %v5043 = vand.u32 %v5041, 31
          %v5044 = vsub.s32 32, %v5043
          %v5045 = vshrl.u32 683565275, %v5044
          %v5046 = vshll.u32 683565275, %v5043
          %v5047 = vshrl.u32 2475754826, %v5044
          %v5048 = vor.u32 %v5046, %v5047
          %v5049 = vshll.u32 2475754826, %v5043
          %v5050 = vshrl.u32 2131351028, %v5044
          %v5051 = vor.u32 %v5049, %v5050
          %v5052 = vshll.u32 2131351028, %v5043
          %v5053 = vshrl.u32 2102212464, %v5044
          %v5054 = vor.u32 %v5052, %v5053
          %v5055 = vshll.u32 2102212464, %v5043
          %v5056 = vshrl.u32 920167782, %v5044
          %v5057 = vor.u32 %v5055, %v5056
          %v5058 = vshll.u32 920167782, %v5043
          %v5059 = vshrl.u32 1326507024, %v5044
          %v5060 = vor.u32 %v5058, %v5059
          %vm5061 = vcmp.lt.s32.totalorder %v5042, 1
          %vm5062 = vcmp.lt.s32.totalorder %v5042, 2
          %vm5063 = vcmp.lt.s32.totalorder %v5042, 3
          %vm5064 = vcmp.lt.s32.totalorder %v5042, 4
          %v5065 = vsel %vm5061, %v5045, %v5048
          %v5066 = vsel %vm5064, %v5054, 2102212464
          %v5067 = vsel %vm5063, %v5051, %v5066
          %v5068 = vsel %vm5062, %v5065, %v5067
          %v5069 = vsel %vm5061, %v5048, %v5051
          %v5070 = vsel %vm5064, %v5057, 920167782
          %v5071 = vsel %vm5063, %v5054, %v5070
          %v5072 = vsel %vm5062, %v5069, %v5071
          %v5073 = vsel %vm5061, %v5051, %v5054
          %v5074 = vsel %vm5064, %v5060, 1326507024
          %v5075 = vsel %vm5063, %v5057, %v5074
          %v5076 = vsel %vm5062, %v5073, %v5075
          %v5077 = vshll.u32 %v5037, 8
          %v5078 = vand.u32 %v5077, 65535
          %v5079 = vshrl.u32 %v5077, 16
          %v5080 = vand.u32 %v5076, 65535
          %v5081 = vshrl.u32 %v5076, 16
          %v5082 = vmul.u32 %v5078, %v5080
          %v5083 = vmul.u32 %v5078, %v5081
          %v5084 = vmul.u32 %v5079, %v5080
          %v5085 = vmul.u32 %v5079, %v5081
          %v5086 = vshll.u32 %v5083, 16
          %v5087 = vshrl.u32 %v5083, 16
          %v5088 = vshll.u32 %v5084, 16
          %v5089 = vshrl.u32 %v5084, 16
          %vm5090 = vc.u32 %v5082, %v5086
          %v5091 = vsel %vm5090, 1, 0
          %v5092 = vadd.s32 %v5082, %v5086
          %v5093 = vadd.s32 %v5085, %v5091
          %vm5094 = vc.u32 %v5092, %v5088
          %v5095 = vsel %vm5094, 1, 0
          %v5096 = vadd.s32 %v5092, %v5088
          %v5097 = vadd.s32 %v5093, %v5095
          %v5098 = vadd.s32 %v5097, %v5087
          %v5099 = vadd.s32 %v5098, %v5089
          %v5100 = vand.u32 %v5077, 65535
          %v5101 = vshrl.u32 %v5077, 16
          %v5102 = vand.u32 %v5072, 65535
          %v5103 = vshrl.u32 %v5072, 16
          %v5104 = vmul.u32 %v5100, %v5102
          %v5105 = vmul.u32 %v5100, %v5103
          %v5106 = vmul.u32 %v5101, %v5102
          %v5107 = vmul.u32 %v5101, %v5103
          %v5108 = vshll.u32 %v5105, 16
          %v5109 = vshrl.u32 %v5105, 16
          %v5110 = vshll.u32 %v5106, 16
          %v5111 = vshrl.u32 %v5106, 16
          %vm5112 = vc.u32 %v5104, %v5108
          %v5113 = vsel %vm5112, 1, 0
          %v5114 = vadd.s32 %v5104, %v5108
          %v5115 = vadd.s32 %v5107, %v5113
          %vm5116 = vc.u32 %v5114, %v5110
          %v5117 = vsel %vm5116, 1, 0
          %v5118 = vadd.s32 %v5114, %v5110
          %v5119 = vadd.s32 %v5115, %v5117
          %v5120 = vadd.s32 %v5119, %v5109
          %v5121 = vadd.s32 %v5120, %v5111
          %v5122 = vmul.u32 %v5077, %v5068
          %v5123 = vadd.s32 %v5099, %v5118
          %vm5124 = vc.u32 %v5099, %v5118
          %v5125 = vadd.s32 %v5121, 1
          %v5126 = vsel %vm5124, %v5125, %v5121
          %v5127 = vadd.s32 %v5122, %v5126
          %v5128 = vadd.s32 %v5127, 536870912
          %v5129 = vshrl.u32 %v5128, 30
          %v5130 = vshll.u32 %v5129, 30
          %v5131 = vsub.s32 %v5127, %v5130
          %vm5132 = vcmp.lt.s32.totalorder %v5131, 0
          %v5133 = vsub.s32 0, %v5131
          %v5134 = vsel %vm5132, %v5133, %v5131
          %v5135 = vclz %v5134
          %v5136 = vsub.s32 %v5135, 2
          %vm5137 = vcmp.gt.s32.totalorder 0, %v5136
          %v5138 = vsel %vm5137, 0, %v5136
          %v5139 = vsub.s32 32, %v5138
          %v5140 = vshll.u32 %v5131, %v5138
          %v5141 = vshrl.u32 %v5123, %v5139
          %v5142 = vor.u32 %v5140, %v5141
          %v5143 = vsub.s32 4294967266, %v5138
          %v5144 = vadd.s32 %v5143, 127
          %v5145 = vshll.u32 %v5144, 23
          %v5146 = vor.u32 4788187, %v5145
          %v5147 = vand.u32 2147483647, %v5146
          %v5149 = vcvt.s32.f32 %v5142
          %v5150 = vmul.f32 %v5149, %v5147
          %v5151 = vxor.u32 %v5150, 2147483648
          %v5152 = vsel %vm5031, %v5151, %v5150
          %v5153 = vsub.s32 4, %v5129
          %v5154 = vsel %vm5031, %v5153, %v5129
          %v5155 = vsel %vm5030, %v3725, %v5152
          %v5156 = vsel %vm5030, 0, %v5154
          %v5157 = vmul.f32 %v5155, %v5155
          %v5158 = vmul.f32 %v5157, -0.001358992
          %v5159 = vadd.f32 %v5158, 0.041655596
          %v5160 = vmul.f32 %v5157, %v5159
          %v5161 = vadd.f32 %v5160, -0.4999988
          %v5162 = vmul.f32 %v5157, %v5161
          %v5163 = vadd.f32 1.0, %v5162
          %v5164 = vmul.f32 %v5155, %v5155
          %v5165 = vmul.f32 %v5164, -0.00019511016
          %v5166 = vadd.f32 %v5165, 0.008332121
          %v5167 = vmul.f32 %v5164, %v5166
          %v5168 = vadd.f32 %v5167, -0.16666654
          %v5169 = vmul.f32 %v5164, %v5168
          %v5170 = vadd.f32 %v5169, 1.0
          %v5171 = vmul.f32 %v5170, %v5155
          %vm5172 = vweird.f32 %v3725
          %v5173 = vadd.s32 %v5156, 3
          %v5174 = vand.u32 %v5173, 3
          %vm5175 = vcmp.lt.s32.totalorder %v5174, 2
          %vm5176 = vcmp.eq.s32.totalorder %v5174, 0
          %v5177 = vxor.u32 %v5171, 2147483648
          %v5178 = vsel %vm5176, %v5163, %v5177
          %vm5179 = vcmp.eq.s32.totalorder %v5174, 2
          %v5180 = vxor.u32 %v5163, 2147483648
          %v5181 = vsel %vm5179, %v5180, %v5171
          %v5182 = vsel %vm5175, %v5178, %v5181
          %v5183 = vsel %vm5172, nan, %v5182
          %v5184 = vand.u32 2147483647, %v3687
          %vm5185 = vcmp.le.f32.partialorder %v5184, 0.7853982
          %vm5186 = vcmp.lt.s32.totalorder %v3687, 0
          %v5187 = vand.u32 %v3687, 2139095040
          %v5188 = vshrl.u32 %v5187, 23
          %v5189 = vsub.s32 %v5188, 127
          %v5190 = vand.u32 2147483647, %v3687
          %v5191 = vand.u32 %v5190, 8388607
          %v5192 = vor.u32 %v5191, 8388608
          %v5193 = vsub.s32 0, %v5192
          %v5194 = vadd.s32 %v5189, 1
          %vm5195 = vcmp.gt.s32.totalorder %v5194, 0
          %v5196 = vsel %vm5195, %v5194, 0
          %v5197 = vshrl.u32 %v5196, 5
          %v5198 = vand.u32 %v5196, 31
          %v5199 = vsub.s32 32, %v5198
          %v5200 = vshrl.u32 683565275, %v5199
          %v5201 = vshll.u32 683565275, %v5198
          %v5202 = vshrl.u32 2475754826, %v5199
          %v5203 = vor.u32 %v5201, %v5202
          %v5204 = vshll.u32 2475754826, %v5198
          %v5205 = vshrl.u32 2131351028, %v5199
          %v5206 = vor.u32 %v5204, %v5205
          %v5207 = vshll.u32 2131351028, %v5198
          %v5208 = vshrl.u32 2102212464, %v5199
          %v5209 = vor.u32 %v5207, %v5208
          %v5210 = vshll.u32 2102212464, %v5198
          %v5211 = vshrl.u32 920167782, %v5199
          %v5212 = vor.u32 %v5210, %v5211
          %v5213 = vshll.u32 920167782, %v5198
          %v5214 = vshrl.u32 1326507024, %v5199
          %v5215 = vor.u32 %v5213, %v5214
          %vm5216 = vcmp.lt.s32.totalorder %v5197, 1
          %vm5217 = vcmp.lt.s32.totalorder %v5197, 2
          %vm5218 = vcmp.lt.s32.totalorder %v5197, 3
          %vm5219 = vcmp.lt.s32.totalorder %v5197, 4
          %v5220 = vsel %vm5216, %v5200, %v5203
          %v5221 = vsel %vm5219, %v5209, 2102212464
          %v5222 = vsel %vm5218, %v5206, %v5221
          %v5223 = vsel %vm5217, %v5220, %v5222
          %v5224 = vsel %vm5216, %v5203, %v5206
          %v5225 = vsel %vm5219, %v5212, 920167782
          %v5226 = vsel %vm5218, %v5209, %v5225
          %v5227 = vsel %vm5217, %v5224, %v5226
          %v5228 = vsel %vm5216, %v5206, %v5209
          %v5229 = vsel %vm5219, %v5215, 1326507024
          %v5230 = vsel %vm5218, %v5212, %v5229
          %v5231 = vsel %vm5217, %v5228, %v5230
          %v5232 = vshll.u32 %v5192, 8
          %v5233 = vand.u32 %v5232, 65535
          %v5234 = vshrl.u32 %v5232, 16
          %v5235 = vand.u32 %v5231, 65535
          %v5236 = vshrl.u32 %v5231, 16
          %v5237 = vmul.u32 %v5233, %v5235
          %v5238 = vmul.u32 %v5233, %v5236
          %v5239 = vmul.u32 %v5234, %v5235
          %v5240 = vmul.u32 %v5234, %v5236
          %v5241 = vshll.u32 %v5238, 16
          %v5242 = vshrl.u32 %v5238, 16
          %v5243 = vshll.u32 %v5239, 16
          %v5244 = vshrl.u32 %v5239, 16
          %vm5245 = vc.u32 %v5237, %v5241
          %v5246 = vsel %vm5245, 1, 0
          %v5247 = vadd.s32 %v5237, %v5241
          %v5248 = vadd.s32 %v5240, %v5246
          %vm5249 = vc.u32 %v5247, %v5243
          %v5250 = vsel %vm5249, 1, 0
          %v5251 = vadd.s32 %v5247, %v5243
          %v5252 = vadd.s32 %v5248, %v5250
          %v5253 = vadd.s32 %v5252, %v5242
          %v5254 = vadd.s32 %v5253, %v5244
          %v5255 = vand.u32 %v5232, 65535
          %v5256 = vshrl.u32 %v5232, 16
          %v5257 = vand.u32 %v5227, 65535
          %v5258 = vshrl.u32 %v5227, 16
          %v5259 = vmul.u32 %v5255, %v5257
          %v5260 = vmul.u32 %v5255, %v5258
          %v5261 = vmul.u32 %v5256, %v5257
          %v5262 = vmul.u32 %v5256, %v5258
          %v5263 = vshll.u32 %v5260, 16
          %v5264 = vshrl.u32 %v5260, 16
          %v5265 = vshll.u32 %v5261, 16
          %v5266 = vshrl.u32 %v5261, 16
          %vm5267 = vc.u32 %v5259, %v5263
          %v5268 = vsel %vm5267, 1, 0
          %v5269 = vadd.s32 %v5259, %v5263
          %v5270 = vadd.s32 %v5262, %v5268
          %vm5271 = vc.u32 %v5269, %v5265
          %v5272 = vsel %vm5271, 1, 0
          %v5273 = vadd.s32 %v5269, %v5265
          %v5274 = vadd.s32 %v5270, %v5272
          %v5275 = vadd.s32 %v5274, %v5264
          %v5276 = vadd.s32 %v5275, %v5266
          %v5277 = vmul.u32 %v5232, %v5223
          %v5278 = vadd.s32 %v5254, %v5273
          %vm5279 = vc.u32 %v5254, %v5273
          %v5280 = vadd.s32 %v5276, 1
          %v5281 = vsel %vm5279, %v5280, %v5276
          %v5282 = vadd.s32 %v5277, %v5281
          %v5283 = vadd.s32 %v5282, 536870912
          %v5284 = vshrl.u32 %v5283, 30
          %v5285 = vshll.u32 %v5284, 30
          %v5286 = vsub.s32 %v5282, %v5285
          %vm5287 = vcmp.lt.s32.totalorder %v5286, 0
          %v5288 = vsub.s32 0, %v5286
          %v5289 = vsel %vm5287, %v5288, %v5286
          %v5290 = vclz %v5289
          %v5291 = vsub.s32 %v5290, 2
          %vm5292 = vcmp.gt.s32.totalorder 0, %v5291
          %v5293 = vsel %vm5292, 0, %v5291
          %v5294 = vsub.s32 32, %v5293
          %v5295 = vshll.u32 %v5286, %v5293
          %v5296 = vshrl.u32 %v5278, %v5294
          %v5297 = vor.u32 %v5295, %v5296
          %v5298 = vsub.s32 4294967266, %v5293
          %v5299 = vadd.s32 %v5298, 127
          %v5300 = vshll.u32 %v5299, 23
          %v5301 = vor.u32 4788187, %v5300
          %v5302 = vand.u32 2147483647, %v5301
          %v5304 = vcvt.s32.f32 %v5297
          %v5305 = vmul.f32 %v5304, %v5302
          %v5306 = vxor.u32 %v5305, 2147483648
          %v5307 = vsel %vm5186, %v5306, %v5305
          %v5308 = vsub.s32 4, %v5284
          %v5309 = vsel %vm5186, %v5308, %v5284
          %v5310 = vsel %vm5185, %v3687, %v5307
          %v5311 = vsel %vm5185, 0, %v5309
          %v5312 = vmul.f32 %v5310, %v5310
          %v5313 = vmul.f32 %v5312, -0.001358992
          %v5314 = vadd.f32 %v5313, 0.041655596
          %v5315 = vmul.f32 %v5312, %v5314
          %v5316 = vadd.f32 %v5315, -0.4999988
          %v5317 = vmul.f32 %v5312, %v5316
          %v5318 = vadd.f32 1.0, %v5317
          %v5319 = vmul.f32 %v5310, %v5310
          %v5320 = vmul.f32 %v5319, -0.00019511016
          %v5321 = vadd.f32 %v5320, 0.008332121
          %v5322 = vmul.f32 %v5319, %v5321
          %v5323 = vadd.f32 %v5322, -0.16666654
          %v5324 = vmul.f32 %v5319, %v5323
          %v5325 = vadd.f32 %v5324, 1.0
          %v5326 = vmul.f32 %v5325, %v5310
          %vm5327 = vweird.f32 %v3687
          %v5328 = vadd.s32 %v5311, 3
          %v5329 = vand.u32 %v5328, 3
          %vm5330 = vcmp.lt.s32.totalorder %v5329, 2
          %vm5331 = vcmp.eq.s32.totalorder %v5329, 0
          %v5332 = vxor.u32 %v5326, 2147483648
          %v5333 = vsel %vm5331, %v5318, %v5332
          %vm5334 = vcmp.eq.s32.totalorder %v5329, 2
          %v5335 = vxor.u32 %v5318, 2147483648
          %v5336 = vsel %vm5334, %v5335, %v5326
          %v5337 = vsel %vm5330, %v5333, %v5336
          %v5338 = vsel %vm5327, nan, %v5337
          %v5339 = vand.u32 2147483647, %v3728
          %vm5340 = vcmp.le.f32.partialorder %v5339, 0.7853982
          %vm5341 = vcmp.lt.s32.totalorder %v3728, 0
          %v5342 = vand.u32 %v3728, 2139095040
          %v5343 = vshrl.u32 %v5342, 23
          %v5344 = vsub.s32 %v5343, 127
          %v5345 = vand.u32 2147483647, %v3728
          %v5346 = vand.u32 %v5345, 8388607
          %v5347 = vor.u32 %v5346, 8388608
          %v5348 = vsub.s32 0, %v5347
          %v5349 = vadd.s32 %v5344, 1
          %vm5350 = vcmp.gt.s32.totalorder %v5349, 0
          %v5351 = vsel %vm5350, %v5349, 0
          %v5352 = vshrl.u32 %v5351, 5
          %v5353 = vand.u32 %v5351, 31
          %v5354 = vsub.s32 32, %v5353
          %v5355 = vshrl.u32 683565275, %v5354
          %v5356 = vshll.u32 683565275, %v5353
          %v5357 = vshrl.u32 2475754826, %v5354
          %v5358 = vor.u32 %v5356, %v5357
          %v5359 = vshll.u32 2475754826, %v5353
          %v5360 = vshrl.u32 2131351028, %v5354
          %v5361 = vor.u32 %v5359, %v5360
          %v5362 = vshll.u32 2131351028, %v5353
          %v5363 = vshrl.u32 2102212464, %v5354
          %v5364 = vor.u32 %v5362, %v5363
          %v5365 = vshll.u32 2102212464, %v5353
          %v5366 = vshrl.u32 920167782, %v5354
          %v5367 = vor.u32 %v5365, %v5366
          %v5368 = vshll.u32 920167782, %v5353
          %v5369 = vshrl.u32 1326507024, %v5354
          %v5370 = vor.u32 %v5368, %v5369
          %vm5371 = vcmp.lt.s32.totalorder %v5352, 1
          %vm5372 = vcmp.lt.s32.totalorder %v5352, 2
          %vm5373 = vcmp.lt.s32.totalorder %v5352, 3
          %vm5374 = vcmp.lt.s32.totalorder %v5352, 4
          %v5375 = vsel %vm5371, %v5355, %v5358
          %v5376 = vsel %vm5374, %v5364, 2102212464
          %v5377 = vsel %vm5373, %v5361, %v5376
          %v5378 = vsel %vm5372, %v5375, %v5377
          %v5379 = vsel %vm5371, %v5358, %v5361
          %v5380 = vsel %vm5374, %v5367, 920167782
          %v5381 = vsel %vm5373, %v5364, %v5380
          %v5382 = vsel %vm5372, %v5379, %v5381
          %v5383 = vsel %vm5371, %v5361, %v5364
          %v5384 = vsel %vm5374, %v5370, 1326507024
          %v5385 = vsel %vm5373, %v5367, %v5384
          %v5386 = vsel %vm5372, %v5383, %v5385
          %v5387 = vshll.u32 %v5347, 8
          %v5388 = vand.u32 %v5387, 65535
          %v5389 = vshrl.u32 %v5387, 16
          %v5390 = vand.u32 %v5386, 65535
          %v5391 = vshrl.u32 %v5386, 16
          %v5392 = vmul.u32 %v5388, %v5390
          %v5393 = vmul.u32 %v5388, %v5391
          %v5394 = vmul.u32 %v5389, %v5390
          %v5395 = vmul.u32 %v5389, %v5391
          %v5396 = vshll.u32 %v5393, 16
          %v5397 = vshrl.u32 %v5393, 16
          %v5398 = vshll.u32 %v5394, 16
          %v5399 = vshrl.u32 %v5394, 16
          %vm5400 = vc.u32 %v5392, %v5396
          %v5401 = vsel %vm5400, 1, 0
          %v5402 = vadd.s32 %v5392, %v5396
          %v5403 = vadd.s32 %v5395, %v5401
          %vm5404 = vc.u32 %v5402, %v5398
          %v5405 = vsel %vm5404, 1, 0
          %v5406 = vadd.s32 %v5402, %v5398
          %v5407 = vadd.s32 %v5403, %v5405
          %v5408 = vadd.s32 %v5407, %v5397
          %v5409 = vadd.s32 %v5408, %v5399
          %v5410 = vand.u32 %v5387, 65535
          %v5411 = vshrl.u32 %v5387, 16
          %v5412 = vand.u32 %v5382, 65535
          %v5413 = vshrl.u32 %v5382, 16
          %v5414 = vmul.u32 %v5410, %v5412
          %v5415 = vmul.u32 %v5410, %v5413
          %v5416 = vmul.u32 %v5411, %v5412
          %v5417 = vmul.u32 %v5411, %v5413
          %v5418 = vshll.u32 %v5415, 16
          %v5419 = vshrl.u32 %v5415, 16
          %v5420 = vshll.u32 %v5416, 16
          %v5421 = vshrl.u32 %v5416, 16
          %vm5422 = vc.u32 %v5414, %v5418
          %v5423 = vsel %vm5422, 1, 0
          %v5424 = vadd.s32 %v5414, %v5418
          %v5425 = vadd.s32 %v5417, %v5423
          %vm5426 = vc.u32 %v5424, %v5420
          %v5427 = vsel %vm5426, 1, 0
          %v5428 = vadd.s32 %v5424, %v5420
          %v5429 = vadd.s32 %v5425, %v5427
          %v5430 = vadd.s32 %v5429, %v5419
          %v5431 = vadd.s32 %v5430, %v5421
          %v5432 = vmul.u32 %v5387, %v5378
          %v5433 = vadd.s32 %v5409, %v5428
          %vm5434 = vc.u32 %v5409, %v5428
          %v5435 = vadd.s32 %v5431, 1
          %v5436 = vsel %vm5434, %v5435, %v5431
          %v5437 = vadd.s32 %v5432, %v5436
          %v5438 = vadd.s32 %v5437, 536870912
          %v5439 = vshrl.u32 %v5438, 30
          %v5440 = vshll.u32 %v5439, 30
          %v5441 = vsub.s32 %v5437, %v5440
          %vm5442 = vcmp.lt.s32.totalorder %v5441, 0
          %v5443 = vsub.s32 0, %v5441
          %v5444 = vsel %vm5442, %v5443, %v5441
          %v5445 = vclz %v5444
          %v5446 = vsub.s32 %v5445, 2
          %vm5447 = vcmp.gt.s32.totalorder 0, %v5446
          %v5448 = vsel %vm5447, 0, %v5446
          %v5449 = vsub.s32 32, %v5448
          %v5450 = vshll.u32 %v5441, %v5448
          %v5451 = vshrl.u32 %v5433, %v5449
          %v5452 = vor.u32 %v5450, %v5451
          %v5453 = vsub.s32 4294967266, %v5448
          %v5454 = vadd.s32 %v5453, 127
          %v5455 = vshll.u32 %v5454, 23
          %v5456 = vor.u32 4788187, %v5455
          %v5457 = vand.u32 2147483647, %v5456
          %v5459 = vcvt.s32.f32 %v5452
          %v5460 = vmul.f32 %v5459, %v5457
          %v5461 = vxor.u32 %v5460, 2147483648
          %v5462 = vsel %vm5341, %v5461, %v5460
          %v5463 = vsub.s32 4, %v5439
          %v5464 = vsel %vm5341, %v5463, %v5439
          %v5465 = vsel %vm5340, %v3728, %v5462
          %v5466 = vsel %vm5340, 0, %v5464
          %v5467 = vmul.f32 %v5465, %v5465
          %v5468 = vmul.f32 %v5467, -0.001358992
          %v5469 = vadd.f32 %v5468, 0.041655596
          %v5470 = vmul.f32 %v5467, %v5469
          %v5471 = vadd.f32 %v5470, -0.4999988
          %v5472 = vmul.f32 %v5467, %v5471
          %v5473 = vadd.f32 1.0, %v5472
          %v5474 = vmul.f32 %v5465, %v5465
          %v5475 = vmul.f32 %v5474, -0.00019511016
          %v5476 = vadd.f32 %v5475, 0.008332121
          %v5477 = vmul.f32 %v5474, %v5476
          %v5478 = vadd.f32 %v5477, -0.16666654
          %v5479 = vmul.f32 %v5474, %v5478
          %v5480 = vadd.f32 %v5479, 1.0
          %v5481 = vmul.f32 %v5480, %v5465
          %vm5482 = vweird.f32 %v3728
          %v5483 = vadd.s32 %v5466, 3
          %v5484 = vand.u32 %v5483, 3
          %vm5485 = vcmp.lt.s32.totalorder %v5484, 2
          %vm5486 = vcmp.eq.s32.totalorder %v5484, 0
          %v5487 = vxor.u32 %v5481, 2147483648
          %v5488 = vsel %vm5486, %v5473, %v5487
          %vm5489 = vcmp.eq.s32.totalorder %v5484, 2
          %v5490 = vxor.u32 %v5473, 2147483648
          %v5491 = vsel %vm5489, %v5490, %v5481
          %v5492 = vsel %vm5485, %v5488, %v5491
          %v5493 = vsel %vm5482, nan, %v5492
          %v5494 = vand.u32 2147483647, %v3690
          %vm5495 = vcmp.le.f32.partialorder %v5494, 0.7853982
          %vm5496 = vcmp.lt.s32.totalorder %v3690, 0
          %v5497 = vand.u32 %v3690, 2139095040
          %v5498 = vshrl.u32 %v5497, 23
          %v5499 = vsub.s32 %v5498, 127
          %v5500 = vand.u32 2147483647, %v3690
          %v5501 = vand.u32 %v5500, 8388607
          %v5502 = vor.u32 %v5501, 8388608
          %v5503 = vsub.s32 0, %v5502
          %v5504 = vadd.s32 %v5499, 1
          %vm5505 = vcmp.gt.s32.totalorder %v5504, 0
          %v5506 = vsel %vm5505, %v5504, 0
          %v5507 = vshrl.u32 %v5506, 5
          %v5508 = vand.u32 %v5506, 31
          %v5509 = vsub.s32 32, %v5508
          %v5510 = vshrl.u32 683565275, %v5509
          %v5511 = vshll.u32 683565275, %v5508
          %v5512 = vshrl.u32 2475754826, %v5509
          %v5513 = vor.u32 %v5511, %v5512
          %v5514 = vshll.u32 2475754826, %v5508
          %v5515 = vshrl.u32 2131351028, %v5509
          %v5516 = vor.u32 %v5514, %v5515
          %v5517 = vshll.u32 2131351028, %v5508
          %v5518 = vshrl.u32 2102212464, %v5509
          %v5519 = vor.u32 %v5517, %v5518
          %v5520 = vshll.u32 2102212464, %v5508
          %v5521 = vshrl.u32 920167782, %v5509
          %v5522 = vor.u32 %v5520, %v5521
          %v5523 = vshll.u32 920167782, %v5508
          %v5524 = vshrl.u32 1326507024, %v5509
          %v5525 = vor.u32 %v5523, %v5524
          %vm5526 = vcmp.lt.s32.totalorder %v5507, 1
          %vm5527 = vcmp.lt.s32.totalorder %v5507, 2
          %vm5528 = vcmp.lt.s32.totalorder %v5507, 3
          %vm5529 = vcmp.lt.s32.totalorder %v5507, 4
          %v5530 = vsel %vm5526, %v5510, %v5513
          %v5531 = vsel %vm5529, %v5519, 2102212464
          %v5532 = vsel %vm5528, %v5516, %v5531
          %v5533 = vsel %vm5527, %v5530, %v5532
          %v5534 = vsel %vm5526, %v5513, %v5516
          %v5535 = vsel %vm5529, %v5522, 920167782
          %v5536 = vsel %vm5528, %v5519, %v5535
          %v5537 = vsel %vm5527, %v5534, %v5536
          %v5538 = vsel %vm5526, %v5516, %v5519
          %v5539 = vsel %vm5529, %v5525, 1326507024
          %v5540 = vsel %vm5528, %v5522, %v5539
          %v5541 = vsel %vm5527, %v5538, %v5540
          %v5542 = vshll.u32 %v5502, 8
          %v5543 = vand.u32 %v5542, 65535
          %v5544 = vshrl.u32 %v5542, 16
          %v5545 = vand.u32 %v5541, 65535
          %v5546 = vshrl.u32 %v5541, 16
          %v5547 = vmul.u32 %v5543, %v5545
          %v5548 = vmul.u32 %v5543, %v5546
          %v5549 = vmul.u32 %v5544, %v5545
          %v5550 = vmul.u32 %v5544, %v5546
          %v5551 = vshll.u32 %v5548, 16
          %v5552 = vshrl.u32 %v5548, 16
          %v5553 = vshll.u32 %v5549, 16
          %v5554 = vshrl.u32 %v5549, 16
          %vm5555 = vc.u32 %v5547, %v5551
          %v5556 = vsel %vm5555, 1, 0
          %v5557 = vadd.s32 %v5547, %v5551
          %v5558 = vadd.s32 %v5550, %v5556
          %vm5559 = vc.u32 %v5557, %v5553
          %v5560 = vsel %vm5559, 1, 0
          %v5561 = vadd.s32 %v5557, %v5553
          %v5562 = vadd.s32 %v5558, %v5560
          %v5563 = vadd.s32 %v5562, %v5552
          %v5564 = vadd.s32 %v5563, %v5554
          %v5565 = vand.u32 %v5542, 65535
          %v5566 = vshrl.u32 %v5542, 16
          %v5567 = vand.u32 %v5537, 65535
          %v5568 = vshrl.u32 %v5537, 16
          %v5569 = vmul.u32 %v5565, %v5567
          %v5570 = vmul.u32 %v5565, %v5568
          %v5571 = vmul.u32 %v5566, %v5567
          %v5572 = vmul.u32 %v5566, %v5568
          %v5573 = vshll.u32 %v5570, 16
          %v5574 = vshrl.u32 %v5570, 16
          %v5575 = vshll.u32 %v5571, 16
          %v5576 = vshrl.u32 %v5571, 16
          %vm5577 = vc.u32 %v5569, %v5573
          %v5578 = vsel %vm5577, 1, 0
          %v5579 = vadd.s32 %v5569, %v5573
          %v5580 = vadd.s32 %v5572, %v5578
          %vm5581 = vc.u32 %v5579, %v5575
          %v5582 = vsel %vm5581, 1, 0
          %v5583 = vadd.s32 %v5579, %v5575
          %v5584 = vadd.s32 %v5580, %v5582
          %v5585 = vadd.s32 %v5584, %v5574
          %v5586 = vadd.s32 %v5585, %v5576
          %v5587 = vmul.u32 %v5542, %v5533
          %v5588 = vadd.s32 %v5564, %v5583
          %vm5589 = vc.u32 %v5564, %v5583
          %v5590 = vadd.s32 %v5586, 1
          %v5591 = vsel %vm5589, %v5590, %v5586
          %v5592 = vadd.s32 %v5587, %v5591
          %v5593 = vadd.s32 %v5592, 536870912
          %v5594 = vshrl.u32 %v5593, 30
          %v5595 = vshll.u32 %v5594, 30
          %v5596 = vsub.s32 %v5592, %v5595
          %vm5597 = vcmp.lt.s32.totalorder %v5596, 0
          %v5598 = vsub.s32 0, %v5596
          %v5599 = vsel %vm5597, %v5598, %v5596
          %v5600 = vclz %v5599
          %v5601 = vsub.s32 %v5600, 2
          %vm5602 = vcmp.gt.s32.totalorder 0, %v5601
          %v5603 = vsel %vm5602, 0, %v5601
          %v5604 = vsub.s32 32, %v5603
          %v5605 = vshll.u32 %v5596, %v5603
          %v5606 = vshrl.u32 %v5588, %v5604
          %v5607 = vor.u32 %v5605, %v5606
          %v5608 = vsub.s32 4294967266, %v5603
          %v5609 = vadd.s32 %v5608, 127
          %v5610 = vshll.u32 %v5609, 23
          %v5611 = vor.u32 4788187, %v5610
          %v5612 = vand.u32 2147483647, %v5611
          %v5614 = vcvt.s32.f32 %v5607
          %v5615 = vmul.f32 %v5614, %v5612
          %v5616 = vxor.u32 %v5615, 2147483648
          %v5617 = vsel %vm5496, %v5616, %v5615
          %v5618 = vsub.s32 4, %v5594
          %v5619 = vsel %vm5496, %v5618, %v5594
          %v5620 = vsel %vm5495, %v3690, %v5617
          %v5621 = vsel %vm5495, 0, %v5619
          %v5622 = vmul.f32 %v5620, %v5620
          %v5623 = vmul.f32 %v5622, -0.001358992
          %v5624 = vadd.f32 %v5623, 0.041655596
          %v5625 = vmul.f32 %v5622, %v5624
          %v5626 = vadd.f32 %v5625, -0.4999988
          %v5627 = vmul.f32 %v5622, %v5626
          %v5628 = vadd.f32 1.0, %v5627
          %v5629 = vmul.f32 %v5620, %v5620
          %v5630 = vmul.f32 %v5629, -0.00019511016
          %v5631 = vadd.f32 %v5630, 0.008332121
          %v5632 = vmul.f32 %v5629, %v5631
          %v5633 = vadd.f32 %v5632, -0.16666654
          %v5634 = vmul.f32 %v5629, %v5633
          %v5635 = vadd.f32 %v5634, 1.0
          %v5636 = vmul.f32 %v5635, %v5620
          %vm5637 = vweird.f32 %v3690
          %v5638 = vadd.s32 %v5621, 3
          %v5639 = vand.u32 %v5638, 3
          %vm5640 = vcmp.lt.s32.totalorder %v5639, 2
          %vm5641 = vcmp.eq.s32.totalorder %v5639, 0
          %v5642 = vxor.u32 %v5636, 2147483648
          %v5643 = vsel %vm5641, %v5628, %v5642
          %vm5644 = vcmp.eq.s32.totalorder %v5639, 2
          %v5645 = vxor.u32 %v5628, 2147483648
          %v5646 = vsel %vm5644, %v5645, %v5636
          %v5647 = vsel %vm5640, %v5643, %v5646
          %v5648 = vsel %vm5637, nan, %v5647
          %v5649 = vand.u32 2147483647, %v3731
          %vm5650 = vcmp.le.f32.partialorder %v5649, 0.7853982
          %vm5651 = vcmp.lt.s32.totalorder %v3731, 0
          %v5652 = vand.u32 %v3731, 2139095040
          %v5653 = vshrl.u32 %v5652, 23
          %v5654 = vsub.s32 %v5653, 127
          %v5655 = vand.u32 2147483647, %v3731
          %v5656 = vand.u32 %v5655, 8388607
          %v5657 = vor.u32 %v5656, 8388608
          %v5658 = vsub.s32 0, %v5657
          %v5659 = vadd.s32 %v5654, 1
          %vm5660 = vcmp.gt.s32.totalorder %v5659, 0
          %v5661 = vsel %vm5660, %v5659, 0
          %v5662 = vshrl.u32 %v5661, 5
          %v5663 = vand.u32 %v5661, 31
          %v5664 = vsub.s32 32, %v5663
          %v5665 = vshrl.u32 683565275, %v5664
          %v5666 = vshll.u32 683565275, %v5663
          %v5667 = vshrl.u32 2475754826, %v5664
          %v5668 = vor.u32 %v5666, %v5667
          %v5669 = vshll.u32 2475754826, %v5663
          %v5670 = vshrl.u32 2131351028, %v5664
          %v5671 = vor.u32 %v5669, %v5670
          %v5672 = vshll.u32 2131351028, %v5663
          %v5673 = vshrl.u32 2102212464, %v5664
          %v5674 = vor.u32 %v5672, %v5673
          %v5675 = vshll.u32 2102212464, %v5663
          %v5676 = vshrl.u32 920167782, %v5664
          %v5677 = vor.u32 %v5675, %v5676
          %v5678 = vshll.u32 920167782, %v5663
          %v5679 = vshrl.u32 1326507024, %v5664
          %v5680 = vor.u32 %v5678, %v5679
          %vm5681 = vcmp.lt.s32.totalorder %v5662, 1
          %vm5682 = vcmp.lt.s32.totalorder %v5662, 2
          %vm5683 = vcmp.lt.s32.totalorder %v5662, 3
          %vm5684 = vcmp.lt.s32.totalorder %v5662, 4
          %v5685 = vsel %vm5681, %v5665, %v5668
          %v5686 = vsel %vm5684, %v5674, 2102212464
          %v5687 = vsel %vm5683, %v5671, %v5686
          %v5688 = vsel %vm5682, %v5685, %v5687
          %v5689 = vsel %vm5681, %v5668, %v5671
          %v5690 = vsel %vm5684, %v5677, 920167782
          %v5691 = vsel %vm5683, %v5674, %v5690
          %v5692 = vsel %vm5682, %v5689, %v5691
          %v5693 = vsel %vm5681, %v5671, %v5674
          %v5694 = vsel %vm5684, %v5680, 1326507024
          %v5695 = vsel %vm5683, %v5677, %v5694
          %v5696 = vsel %vm5682, %v5693, %v5695
          %v5697 = vshll.u32 %v5657, 8
          %v5698 = vand.u32 %v5697, 65535
          %v5699 = vshrl.u32 %v5697, 16
          %v5700 = vand.u32 %v5696, 65535
          %v5701 = vshrl.u32 %v5696, 16
          %v5702 = vmul.u32 %v5698, %v5700
          %v5703 = vmul.u32 %v5698, %v5701
          %v5704 = vmul.u32 %v5699, %v5700
          %v5705 = vmul.u32 %v5699, %v5701
          %v5706 = vshll.u32 %v5703, 16
          %v5707 = vshrl.u32 %v5703, 16
          %v5708 = vshll.u32 %v5704, 16
          %v5709 = vshrl.u32 %v5704, 16
          %vm5710 = vc.u32 %v5702, %v5706
          %v5711 = vsel %vm5710, 1, 0
          %v5712 = vadd.s32 %v5702, %v5706
          %v5713 = vadd.s32 %v5705, %v5711
          %vm5714 = vc.u32 %v5712, %v5708
          %v5715 = vsel %vm5714, 1, 0
          %v5716 = vadd.s32 %v5712, %v5708
          %v5717 = vadd.s32 %v5713, %v5715
          %v5718 = vadd.s32 %v5717, %v5707
          %v5719 = vadd.s32 %v5718, %v5709
          %v5720 = vand.u32 %v5697, 65535
          %v5721 = vshrl.u32 %v5697, 16
          %v5722 = vand.u32 %v5692, 65535
          %v5723 = vshrl.u32 %v5692, 16
          %v5724 = vmul.u32 %v5720, %v5722
          %v5725 = vmul.u32 %v5720, %v5723
          %v5726 = vmul.u32 %v5721, %v5722
          %v5727 = vmul.u32 %v5721, %v5723
          %v5728 = vshll.u32 %v5725, 16
          %v5729 = vshrl.u32 %v5725, 16
          %v5730 = vshll.u32 %v5726, 16
          %v5731 = vshrl.u32 %v5726, 16
          %vm5732 = vc.u32 %v5724, %v5728
          %v5733 = vsel %vm5732, 1, 0
          %v5734 = vadd.s32 %v5724, %v5728
          %v5735 = vadd.s32 %v5727, %v5733
          %vm5736 = vc.u32 %v5734, %v5730
          %v5737 = vsel %vm5736, 1, 0
          %v5738 = vadd.s32 %v5734, %v5730
          %v5739 = vadd.s32 %v5735, %v5737
          %v5740 = vadd.s32 %v5739, %v5729
          %v5741 = vadd.s32 %v5740, %v5731
          %v5742 = vmul.u32 %v5697, %v5688
          %v5743 = vadd.s32 %v5719, %v5738
          %vm5744 = vc.u32 %v5719, %v5738
          %v5745 = vadd.s32 %v5741, 1
          %v5746 = vsel %vm5744, %v5745, %v5741
          %v5747 = vadd.s32 %v5742, %v5746
          %v5748 = vadd.s32 %v5747, 536870912
          %v5749 = vshrl.u32 %v5748, 30
          %v5750 = vshll.u32 %v5749, 30
          %v5751 = vsub.s32 %v5747, %v5750
          %vm5752 = vcmp.lt.s32.totalorder %v5751, 0
          %v5753 = vsub.s32 0, %v5751
          %v5754 = vsel %vm5752, %v5753, %v5751
          %v5755 = vclz %v5754
          %v5756 = vsub.s32 %v5755, 2
          %vm5757 = vcmp.gt.s32.totalorder 0, %v5756
          %v5758 = vsel %vm5757, 0, %v5756
          %v5759 = vsub.s32 32, %v5758
          %v5760 = vshll.u32 %v5751, %v5758
          %v5761 = vshrl.u32 %v5743, %v5759
          %v5762 = vor.u32 %v5760, %v5761
          %v5763 = vsub.s32 4294967266, %v5758
          %v5764 = vadd.s32 %v5763, 127
          %v5765 = vshll.u32 %v5764, 23
          %v5766 = vor.u32 4788187, %v5765
          %v5767 = vand.u32 2147483647, %v5766
          %v5769 = vcvt.s32.f32 %v5762
          %v5770 = vmul.f32 %v5769, %v5767
          %v5771 = vxor.u32 %v5770, 2147483648
          %v5772 = vsel %vm5651, %v5771, %v5770
          %v5773 = vsub.s32 4, %v5749
          %v5774 = vsel %vm5651, %v5773, %v5749
          %v5775 = vsel %vm5650, %v3731, %v5772
          %v5776 = vsel %vm5650, 0, %v5774
          %v5777 = vmul.f32 %v5775, %v5775
          %v5778 = vmul.f32 %v5777, -0.001358992
          %v5779 = vadd.f32 %v5778, 0.041655596
          %v5780 = vmul.f32 %v5777, %v5779
          %v5781 = vadd.f32 %v5780, -0.4999988
          %v5782 = vmul.f32 %v5777, %v5781
          %v5783 = vadd.f32 1.0, %v5782
          %v5784 = vmul.f32 %v5775, %v5775
          %v5785 = vmul.f32 %v5784, -0.00019511016
          %v5786 = vadd.f32 %v5785, 0.008332121
          %v5787 = vmul.f32 %v5784, %v5786
          %v5788 = vadd.f32 %v5787, -0.16666654
          %v5789 = vmul.f32 %v5784, %v5788
          %v5790 = vadd.f32 %v5789, 1.0
          %v5791 = vmul.f32 %v5790, %v5775
          %vm5792 = vweird.f32 %v3731
          %v5793 = vadd.s32 %v5776, 3
          %v5794 = vand.u32 %v5793, 3
          %vm5795 = vcmp.lt.s32.totalorder %v5794, 2
          %vm5796 = vcmp.eq.s32.totalorder %v5794, 0
          %v5797 = vxor.u32 %v5791, 2147483648
          %v5798 = vsel %vm5796, %v5783, %v5797
          %vm5799 = vcmp.eq.s32.totalorder %v5794, 2
          %v5800 = vxor.u32 %v5783, 2147483648
          %v5801 = vsel %vm5799, %v5800, %v5791
          %v5802 = vsel %vm5795, %v5798, %v5801
          %v5803 = vsel %vm5792, nan, %v5802
          %v5804 = vand.u32 2147483647, %v3693
          %vm5805 = vcmp.le.f32.partialorder %v5804, 0.7853982
          %vm5806 = vcmp.lt.s32.totalorder %v3693, 0
          %v5807 = vand.u32 %v3693, 2139095040
          %v5808 = vshrl.u32 %v5807, 23
          %v5809 = vsub.s32 %v5808, 127
          %v5810 = vand.u32 2147483647, %v3693
          %v5811 = vand.u32 %v5810, 8388607
          %v5812 = vor.u32 %v5811, 8388608
          %v5813 = vsub.s32 0, %v5812
          %v5814 = vadd.s32 %v5809, 1
          %vm5815 = vcmp.gt.s32.totalorder %v5814, 0
          %v5816 = vsel %vm5815, %v5814, 0
          %v5817 = vshrl.u32 %v5816, 5
          %v5818 = vand.u32 %v5816, 31
          %v5819 = vsub.s32 32, %v5818
          %v5820 = vshrl.u32 683565275, %v5819
          %v5821 = vshll.u32 683565275, %v5818
          %v5822 = vshrl.u32 2475754826, %v5819
          %v5823 = vor.u32 %v5821, %v5822
          %v5824 = vshll.u32 2475754826, %v5818
          %v5825 = vshrl.u32 2131351028, %v5819
          %v5826 = vor.u32 %v5824, %v5825
          %v5827 = vshll.u32 2131351028, %v5818
          %v5828 = vshrl.u32 2102212464, %v5819
          %v5829 = vor.u32 %v5827, %v5828
          %v5830 = vshll.u32 2102212464, %v5818
          %v5831 = vshrl.u32 920167782, %v5819
          %v5832 = vor.u32 %v5830, %v5831
          %v5833 = vshll.u32 920167782, %v5818
          %v5834 = vshrl.u32 1326507024, %v5819
          %v5835 = vor.u32 %v5833, %v5834
          %vm5836 = vcmp.lt.s32.totalorder %v5817, 1
          %vm5837 = vcmp.lt.s32.totalorder %v5817, 2
          %vm5838 = vcmp.lt.s32.totalorder %v5817, 3
          %vm5839 = vcmp.lt.s32.totalorder %v5817, 4
          %v5840 = vsel %vm5836, %v5820, %v5823
          %v5841 = vsel %vm5839, %v5829, 2102212464
          %v5842 = vsel %vm5838, %v5826, %v5841
          %v5843 = vsel %vm5837, %v5840, %v5842
          %v5844 = vsel %vm5836, %v5823, %v5826
          %v5845 = vsel %vm5839, %v5832, 920167782
          %v5846 = vsel %vm5838, %v5829, %v5845
          %v5847 = vsel %vm5837, %v5844, %v5846
          %v5848 = vsel %vm5836, %v5826, %v5829
          %v5849 = vsel %vm5839, %v5835, 1326507024
          %v5850 = vsel %vm5838, %v5832, %v5849
          %v5851 = vsel %vm5837, %v5848, %v5850
          %v5852 = vshll.u32 %v5812, 8
          %v5853 = vand.u32 %v5852, 65535
          %v5854 = vshrl.u32 %v5852, 16
          %v5855 = vand.u32 %v5851, 65535
          %v5856 = vshrl.u32 %v5851, 16
          %v5857 = vmul.u32 %v5853, %v5855
          %v5858 = vmul.u32 %v5853, %v5856
          %v5859 = vmul.u32 %v5854, %v5855
          %v5860 = vmul.u32 %v5854, %v5856
          %v5861 = vshll.u32 %v5858, 16
          %v5862 = vshrl.u32 %v5858, 16
          %v5863 = vshll.u32 %v5859, 16
          %v5864 = vshrl.u32 %v5859, 16
          %vm5865 = vc.u32 %v5857, %v5861
          %v5866 = vsel %vm5865, 1, 0
          %v5867 = vadd.s32 %v5857, %v5861
          %v5868 = vadd.s32 %v5860, %v5866
          %vm5869 = vc.u32 %v5867, %v5863
          %v5870 = vsel %vm5869, 1, 0
          %v5871 = vadd.s32 %v5867, %v5863
          %v5872 = vadd.s32 %v5868, %v5870
          %v5873 = vadd.s32 %v5872, %v5862
          %v5874 = vadd.s32 %v5873, %v5864
          %v5875 = vand.u32 %v5852, 65535
          %v5876 = vshrl.u32 %v5852, 16
          %v5877 = vand.u32 %v5847, 65535
          %v5878 = vshrl.u32 %v5847, 16
          %v5879 = vmul.u32 %v5875, %v5877
          %v5880 = vmul.u32 %v5875, %v5878
          %v5881 = vmul.u32 %v5876, %v5877
          %v5882 = vmul.u32 %v5876, %v5878
          %v5883 = vshll.u32 %v5880, 16
          %v5884 = vshrl.u32 %v5880, 16
          %v5885 = vshll.u32 %v5881, 16
          %v5886 = vshrl.u32 %v5881, 16
          %vm5887 = vc.u32 %v5879, %v5883
          %v5888 = vsel %vm5887, 1, 0
          %v5889 = vadd.s32 %v5879, %v5883
          %v5890 = vadd.s32 %v5882, %v5888
          %vm5891 = vc.u32 %v5889, %v5885
          %v5892 = vsel %vm5891, 1, 0
          %v5893 = vadd.s32 %v5889, %v5885
          %v5894 = vadd.s32 %v5890, %v5892
          %v5895 = vadd.s32 %v5894, %v5884
          %v5896 = vadd.s32 %v5895, %v5886
          %v5897 = vmul.u32 %v5852, %v5843
          %v5898 = vadd.s32 %v5874, %v5893
          %vm5899 = vc.u32 %v5874, %v5893
          %v5900 = vadd.s32 %v5896, 1
          %v5901 = vsel %vm5899, %v5900, %v5896
          %v5902 = vadd.s32 %v5897, %v5901
          %v5903 = vadd.s32 %v5902, 536870912
          %v5904 = vshrl.u32 %v5903, 30
          %v5905 = vshll.u32 %v5904, 30
          %v5906 = vsub.s32 %v5902, %v5905
          %vm5907 = vcmp.lt.s32.totalorder %v5906, 0
          %v5908 = vsub.s32 0, %v5906
          %v5909 = vsel %vm5907, %v5908, %v5906
          %v5910 = vclz %v5909
          %v5911 = vsub.s32 %v5910, 2
          %vm5912 = vcmp.gt.s32.totalorder 0, %v5911
          %v5913 = vsel %vm5912, 0, %v5911
          %v5914 = vsub.s32 32, %v5913
          %v5915 = vshll.u32 %v5906, %v5913
          %v5916 = vshrl.u32 %v5898, %v5914
          %v5917 = vor.u32 %v5915, %v5916
          %v5918 = vsub.s32 4294967266, %v5913
          %v5919 = vadd.s32 %v5918, 127
          %v5920 = vshll.u32 %v5919, 23
          %v5921 = vor.u32 4788187, %v5920
          %v5922 = vand.u32 2147483647, %v5921
          %v5924 = vcvt.s32.f32 %v5917
          %v5925 = vmul.f32 %v5924, %v5922
          %v5926 = vxor.u32 %v5925, 2147483648
          %v5927 = vsel %vm5806, %v5926, %v5925
          %v5928 = vsub.s32 4, %v5904
          %v5929 = vsel %vm5806, %v5928, %v5904
          %v5930 = vsel %vm5805, %v3693, %v5927
          %v5931 = vsel %vm5805, 0, %v5929
          %v5932 = vmul.f32 %v5930, %v5930
          %v5933 = vmul.f32 %v5932, -0.001358992
          %v5934 = vadd.f32 %v5933, 0.041655596
          %v5935 = vmul.f32 %v5932, %v5934
          %v5936 = vadd.f32 %v5935, -0.4999988
          %v5937 = vmul.f32 %v5932, %v5936
          %v5938 = vadd.f32 1.0, %v5937
          %v5939 = vmul.f32 %v5930, %v5930
          %v5940 = vmul.f32 %v5939, -0.00019511016
          %v5941 = vadd.f32 %v5940, 0.008332121
          %v5942 = vmul.f32 %v5939, %v5941
          %v5943 = vadd.f32 %v5942, -0.16666654
          %v5944 = vmul.f32 %v5939, %v5943
          %v5945 = vadd.f32 %v5944, 1.0
          %v5946 = vmul.f32 %v5945, %v5930
          %vm5947 = vweird.f32 %v3693
          %v5948 = vadd.s32 %v5931, 3
          %v5949 = vand.u32 %v5948, 3
          %vm5950 = vcmp.lt.s32.totalorder %v5949, 2
          %vm5951 = vcmp.eq.s32.totalorder %v5949, 0
          %v5952 = vxor.u32 %v5946, 2147483648
          %v5953 = vsel %vm5951, %v5938, %v5952
          %vm5954 = vcmp.eq.s32.totalorder %v5949, 2
          %v5955 = vxor.u32 %v5938, 2147483648
          %v5956 = vsel %vm5954, %v5955, %v5946
          %v5957 = vsel %vm5950, %v5953, %v5956
          %v5958 = vsel %vm5947, nan, %v5957
          %v5959 = vand.u32 2147483647, %v3734
          %vm5960 = vcmp.le.f32.partialorder %v5959, 0.7853982
          %vm5961 = vcmp.lt.s32.totalorder %v3734, 0
          %v5962 = vand.u32 %v3734, 2139095040
          %v5963 = vshrl.u32 %v5962, 23
          %v5964 = vsub.s32 %v5963, 127
          %v5965 = vand.u32 2147483647, %v3734
          %v5966 = vand.u32 %v5965, 8388607
          %v5967 = vor.u32 %v5966, 8388608
          %v5968 = vsub.s32 0, %v5967
          %v5969 = vadd.s32 %v5964, 1
          %vm5970 = vcmp.gt.s32.totalorder %v5969, 0
          %v5971 = vsel %vm5970, %v5969, 0
          %v5972 = vshrl.u32 %v5971, 5
          %v5973 = vand.u32 %v5971, 31
          %v5974 = vsub.s32 32, %v5973
          %v5975 = vshrl.u32 683565275, %v5974
          %v5976 = vshll.u32 683565275, %v5973
          %v5977 = vshrl.u32 2475754826, %v5974
          %v5978 = vor.u32 %v5976, %v5977
          %v5979 = vshll.u32 2475754826, %v5973
          %v5980 = vshrl.u32 2131351028, %v5974
          %v5981 = vor.u32 %v5979, %v5980
          %v5982 = vshll.u32 2131351028, %v5973
          %v5983 = vshrl.u32 2102212464, %v5974
          %v5984 = vor.u32 %v5982, %v5983
          %v5985 = vshll.u32 2102212464, %v5973
          %v5986 = vshrl.u32 920167782, %v5974
          %v5987 = vor.u32 %v5985, %v5986
          %v5988 = vshll.u32 920167782, %v5973
          %v5989 = vshrl.u32 1326507024, %v5974
          %v5990 = vor.u32 %v5988, %v5989
          %vm5991 = vcmp.lt.s32.totalorder %v5972, 1
          %vm5992 = vcmp.lt.s32.totalorder %v5972, 2
          %vm5993 = vcmp.lt.s32.totalorder %v5972, 3
          %vm5994 = vcmp.lt.s32.totalorder %v5972, 4
          %v5995 = vsel %vm5991, %v5975, %v5978
          %v5996 = vsel %vm5994, %v5984, 2102212464
          %v5997 = vsel %vm5993, %v5981, %v5996
          %v5998 = vsel %vm5992, %v5995, %v5997
          %v5999 = vsel %vm5991, %v5978, %v5981
          %v6000 = vsel %vm5994, %v5987, 920167782
          %v6001 = vsel %vm5993, %v5984, %v6000
          %v6002 = vsel %vm5992, %v5999, %v6001
          %v6003 = vsel %vm5991, %v5981, %v5984
          %v6004 = vsel %vm5994, %v5990, 1326507024
          %v6005 = vsel %vm5993, %v5987, %v6004
          %v6006 = vsel %vm5992, %v6003, %v6005
          %v6007 = vshll.u32 %v5967, 8
          %v6008 = vand.u32 %v6007, 65535
          %v6009 = vshrl.u32 %v6007, 16
          %v6010 = vand.u32 %v6006, 65535
          %v6011 = vshrl.u32 %v6006, 16
          %v6012 = vmul.u32 %v6008, %v6010
          %v6013 = vmul.u32 %v6008, %v6011
          %v6014 = vmul.u32 %v6009, %v6010
          %v6015 = vmul.u32 %v6009, %v6011
          %v6016 = vshll.u32 %v6013, 16
          %v6017 = vshrl.u32 %v6013, 16
          %v6018 = vshll.u32 %v6014, 16
          %v6019 = vshrl.u32 %v6014, 16
          %vm6020 = vc.u32 %v6012, %v6016
          %v6021 = vsel %vm6020, 1, 0
          %v6022 = vadd.s32 %v6012, %v6016
          %v6023 = vadd.s32 %v6015, %v6021
          %vm6024 = vc.u32 %v6022, %v6018
          %v6025 = vsel %vm6024, 1, 0
          %v6026 = vadd.s32 %v6022, %v6018
          %v6027 = vadd.s32 %v6023, %v6025
          %v6028 = vadd.s32 %v6027, %v6017
          %v6029 = vadd.s32 %v6028, %v6019
          %v6030 = vand.u32 %v6007, 65535
          %v6031 = vshrl.u32 %v6007, 16
          %v6032 = vand.u32 %v6002, 65535
          %v6033 = vshrl.u32 %v6002, 16
          %v6034 = vmul.u32 %v6030, %v6032
          %v6035 = vmul.u32 %v6030, %v6033
          %v6036 = vmul.u32 %v6031, %v6032
          %v6037 = vmul.u32 %v6031, %v6033
          %v6038 = vshll.u32 %v6035, 16
          %v6039 = vshrl.u32 %v6035, 16
          %v6040 = vshll.u32 %v6036, 16
          %v6041 = vshrl.u32 %v6036, 16
          %vm6042 = vc.u32 %v6034, %v6038
          %v6043 = vsel %vm6042, 1, 0
          %v6044 = vadd.s32 %v6034, %v6038
          %v6045 = vadd.s32 %v6037, %v6043
          %vm6046 = vc.u32 %v6044, %v6040
          %v6047 = vsel %vm6046, 1, 0
          %v6048 = vadd.s32 %v6044, %v6040
          %v6049 = vadd.s32 %v6045, %v6047
          %v6050 = vadd.s32 %v6049, %v6039
          %v6051 = vadd.s32 %v6050, %v6041
          %v6052 = vmul.u32 %v6007, %v5998
          %v6053 = vadd.s32 %v6029, %v6048
          %vm6054 = vc.u32 %v6029, %v6048
          %v6055 = vadd.s32 %v6051, 1
          %v6056 = vsel %vm6054, %v6055, %v6051
          %v6057 = vadd.s32 %v6052, %v6056
          %v6058 = vadd.s32 %v6057, 536870912
          %v6059 = vshrl.u32 %v6058, 30
          %v6060 = vshll.u32 %v6059, 30
          %v6061 = vsub.s32 %v6057, %v6060
          %vm6062 = vcmp.lt.s32.totalorder %v6061, 0
          %v6063 = vsub.s32 0, %v6061
          %v6064 = vsel %vm6062, %v6063, %v6061
          %v6065 = vclz %v6064
          %v6066 = vsub.s32 %v6065, 2
          %vm6067 = vcmp.gt.s32.totalorder 0, %v6066
          %v6068 = vsel %vm6067, 0, %v6066
          %v6069 = vsub.s32 32, %v6068
          %v6070 = vshll.u32 %v6061, %v6068
          %v6071 = vshrl.u32 %v6053, %v6069
          %v6072 = vor.u32 %v6070, %v6071
          %v6073 = vsub.s32 4294967266, %v6068
          %v6074 = vadd.s32 %v6073, 127
          %v6075 = vshll.u32 %v6074, 23
          %v6076 = vor.u32 4788187, %v6075
          %v6077 = vand.u32 2147483647, %v6076
          %v6079 = vcvt.s32.f32 %v6072
          %v6080 = vmul.f32 %v6079, %v6077
          %v6081 = vxor.u32 %v6080, 2147483648
          %v6082 = vsel %vm5961, %v6081, %v6080
          %v6083 = vsub.s32 4, %v6059
          %v6084 = vsel %vm5961, %v6083, %v6059
          %v6085 = vsel %vm5960, %v3734, %v6082
          %v6086 = vsel %vm5960, 0, %v6084
          %v6087 = vmul.f32 %v6085, %v6085
          %v6088 = vmul.f32 %v6087, -0.001358992
          %v6089 = vadd.f32 %v6088, 0.041655596
          %v6090 = vmul.f32 %v6087, %v6089
          %v6091 = vadd.f32 %v6090, -0.4999988
          %v6092 = vmul.f32 %v6087, %v6091
          %v6093 = vadd.f32 1.0, %v6092
          %v6094 = vmul.f32 %v6085, %v6085
          %v6095 = vmul.f32 %v6094, -0.00019511016
          %v6096 = vadd.f32 %v6095, 0.008332121
          %v6097 = vmul.f32 %v6094, %v6096
          %v6098 = vadd.f32 %v6097, -0.16666654
          %v6099 = vmul.f32 %v6094, %v6098
          %v6100 = vadd.f32 %v6099, 1.0
          %v6101 = vmul.f32 %v6100, %v6085
          %vm6102 = vweird.f32 %v3734
          %v6103 = vadd.s32 %v6086, 3
          %v6104 = vand.u32 %v6103, 3
          %vm6105 = vcmp.lt.s32.totalorder %v6104, 2
          %vm6106 = vcmp.eq.s32.totalorder %v6104, 0
          %v6107 = vxor.u32 %v6101, 2147483648
          %v6108 = vsel %vm6106, %v6093, %v6107
          %vm6109 = vcmp.eq.s32.totalorder %v6104, 2
          %v6110 = vxor.u32 %v6093, 2147483648
          %v6111 = vsel %vm6109, %v6110, %v6101
          %v6112 = vsel %vm6105, %v6108, %v6111
          %v6113 = vsel %vm6102, nan, %v6112
          %v6114 = vand.u32 2147483647, %v3696
          %vm6115 = vcmp.le.f32.partialorder %v6114, 0.7853982
          %vm6116 = vcmp.lt.s32.totalorder %v3696, 0
          %v6117 = vand.u32 %v3696, 2139095040
          %v6118 = vshrl.u32 %v6117, 23
          %v6119 = vsub.s32 %v6118, 127
          %v6120 = vand.u32 2147483647, %v3696
          %v6121 = vand.u32 %v6120, 8388607
          %v6122 = vor.u32 %v6121, 8388608
          %v6123 = vsub.s32 0, %v6122
          %v6124 = vadd.s32 %v6119, 1
          %vm6125 = vcmp.gt.s32.totalorder %v6124, 0
          %v6126 = vsel %vm6125, %v6124, 0
          %v6127 = vshrl.u32 %v6126, 5
          %v6128 = vand.u32 %v6126, 31
          %v6129 = vsub.s32 32, %v6128
          %v6130 = vshrl.u32 683565275, %v6129
          %v6131 = vshll.u32 683565275, %v6128
          %v6132 = vshrl.u32 2475754826, %v6129
          %v6133 = vor.u32 %v6131, %v6132
          %v6134 = vshll.u32 2475754826, %v6128
          %v6135 = vshrl.u32 2131351028, %v6129
          %v6136 = vor.u32 %v6134, %v6135
          %v6137 = vshll.u32 2131351028, %v6128
          %v6138 = vshrl.u32 2102212464, %v6129
          %v6139 = vor.u32 %v6137, %v6138
          %v6140 = vshll.u32 2102212464, %v6128
          %v6141 = vshrl.u32 920167782, %v6129
          %v6142 = vor.u32 %v6140, %v6141
          %v6143 = vshll.u32 920167782, %v6128
          %v6144 = vshrl.u32 1326507024, %v6129
          %v6145 = vor.u32 %v6143, %v6144
          %vm6146 = vcmp.lt.s32.totalorder %v6127, 1
          %vm6147 = vcmp.lt.s32.totalorder %v6127, 2
          %vm6148 = vcmp.lt.s32.totalorder %v6127, 3
          %vm6149 = vcmp.lt.s32.totalorder %v6127, 4
          %v6150 = vsel %vm6146, %v6130, %v6133
          %v6151 = vsel %vm6149, %v6139, 2102212464
          %v6152 = vsel %vm6148, %v6136, %v6151
          %v6153 = vsel %vm6147, %v6150, %v6152
          %v6154 = vsel %vm6146, %v6133, %v6136
          %v6155 = vsel %vm6149, %v6142, 920167782
          %v6156 = vsel %vm6148, %v6139, %v6155
          %v6157 = vsel %vm6147, %v6154, %v6156
          %v6158 = vsel %vm6146, %v6136, %v6139
          %v6159 = vsel %vm6149, %v6145, 1326507024
          %v6160 = vsel %vm6148, %v6142, %v6159
          %v6161 = vsel %vm6147, %v6158, %v6160
          %v6162 = vshll.u32 %v6122, 8
          %v6163 = vand.u32 %v6162, 65535
          %v6164 = vshrl.u32 %v6162, 16
          %v6165 = vand.u32 %v6161, 65535
          %v6166 = vshrl.u32 %v6161, 16
          %v6167 = vmul.u32 %v6163, %v6165
          %v6168 = vmul.u32 %v6163, %v6166
          %v6169 = vmul.u32 %v6164, %v6165
          %v6170 = vmul.u32 %v6164, %v6166
          %v6171 = vshll.u32 %v6168, 16
          %v6172 = vshrl.u32 %v6168, 16
          %v6173 = vshll.u32 %v6169, 16
          %v6174 = vshrl.u32 %v6169, 16
          %vm6175 = vc.u32 %v6167, %v6171
          %v6176 = vsel %vm6175, 1, 0
          %v6177 = vadd.s32 %v6167, %v6171
          %v6178 = vadd.s32 %v6170, %v6176
          %vm6179 = vc.u32 %v6177, %v6173
          %v6180 = vsel %vm6179, 1, 0
          %v6181 = vadd.s32 %v6177, %v6173
          %v6182 = vadd.s32 %v6178, %v6180
          %v6183 = vadd.s32 %v6182, %v6172
          %v6184 = vadd.s32 %v6183, %v6174
          %v6185 = vand.u32 %v6162, 65535
          %v6186 = vshrl.u32 %v6162, 16
          %v6187 = vand.u32 %v6157, 65535
          %v6188 = vshrl.u32 %v6157, 16
          %v6189 = vmul.u32 %v6185, %v6187
          %v6190 = vmul.u32 %v6185, %v6188
          %v6191 = vmul.u32 %v6186, %v6187
          %v6192 = vmul.u32 %v6186, %v6188
          %v6193 = vshll.u32 %v6190, 16
          %v6194 = vshrl.u32 %v6190, 16
          %v6195 = vshll.u32 %v6191, 16
          %v6196 = vshrl.u32 %v6191, 16
          %vm6197 = vc.u32 %v6189, %v6193
          %v6198 = vsel %vm6197, 1, 0
          %v6199 = vadd.s32 %v6189, %v6193
          %v6200 = vadd.s32 %v6192, %v6198
          %vm6201 = vc.u32 %v6199, %v6195
          %v6202 = vsel %vm6201, 1, 0
          %v6203 = vadd.s32 %v6199, %v6195
          %v6204 = vadd.s32 %v6200, %v6202
          %v6205 = vadd.s32 %v6204, %v6194
          %v6206 = vadd.s32 %v6205, %v6196
          %v6207 = vmul.u32 %v6162, %v6153
          %v6208 = vadd.s32 %v6184, %v6203
          %vm6209 = vc.u32 %v6184, %v6203
          %v6210 = vadd.s32 %v6206, 1
          %v6211 = vsel %vm6209, %v6210, %v6206
          %v6212 = vadd.s32 %v6207, %v6211
          %v6213 = vadd.s32 %v6212, 536870912
          %v6214 = vshrl.u32 %v6213, 30
          %v6215 = vshll.u32 %v6214, 30
          %v6216 = vsub.s32 %v6212, %v6215
          %vm6217 = vcmp.lt.s32.totalorder %v6216, 0
          %v6218 = vsub.s32 0, %v6216
          %v6219 = vsel %vm6217, %v6218, %v6216
          %v6220 = vclz %v6219
          %v6221 = vsub.s32 %v6220, 2
          %vm6222 = vcmp.gt.s32.totalorder 0, %v6221
          %v6223 = vsel %vm6222, 0, %v6221
          %v6224 = vsub.s32 32, %v6223
          %v6225 = vshll.u32 %v6216, %v6223
          %v6226 = vshrl.u32 %v6208, %v6224
          %v6227 = vor.u32 %v6225, %v6226
          %v6228 = vsub.s32 4294967266, %v6223
          %v6229 = vadd.s32 %v6228, 127
          %v6230 = vshll.u32 %v6229, 23
          %v6231 = vor.u32 4788187, %v6230
          %v6232 = vand.u32 2147483647, %v6231
          %v6234 = vcvt.s32.f32 %v6227
          %v6235 = vmul.f32 %v6234, %v6232
          %v6236 = vxor.u32 %v6235, 2147483648
          %v6237 = vsel %vm6116, %v6236, %v6235
          %v6238 = vsub.s32 4, %v6214
          %v6239 = vsel %vm6116, %v6238, %v6214
          %v6240 = vsel %vm6115, %v3696, %v6237
          %v6241 = vsel %vm6115, 0, %v6239
          %v6242 = vmul.f32 %v6240, %v6240
          %v6243 = vmul.f32 %v6242, -0.001358992
          %v6244 = vadd.f32 %v6243, 0.041655596
          %v6245 = vmul.f32 %v6242, %v6244
          %v6246 = vadd.f32 %v6245, -0.4999988
          %v6247 = vmul.f32 %v6242, %v6246
          %v6248 = vadd.f32 1.0, %v6247
          %v6249 = vmul.f32 %v6240, %v6240
          %v6250 = vmul.f32 %v6249, -0.00019511016
          %v6251 = vadd.f32 %v6250, 0.008332121
          %v6252 = vmul.f32 %v6249, %v6251
          %v6253 = vadd.f32 %v6252, -0.16666654
          %v6254 = vmul.f32 %v6249, %v6253
          %v6255 = vadd.f32 %v6254, 1.0
          %v6256 = vmul.f32 %v6255, %v6240
          %vm6257 = vweird.f32 %v3696
          %v6258 = vadd.s32 %v6241, 3
          %v6259 = vand.u32 %v6258, 3
          %vm6260 = vcmp.lt.s32.totalorder %v6259, 2
          %vm6261 = vcmp.eq.s32.totalorder %v6259, 0
          %v6262 = vxor.u32 %v6256, 2147483648
          %v6263 = vsel %vm6261, %v6248, %v6262
          %vm6264 = vcmp.eq.s32.totalorder %v6259, 2
          %v6265 = vxor.u32 %v6248, 2147483648
          %v6266 = vsel %vm6264, %v6265, %v6256
          %v6267 = vsel %vm6260, %v6263, %v6266
          %v6268 = vsel %vm6257, nan, %v6267
          %v6269 = vand.u32 2147483647, %v3737
          %vm6270 = vcmp.le.f32.partialorder %v6269, 0.7853982
          %vm6271 = vcmp.lt.s32.totalorder %v3737, 0
          %v6272 = vand.u32 %v3737, 2139095040
          %v6273 = vshrl.u32 %v6272, 23
          %v6274 = vsub.s32 %v6273, 127
          %v6275 = vand.u32 2147483647, %v3737
          %v6276 = vand.u32 %v6275, 8388607
          %v6277 = vor.u32 %v6276, 8388608
          %v6278 = vsub.s32 0, %v6277
          %v6279 = vadd.s32 %v6274, 1
          %vm6280 = vcmp.gt.s32.totalorder %v6279, 0
          %v6281 = vsel %vm6280, %v6279, 0
          %v6282 = vshrl.u32 %v6281, 5
          %v6283 = vand.u32 %v6281, 31
          %v6284 = vsub.s32 32, %v6283
          %v6285 = vshrl.u32 683565275, %v6284
          %v6286 = vshll.u32 683565275, %v6283
          %v6287 = vshrl.u32 2475754826, %v6284
          %v6288 = vor.u32 %v6286, %v6287
          %v6289 = vshll.u32 2475754826, %v6283
          %v6290 = vshrl.u32 2131351028, %v6284
          %v6291 = vor.u32 %v6289, %v6290
          %v6292 = vshll.u32 2131351028, %v6283
          %v6293 = vshrl.u32 2102212464, %v6284
          %v6294 = vor.u32 %v6292, %v6293
          %v6295 = vshll.u32 2102212464, %v6283
          %v6296 = vshrl.u32 920167782, %v6284
          %v6297 = vor.u32 %v6295, %v6296
          %v6298 = vshll.u32 920167782, %v6283
          %v6299 = vshrl.u32 1326507024, %v6284
          %v6300 = vor.u32 %v6298, %v6299
          %vm6301 = vcmp.lt.s32.totalorder %v6282, 1
          %vm6302 = vcmp.lt.s32.totalorder %v6282, 2
          %vm6303 = vcmp.lt.s32.totalorder %v6282, 3
          %vm6304 = vcmp.lt.s32.totalorder %v6282, 4
          %v6305 = vsel %vm6301, %v6285, %v6288
          %v6306 = vsel %vm6304, %v6294, 2102212464
          %v6307 = vsel %vm6303, %v6291, %v6306
          %v6308 = vsel %vm6302, %v6305, %v6307
          %v6309 = vsel %vm6301, %v6288, %v6291
          %v6310 = vsel %vm6304, %v6297, 920167782
          %v6311 = vsel %vm6303, %v6294, %v6310
          %v6312 = vsel %vm6302, %v6309, %v6311
          %v6313 = vsel %vm6301, %v6291, %v6294
          %v6314 = vsel %vm6304, %v6300, 1326507024
          %v6315 = vsel %vm6303, %v6297, %v6314
          %v6316 = vsel %vm6302, %v6313, %v6315
          %v6317 = vshll.u32 %v6277, 8
          %v6318 = vand.u32 %v6317, 65535
          %v6319 = vshrl.u32 %v6317, 16
          %v6320 = vand.u32 %v6316, 65535
          %v6321 = vshrl.u32 %v6316, 16
          %v6322 = vmul.u32 %v6318, %v6320
          %v6323 = vmul.u32 %v6318, %v6321
          %v6324 = vmul.u32 %v6319, %v6320
          %v6325 = vmul.u32 %v6319, %v6321
          %v6326 = vshll.u32 %v6323, 16
          %v6327 = vshrl.u32 %v6323, 16
          %v6328 = vshll.u32 %v6324, 16
          %v6329 = vshrl.u32 %v6324, 16
          %vm6330 = vc.u32 %v6322, %v6326
          %v6331 = vsel %vm6330, 1, 0
          %v6332 = vadd.s32 %v6322, %v6326
          %v6333 = vadd.s32 %v6325, %v6331
          %vm6334 = vc.u32 %v6332, %v6328
          %v6335 = vsel %vm6334, 1, 0
          %v6336 = vadd.s32 %v6332, %v6328
          %v6337 = vadd.s32 %v6333, %v6335
          %v6338 = vadd.s32 %v6337, %v6327
          %v6339 = vadd.s32 %v6338, %v6329
          %v6340 = vand.u32 %v6317, 65535
          %v6341 = vshrl.u32 %v6317, 16
          %v6342 = vand.u32 %v6312, 65535
          %v6343 = vshrl.u32 %v6312, 16
          %v6344 = vmul.u32 %v6340, %v6342
          %v6345 = vmul.u32 %v6340, %v6343
          %v6346 = vmul.u32 %v6341, %v6342
          %v6347 = vmul.u32 %v6341, %v6343
          %v6348 = vshll.u32 %v6345, 16
          %v6349 = vshrl.u32 %v6345, 16
          %v6350 = vshll.u32 %v6346, 16
          %v6351 = vshrl.u32 %v6346, 16
          %vm6352 = vc.u32 %v6344, %v6348
          %v6353 = vsel %vm6352, 1, 0
          %v6354 = vadd.s32 %v6344, %v6348
          %v6355 = vadd.s32 %v6347, %v6353
          %vm6356 = vc.u32 %v6354, %v6350
          %v6357 = vsel %vm6356, 1, 0
          %v6358 = vadd.s32 %v6354, %v6350
          %v6359 = vadd.s32 %v6355, %v6357
          %v6360 = vadd.s32 %v6359, %v6349
          %v6361 = vadd.s32 %v6360, %v6351
          %v6362 = vmul.u32 %v6317, %v6308
          %v6363 = vadd.s32 %v6339, %v6358
          %vm6364 = vc.u32 %v6339, %v6358
          %v6365 = vadd.s32 %v6361, 1
          %v6366 = vsel %vm6364, %v6365, %v6361
          %v6367 = vadd.s32 %v6362, %v6366
          %v6368 = vadd.s32 %v6367, 536870912
          %v6369 = vshrl.u32 %v6368, 30
          %v6370 = vshll.u32 %v6369, 30
          %v6371 = vsub.s32 %v6367, %v6370
          %vm6372 = vcmp.lt.s32.totalorder %v6371, 0
          %v6373 = vsub.s32 0, %v6371
          %v6374 = vsel %vm6372, %v6373, %v6371
          %v6375 = vclz %v6374
          %v6376 = vsub.s32 %v6375, 2
          %vm6377 = vcmp.gt.s32.totalorder 0, %v6376
          %v6378 = vsel %vm6377, 0, %v6376
          %v6379 = vsub.s32 32, %v6378
          %v6380 = vshll.u32 %v6371, %v6378
          %v6381 = vshrl.u32 %v6363, %v6379
          %v6382 = vor.u32 %v6380, %v6381
          %v6383 = vsub.s32 4294967266, %v6378
          %v6384 = vadd.s32 %v6383, 127
          %v6385 = vshll.u32 %v6384, 23
          %v6386 = vor.u32 4788187, %v6385
          %v6387 = vand.u32 2147483647, %v6386
          %v6389 = vcvt.s32.f32 %v6382
          %v6390 = vmul.f32 %v6389, %v6387
          %v6391 = vxor.u32 %v6390, 2147483648
          %v6392 = vsel %vm6271, %v6391, %v6390
          %v6393 = vsub.s32 4, %v6369
          %v6394 = vsel %vm6271, %v6393, %v6369
          %v6395 = vsel %vm6270, %v3737, %v6392
          %v6396 = vsel %vm6270, 0, %v6394
          %v6397 = vmul.f32 %v6395, %v6395
          %v6398 = vmul.f32 %v6397, -0.001358992
          %v6399 = vadd.f32 %v6398, 0.041655596
          %v6400 = vmul.f32 %v6397, %v6399
          %v6401 = vadd.f32 %v6400, -0.4999988
          %v6402 = vmul.f32 %v6397, %v6401
          %v6403 = vadd.f32 1.0, %v6402
          %v6404 = vmul.f32 %v6395, %v6395
          %v6405 = vmul.f32 %v6404, -0.00019511016
          %v6406 = vadd.f32 %v6405, 0.008332121
          %v6407 = vmul.f32 %v6404, %v6406
          %v6408 = vadd.f32 %v6407, -0.16666654
          %v6409 = vmul.f32 %v6404, %v6408
          %v6410 = vadd.f32 %v6409, 1.0
          %v6411 = vmul.f32 %v6410, %v6395
          %vm6412 = vweird.f32 %v3737
          %v6413 = vadd.s32 %v6396, 3
          %v6414 = vand.u32 %v6413, 3
          %vm6415 = vcmp.lt.s32.totalorder %v6414, 2
          %vm6416 = vcmp.eq.s32.totalorder %v6414, 0
          %v6417 = vxor.u32 %v6411, 2147483648
          %v6418 = vsel %vm6416, %v6403, %v6417
          %vm6419 = vcmp.eq.s32.totalorder %v6414, 2
          %v6420 = vxor.u32 %v6403, 2147483648
          %v6421 = vsel %vm6419, %v6420, %v6411
          %v6422 = vsel %vm6415, %v6418, %v6421
          %v6423 = vsel %vm6412, nan, %v6422
          %v6424 = vand.u32 2147483647, %v3699
          %vm6425 = vcmp.le.f32.partialorder %v6424, 0.7853982
          %vm6426 = vcmp.lt.s32.totalorder %v3699, 0
          %v6427 = vand.u32 %v3699, 2139095040
          %v6428 = vshrl.u32 %v6427, 23
          %v6429 = vsub.s32 %v6428, 127
          %v6430 = vand.u32 2147483647, %v3699
          %v6431 = vand.u32 %v6430, 8388607
          %v6432 = vor.u32 %v6431, 8388608
          %v6433 = vsub.s32 0, %v6432
          %v6434 = vadd.s32 %v6429, 1
          %vm6435 = vcmp.gt.s32.totalorder %v6434, 0
          %v6436 = vsel %vm6435, %v6434, 0
          %v6437 = vshrl.u32 %v6436, 5
          %v6438 = vand.u32 %v6436, 31
          %v6439 = vsub.s32 32, %v6438
          %v6440 = vshrl.u32 683565275, %v6439
          %v6441 = vshll.u32 683565275, %v6438
          %v6442 = vshrl.u32 2475754826, %v6439
          %v6443 = vor.u32 %v6441, %v6442
          %v6444 = vshll.u32 2475754826, %v6438
          %v6445 = vshrl.u32 2131351028, %v6439
          %v6446 = vor.u32 %v6444, %v6445
          %v6447 = vshll.u32 2131351028, %v6438
          %v6448 = vshrl.u32 2102212464, %v6439
          %v6449 = vor.u32 %v6447, %v6448
          %v6450 = vshll.u32 2102212464, %v6438
          %v6451 = vshrl.u32 920167782, %v6439
          %v6452 = vor.u32 %v6450, %v6451
          %v6453 = vshll.u32 920167782, %v6438
          %v6454 = vshrl.u32 1326507024, %v6439
          %v6455 = vor.u32 %v6453, %v6454
          %vm6456 = vcmp.lt.s32.totalorder %v6437, 1
          %vm6457 = vcmp.lt.s32.totalorder %v6437, 2
          %vm6458 = vcmp.lt.s32.totalorder %v6437, 3
          %vm6459 = vcmp.lt.s32.totalorder %v6437, 4
          %v6460 = vsel %vm6456, %v6440, %v6443
          %v6461 = vsel %vm6459, %v6449, 2102212464
          %v6462 = vsel %vm6458, %v6446, %v6461
          %v6463 = vsel %vm6457, %v6460, %v6462
          %v6464 = vsel %vm6456, %v6443, %v6446
          %v6465 = vsel %vm6459, %v6452, 920167782
          %v6466 = vsel %vm6458, %v6449, %v6465
          %v6467 = vsel %vm6457, %v6464, %v6466
          %v6468 = vsel %vm6456, %v6446, %v6449
          %v6469 = vsel %vm6459, %v6455, 1326507024
          %v6470 = vsel %vm6458, %v6452, %v6469
          %v6471 = vsel %vm6457, %v6468, %v6470
          %v6472 = vshll.u32 %v6432, 8
          %v6473 = vand.u32 %v6472, 65535
          %v6474 = vshrl.u32 %v6472, 16
          %v6475 = vand.u32 %v6471, 65535
          %v6476 = vshrl.u32 %v6471, 16
          %v6477 = vmul.u32 %v6473, %v6475
          %v6478 = vmul.u32 %v6473, %v6476
          %v6479 = vmul.u32 %v6474, %v6475
          %v6480 = vmul.u32 %v6474, %v6476
          %v6481 = vshll.u32 %v6478, 16
          %v6482 = vshrl.u32 %v6478, 16
          %v6483 = vshll.u32 %v6479, 16
          %v6484 = vshrl.u32 %v6479, 16
          %vm6485 = vc.u32 %v6477, %v6481
          %v6486 = vsel %vm6485, 1, 0
          %v6487 = vadd.s32 %v6477, %v6481
          %v6488 = vadd.s32 %v6480, %v6486
          %vm6489 = vc.u32 %v6487, %v6483
          %v6490 = vsel %vm6489, 1, 0
          %v6491 = vadd.s32 %v6487, %v6483
          %v6492 = vadd.s32 %v6488, %v6490
          %v6493 = vadd.s32 %v6492, %v6482
          %v6494 = vadd.s32 %v6493, %v6484
          %v6495 = vand.u32 %v6472, 65535
          %v6496 = vshrl.u32 %v6472, 16
          %v6497 = vand.u32 %v6467, 65535
          %v6498 = vshrl.u32 %v6467, 16
          %v6499 = vmul.u32 %v6495, %v6497
          %v6500 = vmul.u32 %v6495, %v6498
          %v6501 = vmul.u32 %v6496, %v6497
          %v6502 = vmul.u32 %v6496, %v6498
          %v6503 = vshll.u32 %v6500, 16
          %v6504 = vshrl.u32 %v6500, 16
          %v6505 = vshll.u32 %v6501, 16
          %v6506 = vshrl.u32 %v6501, 16
          %vm6507 = vc.u32 %v6499, %v6503
          %v6508 = vsel %vm6507, 1, 0
          %v6509 = vadd.s32 %v6499, %v6503
          %v6510 = vadd.s32 %v6502, %v6508
          %vm6511 = vc.u32 %v6509, %v6505
          %v6512 = vsel %vm6511, 1, 0
          %v6513 = vadd.s32 %v6509, %v6505
          %v6514 = vadd.s32 %v6510, %v6512
          %v6515 = vadd.s32 %v6514, %v6504
          %v6516 = vadd.s32 %v6515, %v6506
          %v6517 = vmul.u32 %v6472, %v6463
          %v6518 = vadd.s32 %v6494, %v6513
          %vm6519 = vc.u32 %v6494, %v6513
          %v6520 = vadd.s32 %v6516, 1
          %v6521 = vsel %vm6519, %v6520, %v6516
          %v6522 = vadd.s32 %v6517, %v6521
          %v6523 = vadd.s32 %v6522, 536870912
          %v6524 = vshrl.u32 %v6523, 30
          %v6525 = vshll.u32 %v6524, 30
          %v6526 = vsub.s32 %v6522, %v6525
          %vm6527 = vcmp.lt.s32.totalorder %v6526, 0
          %v6528 = vsub.s32 0, %v6526
          %v6529 = vsel %vm6527, %v6528, %v6526
          %v6530 = vclz %v6529
          %v6531 = vsub.s32 %v6530, 2
          %vm6532 = vcmp.gt.s32.totalorder 0, %v6531
          %v6533 = vsel %vm6532, 0, %v6531
          %v6534 = vsub.s32 32, %v6533
          %v6535 = vshll.u32 %v6526, %v6533
          %v6536 = vshrl.u32 %v6518, %v6534
          %v6537 = vor.u32 %v6535, %v6536
          %v6538 = vsub.s32 4294967266, %v6533
          %v6539 = vadd.s32 %v6538, 127
          %v6540 = vshll.u32 %v6539, 23
          %v6541 = vor.u32 4788187, %v6540
          %v6542 = vand.u32 2147483647, %v6541
          %v6544 = vcvt.s32.f32 %v6537
          %v6545 = vmul.f32 %v6544, %v6542
          %v6546 = vxor.u32 %v6545, 2147483648
          %v6547 = vsel %vm6426, %v6546, %v6545
          %v6548 = vsub.s32 4, %v6524
          %v6549 = vsel %vm6426, %v6548, %v6524
          %v6550 = vsel %vm6425, %v3699, %v6547
          %v6551 = vsel %vm6425, 0, %v6549
          %v6552 = vmul.f32 %v6550, %v6550
          %v6553 = vmul.f32 %v6552, -0.001358992
          %v6554 = vadd.f32 %v6553, 0.041655596
          %v6555 = vmul.f32 %v6552, %v6554
          %v6556 = vadd.f32 %v6555, -0.4999988
          %v6557 = vmul.f32 %v6552, %v6556
          %v6558 = vadd.f32 1.0, %v6557
          %v6559 = vmul.f32 %v6550, %v6550
          %v6560 = vmul.f32 %v6559, -0.00019511016
          %v6561 = vadd.f32 %v6560, 0.008332121
          %v6562 = vmul.f32 %v6559, %v6561
          %v6563 = vadd.f32 %v6562, -0.16666654
          %v6564 = vmul.f32 %v6559, %v6563
          %v6565 = vadd.f32 %v6564, 1.0
          %v6566 = vmul.f32 %v6565, %v6550
          %vm6567 = vweird.f32 %v3699
          %v6568 = vadd.s32 %v6551, 3
          %v6569 = vand.u32 %v6568, 3
          %vm6570 = vcmp.lt.s32.totalorder %v6569, 2
          %vm6571 = vcmp.eq.s32.totalorder %v6569, 0
          %v6572 = vxor.u32 %v6566, 2147483648
          %v6573 = vsel %vm6571, %v6558, %v6572
          %vm6574 = vcmp.eq.s32.totalorder %v6569, 2
          %v6575 = vxor.u32 %v6558, 2147483648
          %v6576 = vsel %vm6574, %v6575, %v6566
          %v6577 = vsel %vm6570, %v6573, %v6576
          %v6578 = vsel %vm6567, nan, %v6577
          %v6579 = vand.u32 2147483647, %v3740
          %vm6580 = vcmp.le.f32.partialorder %v6579, 0.7853982
          %vm6581 = vcmp.lt.s32.totalorder %v3740, 0
          %v6582 = vand.u32 %v3740, 2139095040
          %v6583 = vshrl.u32 %v6582, 23
          %v6584 = vsub.s32 %v6583, 127
          %v6585 = vand.u32 2147483647, %v3740
          %v6586 = vand.u32 %v6585, 8388607
          %v6587 = vor.u32 %v6586, 8388608
          %v6588 = vsub.s32 0, %v6587
          %v6589 = vadd.s32 %v6584, 1
          %vm6590 = vcmp.gt.s32.totalorder %v6589, 0
          %v6591 = vsel %vm6590, %v6589, 0
          %v6592 = vshrl.u32 %v6591, 5
          %v6593 = vand.u32 %v6591, 31
          %v6594 = vsub.s32 32, %v6593
          %v6595 = vshrl.u32 683565275, %v6594
          %v6596 = vshll.u32 683565275, %v6593
          %v6597 = vshrl.u32 2475754826, %v6594
          %v6598 = vor.u32 %v6596, %v6597
          %v6599 = vshll.u32 2475754826, %v6593
          %v6600 = vshrl.u32 2131351028, %v6594
          %v6601 = vor.u32 %v6599, %v6600
          %v6602 = vshll.u32 2131351028, %v6593
          %v6603 = vshrl.u32 2102212464, %v6594
          %v6604 = vor.u32 %v6602, %v6603
          %v6605 = vshll.u32 2102212464, %v6593
          %v6606 = vshrl.u32 920167782, %v6594
          %v6607 = vor.u32 %v6605, %v6606
          %v6608 = vshll.u32 920167782, %v6593
          %v6609 = vshrl.u32 1326507024, %v6594
          %v6610 = vor.u32 %v6608, %v6609
          %vm6611 = vcmp.lt.s32.totalorder %v6592, 1
          %vm6612 = vcmp.lt.s32.totalorder %v6592, 2
          %vm6613 = vcmp.lt.s32.totalorder %v6592, 3
          %vm6614 = vcmp.lt.s32.totalorder %v6592, 4
          %v6615 = vsel %vm6611, %v6595, %v6598
          %v6616 = vsel %vm6614, %v6604, 2102212464
          %v6617 = vsel %vm6613, %v6601, %v6616
          %v6618 = vsel %vm6612, %v6615, %v6617
          %v6619 = vsel %vm6611, %v6598, %v6601
          %v6620 = vsel %vm6614, %v6607, 920167782
          %v6621 = vsel %vm6613, %v6604, %v6620
          %v6622 = vsel %vm6612, %v6619, %v6621
          %v6623 = vsel %vm6611, %v6601, %v6604
          %v6624 = vsel %vm6614, %v6610, 1326507024
          %v6625 = vsel %vm6613, %v6607, %v6624
          %v6626 = vsel %vm6612, %v6623, %v6625
          %v6627 = vshll.u32 %v6587, 8
          %v6628 = vand.u32 %v6627, 65535
          %v6629 = vshrl.u32 %v6627, 16
          %v6630 = vand.u32 %v6626, 65535
          %v6631 = vshrl.u32 %v6626, 16
          %v6632 = vmul.u32 %v6628, %v6630
          %v6633 = vmul.u32 %v6628, %v6631
          %v6634 = vmul.u32 %v6629, %v6630
          %v6635 = vmul.u32 %v6629, %v6631
          %v6636 = vshll.u32 %v6633, 16
          %v6637 = vshrl.u32 %v6633, 16
          %v6638 = vshll.u32 %v6634, 16
          %v6639 = vshrl.u32 %v6634, 16
          %vm6640 = vc.u32 %v6632, %v6636
          %v6641 = vsel %vm6640, 1, 0
          %v6642 = vadd.s32 %v6632, %v6636
          %v6643 = vadd.s32 %v6635, %v6641
          %vm6644 = vc.u32 %v6642, %v6638
          %v6645 = vsel %vm6644, 1, 0
          %v6646 = vadd.s32 %v6642, %v6638
          %v6647 = vadd.s32 %v6643, %v6645
          %v6648 = vadd.s32 %v6647, %v6637
          %v6649 = vadd.s32 %v6648, %v6639
          %v6650 = vand.u32 %v6627, 65535
          %v6651 = vshrl.u32 %v6627, 16
          %v6652 = vand.u32 %v6622, 65535
          %v6653 = vshrl.u32 %v6622, 16
          %v6654 = vmul.u32 %v6650, %v6652
          %v6655 = vmul.u32 %v6650, %v6653
          %v6656 = vmul.u32 %v6651, %v6652
          %v6657 = vmul.u32 %v6651, %v6653
          %v6658 = vshll.u32 %v6655, 16
          %v6659 = vshrl.u32 %v6655, 16
          %v6660 = vshll.u32 %v6656, 16
          %v6661 = vshrl.u32 %v6656, 16
          %vm6662 = vc.u32 %v6654, %v6658
          %v6663 = vsel %vm6662, 1, 0
          %v6664 = vadd.s32 %v6654, %v6658
          %v6665 = vadd.s32 %v6657, %v6663
          %vm6666 = vc.u32 %v6664, %v6660
          %v6667 = vsel %vm6666, 1, 0
          %v6668 = vadd.s32 %v6664, %v6660
          %v6669 = vadd.s32 %v6665, %v6667
          %v6670 = vadd.s32 %v6669, %v6659
          %v6671 = vadd.s32 %v6670, %v6661
          %v6672 = vmul.u32 %v6627, %v6618
          %v6673 = vadd.s32 %v6649, %v6668
          %vm6674 = vc.u32 %v6649, %v6668
          %v6675 = vadd.s32 %v6671, 1
          %v6676 = vsel %vm6674, %v6675, %v6671
          %v6677 = vadd.s32 %v6672, %v6676
          %v6678 = vadd.s32 %v6677, 536870912
          %v6679 = vshrl.u32 %v6678, 30
          %v6680 = vshll.u32 %v6679, 30
          %v6681 = vsub.s32 %v6677, %v6680
          %vm6682 = vcmp.lt.s32.totalorder %v6681, 0
          %v6683 = vsub.s32 0, %v6681
          %v6684 = vsel %vm6682, %v6683, %v6681
          %v6685 = vclz %v6684
          %v6686 = vsub.s32 %v6685, 2
          %vm6687 = vcmp.gt.s32.totalorder 0, %v6686
          %v6688 = vsel %vm6687, 0, %v6686
          %v6689 = vsub.s32 32, %v6688
          %v6690 = vshll.u32 %v6681, %v6688
          %v6691 = vshrl.u32 %v6673, %v6689
          %v6692 = vor.u32 %v6690, %v6691
          %v6693 = vsub.s32 4294967266, %v6688
          %v6694 = vadd.s32 %v6693, 127
          %v6695 = vshll.u32 %v6694, 23
          %v6696 = vor.u32 4788187, %v6695
          %v6697 = vand.u32 2147483647, %v6696
          %v6699 = vcvt.s32.f32 %v6692
          %v6700 = vmul.f32 %v6699, %v6697
          %v6701 = vxor.u32 %v6700, 2147483648
          %v6702 = vsel %vm6581, %v6701, %v6700
          %v6703 = vsub.s32 4, %v6679
          %v6704 = vsel %vm6581, %v6703, %v6679
          %v6705 = vsel %vm6580, %v3740, %v6702
          %v6706 = vsel %vm6580, 0, %v6704
          %v6707 = vmul.f32 %v6705, %v6705
          %v6708 = vmul.f32 %v6707, -0.001358992
          %v6709 = vadd.f32 %v6708, 0.041655596
          %v6710 = vmul.f32 %v6707, %v6709
          %v6711 = vadd.f32 %v6710, -0.4999988
          %v6712 = vmul.f32 %v6707, %v6711
          %v6713 = vadd.f32 1.0, %v6712
          %v6714 = vmul.f32 %v6705, %v6705
          %v6715 = vmul.f32 %v6714, -0.00019511016
          %v6716 = vadd.f32 %v6715, 0.008332121
          %v6717 = vmul.f32 %v6714, %v6716
          %v6718 = vadd.f32 %v6717, -0.16666654
          %v6719 = vmul.f32 %v6714, %v6718
          %v6720 = vadd.f32 %v6719, 1.0
          %v6721 = vmul.f32 %v6720, %v6705
          %vm6722 = vweird.f32 %v3740
          %v6723 = vadd.s32 %v6706, 3
          %v6724 = vand.u32 %v6723, 3
          %vm6725 = vcmp.lt.s32.totalorder %v6724, 2
          %vm6726 = vcmp.eq.s32.totalorder %v6724, 0
          %v6727 = vxor.u32 %v6721, 2147483648
          %v6728 = vsel %vm6726, %v6713, %v6727
          %vm6729 = vcmp.eq.s32.totalorder %v6724, 2
          %v6730 = vxor.u32 %v6713, 2147483648
          %v6731 = vsel %vm6729, %v6730, %v6721
          %v6732 = vsel %vm6725, %v6728, %v6731
          %v6733 = vsel %vm6722, nan, %v6732
          %v6734 = vmul.f32 %v3497, %v4408
          %v6735 = vmul.f32 %v3497, %v4563
          %v6736 = vmul.f32 %v3497, %v4718
          %v6737 = vmul.f32 %v3497, %v4873
          %v6738 = vmul.f32 %v3497, %v5028
          %v6739 = vmul.f32 %v3497, %v5183
          %v6740 = vmul.f32 %v3497, %v5338
          %v6741 = vmul.f32 %v3497, %v5493
          %v6742 = vmul.f32 %v3497, %v5648
          %v6743 = vmul.f32 %v3497, %v5803
          %v6744 = vmul.f32 %v3497, %v5958
          %v6745 = vmul.f32 %v3497, %v6113
          %v6746 = vmul.f32 %v3497, %v6268
          %v6747 = vmul.f32 %v3497, %v6423
          %v6748 = vmul.f32 %v3497, %v6578
          %v6749 = vmul.f32 %v3497, %v6733
          %v6750 = vadd.f32 %v4238, %v6734
          %v6751 = vadd.f32 %v4239, %v6735
          %v6752 = vadd.f32 %v4240, %v6736
          %v6753 = vadd.f32 %v4241, %v6737
          %v6754 = vadd.f32 %v4242, %v6738
          %v6755 = vadd.f32 %v4243, %v6739
          %v6756 = vadd.f32 %v4244, %v6740
          %v6757 = vadd.f32 %v4245, %v6741
          %v6758 = vadd.f32 %v4246, %v6742
          %v6759 = vadd.f32 %v4247, %v6743
          %v6760 = vadd.f32 %v4248, %v6744
          %v6761 = vadd.f32 %v4249, %v6745
          %v6762 = vadd.f32 %v4250, %v6746
          %v6763 = vadd.f32 %v4251, %v6747
          %v6764 = vadd.f32 %v4252, %v6748
          %v6765 = vadd.f32 %v4253, %v6749
          %v6766 = vmul.f32 %v3678, %v3678
          %v6767 = vmul.f32 %v3719, %v3719
          %v6768 = vmul.f32 %v3681, %v3681
          %v6769 = vmul.f32 %v3722, %v3722
          %v6770 = vmul.f32 %v3684, %v3684
          %v6771 = vmul.f32 %v3725, %v3725
          %v6772 = vmul.f32 %v3687, %v3687
          %v6773 = vmul.f32 %v3728, %v3728
          %v6774 = vmul.f32 %v3690, %v3690
          %v6775 = vmul.f32 %v3731, %v3731
          %v6776 = vmul.f32 %v3693, %v3693
          %v6777 = vmul.f32 %v3734, %v3734
          %v6778 = vmul.f32 %v3696, %v3696
          %v6779 = vmul.f32 %v3737, %v3737
          %v6780 = vmul.f32 %v3699, %v3699
          %v6781 = vmul.f32 %v3740, %v3740
          %v6782 = vmul.f32 %v3546, %v6766
          %v6783 = vmul.f32 %v3546, %v6767
          %v6784 = vmul.f32 %v3546, %v6768
          %v6785 = vmul.f32 %v3546, %v6769
          %v6786 = vmul.f32 %v3546, %v6770
          %v6787 = vmul.f32 %v3546, %v6771
          %v6788 = vmul.f32 %v3546, %v6772
          %v6789 = vmul.f32 %v3546, %v6773
          %v6790 = vmul.f32 %v3546, %v6774
          %v6791 = vmul.f32 %v3546, %v6775
          %v6792 = vmul.f32 %v3546, %v6776
          %v6793 = vmul.f32 %v3546, %v6777
          %v6794 = vmul.f32 %v3546, %v6778
          %v6795 = vmul.f32 %v3546, %v6779
          %v6796 = vmul.f32 %v3546, %v6780
          %v6797 = vmul.f32 %v3546, %v6781
          %v6798 = vadd.f32 %v6750, %v6782
          %v6799 = vadd.f32 %v6751, %v6783
          %v6800 = vadd.f32 %v6752, %v6784
          %v6801 = vadd.f32 %v6753, %v6785
          %v6802 = vadd.f32 %v6754, %v6786
          %v6803 = vadd.f32 %v6755, %v6787
          %v6804 = vadd.f32 %v6756, %v6788
          %v6805 = vadd.f32 %v6757, %v6789
          %v6806 = vadd.f32 %v6758, %v6790
          %v6807 = vadd.f32 %v6759, %v6791
          %v6808 = vadd.f32 %v6760, %v6792
          %v6809 = vadd.f32 %v6761, %v6793
          %v6810 = vadd.f32 %v6762, %v6794
          %v6811 = vadd.f32 %v6763, %v6795
          %v6812 = vadd.f32 %v6764, %v6796
          %v6813 = vadd.f32 %v6765, %v6797
          %v6814 = vld [vmem:[%s6] sm:$0x7]
          %v6815 = vld [vmem:[%s7] sm:$0x7]
          %6817 = vset.pattern.permute.xlu0 0
          %6818 = vperm.xlu0 %6817, %v6815
          %v6819 = vpop.permute.xlu0 %6818
          %v6822 = vsel %vm3635, %v6814, 0
          %6824 = vmatpush.msra.mxu0 0.0
          %6825 = vmatpush.msra.mxu0 0.0
          %6826 = vmatpush.msra.mxu0 0.0
          %6827 = vmatpush.msra.mxu0 0.0
          %6828 = vmatpush.msra.mxu0 0.0
          %6829 = vmatpush.msra.mxu0 0.0
          %6830 = vmatpush.msra.mxu0 0.0
          %6831 = vmatpush.msra.mxu0 0.0
          %6832 = vmatpush.msra.mxu0 %v6812
          %6833 = vmatpush.msra.mxu0 %v6810
          %6834 = vmatpush.msra.mxu0 %v6808
          %6835 = vmatpush.msra.mxu0 %v6806
          %6836 = vmatpush.msra.mxu0 %v6804
          %6837 = vmatpush.msra.mxu0 %v6802
          %6838 = vmatpush.msra.mxu0 %v6800
          %6839 = vmatpush.msra.mxu0 %v6798
          %6840 = vmatmul.f32.gmra.mxu0 %v6822
          %v6841 = vpop.f32.mrf.mxu0
          %v6842 = vadd.f32 %v6819, %v6841
          %6843 = vdwg.mxu0
          %6844 = vmatpush.msra.mxu0 0.0
          %6845 = vmatpush.msra.mxu0 0.0
          %6846 = vmatpush.msra.mxu0 0.0
          %6847 = vmatpush.msra.mxu0 0.0
          %6848 = vmatpush.msra.mxu0 0.0
          %6849 = vmatpush.msra.mxu0 0.0
          %6850 = vmatpush.msra.mxu0 0.0
          %6851 = vmatpush.msra.mxu0 0.0
          %6852 = vmatpush.msra.mxu0 %v6813
          %6853 = vmatpush.msra.mxu0 %v6811
          %6854 = vmatpush.msra.mxu0 %v6809
          %6855 = vmatpush.msra.mxu0 %v6807
          %6856 = vmatpush.msra.mxu0 %v6805
          %6857 = vmatpush.msra.mxu0 %v6803
          %6858 = vmatpush.msra.mxu0 %v6801
          %6859 = vmatpush.msra.mxu0 %v6799
          %6860 = vmatmul.f32.gmra.mxu0 %v6822
          %v6861 = vpop.f32.mrf.mxu0
          %v6862 = vadd.f32 %v6819, %v6861
          %6863 = vdwg.mxu0
          %vm6864 = vcmp.ge.f32.partialorder %v6842, 0.0
          %vm6865 = vcmp.ge.f32.partialorder %v6862, 0.0
          %v6866 = vand.u32 2147483647, %v6842
          %v6867 = vand.u32 2147483647, %v6862
          %v6868 = vsub.f32 0.0, %v6866
          %v6869 = vsub.f32 0.0, %v6867
          %v6870 = vmul.f32 %v6868, 1.442695
          %v6871 = vpow.pop %v6870
          %v6872 = vmul.f32 %v6869, 1.442695
          %v6873 = vpow.pop %v6872
          %v6874 = vadd.f32 %v6871, 1.0
          %v6875 = vadd.f32 %v6873, 1.0
          %v6876 = vrcp.pop %v6874
          %v6877 = vrcp.pop %v6875
          %v6878 = vmul.f32 %v6874, %v6876
          %v6879 = vmul.f32 %v6875, %v6877
          %v6880 = vsub.f32 2.0, %v6878
          %v6881 = vsub.f32 2.0, %v6879
          %v6882 = vmul.f32 %v6876, %v6880
          %v6883 = vmul.f32 %v6877, %v6881
          %v6884 = vsub.f32 1.0, %v6882
          %v6885 = vsub.f32 1.0, %v6883
          %v6886 = vsel %vm6864, %v6882, %v6884
          %v6887 = vsel %vm6865, %v6883, %v6885
          %v6888 = vmul.f32 %v6842, %v6886
          %v6889 = vmul.f32 %v6862, %v6887
          %v6890 = vmul.f32 %v710, %v6888
          %v6891 = vmul.f32 %v710, %v6889
          %v6892 = vmax.f32 %v6842, 0.0
          %v6893 = vmax.f32 %v6862, 0.0
          %v6894 = vlog2.pop %v6874
          %v6895 = vmul.f32 %v6894, 0.6931472
          %v6896 = vlog2.pop %v6875
          %v6897 = vmul.f32 %v6896, 0.6931472
          %v6898 = vadd.f32 %v6892, %v6895
          %v6899 = vadd.f32 %v6893, %v6897
          %v6900 = vmul.f32 %v791, %v6898
          %v6901 = vmul.f32 %v791, %v6899
          %v6902 = vadd.f32 %v6890, %v6900
          %v6903 = vadd.f32 %v6891, %v6901
          %v6904 = vmul.f32 %v6871, %v6871
          %v6905 = vmul.f32 %v6873, %v6873
          %v6906 = vsub.f32 1.0, %v6904
          %v6907 = vsub.f32 1.0, %v6905
          %v6908 = vadd.f32 %v6904, 1.0
          %v6909 = vadd.f32 %v6905, 1.0
          %v6910 = vrcp.pop %v6908
          %v6911 = vrcp.pop %v6909
          %v6912 = vmul.f32 %v6908, %v6910
          %v6913 = vmul.f32 %v6909, %v6911
          %v6914 = vsub.f32 2.0, %v6912
          %v6915 = vsub.f32 2.0, %v6913
          %v6916 = vmul.f32 %v6910, %v6914
          %v6917 = vmul.f32 %v6911, %v6915
          %v6918 = vmul.f32 %v6906, %v6916
          %v6919 = vmul.f32 %v6907, %v6917
          %v6920 = vsub.f32 0.0, %v6918
          %v6921 = vsub.f32 0.0, %v6919
          %v6922 = vsel %vm6864, %v6918, %v6920
          %v6923 = vsel %vm6865, %v6919, %v6921
          %v6924 = vmul.f32 %v984, %v6922
          %v6925 = vmul.f32 %v984, %v6923
          %v6926 = vadd.f32 %v6902, %v6924
          %v6927 = vadd.f32 %v6903, %v6925
          %v6928 = vand.u32 2147483647, %v6842
          %vm6929 = vcmp.le.f32.partialorder %v6928, 0.7853982
          %vm6930 = vcmp.lt.s32.totalorder %v6842, 0
          %v6931 = vand.u32 %v6842, 2139095040
          %v6932 = vshrl.u32 %v6931, 23
          %v6933 = vsub.s32 %v6932, 127
          %v6934 = vand.u32 2147483647, %v6842
          %v6935 = vand.u32 %v6934, 8388607
          %v6936 = vor.u32 %v6935, 8388608
          %v6937 = vsub.s32 0, %v6936
          %v6938 = vadd.s32 %v6933, 1
          %vm6939 = vcmp.gt.s32.totalorder %v6938, 0
          %v6940 = vsel %vm6939, %v6938, 0
          %v6941 = vshrl.u32 %v6940, 5
          %v6942 = vand.u32 %v6940, 31
          %v6943 = vsub.s32 32, %v6942
          %v6944 = vshrl.u32 683565275, %v6943
          %v6945 = vshll.u32 683565275, %v6942
          %v6946 = vshrl.u32 2475754826, %v6943
          %v6947 = vor.u32 %v6945, %v6946
          %v6948 = vshll.u32 2475754826, %v6942
          %v6949 = vshrl.u32 2131351028, %v6943
          %v6950 = vor.u32 %v6948, %v6949
          %v6951 = vshll.u32 2131351028, %v6942
          %v6952 = vshrl.u32 2102212464, %v6943
          %v6953 = vor.u32 %v6951, %v6952
          %v6954 = vshll.u32 2102212464, %v6942
          %v6955 = vshrl.u32 920167782, %v6943
          %v6956 = vor.u32 %v6954, %v6955
          %v6957 = vshll.u32 920167782, %v6942
          %v6958 = vshrl.u32 1326507024, %v6943
          %v6959 = vor.u32 %v6957, %v6958
          %vm6960 = vcmp.lt.s32.totalorder %v6941, 1
          %vm6961 = vcmp.lt.s32.totalorder %v6941, 2
          %vm6962 = vcmp.lt.s32.totalorder %v6941, 3
          %vm6963 = vcmp.lt.s32.totalorder %v6941, 4
          %v6964 = vsel %vm6960, %v6944, %v6947
          %v6965 = vsel %vm6963, %v6953, 2102212464
          %v6966 = vsel %vm6962, %v6950, %v6965
          %v6967 = vsel %vm6961, %v6964, %v6966
          %v6968 = vsel %vm6960, %v6947, %v6950
          %v6969 = vsel %vm6963, %v6956, 920167782
          %v6970 = vsel %vm6962, %v6953, %v6969
          %v6971 = vsel %vm6961, %v6968, %v6970
          %v6972 = vsel %vm6960, %v6950, %v6953
          %v6973 = vsel %vm6963, %v6959, 1326507024
          %v6974 = vsel %vm6962, %v6956, %v6973
          %v6975 = vsel %vm6961, %v6972, %v6974
          %v6976 = vshll.u32 %v6936, 8
          %v6977 = vand.u32 %v6976, 65535
          %v6978 = vshrl.u32 %v6976, 16
          %v6979 = vand.u32 %v6975, 65535
          %v6980 = vshrl.u32 %v6975, 16
          %v6981 = vmul.u32 %v6977, %v6979
          %v6982 = vmul.u32 %v6977, %v6980
          %v6983 = vmul.u32 %v6978, %v6979
          %v6984 = vmul.u32 %v6978, %v6980
          %v6985 = vshll.u32 %v6982, 16
          %v6986 = vshrl.u32 %v6982, 16
          %v6987 = vshll.u32 %v6983, 16
          %v6988 = vshrl.u32 %v6983, 16
          %vm6989 = vc.u32 %v6981, %v6985
          %v6990 = vsel %vm6989, 1, 0
          %v6991 = vadd.s32 %v6981, %v6985
          %v6992 = vadd.s32 %v6984, %v6990
          %vm6993 = vc.u32 %v6991, %v6987
          %v6994 = vsel %vm6993, 1, 0
          %v6995 = vadd.s32 %v6991, %v6987
          %v6996 = vadd.s32 %v6992, %v6994
          %v6997 = vadd.s32 %v6996, %v6986
          %v6998 = vadd.s32 %v6997, %v6988
          %v6999 = vand.u32 %v6976, 65535
          %v7000 = vshrl.u32 %v6976, 16
          %v7001 = vand.u32 %v6971, 65535
          %v7002 = vshrl.u32 %v6971, 16
          %v7003 = vmul.u32 %v6999, %v7001
          %v7004 = vmul.u32 %v6999, %v7002
          %v7005 = vmul.u32 %v7000, %v7001
          %v7006 = vmul.u32 %v7000, %v7002
          %v7007 = vshll.u32 %v7004, 16
          %v7008 = vshrl.u32 %v7004, 16
          %v7009 = vshll.u32 %v7005, 16
          %v7010 = vshrl.u32 %v7005, 16
          %vm7011 = vc.u32 %v7003, %v7007
          %v7012 = vsel %vm7011, 1, 0
          %v7013 = vadd.s32 %v7003, %v7007
          %v7014 = vadd.s32 %v7006, %v7012
          %vm7015 = vc.u32 %v7013, %v7009
          %v7016 = vsel %vm7015, 1, 0
          %v7017 = vadd.s32 %v7013, %v7009
          %v7018 = vadd.s32 %v7014, %v7016
          %v7019 = vadd.s32 %v7018, %v7008
          %v7020 = vadd.s32 %v7019, %v7010
          %v7021 = vmul.u32 %v6976, %v6967
          %v7022 = vadd.s32 %v6998, %v7017
          %vm7023 = vc.u32 %v6998, %v7017
          %v7024 = vadd.s32 %v7020, 1
          %v7025 = vsel %vm7023, %v7024, %v7020
          %v7026 = vadd.s32 %v7021, %v7025
          %v7027 = vadd.s32 %v7026, 536870912
          %v7028 = vshrl.u32 %v7027, 30
          %v7029 = vshll.u32 %v7028, 30
          %v7030 = vsub.s32 %v7026, %v7029
          %vm7031 = vcmp.lt.s32.totalorder %v7030, 0
          %v7032 = vsub.s32 0, %v7030
          %v7033 = vsel %vm7031, %v7032, %v7030
          %v7034 = vclz %v7033
          %v7035 = vsub.s32 %v7034, 2
          %vm7036 = vcmp.gt.s32.totalorder 0, %v7035
          %v7037 = vsel %vm7036, 0, %v7035
          %v7038 = vsub.s32 32, %v7037
          %v7039 = vshll.u32 %v7030, %v7037
          %v7040 = vshrl.u32 %v7022, %v7038
          %v7041 = vor.u32 %v7039, %v7040
          %v7042 = vsub.s32 4294967266, %v7037
          %v7043 = vadd.s32 %v7042, 127
          %v7044 = vshll.u32 %v7043, 23
          %v7045 = vor.u32 4788187, %v7044
          %v7046 = vand.u32 2147483647, %v7045
          %v7048 = vcvt.s32.f32 %v7041
          %v7049 = vmul.f32 %v7048, %v7046
          %v7050 = vxor.u32 %v7049, 2147483648
          %v7051 = vsel %vm6930, %v7050, %v7049
          %v7052 = vsub.s32 4, %v7028
          %v7053 = vsel %vm6930, %v7052, %v7028
          %v7054 = vsel %vm6929, %v6842, %v7051
          %v7055 = vsel %vm6929, 0, %v7053
          %v7056 = vmul.f32 %v7054, %v7054
          %v7057 = vmul.f32 %v7056, -0.001358992
          %v7058 = vadd.f32 %v7057, 0.041655596
          %v7059 = vmul.f32 %v7056, %v7058
          %v7060 = vadd.f32 %v7059, -0.4999988
          %v7061 = vmul.f32 %v7056, %v7060
          %v7062 = vadd.f32 1.0, %v7061
          %v7063 = vmul.f32 %v7054, %v7054
          %v7064 = vmul.f32 %v7063, -0.00019511016
          %v7065 = vadd.f32 %v7064, 0.008332121
          %v7066 = vmul.f32 %v7063, %v7065
          %v7067 = vadd.f32 %v7066, -0.16666654
          %v7068 = vmul.f32 %v7063, %v7067
          %v7069 = vadd.f32 %v7068, 1.0
          %v7070 = vmul.f32 %v7069, %v7054
          %vm7071 = vweird.f32 %v6842
          %v7072 = vadd.s32 %v7055, 3
          %v7073 = vand.u32 %v7072, 3
          %vm7074 = vcmp.lt.s32.totalorder %v7073, 2
          %vm7075 = vcmp.eq.s32.totalorder %v7073, 0
          %v7076 = vxor.u32 %v7070, 2147483648
          %v7077 = vsel %vm7075, %v7062, %v7076
          %vm7078 = vcmp.eq.s32.totalorder %v7073, 2
          %v7079 = vxor.u32 %v7062, 2147483648
          %v7080 = vsel %vm7078, %v7079, %v7070
          %v7081 = vsel %vm7074, %v7077, %v7080
          %v7082 = vsel %vm7071, nan, %v7081
          %v7083 = vand.u32 2147483647, %v6862
          %vm7084 = vcmp.le.f32.partialorder %v7083, 0.7853982
          %vm7085 = vcmp.lt.s32.totalorder %v6862, 0
          %v7086 = vand.u32 %v6862, 2139095040
          %v7087 = vshrl.u32 %v7086, 23
          %v7088 = vsub.s32 %v7087, 127
          %v7089 = vand.u32 2147483647, %v6862
          %v7090 = vand.u32 %v7089, 8388607
          %v7091 = vor.u32 %v7090, 8388608
          %v7092 = vsub.s32 0, %v7091
          %v7093 = vadd.s32 %v7088, 1
          %vm7094 = vcmp.gt.s32.totalorder %v7093, 0
          %v7095 = vsel %vm7094, %v7093, 0
          %v7096 = vshrl.u32 %v7095, 5
          %v7097 = vand.u32 %v7095, 31
          %v7098 = vsub.s32 32, %v7097
          %v7099 = vshrl.u32 683565275, %v7098
          %v7100 = vshll.u32 683565275, %v7097
          %v7101 = vshrl.u32 2475754826, %v7098
          %v7102 = vor.u32 %v7100, %v7101
          %v7103 = vshll.u32 2475754826, %v7097
          %v7104 = vshrl.u32 2131351028, %v7098
          %v7105 = vor.u32 %v7103, %v7104
          %v7106 = vshll.u32 2131351028, %v7097
          %v7107 = vshrl.u32 2102212464, %v7098
          %v7108 = vor.u32 %v7106, %v7107
          %v7109 = vshll.u32 2102212464, %v7097
          %v7110 = vshrl.u32 920167782, %v7098
          %v7111 = vor.u32 %v7109, %v7110
          %v7112 = vshll.u32 920167782, %v7097
          %v7113 = vshrl.u32 1326507024, %v7098
          %v7114 = vor.u32 %v7112, %v7113
          %vm7115 = vcmp.lt.s32.totalorder %v7096, 1
          %vm7116 = vcmp.lt.s32.totalorder %v7096, 2
          %vm7117 = vcmp.lt.s32.totalorder %v7096, 3
          %vm7118 = vcmp.lt.s32.totalorder %v7096, 4
          %v7119 = vsel %vm7115, %v7099, %v7102
          %v7120 = vsel %vm7118, %v7108, 2102212464
          %v7121 = vsel %vm7117, %v7105, %v7120
          %v7122 = vsel %vm7116, %v7119, %v7121
          %v7123 = vsel %vm7115, %v7102, %v7105
          %v7124 = vsel %vm7118, %v7111, 920167782
          %v7125 = vsel %vm7117, %v7108, %v7124
          %v7126 = vsel %vm7116, %v7123, %v7125
          %v7127 = vsel %vm7115, %v7105, %v7108
          %v7128 = vsel %vm7118, %v7114, 1326507024
          %v7129 = vsel %vm7117, %v7111, %v7128
          %v7130 = vsel %vm7116, %v7127, %v7129
          %v7131 = vshll.u32 %v7091, 8
          %v7132 = vand.u32 %v7131, 65535
          %v7133 = vshrl.u32 %v7131, 16
          %v7134 = vand.u32 %v7130, 65535
          %v7135 = vshrl.u32 %v7130, 16
          %v7136 = vmul.u32 %v7132, %v7134
          %v7137 = vmul.u32 %v7132, %v7135
          %v7138 = vmul.u32 %v7133, %v7134
          %v7139 = vmul.u32 %v7133, %v7135
          %v7140 = vshll.u32 %v7137, 16
          %v7141 = vshrl.u32 %v7137, 16
          %v7142 = vshll.u32 %v7138, 16
          %v7143 = vshrl.u32 %v7138, 16
          %vm7144 = vc.u32 %v7136, %v7140
          %v7145 = vsel %vm7144, 1, 0
          %v7146 = vadd.s32 %v7136, %v7140
          %v7147 = vadd.s32 %v7139, %v7145
          %vm7148 = vc.u32 %v7146, %v7142
          %v7149 = vsel %vm7148, 1, 0
          %v7150 = vadd.s32 %v7146, %v7142
          %v7151 = vadd.s32 %v7147, %v7149
          %v7152 = vadd.s32 %v7151, %v7141
          %v7153 = vadd.s32 %v7152, %v7143
          %v7154 = vand.u32 %v7131, 65535
          %v7155 = vshrl.u32 %v7131, 16
          %v7156 = vand.u32 %v7126, 65535
          %v7157 = vshrl.u32 %v7126, 16
          %v7158 = vmul.u32 %v7154, %v7156
          %v7159 = vmul.u32 %v7154, %v7157
          %v7160 = vmul.u32 %v7155, %v7156
          %v7161 = vmul.u32 %v7155, %v7157
          %v7162 = vshll.u32 %v7159, 16
          %v7163 = vshrl.u32 %v7159, 16
          %v7164 = vshll.u32 %v7160, 16
          %v7165 = vshrl.u32 %v7160, 16
          %vm7166 = vc.u32 %v7158, %v7162
          %v7167 = vsel %vm7166, 1, 0
          %v7168 = vadd.s32 %v7158, %v7162
          %v7169 = vadd.s32 %v7161, %v7167
          %vm7170 = vc.u32 %v7168, %v7164
          %v7171 = vsel %vm7170, 1, 0
          %v7172 = vadd.s32 %v7168, %v7164
          %v7173 = vadd.s32 %v7169, %v7171
          %v7174 = vadd.s32 %v7173, %v7163
          %v7175 = vadd.s32 %v7174, %v7165
          %v7176 = vmul.u32 %v7131, %v7122
          %v7177 = vadd.s32 %v7153, %v7172
          %vm7178 = vc.u32 %v7153, %v7172
          %v7179 = vadd.s32 %v7175, 1
          %v7180 = vsel %vm7178, %v7179, %v7175
          %v7181 = vadd.s32 %v7176, %v7180
          %v7182 = vadd.s32 %v7181, 536870912
          %v7183 = vshrl.u32 %v7182, 30
          %v7184 = vshll.u32 %v7183, 30
          %v7185 = vsub.s32 %v7181, %v7184
          %vm7186 = vcmp.lt.s32.totalorder %v7185, 0
          %v7187 = vsub.s32 0, %v7185
          %v7188 = vsel %vm7186, %v7187, %v7185
          %v7189 = vclz %v7188
          %v7190 = vsub.s32 %v7189, 2
          %vm7191 = vcmp.gt.s32.totalorder 0, %v7190
          %v7192 = vsel %vm7191, 0, %v7190
          %v7193 = vsub.s32 32, %v7192
          %v7194 = vshll.u32 %v7185, %v7192
          %v7195 = vshrl.u32 %v7177, %v7193
          %v7196 = vor.u32 %v7194, %v7195
          %v7197 = vsub.s32 4294967266, %v7192
          %v7198 = vadd.s32 %v7197, 127
          %v7199 = vshll.u32 %v7198, 23
          %v7200 = vor.u32 4788187, %v7199
          %v7201 = vand.u32 2147483647, %v7200
          %v7203 = vcvt.s32.f32 %v7196
          %v7204 = vmul.f32 %v7203, %v7201
          %v7205 = vxor.u32 %v7204, 2147483648
          %v7206 = vsel %vm7085, %v7205, %v7204
          %v7207 = vsub.s32 4, %v7183
          %v7208 = vsel %vm7085, %v7207, %v7183
          %v7209 = vsel %vm7084, %v6862, %v7206
          %v7210 = vsel %vm7084, 0, %v7208
          %v7211 = vmul.f32 %v7209, %v7209
          %v7212 = vmul.f32 %v7211, -0.001358992
          %v7213 = vadd.f32 %v7212, 0.041655596
          %v7214 = vmul.f32 %v7211, %v7213
          %v7215 = vadd.f32 %v7214, -0.4999988
          %v7216 = vmul.f32 %v7211, %v7215
          %v7217 = vadd.f32 1.0, %v7216
          %v7218 = vmul.f32 %v7209, %v7209
          %v7219 = vmul.f32 %v7218, -0.00019511016
          %v7220 = vadd.f32 %v7219, 0.008332121
          %v7221 = vmul.f32 %v7218, %v7220
          %v7222 = vadd.f32 %v7221, -0.16666654
          %v7223 = vmul.f32 %v7218, %v7222
          %v7224 = vadd.f32 %v7223, 1.0
          %v7225 = vmul.f32 %v7224, %v7209
          %vm7226 = vweird.f32 %v6862
          %v7227 = vadd.s32 %v7210, 3
          %v7228 = vand.u32 %v7227, 3
          %vm7229 = vcmp.lt.s32.totalorder %v7228, 2
          %vm7230 = vcmp.eq.s32.totalorder %v7228, 0
          %v7231 = vxor.u32 %v7225, 2147483648
          %v7232 = vsel %vm7230, %v7217, %v7231
          %vm7233 = vcmp.eq.s32.totalorder %v7228, 2
          %v7234 = vxor.u32 %v7217, 2147483648
          %v7235 = vsel %vm7233, %v7234, %v7225
          %v7236 = vsel %vm7229, %v7232, %v7235
          %v7237 = vsel %vm7226, nan, %v7236
          %v7238 = vmul.f32 %v3497, %v7082
          %v7239 = vmul.f32 %v3497, %v7237
          %v7240 = vadd.f32 %v6926, %v7238
          %v7241 = vadd.f32 %v6927, %v7239
          %v7242 = vmul.f32 %v6842, %v6842
          %v7243 = vmul.f32 %v6862, %v6862
          %v7244 = vmul.f32 %v3546, %v7242
          %v7245 = vmul.f32 %v3546, %v7243
          %v7246 = vadd.f32 %v7240, %v7244
          %v7247 = vadd.f32 %v7241, %v7245
          %v7250 = vrot.slane %v7247, 4
          %vm7251 = vcmask 1043456
          %v7252 = vsel %vm7251, %v7246, %v7250
          %s7254 = smul.addr %s333, 4
          %s7255 = scalar_lea.vmem %s313, %s7254 [#allocation5]
          %7256 = vst [vmem:[%s7255] sm:$0x77] %v7252
        $region61: #{navier_stokes_forward.1} parent=51 // loop_footer
          %s331 = sadd.s32 1, %s327
        $region62: #{navier_stokes_forward.1} parent=51 // loop_footer_branch
          %326 = sbr.rel target = $region58
        $region63: #{navier_stokes_forward.1} parent=51 // loop_exit
          _
        %s7257 = sand.u32 %s204, 1
        %s7258 = scalar_lea.sflag [#allocation3], %s7257
        %s7259 = sand.u32 %s204, 1
        %s7260 = smul.addr %s7259, 16
        %s7261 = scalar_lea.vmem [#allocation5], %s7260
        // Predicated region
        $region64: #{navier_stokes_forward.1} parent=51 // pred_check
          %p7262 = pneg %p214
        $region65: #{navier_stokes_forward.1} parent=51 // pred_check_branch
          %7264 = sbr.rel (%p7262) target = $region67
        $region66: #{navier_stokes_forward.1} parent=51 // pred_region
          %s7265 = smul.u32 4, %s23
          %7267 = vsyncadd %s7258, 0
          %s7268 = smul.addr %s7265, 4
          %s7269 = scalar_lea.hbm %s8, %s7268
          %s7271 = sshll.u32 %s7261, 4
          %s7272 = int_to_ptr.vmem [resolvable:$true] %s7271
          %s7273 = sshll.u32 %s7269, 4
          %s7274 = int_to_ptr.hbm [resolvable:$true] %s7273
          %7276 = dma.vmem_to_hbm [thread:$0]  %s7272, 256, %s7274, %s7258
        $region67: #{navier_stokes_forward.1} parent=51 // pred_fallthru
          _
      $region52: #{navier_stokes_forward.1} parent=5 // pred_fallthru
        _
      %p7277 = scmp.le.s32.totalorder 2, %s18
      // Predicated region
      $region68: #{navier_stokes_forward.1} parent=5 // pred_check
        %p7278 = pneg %p7277
      $region69: #{navier_stokes_forward.1} parent=5 // pred_check_branch
        %7280 = sbr.rel (%p7278) target = $region71
      $region70: #{navier_stokes_forward.1} parent=5 // pred_region
        %s7281 = ssub.s32 %s18, 2
        // Predicated region
        $region72: #{navier_stokes_forward.1} parent=70 // pred_check
          %p7282 = pneg %p220
        $region73: #{navier_stokes_forward.1} parent=70 // pred_check_branch
          %7284 = sbr.rel (%p7282) target = $region75
        $region74: #{navier_stokes_forward.1} parent=70 // pred_region
          %s7285 = sand.u32 %s205, 1
          %s7286 = scalar_lea.sflag [#allocation3], %s7285
          %s7287 = sand.u32 %s205, 1
          %s7288 = smul.addr %s7287, 16
          %s7289 = scalar_lea.vmem [#allocation5], %s7288
          %7291 = dma.done %s7286, 256
        $region75: #{navier_stokes_forward.1} parent=70 // pred_fallthru
          _
      $region71: #{navier_stokes_forward.1} parent=5 // pred_fallthru
        _
    $region6: #{navier_stokes_forward.1} parent=1 // loop_footer
      %s22 = sadd.s32 1, %s18
    $region7: #{navier_stokes_forward.1} parent=1 // loop_footer_branch
      %17 = sbr.rel target = $region3
    $region8: #{navier_stokes_forward.1} parent=1 // loop_exit
      _
    %7292 = vsyncpa [#allocation3], 1
    %s7293 = scalar_lea.sflag [#allocation3], 1
    %7294 = vsyncpa %s7293, 1
    %7295 = vsyncpa [#allocation4], 1
    %s7296 = scalar_lea.sflag [#allocation4], 1
    %7297 = vsyncpa %s7296, 1

</llo_original>
